<compile_context>
chip_gen: v7x
topology: tpu7x:2x2x1
jax: 0.10.0
libtpu: 0.0.40
codegen_flags: <defaults>
</compile_context>

<pallas_src>
import math

import jax
import jax.numpy as jnp
from jax.experimental import pallas as pl
from jax.experimental.pallas import tpu as pltpu


# ----------------------------- kernel helpers ------------------------------


def _zero_border(ref):
    """Zero the 1-pixel spatial border of a padded (Hp, Wp, C) VMEM scratch.

    Done every grid step (cost ~4*W*C stores, negligible vs the interior) so it
    is correct no matter how grid steps are sharded across cores; the interior
    store never touches the border.
    """
    Hp, Wp, C = ref.shape
    z_row = jnp.zeros((1, Wp, C), ref.dtype)
    z_col = jnp.zeros((Hp, 1, C), ref.dtype)
    ref[0:1, :, :] = z_row
    ref[Hp - 1:Hp, :, :] = z_row
    ref[:, 0:1, :] = z_col
    ref[:, Wp - 1:Wp, :] = z_col


def _conv3x3_acc(pad_ref, w_ref, H, W):
    """3x3 SAME conv as 9 accumulating matmuls on shifted tap views.

    pad_ref: padded (H+2, W+2, Cin) bf16 VMEM scratch (border already zero).
    w_ref:   (9, Cin, Cout) bf16 folded weights; tap t = dy*3 + dx (HWIO order).
    Returns an (H*W, Cout) f32 accumulator (no im2col patch materialization).
    """
    acc = None
    for t in range(9):
        dy, dx = t // 3, t % 3
        tap = pad_ref[dy:dy + H, dx:dx + W, :].reshape(H * W, -1)   # bf16 view load
        part = jnp.dot(tap, w_ref[t], preferred_element_type=jnp.float32)
        acc = part if acc is None else acc + part
    return acc


def _basic_block_kernel(x_ref, w1_ref, b1_ref, w2_ref, b2_ref, o_ref,
                        xpad_ref, mid_ref):
    """Fused: conv1 -> bn1 -> relu -> conv2 -> bn2 -> +residual -> relu."""
    _, H, W, Cin = x_ref.shape
    Cmid = b1_ref.shape[-1]

    # Keep the 1-pixel halo of both padded scratches zero.
    _zero_border(xpad_ref)
    _zero_border(mid_ref)

    # Stage x into the padded scratch: interior only, no concat padding.
    xpad_ref[1:H + 1, 1:W + 1, :] = x_ref[0]

    # conv1 (3x3, pad=1; BN1 scale folded into w1) + bias + ReLU.
    h = _conv3x3_acc(xpad_ref, w1_ref, H, W) + b1_ref[...]          # (H*W, Cmid) f32
    h = jnp.maximum(h, 0.0)
    # Intermediate never leaves VMEM: bf16 interior write into padded scratch.
    mid_ref[1:H + 1, 1:W + 1, :] = h.astype(jnp.bfloat16).reshape(H, W, Cmid)

    # conv2 (3x3, pad=1; BN2 scale folded into w2) + bias + residual + ReLU.
    out = _conv3x3_acc(mid_ref, w2_ref, H, W) + b2_ref[...]         # (H*W, Cout) f32
    out = out + x_ref[0].reshape(H * W, Cin)     # bf16 residual, widened per-vreg
    o_ref[0] = jnp.maximum(out, 0.0).astype(o_ref.dtype)            # bf16 store


# ------------------------------- wrapper ------------------------------------


def _fold_bn(gamma, beta, mean, var, eps=1e-5):
    scale = gamma / jnp.sqrt(var + eps)
    bias = beta - mean * scale
    return scale, bias


def basic_block_forward(x_nchw, params):
    """Equivalent of BasicBlock.forward (eval-mode BN, stride=1, downsample=None)."""
    N, Cin, H, W = x_nchw.shape
    w1, w2 = params["w1"], params["w2"]            # HWIO: (3, 3, cin, cout)
    Cmid, Cout = w1.shape[-1], w2.shape[-1]
    assert w1.shape == (3, 3, Cin, Cmid) and w2.shape == (3, 3, Cmid, Cout)
    assert Cout == Cin, "identity residual requires planes == inplanes"

    # Fold eval-mode BN scale into the conv weights; per-channel f32 bias only.
    s1, b1 = _fold_bn(**params["bn1"])
    s2, b2 = _fold_bn(**params["bn2"])
    w1f = (w1 * s1).reshape(9, Cin, Cmid).astype(jnp.bfloat16)   # (9, Cin, Cmid)
    w2f = (w2 * s2).reshape(9, Cmid, Cout).astype(jnp.bfloat16)  # (9, Cmid, Cout)
    b1 = b1.reshape(1, Cmid).astype(jnp.float32)
    b2 = b2.reshape(1, Cout).astype(jnp.float32)

    # NCHW -> NHWC, bf16 activations for the MXU (accumulation stays f32).
    x = jnp.transpose(x_nchw, (0, 2, 3, 1)).astype(jnp.bfloat16)

    # Constant operands: single-buffered (index map never changes).
    def _const_spec(block):
        return pl.BlockSpec(block, lambda n, _b=block: (0,) * len(_b),
                            pipeline_mode=pl.Buffered(1))

    out_flat = pl.pallas_call(
        _basic_block_kernel,
        out_shape=jax.ShapeDtypeStruct((N, H * W, Cout), jnp.bfloat16),
        grid_spec=pltpu.PrefetchScalarGridSpec(
            num_scalar_prefetch=0,
            grid=(N,),
            in_specs=[
                pl.BlockSpec((1, H, W, Cin), lambda n: (n, 0, 0, 0)),   # x
                _const_spec((9, Cin, Cmid)),                            # w1 (folded)
                _const_spec((1, Cmid)),                                 # b1
                _const_spec((9, Cmid, Cout)),                           # w2 (folded)
                _const_spec((1, Cout)),                                 # b2
            ],
            out_specs=pl.BlockSpec((1, H * W, Cout), lambda n: (n, 0, 0)),
            scratch_shapes=[
                pltpu.VMEM((H + 2, W + 2, Cin), jnp.bfloat16),    # padded x
                pltpu.VMEM((H + 2, W + 2, Cmid), jnp.bfloat16),   # padded conv1 act
            ],
        ),
        compiler_params=pltpu.CompilerParams(
            dimension_semantics=("parallel",),
            vmem_limit_bytes=64 * 1024 * 1024,
        ),
    )(x, w1f, b1, w2f, b2)

    # NHWC/bf16 is the natural output for chained blocks; convert back only for
    # interface parity with the NCHW PyTorch module.
    out = out_flat.reshape(N, H, W, Cout)
    return jnp.transpose(out, (0, 3, 1, 2)).astype(x_nchw.dtype)


# --------------------------- params & reference ------------------------------


def init_params(key, inplanes, planes):
    ks = jax.random.split(key, 10)
    fan1 = 9 * inplanes
    fan2 = 9 * planes
    w1 = jax.random.normal(ks[0], (3, 3, inplanes, planes), jnp.float32) / math.sqrt(fan1)
    w2 = jax.random.normal(ks[1], (3, 3, planes, planes), jnp.float32) / math.sqrt(fan2)
    bn1 = dict(
        gamma=1.0 + 0.1 * jax.random.normal(ks[2], (planes,), jnp.float32),
        beta=0.1 * jax.random.normal(ks[3], (planes,), jnp.float32),
        mean=0.1 * jax.random.normal(ks[4], (planes,), jnp.float32),
        var=0.5 + jnp.abs(jax.random.normal(ks[5], (planes,), jnp.float32)) * 0.5,
    )
    bn2 = dict(
        gamma=1.0 + 0.1 * jax.random.normal(ks[6], (planes,), jnp.float32),
        beta=0.1 * jax.random.normal(ks[7], (planes,), jnp.float32),
        mean=0.1 * jax.random.normal(ks[8], (planes,), jnp.float32),
        var=0.5 + jnp.abs(jax.random.normal(ks[9], (planes,), jnp.float32)) * 0.5,
    )
    return dict(w1=w1, bn1=bn1, w2=w2, bn2=bn2)


def _reference_forward(x_nchw, params):
    """Pure-JAX reference (lax.conv) matching the kernel's bf16/f32 numerics."""
    x = jnp.transpose(x_nchw, (0, 2, 3, 1)).astype(jnp.bfloat16)
    s1, b1 = _fold_bn(**params["bn1"])
    s2, b2 = _fold_bn(**params["bn2"])
    w1f = (params["w1"] * s1).astype(jnp.bfloat16)
    w2f = (params["w2"] * s2).astype(jnp.bfloat16)
    dn = ("NHWC", "HWIO", "NHWC")

    def conv(inp, w):
        return jax.lax.conv_general_dilated(
            inp, w, window_strides=(1, 1), padding="SAME",
            dimension_numbers=dn, preferred_element_type=jnp.float32)

    h = jnp.maximum(conv(x, w1f) + b1, 0.0).astype(jnp.bfloat16)
    out = jnp.maximum(conv(h, w2f) + b2 + x.astype(jnp.float32), 0.0)
    out = out.astype(jnp.bfloat16).astype(jnp.float32)   # kernel emits bf16
    return jnp.transpose(out, (0, 3, 1, 2))


if __name__ == "__main__":
    key = jax.random.PRNGKey(0)
    kx, kp = jax.random.split(key)

    N, C, H, W = 2, 4, 16, 16  # inplanes = planes = 4
    x = jax.random.normal(kx, (N, C, H, W), jnp.float32)
    params = init_params(kp, inplanes=C, planes=C)

    fwd = jax.jit(basic_block_forward)
    out = jax.block_until_ready(fwd(x, params))

    ref = jax.block_until_ready(_reference_forward(x, params))
    assert out.shape == (N, C, H, W)
    max_err = float(jnp.max(jnp.abs(out - ref)))
    # bf16 MXU inputs, bf16 intermediate/output, f32 accumulation: compare
    # against an identically quantized reference; tolerance covers
    # accumulation-order differences.
    assert jnp.allclose(out, ref, atol=2e-2, rtol=2e-2), max_err

    print("KERNEL_OK")
</pallas_src>

<mosaic_0001>
module attributes {stable_mosaic.version = 11 : i64} {
  func.func @_basic_block_kernel(%arg0: i32, %arg1: memref<1x16x16x4xbf16, #tpu.memory_space<vmem>>, %arg2: memref<9x4x4xbf16, #tpu.memory_space<vmem>>, %arg3: memref<1x4xf32, #tpu.memory_space<vmem>>, %arg4: memref<9x4x4xbf16, #tpu.memory_space<vmem>>, %arg5: memref<1x4xf32, #tpu.memory_space<vmem>>, %arg6: memref<1x256x4xbf16, #tpu.memory_space<vmem>>, %arg7: memref<18x18x4xbf16, #tpu.memory_space<vmem>>, %arg8: memref<18x18x4xbf16, #tpu.memory_space<vmem>>) attributes {dimension_semantics = [#tpu.dimension_semantics<parallel>], iteration_bounds = array<i64: 2>, scalar_prefetch = 0 : i64, scratch_operands = 2 : i64, tpu.core_type = #tpu.core_type<tc>, window_params = [{transform_indices = @transform_0, window_bounds = array<i64: 1, 16, 16, 4>}, {pipeline_mode = #tpu.pipeline_mode<synchronous>, transform_indices = @transform_1, window_bounds = array<i64: 9, 4, 4>}, {pipeline_mode = #tpu.pipeline_mode<synchronous>, transform_indices = @transform_2, window_bounds = array<i64: 1, 4>}, {pipeline_mode = #tpu.pipeline_mode<synchronous>, transform_indices = @transform_3, window_bounds = array<i64: 9, 4, 4>}, {pipeline_mode = #tpu.pipeline_mode<synchronous>, transform_indices = @transform_4, window_bounds = array<i64: 1, 4>}, {transform_indices = @transform_5, window_bounds = array<i64: 1, 256, 4>}]} {
    %cst = arith.constant 0.000000e+00 : bf16
    %0 = vector.broadcast %cst : bf16 to vector<1x18x4xbf16>
    %cst_0 = arith.constant 0.000000e+00 : bf16
    %1 = vector.broadcast %cst_0 : bf16 to vector<18x1x4xbf16>
    %c0 = arith.constant 0 : index
    %c0_1 = arith.constant 0 : index
    %c0_2 = arith.constant 0 : index
    %2 = vector.load %arg7[%c0, %c0_1, %c0_2] : memref<18x18x4xbf16, #tpu.memory_space<vmem>>, vector<1x18x4xbf16>
    tpu.vector_store %arg7[%c0, %c0_1, %c0_2], %0 {strides = array<i32>} : memref<18x18x4xbf16, #tpu.memory_space<vmem>>, vector<1x18x4xbf16>,
    %c17 = arith.constant 17 : index
    %c0_3 = arith.constant 0 : index
    %c0_4 = arith.constant 0 : index
    %3 = vector.load %arg7[%c17, %c0_3, %c0_4] : memref<18x18x4xbf16, #tpu.memory_space<vmem>>, vector<1x18x4xbf16>
    tpu.vector_store %arg7[%c17, %c0_3, %c0_4], %0 {strides = array<i32>} : memref<18x18x4xbf16, #tpu.memory_space<vmem>>, vector<1x18x4xbf16>,
    %c0_5 = arith.constant 0 : index
    %c0_6 = arith.constant 0 : index
    %c0_7 = arith.constant 0 : index
    %4 = vector.load %arg7[%c0_5, %c0_6, %c0_7] : memref<18x18x4xbf16, #tpu.memory_space<vmem>>, vector<18x1x4xbf16>
    tpu.vector_store %arg7[%c0_5, %c0_6, %c0_7], %1 {strides = array<i32>} : memref<18x18x4xbf16, #tpu.memory_space<vmem>>, vector<18x1x4xbf16>,
    %c0_8 = arith.constant 0 : index
    %c17_9 = arith.constant 17 : index
    %c0_10 = arith.constant 0 : index
    %5 = vector.load %arg7[%c0_8, %c17_9, %c0_10] : memref<18x18x4xbf16, #tpu.memory_space<vmem>>, vector<18x1x4xbf16>
    tpu.vector_store %arg7[%c0_8, %c17_9, %c0_10], %1 {strides = array<i32>} : memref<18x18x4xbf16, #tpu.memory_space<vmem>>, vector<18x1x4xbf16>,
    %cst_11 = arith.constant 0.000000e+00 : bf16
    %6 = vector.broadcast %cst_11 : bf16 to vector<1x18x4xbf16>
    %cst_12 = arith.constant 0.000000e+00 : bf16
    %7 = vector.broadcast %cst_12 : bf16 to vector<18x1x4xbf16>
    %c0_13 = arith.constant 0 : index
    %c0_14 = arith.constant 0 : index
    %c0_15 = arith.constant 0 : index
    %8 = vector.load %arg8[%c0_13, %c0_14, %c0_15] : memref<18x18x4xbf16, #tpu.memory_space<vmem>>, vector<1x18x4xbf16>
    tpu.vector_store %arg8[%c0_13, %c0_14, %c0_15], %6 {strides = array<i32>} : memref<18x18x4xbf16, #tpu.memory_space<vmem>>, vector<1x18x4xbf16>,
    %c17_16 = arith.constant 17 : index
    %c0_17 = arith.constant 0 : index
    %c0_18 = arith.constant 0 : index
    %9 = vector.load %arg8[%c17_16, %c0_17, %c0_18] : memref<18x18x4xbf16, #tpu.memory_space<vmem>>, vector<1x18x4xbf16>
    tpu.vector_store %arg8[%c17_16, %c0_17, %c0_18], %6 {strides = array<i32>} : memref<18x18x4xbf16, #tpu.memory_space<vmem>>, vector<1x18x4xbf16>,
    %c0_19 = arith.constant 0 : index
    %c0_20 = arith.constant 0 : index
    %c0_21 = arith.constant 0 : index
    %10 = vector.load %arg8[%c0_19, %c0_20, %c0_21] : memref<18x18x4xbf16, #tpu.memory_space<vmem>>, vector<18x1x4xbf16>
    tpu.vector_store %arg8[%c0_19, %c0_20, %c0_21], %7 {strides = array<i32>} : memref<18x18x4xbf16, #tpu.memory_space<vmem>>, vector<18x1x4xbf16>,
    %c0_22 = arith.constant 0 : index
    %c17_23 = arith.constant 17 : index
    %c0_24 = arith.constant 0 : index
    %11 = vector.load %arg8[%c0_22, %c17_23, %c0_24] : memref<18x18x4xbf16, #tpu.memory_space<vmem>>, vector<18x1x4xbf16>
    tpu.vector_store %arg8[%c0_22, %c17_23, %c0_24], %7 {strides = array<i32>} : memref<18x18x4xbf16, #tpu.memory_space<vmem>>, vector<18x1x4xbf16>,
    %c0_25 = arith.constant 0 : index
    %c0_26 = arith.constant 0 : index
    %c0_27 = arith.constant 0 : index
    %c0_28 = arith.constant 0 : index
    %12 = vector.load %arg1[%c0_25, %c0_26, %c0_27, %c0_28] : memref<1x16x16x4xbf16, #tpu.memory_space<vmem>>, vector<1x16x16x4xbf16>
    %13 = vector.shape_cast %12 : vector<1x16x16x4xbf16> to vector<16x16x4xbf16>
    %c1 = arith.constant 1 : index
    %c1_29 = arith.constant 1 : index
    %c0_30 = arith.constant 0 : index
    %14 = vector.load %arg7[%c1, %c1_29, %c0_30] : memref<18x18x4xbf16, #tpu.memory_space<vmem>>, vector<16x16x4xbf16>
    tpu.vector_store %arg7[%c1, %c1_29, %c0_30], %13 {strides = array<i32>} : memref<18x18x4xbf16, #tpu.memory_space<vmem>>, vector<16x16x4xbf16>,
    %c0_31 = arith.constant 0 : index
    %c0_32 = arith.constant 0 : index
    %c0_33 = arith.constant 0 : index
    %15 = vector.load %arg7[%c0_31, %c0_32, %c0_33] : memref<18x18x4xbf16, #tpu.memory_space<vmem>>, vector<16x16x4xbf16>
    %16 = vector.shape_cast %15 : vector<16x16x4xbf16> to vector<256x4xbf16>
    %c0_34 = arith.constant 0 : index
    %c0_35 = arith.constant 0 : index
    %c0_36 = arith.constant 0 : index
    %17 = vector.load %arg2[%c0_34, %c0_35, %c0_36] : memref<9x4x4xbf16, #tpu.memory_space<vmem>>, vector<1x4x4xbf16>
    %18 = vector.shape_cast %17 : vector<1x4x4xbf16> to vector<4x4xbf16>
    %cst_37 = arith.constant dense<0.000000e+00> : vector<256x4xf32>
    %19 = tpu.matmul %16, %18, %cst_37 {dimension_numbers = #tpu.dot_dimension_numbers<[1], [0], [0], [1], [0, 0, 1, 1], [], []>} : vector<256x4xbf16>, vector<4x4xbf16>, vector<256x4xf32> -> vector<256x4xf32>
    %c0_38 = arith.constant 0 : index
    %c1_39 = arith.constant 1 : index
    %c0_40 = arith.constant 0 : index
    %20 = vector.load %arg7[%c0_38, %c1_39, %c0_40] : memref<18x18x4xbf16, #tpu.memory_space<vmem>>, vector<16x16x4xbf16>
    %21 = vector.shape_cast %20 : vector<16x16x4xbf16> to vector<256x4xbf16>
    %c1_41 = arith.constant 1 : index
    %c0_42 = arith.constant 0 : index
    %c0_43 = arith.constant 0 : index
    %22 = vector.load %arg2[%c1_41, %c0_42, %c0_43] : memref<9x4x4xbf16, #tpu.memory_space<vmem>>, vector<1x4x4xbf16>
    %23 = vector.shape_cast %22 : vector<1x4x4xbf16> to vector<4x4xbf16>
    %cst_44 = arith.constant dense<0.000000e+00> : vector<256x4xf32>
    %24 = tpu.matmul %21, %23, %cst_44 {dimension_numbers = #tpu.dot_dimension_numbers<[1], [0], [0], [1], [0, 0, 1, 1], [], []>} : vector<256x4xbf16>, vector<4x4xbf16>, vector<256x4xf32> -> vector<256x4xf32>
    %25 = arith.addf %19, %24 : vector<256x4xf32>
    %c0_45 = arith.constant 0 : index
    %c2 = arith.constant 2 : index
    %c0_46 = arith.constant 0 : index
    %26 = vector.load %arg7[%c0_45, %c2, %c0_46] : memref<18x18x4xbf16, #tpu.memory_space<vmem>>, vector<16x16x4xbf16>
    %27 = vector.shape_cast %26 : vector<16x16x4xbf16> to vector<256x4xbf16>
    %c2_47 = arith.constant 2 : index
    %c0_48 = arith.constant 0 : index
    %c0_49 = arith.constant 0 : index
    %28 = vector.load %arg2[%c2_47, %c0_48, %c0_49] : memref<9x4x4xbf16, #tpu.memory_space<vmem>>, vector<1x4x4xbf16>
    %29 = vector.shape_cast %28 : vector<1x4x4xbf16> to vector<4x4xbf16>
    %cst_50 = arith.constant dense<0.000000e+00> : vector<256x4xf32>
    %30 = tpu.matmul %27, %29, %cst_50 {dimension_numbers = #tpu.dot_dimension_numbers<[1], [0], [0], [1], [0, 0, 1, 1], [], []>} : vector<256x4xbf16>, vector<4x4xbf16>, vector<256x4xf32> -> vector<256x4xf32>
    %31 = arith.addf %25, %30 : vector<256x4xf32>
    %c1_51 = arith.constant 1 : index
    %c0_52 = arith.constant 0 : index
    %c0_53 = arith.constant 0 : index
    %32 = vector.load %arg7[%c1_51, %c0_52, %c0_53] : memref<18x18x4xbf16, #tpu.memory_space<vmem>>, vector<16x16x4xbf16>
    %33 = vector.shape_cast %32 : vector<16x16x4xbf16> to vector<256x4xbf16>
    %c3 = arith.constant 3 : index
    %c0_54 = arith.constant 0 : index
    %c0_55 = arith.constant 0 : index
    %34 = vector.load %arg2[%c3, %c0_54, %c0_55] : memref<9x4x4xbf16, #tpu.memory_space<vmem>>, vector<1x4x4xbf16>
    %35 = vector.shape_cast %34 : vector<1x4x4xbf16> to vector<4x4xbf16>
    %cst_56 = arith.constant dense<0.000000e+00> : vector<256x4xf32>
    %36 = tpu.matmul %33, %35, %cst_56 {dimension_numbers = #tpu.dot_dimension_numbers<[1], [0], [0], [1], [0, 0, 1, 1], [], []>} : vector<256x4xbf16>, vector<4x4xbf16>, vector<256x4xf32> -> vector<256x4xf32>
    %37 = arith.addf %31, %36 : vector<256x4xf32>
    %c1_57 = arith.constant 1 : index
    %c1_58 = arith.constant 1 : index
    %c0_59 = arith.constant 0 : index
    %38 = vector.load %arg7[%c1_57, %c1_58, %c0_59] : memref<18x18x4xbf16, #tpu.memory_space<vmem>>, vector<16x16x4xbf16>
    %39 = vector.shape_cast %38 : vector<16x16x4xbf16> to vector<256x4xbf16>
    %c4 = arith.constant 4 : index
    %c0_60 = arith.constant 0 : index
    %c0_61 = arith.constant 0 : index
    %40 = vector.load %arg2[%c4, %c0_60, %c0_61] : memref<9x4x4xbf16, #tpu.memory_space<vmem>>, vector<1x4x4xbf16>
    %41 = vector.shape_cast %40 : vector<1x4x4xbf16> to vector<4x4xbf16>
    %cst_62 = arith.constant dense<0.000000e+00> : vector<256x4xf32>
    %42 = tpu.matmul %39, %41, %cst_62 {dimension_numbers = #tpu.dot_dimension_numbers<[1], [0], [0], [1], [0, 0, 1, 1], [], []>} : vector<256x4xbf16>, vector<4x4xbf16>, vector<256x4xf32> -> vector<256x4xf32>
    %43 = arith.addf %37, %42 : vector<256x4xf32>
    %c1_63 = arith.constant 1 : index
    %c2_64 = arith.constant 2 : index
    %c0_65 = arith.constant 0 : index
    %44 = vector.load %arg7[%c1_63, %c2_64, %c0_65] : memref<18x18x4xbf16, #tpu.memory_space<vmem>>, vector<16x16x4xbf16>
    %45 = vector.shape_cast %44 : vector<16x16x4xbf16> to vector<256x4xbf16>
    %c5 = arith.constant 5 : index
    %c0_66 = arith.constant 0 : index
    %c0_67 = arith.constant 0 : index
    %46 = vector.load %arg2[%c5, %c0_66, %c0_67] : memref<9x4x4xbf16, #tpu.memory_space<vmem>>, vector<1x4x4xbf16>
    %47 = vector.shape_cast %46 : vector<1x4x4xbf16> to vector<4x4xbf16>
    %cst_68 = arith.constant dense<0.000000e+00> : vector<256x4xf32>
    %48 = tpu.matmul %45, %47, %cst_68 {dimension_numbers = #tpu.dot_dimension_numbers<[1], [0], [0], [1], [0, 0, 1, 1], [], []>} : vector<256x4xbf16>, vector<4x4xbf16>, vector<256x4xf32> -> vector<256x4xf32>
    %49 = arith.addf %43, %48 : vector<256x4xf32>
    %c2_69 = arith.constant 2 : index
    %c0_70 = arith.constant 0 : index
    %c0_71 = arith.constant 0 : index
    %50 = vector.load %arg7[%c2_69, %c0_70, %c0_71] : memref<18x18x4xbf16, #tpu.memory_space<vmem>>, vector<16x16x4xbf16>
    %51 = vector.shape_cast %50 : vector<16x16x4xbf16> to vector<256x4xbf16>
    %c6 = arith.constant 6 : index
    %c0_72 = arith.constant 0 : index
    %c0_73 = arith.constant 0 : index
    %52 = vector.load %arg2[%c6, %c0_72, %c0_73] : memref<9x4x4xbf16, #tpu.memory_space<vmem>>, vector<1x4x4xbf16>
    %53 = vector.shape_cast %52 : vector<1x4x4xbf16> to vector<4x4xbf16>
    %cst_74 = arith.constant dense<0.000000e+00> : vector<256x4xf32>
    %54 = tpu.matmul %51, %53, %cst_74 {dimension_numbers = #tpu.dot_dimension_numbers<[1], [0], [0], [1], [0, 0, 1, 1], [], []>} : vector<256x4xbf16>, vector<4x4xbf16>, vector<256x4xf32> -> vector<256x4xf32>
    %55 = arith.addf %49, %54 : vector<256x4xf32>
    %c2_75 = arith.constant 2 : index
    %c1_76 = arith.constant 1 : index
    %c0_77 = arith.constant 0 : index
    %56 = vector.load %arg7[%c2_75, %c1_76, %c0_77] : memref<18x18x4xbf16, #tpu.memory_space<vmem>>, vector<16x16x4xbf16>
    %57 = vector.shape_cast %56 : vector<16x16x4xbf16> to vector<256x4xbf16>
    %c7 = arith.constant 7 : index
    %c0_78 = arith.constant 0 : index
    %c0_79 = arith.constant 0 : index
    %58 = vector.load %arg2[%c7, %c0_78, %c0_79] : memref<9x4x4xbf16, #tpu.memory_space<vmem>>, vector<1x4x4xbf16>
    %59 = vector.shape_cast %58 : vector<1x4x4xbf16> to vector<4x4xbf16>
    %cst_80 = arith.constant dense<0.000000e+00> : vector<256x4xf32>
    %60 = tpu.matmul %57, %59, %cst_80 {dimension_numbers = #tpu.dot_dimension_numbers<[1], [0], [0], [1], [0, 0, 1, 1], [], []>} : vector<256x4xbf16>, vector<4x4xbf16>, vector<256x4xf32> -> vector<256x4xf32>
    %61 = arith.addf %55, %60 : vector<256x4xf32>
    %c2_81 = arith.constant 2 : index
    %c2_82 = arith.constant 2 : index
    %c0_83 = arith.constant 0 : index
    %62 = vector.load %arg7[%c2_81, %c2_82, %c0_83] : memref<18x18x4xbf16, #tpu.memory_space<vmem>>, vector<16x16x4xbf16>
    %63 = vector.shape_cast %62 : vector<16x16x4xbf16> to vector<256x4xbf16>
    %c8 = arith.constant 8 : index
    %c0_84 = arith.constant 0 : index
    %c0_85 = arith.constant 0 : index
    %64 = vector.load %arg2[%c8, %c0_84, %c0_85] : memref<9x4x4xbf16, #tpu.memory_space<vmem>>, vector<1x4x4xbf16>
    %65 = vector.shape_cast %64 : vector<1x4x4xbf16> to vector<4x4xbf16>
    %cst_86 = arith.constant dense<0.000000e+00> : vector<256x4xf32>
    %66 = tpu.matmul %63, %65, %cst_86 {dimension_numbers = #tpu.dot_dimension_numbers<[1], [0], [0], [1], [0, 0, 1, 1], [], []>} : vector<256x4xbf16>, vector<4x4xbf16>, vector<256x4xf32> -> vector<256x4xf32>
    %67 = arith.addf %61, %66 : vector<256x4xf32>
    %c0_87 = arith.constant 0 : index
    %c0_88 = arith.constant 0 : index
    %68 = vector.load %arg3[%c0_87, %c0_88] : memref<1x4xf32, #tpu.memory_space<vmem>>, vector<1x4xf32>
    %69 = vector.broadcast %68 : vector<1x4xf32> to vector<256x4xf32>
    %70 = arith.addf %67, %69 : vector<256x4xf32>
    %cst_89 = arith.constant 0.000000e+00 : f32
    %71 = vector.broadcast %cst_89 : f32 to vector<256x4xf32>
    %72 = arith.maximumf %70, %71 : vector<256x4xf32>
    %73 = arith.truncf %72 : vector<256x4xf32> to vector<256x4xbf16>
    %74 = vector.shape_cast %73 : vector<256x4xbf16> to vector<16x16x4xbf16>
    %c1_90 = arith.constant 1 : index
    %c1_91 = arith.constant 1 : index
    %c0_92 = arith.constant 0 : index
    %75 = vector.load %arg8[%c1_90, %c1_91, %c0_92] : memref<18x18x4xbf16, #tpu.memory_space<vmem>>, vector<16x16x4xbf16>
    tpu.vector_store %arg8[%c1_90, %c1_91, %c0_92], %74 {strides = array<i32>} : memref<18x18x4xbf16, #tpu.memory_space<vmem>>, vector<16x16x4xbf16>,
    %c0_93 = arith.constant 0 : index
    %c0_94 = arith.constant 0 : index
    %c0_95 = arith.constant 0 : index
    %76 = vector.load %arg8[%c0_93, %c0_94, %c0_95] : memref<18x18x4xbf16, #tpu.memory_space<vmem>>, vector<16x16x4xbf16>
    %77 = vector.shape_cast %76 : vector<16x16x4xbf16> to vector<256x4xbf16>
    %c0_96 = arith.constant 0 : index
    %c0_97 = arith.constant 0 : index
    %c0_98 = arith.constant 0 : index
    %78 = vector.load %arg4[%c0_96, %c0_97, %c0_98] : memref<9x4x4xbf16, #tpu.memory_space<vmem>>, vector<1x4x4xbf16>
    %79 = vector.shape_cast %78 : vector<1x4x4xbf16> to vector<4x4xbf16>
    %cst_99 = arith.constant dense<0.000000e+00> : vector<256x4xf32>
    %80 = tpu.matmul %77, %79, %cst_99 {dimension_numbers = #tpu.dot_dimension_numbers<[1], [0], [0], [1], [0, 0, 1, 1], [], []>} : vector<256x4xbf16>, vector<4x4xbf16>, vector<256x4xf32> -> vector<256x4xf32>
    %c0_100 = arith.constant 0 : index
    %c1_101 = arith.constant 1 : index
    %c0_102 = arith.constant 0 : index
    %81 = vector.load %arg8[%c0_100, %c1_101, %c0_102] : memref<18x18x4xbf16, #tpu.memory_space<vmem>>, vector<16x16x4xbf16>
    %82 = vector.shape_cast %81 : vector<16x16x4xbf16> to vector<256x4xbf16>
    %c1_103 = arith.constant 1 : index
    %c0_104 = arith.constant 0 : index
    %c0_105 = arith.constant 0 : index
    %83 = vector.load %arg4[%c1_103, %c0_104, %c0_105] : memref<9x4x4xbf16, #tpu.memory_space<vmem>>, vector<1x4x4xbf16>
    %84 = vector.shape_cast %83 : vector<1x4x4xbf16> to vector<4x4xbf16>
    %cst_106 = arith.constant dense<0.000000e+00> : vector<256x4xf32>
    %85 = tpu.matmul %82, %84, %cst_106 {dimension_numbers = #tpu.dot_dimension_numbers<[1], [0], [0], [1], [0, 0, 1, 1], [], []>} : vector<256x4xbf16>, vector<4x4xbf16>, vector<256x4xf32> -> vector<256x4xf32>
    %86 = arith.addf %80, %85 : vector<256x4xf32>
    %c0_107 = arith.constant 0 : index
    %c2_108 = arith.constant 2 : index
    %c0_109 = arith.constant 0 : index
    %87 = vector.load %arg8[%c0_107, %c2_108, %c0_109] : memref<18x18x4xbf16, #tpu.memory_space<vmem>>, vector<16x16x4xbf16>
    %88 = vector.shape_cast %87 : vector<16x16x4xbf16> to vector<256x4xbf16>
    %c2_110 = arith.constant 2 : index
    %c0_111 = arith.constant 0 : index
    %c0_112 = arith.constant 0 : index
    %89 = vector.load %arg4[%c2_110, %c0_111, %c0_112] : memref<9x4x4xbf16, #tpu.memory_space<vmem>>, vector<1x4x4xbf16>
    %90 = vector.shape_cast %89 : vector<1x4x4xbf16> to vector<4x4xbf16>
    %cst_113 = arith.constant dense<0.000000e+00> : vector<256x4xf32>
    %91 = tpu.matmul %88, %90, %cst_113 {dimension_numbers = #tpu.dot_dimension_numbers<[1], [0], [0], [1], [0, 0, 1, 1], [], []>} : vector<256x4xbf16>, vector<4x4xbf16>, vector<256x4xf32> -> vector<256x4xf32>
    %92 = arith.addf %86, %91 : vector<256x4xf32>
    %c1_114 = arith.constant 1 : index
    %c0_115 = arith.constant 0 : index
    %c0_116 = arith.constant 0 : index
    %93 = vector.load %arg8[%c1_114, %c0_115, %c0_116] : memref<18x18x4xbf16, #tpu.memory_space<vmem>>, vector<16x16x4xbf16>
    %94 = vector.shape_cast %93 : vector<16x16x4xbf16> to vector<256x4xbf16>
    %c3_117 = arith.constant 3 : index
    %c0_118 = arith.constant 0 : index
    %c0_119 = arith.constant 0 : index
    %95 = vector.load %arg4[%c3_117, %c0_118, %c0_119] : memref<9x4x4xbf16, #tpu.memory_space<vmem>>, vector<1x4x4xbf16>
    %96 = vector.shape_cast %95 : vector<1x4x4xbf16> to vector<4x4xbf16>
    %cst_120 = arith.constant dense<0.000000e+00> : vector<256x4xf32>
    %97 = tpu.matmul %94, %96, %cst_120 {dimension_numbers = #tpu.dot_dimension_numbers<[1], [0], [0], [1], [0, 0, 1, 1], [], []>} : vector<256x4xbf16>, vector<4x4xbf16>, vector<256x4xf32> -> vector<256x4xf32>
    %98 = arith.addf %92, %97 : vector<256x4xf32>
    %c1_121 = arith.constant 1 : index
    %c1_122 = arith.constant 1 : index
    %c0_123 = arith.constant 0 : index
    %99 = vector.load %arg8[%c1_121, %c1_122, %c0_123] : memref<18x18x4xbf16, #tpu.memory_space<vmem>>, vector<16x16x4xbf16>
    %100 = vector.shape_cast %99 : vector<16x16x4xbf16> to vector<256x4xbf16>
    %c4_124 = arith.constant 4 : index
    %c0_125 = arith.constant 0 : index
    %c0_126 = arith.constant 0 : index
    %101 = vector.load %arg4[%c4_124, %c0_125, %c0_126] : memref<9x4x4xbf16, #tpu.memory_space<vmem>>, vector<1x4x4xbf16>
    %102 = vector.shape_cast %101 : vector<1x4x4xbf16> to vector<4x4xbf16>
    %cst_127 = arith.constant dense<0.000000e+00> : vector<256x4xf32>
    %103 = tpu.matmul %100, %102, %cst_127 {dimension_numbers = #tpu.dot_dimension_numbers<[1], [0], [0], [1], [0, 0, 1, 1], [], []>} : vector<256x4xbf16>, vector<4x4xbf16>, vector<256x4xf32> -> vector<256x4xf32>
    %104 = arith.addf %98, %103 : vector<256x4xf32>
    %c1_128 = arith.constant 1 : index
    %c2_129 = arith.constant 2 : index
    %c0_130 = arith.constant 0 : index
    %105 = vector.load %arg8[%c1_128, %c2_129, %c0_130] : memref<18x18x4xbf16, #tpu.memory_space<vmem>>, vector<16x16x4xbf16>
    %106 = vector.shape_cast %105 : vector<16x16x4xbf16> to vector<256x4xbf16>
    %c5_131 = arith.constant 5 : index
    %c0_132 = arith.constant 0 : index
    %c0_133 = arith.constant 0 : index
    %107 = vector.load %arg4[%c5_131, %c0_132, %c0_133] : memref<9x4x4xbf16, #tpu.memory_space<vmem>>, vector<1x4x4xbf16>
    %108 = vector.shape_cast %107 : vector<1x4x4xbf16> to vector<4x4xbf16>
    %cst_134 = arith.constant dense<0.000000e+00> : vector<256x4xf32>
    %109 = tpu.matmul %106, %108, %cst_134 {dimension_numbers = #tpu.dot_dimension_numbers<[1], [0], [0], [1], [0, 0, 1, 1], [], []>} : vector<256x4xbf16>, vector<4x4xbf16>, vector<256x4xf32> -> vector<256x4xf32>
    %110 = arith.addf %104, %109 : vector<256x4xf32>
    %c2_135 = arith.constant 2 : index
    %c0_136 = arith.constant 0 : index
    %c0_137 = arith.constant 0 : index
    %111 = vector.load %arg8[%c2_135, %c0_136, %c0_137] : memref<18x18x4xbf16, #tpu.memory_space<vmem>>, vector<16x16x4xbf16>
    %112 = vector.shape_cast %111 : vector<16x16x4xbf16> to vector<256x4xbf16>
    %c6_138 = arith.constant 6 : index
    %c0_139 = arith.constant 0 : index
    %c0_140 = arith.constant 0 : index
    %113 = vector.load %arg4[%c6_138, %c0_139, %c0_140] : memref<9x4x4xbf16, #tpu.memory_space<vmem>>, vector<1x4x4xbf16>
    %114 = vector.shape_cast %113 : vector<1x4x4xbf16> to vector<4x4xbf16>
    %cst_141 = arith.constant dense<0.000000e+00> : vector<256x4xf32>
    %115 = tpu.matmul %112, %114, %cst_141 {dimension_numbers = #tpu.dot_dimension_numbers<[1], [0], [0], [1], [0, 0, 1, 1], [], []>} : vector<256x4xbf16>, vector<4x4xbf16>, vector<256x4xf32> -> vector<256x4xf32>
    %116 = arith.addf %110, %115 : vector<256x4xf32>
    %c2_142 = arith.constant 2 : index
    %c1_143 = arith.constant 1 : index
    %c0_144 = arith.constant 0 : index
    %117 = vector.load %arg8[%c2_142, %c1_143, %c0_144] : memref<18x18x4xbf16, #tpu.memory_space<vmem>>, vector<16x16x4xbf16>
    %118 = vector.shape_cast %117 : vector<16x16x4xbf16> to vector<256x4xbf16>
    %c7_145 = arith.constant 7 : index
    %c0_146 = arith.constant 0 : index
    %c0_147 = arith.constant 0 : index
    %119 = vector.load %arg4[%c7_145, %c0_146, %c0_147] : memref<9x4x4xbf16, #tpu.memory_space<vmem>>, vector<1x4x4xbf16>
    %120 = vector.shape_cast %119 : vector<1x4x4xbf16> to vector<4x4xbf16>
    %cst_148 = arith.constant dense<0.000000e+00> : vector<256x4xf32>
    %121 = tpu.matmul %118, %120, %cst_148 {dimension_numbers = #tpu.dot_dimension_numbers<[1], [0], [0], [1], [0, 0, 1, 1], [], []>} : vector<256x4xbf16>, vector<4x4xbf16>, vector<256x4xf32> -> vector<256x4xf32>
    %122 = arith.addf %116, %121 : vector<256x4xf32>
    %c2_149 = arith.constant 2 : index
    %c2_150 = arith.constant 2 : index
    %c0_151 = arith.constant 0 : index
    %123 = vector.load %arg8[%c2_149, %c2_150, %c0_151] : memref<18x18x4xbf16, #tpu.memory_space<vmem>>, vector<16x16x4xbf16>
    %124 = vector.shape_cast %123 : vector<16x16x4xbf16> to vector<256x4xbf16>
    %c8_152 = arith.constant 8 : index
    %c0_153 = arith.constant 0 : index
    %c0_154 = arith.constant 0 : index
    %125 = vector.load %arg4[%c8_152, %c0_153, %c0_154] : memref<9x4x4xbf16, #tpu.memory_space<vmem>>, vector<1x4x4xbf16>
    %126 = vector.shape_cast %125 : vector<1x4x4xbf16> to vector<4x4xbf16>
    %cst_155 = arith.constant dense<0.000000e+00> : vector<256x4xf32>
    %127 = tpu.matmul %124, %126, %cst_155 {dimension_numbers = #tpu.dot_dimension_numbers<[1], [0], [0], [1], [0, 0, 1, 1], [], []>} : vector<256x4xbf16>, vector<4x4xbf16>, vector<256x4xf32> -> vector<256x4xf32>
    %128 = arith.addf %122, %127 : vector<256x4xf32>
    %c0_156 = arith.constant 0 : index
    %c0_157 = arith.constant 0 : index
    %129 = vector.load %arg5[%c0_156, %c0_157] : memref<1x4xf32, #tpu.memory_space<vmem>>, vector<1x4xf32>
    %130 = vector.broadcast %129 : vector<1x4xf32> to vector<256x4xf32>
    %131 = arith.addf %128, %130 : vector<256x4xf32>
    %c0_158 = arith.constant 0 : index
    %c0_159 = arith.constant 0 : index
    %c0_160 = arith.constant 0 : index
    %c0_161 = arith.constant 0 : index
    %132 = vector.load %arg1[%c0_158, %c0_159, %c0_160, %c0_161] : memref<1x16x16x4xbf16, #tpu.memory_space<vmem>>, vector<1x16x16x4xbf16>
    %133 = vector.shape_cast %132 : vector<1x16x16x4xbf16> to vector<16x16x4xbf16>
    %134 = vector.shape_cast %133 : vector<16x16x4xbf16> to vector<256x4xbf16>
    %135 = arith.extf %134 : vector<256x4xbf16> to vector<256x4xf32>
    %136 = arith.addf %131, %135 : vector<256x4xf32>
    %cst_162 = arith.constant 0.000000e+00 : f32
    %137 = vector.broadcast %cst_162 : f32 to vector<256x4xf32>
    %138 = arith.maximumf %136, %137 : vector<256x4xf32>
    %139 = arith.truncf %138 : vector<256x4xf32> to vector<256x4xbf16>
    %c0_163 = arith.constant 0 : index
    %c0_164 = arith.constant 0 : index
    %c0_165 = arith.constant 0 : index
    %140 = vector.load %arg6[%c0_163, %c0_164, %c0_165] : memref<1x256x4xbf16, #tpu.memory_space<vmem>>, vector<1x256x4xbf16>
    %141 = vector.shape_cast %140 : vector<1x256x4xbf16> to vector<256x4xbf16>
    %142 = vector.shape_cast %139 : vector<256x4xbf16> to vector<1x256x4xbf16>
    tpu.vector_store %arg6[%c0_163, %c0_164, %c0_165], %142 {strides = array<i32>} : memref<1x256x4xbf16, #tpu.memory_space<vmem>>, vector<1x256x4xbf16>,
    return
  }
  func.func @transform_0(%arg0: i32) -> (i32, i32, i32, i32) {
    %c0_i32 = arith.constant 0 : i32
    %c0_i32_0 = arith.constant 0 : i32
    %c0_i32_1 = arith.constant 0 : i32
    %c0_i32_2 = arith.constant 0 : i32
    return %arg0, %c0_i32, %c0_i32_0, %c0_i32_1 : i32, i32, i32, i32
  }
  func.func @transform_1(%arg0: i32) -> (i32, i32, i32) {
    %c0_i32 = arith.constant 0 : i32
    %c0_i32_0 = arith.constant 0 : i32
    %c0_i32_1 = arith.constant 0 : i32
    %c0_i32_2 = arith.constant 0 : i32
    return %c0_i32, %c0_i32_0, %c0_i32_1 : i32, i32, i32
  }
  func.func @transform_2(%arg0: i32) -> (i32, i32) {
    %c0_i32 = arith.constant 0 : i32
    %c0_i32_0 = arith.constant 0 : i32
    %c0_i32_1 = arith.constant 0 : i32
    return %c0_i32, %c0_i32_0 : i32, i32
  }
  func.func @transform_3(%arg0: i32) -> (i32, i32, i32) {
    %c0_i32 = arith.constant 0 : i32
    %c0_i32_0 = arith.constant 0 : i32
    %c0_i32_1 = arith.constant 0 : i32
    %c0_i32_2 = arith.constant 0 : i32
    return %c0_i32, %c0_i32_0, %c0_i32_1 : i32, i32, i32
  }
  func.func @transform_4(%arg0: i32) -> (i32, i32) {
    %c0_i32 = arith.constant 0 : i32
    %c0_i32_0 = arith.constant 0 : i32
    %c0_i32_1 = arith.constant 0 : i32
    return %c0_i32, %c0_i32_0 : i32, i32
  }
  func.func @transform_5(%arg0: i32) -> (i32, i32, i32) {
    %c0_i32 = arith.constant 0 : i32
    %c0_i32_0 = arith.constant 0 : i32
    %c0_i32_1 = arith.constant 0 : i32
    return %arg0, %c0_i32, %c0_i32_0 : i32, i32, i32
  }
}

</mosaic_0001>

<llo_original>
// kernel: basic_block_forward.1
$region0: #{basic_block_forward.1}
  #allocation0 [shape = 'u32[]', space=smem, size = 0x4, offset = 0x4, fixed_abs, tag = 'smem constant byte address 0x4 - core index']
  #allocation1 [shape = 'u32[144,128]{1,0:T(1,128)}', space=vmem, size = 0x12000, scoped, tag = 'internal scratch']
  #allocation2 [shape = 'bf16[18,18,4]{2,1,0:T(8,128)(2,1)}', space=vmem, size = 0x1b000, scoped, tag = 'scratch operand']
  #allocation3 [shape = 'bf16[18,18,4]{2,1,0:T(8,128)(2,1)}', space=vmem, size = 0x1b000, scoped, tag = 'scratch operand']
  %s0 = inlined_call_operand.hbm [shape: bf16[2,16,16,4], index: 0, kind: input, shape index: {}]
  %s1 = inlined_call_operand.hbm [shape: bf16[9,4,4], index: 1, kind: input, shape index: {}]
  %s2 = inlined_call_operand.hbm [shape: f32[1,4], index: 2, kind: input, shape index: {}]
  %s3 = inlined_call_operand.hbm [shape: bf16[9,4,4], index: 3, kind: input, shape index: {}]
  %s4 = inlined_call_operand.hbm [shape: f32[1,4], index: 4, kind: input, shape index: {}]
  %s5 = inlined_call_operand.hbm [shape: bf16[2,256,4], index: 5, kind: output, shape index: {}]
  %s6 = sld [smem:[#allocation0]]
  $region73: #{basic_block_forward.1} parent=0
    _
  %s8 = ssub.s32 1, %s6
  %s9 = scalar_select 0, %s8, %s6
  $region1: #{basic_block_forward.1} parent=0
    #allocation4 [shape = 'u8[131072]{0}', space=vmem, size = 0x20000, scoped, tag = 'input window, operand 0']
    #allocation5 [shape = 's32[2]{0}', space=sflag, size = 0x8, scoped, tag = 'scoped memory for basic_block_forward.1']
    #allocation6 [shape = 's32[2]{0}', space=sflag, size = 0x8, scoped, tag = 'scoped memory for basic_block_forward.1']
    #allocation7 [shape = 'u8[9216]{0}', space=vmem, size = 0x2400, scoped, tag = 'input window, operand 1, single buffered']
    #allocation8 [shape = 's32[1]{0}', space=sflag, size = 0x4, scoped, tag = 'scoped memory for basic_block_forward.1']
    #allocation9 [shape = 'u8[512]{0}', space=vmem, size = 0x400, scoped, tag = 'input window, operand 2, single buffered']
    #allocation10 [shape = 'u8[9216]{0}', space=vmem, size = 0x2400, scoped, tag = 'input window, operand 3, single buffered']
    #allocation11 [shape = 's32[1]{0}', space=sflag, size = 0x4, scoped, tag = 'scoped memory for basic_block_forward.1']
    #allocation12 [shape = 'u8[512]{0}', space=vmem, size = 0x400, scoped, tag = 'input window, operand 4, single buffered']
    #allocation13 [shape = 'u8[131072]{0}', space=vmem, size = 0x20000, scoped, tag = 'output window, operand 0']
    %10 = vsyncpa [#allocation5], 0
    %s11 = scalar_lea.sflag [#allocation5], 1
    %12 = vsyncpa %s11, 0
    %13 = vsyncpa [#allocation8], 0
    %14 = vsyncpa [#allocation11], 0
    %15 = vsyncpa [#allocation6], 0
    %s16 = scalar_lea.sflag [#allocation6], 1
    %17 = vsyncpa %s16, 0
    loop: start=0, step=1, limit=4
    $region2: #{basic_block_forward.1} parent=1 // loop_pre_header
      _
    $region3: #{basic_block_forward.1} parent=1 // loop_header
      %s19 = sphi 0, %s23
      %p20 = scmp.ge.s32.totalorder %s19, 4
      %s29 = sphi 0, %s31
      %s32 = sphi 0, %s29
      %s33 = sphi 0, %s32
      %s49 = sphi 0, %s33
      %s53 = sphi 0, %s53
      %s55 = sphi 0, %s53
      %s56 = sphi 0, %s55
      %s70 = sphi 0, %s56
      %s74 = sphi 0, %s74
      %s76 = sphi 0, %s74
      %s77 = sphi 0, %s76
      %s91 = sphi 0, %s77
      %s95 = sphi 0, %s95
      %s97 = sphi 0, %s95
      %s98 = sphi 0, %s97
      %s112 = sphi 0, %s98
      %s116 = sphi 0, %s116
      %s118 = sphi 0, %s116
      %s119 = sphi 0, %s118
      %s133 = sphi 0, %s119
      %s139 = sphi 0, %s141
      %s142 = sphi 0, %s139
      %s143 = sphi 0, %s142
      %s159 = sphi 0, %s143
    $region4: #{basic_block_forward.1} parent=1 // loop_header_branch
      %22 = sbr.rel (%p20) target = $region8
    $region5: #{basic_block_forward.1} parent=1 // loop_body
      %s24 = ssub.s32 %s19, 1
      %s25 = ssub.s32 %s19, 2
      %s26 = sadd.s32 %s19, 1
      %s27 = ssub.s32 %s19, %s26
      %p28 = scmp.eq.s32.totalorder %s27, 0
      %s30 = sadd.s32 %s29, 1
      %s31 = scalar_select %p28, %s29, %s30
      %p34 = pneg %p28
      %p35 = scmp.eq.s32.totalorder %s19, 1
      %p36 = por %p34, %p35
      %p37 = scmp.ne.s32.totalorder %s29, %s32
      %p38 = scmp.eq.s32.totalorder %s19, 0
      %p39 = por %p37, %p38
      %p40 = scmp.ne.s32.totalorder %s29, %s32
      %p41 = scmp.eq.s32.totalorder %s24, 1
      %p42 = por %p40, %p41
      %p43 = scmp.ne.s32.totalorder %s32, %s33
      %p44 = scmp.eq.s32.totalorder %s24, 0
      %p45 = por %p43, %p44
      %p46 = scmp.ne.s32.totalorder %s32, %s33
      %p47 = scmp.eq.s32.totalorder %s25, 1
      %p48 = por %p46, %p47
      %p50 = scmp.ne.s32.totalorder %s33, %s49
      %p51 = scmp.eq.s32.totalorder %s25, 0
      %p52 = por %p50, %p51
      %s54 = sadd.s32 %s53, 1
      %p57 = scmp.eq.s32.totalorder %s19, 1
      %p58 = scmp.ne.s32.totalorder %s53, %s55
      %p59 = scmp.eq.s32.totalorder %s19, 0
      %p60 = por %p58, %p59
      %p61 = scmp.ne.s32.totalorder %s53, %s55
      %p62 = scmp.eq.s32.totalorder %s24, 1
      %p63 = por %p61, %p62
      %p64 = scmp.ne.s32.totalorder %s55, %s56
      %p65 = scmp.eq.s32.totalorder %s24, 0
      %p66 = por %p64, %p65
      %p67 = scmp.ne.s32.totalorder %s55, %s56
      %p68 = scmp.eq.s32.totalorder %s25, 1
      %p69 = por %p67, %p68
      %p71 = scmp.ne.s32.totalorder %s56, %s70
      %p72 = scmp.eq.s32.totalorder %s25, 0
      %p73 = por %p71, %p72
      %s75 = sadd.s32 %s74, 1
      %p78 = scmp.eq.s32.totalorder %s19, 1
      %p79 = scmp.ne.s32.totalorder %s74, %s76
      %p80 = scmp.eq.s32.totalorder %s19, 0
      %p81 = por %p79, %p80
      %p82 = scmp.ne.s32.totalorder %s74, %s76
      %p83 = scmp.eq.s32.totalorder %s24, 1
      %p84 = por %p82, %p83
      %p85 = scmp.ne.s32.totalorder %s76, %s77
      %p86 = scmp.eq.s32.totalorder %s24, 0
      %p87 = por %p85, %p86
      %p88 = scmp.ne.s32.totalorder %s76, %s77
      %p89 = scmp.eq.s32.totalorder %s25, 1
      %p90 = por %p88, %p89
      %p92 = scmp.ne.s32.totalorder %s77, %s91
      %p93 = scmp.eq.s32.totalorder %s25, 0
      %p94 = por %p92, %p93
      %s96 = sadd.s32 %s95, 1
      %p99 = scmp.eq.s32.totalorder %s19, 1
      %p100 = scmp.ne.s32.totalorder %s95, %s97
      %p101 = scmp.eq.s32.totalorder %s19, 0
      %p102 = por %p100, %p101
      %p103 = scmp.ne.s32.totalorder %s95, %s97
      %p104 = scmp.eq.s32.totalorder %s24, 1
      %p105 = por %p103, %p104
      %p106 = scmp.ne.s32.totalorder %s97, %s98
      %p107 = scmp.eq.s32.totalorder %s24, 0
      %p108 = por %p106, %p107
      %p109 = scmp.ne.s32.totalorder %s97, %s98
      %p110 = scmp.eq.s32.totalorder %s25, 1
      %p111 = por %p109, %p110
      %p113 = scmp.ne.s32.totalorder %s98, %s112
      %p114 = scmp.eq.s32.totalorder %s25, 0
      %p115 = por %p113, %p114
      %s117 = sadd.s32 %s116, 1
      %p120 = scmp.eq.s32.totalorder %s19, 1
      %p121 = scmp.ne.s32.totalorder %s116, %s118
      %p122 = scmp.eq.s32.totalorder %s19, 0
      %p123 = por %p121, %p122
      %p124 = scmp.ne.s32.totalorder %s116, %s118
      %p125 = scmp.eq.s32.totalorder %s24, 1
      %p126 = por %p124, %p125
      %p127 = scmp.ne.s32.totalorder %s118, %s119
      %p128 = scmp.eq.s32.totalorder %s24, 0
      %p129 = por %p127, %p128
      %p130 = scmp.ne.s32.totalorder %s118, %s119
      %p131 = scmp.eq.s32.totalorder %s25, 1
      %p132 = por %p130, %p131
      %p134 = scmp.ne.s32.totalorder %s119, %s133
      %p135 = scmp.eq.s32.totalorder %s25, 0
      %p136 = por %p134, %p135
      %s137 = ssub.s32 %s19, %s26
      %p138 = scmp.eq.s32.totalorder %s137, 0
      %s140 = sadd.s32 %s139, 1
      %s141 = scalar_select %p138, %s139, %s140
      %p144 = pneg %p138
      %p145 = scmp.eq.s32.totalorder %s19, 1
      %p146 = por %p144, %p145
      %p147 = scmp.ne.s32.totalorder %s139, %s142
      %p148 = scmp.eq.s32.totalorder %s19, 0
      %p149 = por %p147, %p148
      %p150 = scmp.ne.s32.totalorder %s139, %s142
      %p151 = scmp.eq.s32.totalorder %s24, 1
      %p152 = por %p150, %p151
      %p153 = scmp.ne.s32.totalorder %s142, %s143
      %p154 = scmp.eq.s32.totalorder %s24, 0
      %p155 = por %p153, %p154
      %p156 = scmp.ne.s32.totalorder %s142, %s143
      %p157 = scmp.eq.s32.totalorder %s25, 1
      %p158 = por %p156, %p157
      %p160 = scmp.ne.s32.totalorder %s143, %s159
      %p161 = scmp.eq.s32.totalorder %s25, 0
      %p162 = por %p160, %p161
      %p163 = scmp.le.s32.totalorder 1, %s19
      %p164 = scmp.lt.s32.totalorder %s19, 3
      %p165 = pnand %p163, %p164
      %p166 = pneg %p165
      // Predicated region
      $region9: #{basic_block_forward.1} parent=5 // pred_check
        _
      $region10: #{basic_block_forward.1} parent=5 // pred_check_branch
        %168 = sbr.rel (%p165) target = $region12
      $region11: #{basic_block_forward.1} parent=5 // pred_region
        %s169 = ssub.s32 %s19, 1
        // Predicated region
        $region13: #{basic_block_forward.1} parent=11 // pred_check
          %p170 = pneg %p66
        $region14: #{basic_block_forward.1} parent=11 // pred_check_branch
          %172 = sbr.rel (%p170) target = $region16
        $region15: #{basic_block_forward.1} parent=11 // pred_region
          %s174 = ssub.s32 288, 288
          %175 = vsyncadd [#allocation8], %s174
          %s176 = sshll.u32 [#allocation7], 4
          %s177 = int_to_ptr.vmem [resolvable:$true] %s176
          %182 = dma.hbm_to_vmem [thread:$0]  %s1, 288, %s177, [#allocation8], 32, 32, 2
        $region16: #{basic_block_forward.1} parent=11 // pred_fallthru
          _
        // Predicated region
        $region17: #{basic_block_forward.1} parent=11 // pred_check
          %p183 = pneg %p87
        $region18: #{basic_block_forward.1} parent=11 // pred_check_branch
          %185 = sbr.rel (%p183) target = $region20
        $region19: #{basic_block_forward.1} parent=11 // pred_region
          %s187 = ssub.s32 16, 16
          %188 = vsyncadd [#allocation8], %s187
          %s190 = sshll.u32 [#allocation9], 4
          %s191 = int_to_ptr.vmem [resolvable:$true] %s190
          %193 = dma.hbm_to_vmem [thread:$0]  %s2, 16, %s191, [#allocation8]
        $region20: #{basic_block_forward.1} parent=11 // pred_fallthru
          _
        // Predicated region
        $region21: #{basic_block_forward.1} parent=11 // pred_check
          %p194 = pneg %p108
        $region22: #{basic_block_forward.1} parent=11 // pred_check_branch
          %196 = sbr.rel (%p194) target = $region24
        $region23: #{basic_block_forward.1} parent=11 // pred_region
          %s198 = ssub.s32 288, 288
          %199 = vsyncadd [#allocation11], %s198
          %s200 = sshll.u32 [#allocation10], 4
          %s201 = int_to_ptr.vmem [resolvable:$true] %s200
          %206 = dma.hbm_to_vmem [thread:$0]  %s3, 288, %s201, [#allocation11], 32, 32, 2
        $region24: #{basic_block_forward.1} parent=11 // pred_fallthru
          _
        // Predicated region
        $region25: #{basic_block_forward.1} parent=11 // pred_check
          %p207 = pneg %p129
        $region26: #{basic_block_forward.1} parent=11 // pred_check_branch
          %209 = sbr.rel (%p207) target = $region28
        $region27: #{basic_block_forward.1} parent=11 // pred_region
          %s211 = ssub.s32 16, 16
          %212 = vsyncadd [#allocation11], %s211
          %s214 = sshll.u32 [#allocation12], 4
          %s215 = int_to_ptr.vmem [resolvable:$true] %s214
          %217 = dma.hbm_to_vmem [thread:$0]  %s4, 16, %s215, [#allocation11]
        $region28: #{basic_block_forward.1} parent=11 // pred_fallthru
          _
      $region12: #{basic_block_forward.1} parent=5 // pred_fallthru
        _
      %p218 = scmp.lt.s32.totalorder %s19, 2
      // Predicated region
      $region29: #{basic_block_forward.1} parent=5 // pred_check
        %p219 = pneg %p218
      $region30: #{basic_block_forward.1} parent=5 // pred_check_branch
        %221 = sbr.rel (%p219) target = $region32
      $region31: #{basic_block_forward.1} parent=5 // pred_region
        // Predicated region
        $region33: #{basic_block_forward.1} parent=31 // pred_check
          %p222 = pneg %p39
        $region34: #{basic_block_forward.1} parent=31 // pred_check_branch
          %224 = sbr.rel (%p222) target = $region36
        $region35: #{basic_block_forward.1} parent=31 // pred_region
          %s225 = sand.u32 %s29, 1
          %s226 = scalar_lea.sflag [#allocation5], %s225
          %s227 = sand.u32 %s29, 1
          %s228 = smul.addr %s227, 128
          %s229 = scalar_lea.vmem [#allocation4], %s228
          %s231 = ssub.s32 2048, 2048
          %232 = vsyncadd %s226, %s231
          %s233 = smul.addr %s19, 32
          %s234 = smul.addr %s233, 64
          %s235 = scalar_lea.hbm %s0, %s234
          %s236 = sshll.u32 %s229, 4
          %s237 = int_to_ptr.vmem [resolvable:$true] %s236
          %242 = dma.hbm_to_vmem [thread:$0]  %s235, 2048, %s237, %s226, 64, 64, 4
        $region36: #{basic_block_forward.1} parent=31 // pred_fallthru
          _
      $region32: #{basic_block_forward.1} parent=5 // pred_fallthru
        _
      %p243 = scmp.le.s32.totalorder 1, %s19
      %p244 = scmp.lt.s32.totalorder %s19, 3
      %p245 = pnand %p243, %p244
      %p246 = pneg %p245
      // Predicated region
      $region37: #{basic_block_forward.1} parent=5 // pred_check
        _
      $region38: #{basic_block_forward.1} parent=5 // pred_check_branch
        %248 = sbr.rel (%p245) target = $region40
      $region39: #{basic_block_forward.1} parent=5 // pred_region
        %s249 = ssub.s32 %s19, 1
        %s250 = sand.u32 %s32, 1
        %s251 = scalar_lea.sflag [#allocation5], %s250
        %s252 = sand.u32 %s32, 1
        %s253 = smul.addr %s252, 128
        %s254 = scalar_lea.vmem [#allocation4], %s253
        // Predicated region
        $region41: #{basic_block_forward.1} parent=39 // pred_check
          %p255 = pneg %p45
        $region42: #{basic_block_forward.1} parent=39 // pred_check_branch
          %257 = sbr.rel (%p255) target = $region44
        $region43: #{basic_block_forward.1} parent=39 // pred_region
          %258 = dma.done %s251, 2048
        $region44: #{basic_block_forward.1} parent=39 // pred_fallthru
          _
        // Predicated region
        $region45: #{basic_block_forward.1} parent=39 // pred_check
          %p259 = pneg %p66
        $region46: #{basic_block_forward.1} parent=39 // pred_check_branch
          %261 = sbr.rel (%p259) target = $region48
        $region47: #{basic_block_forward.1} parent=39 // pred_region
          %262 = dma.done [#allocation8], 288
        $region48: #{basic_block_forward.1} parent=39 // pred_fallthru
          _
        // Predicated region
        $region49: #{basic_block_forward.1} parent=39 // pred_check
          %p263 = pneg %p87
        $region50: #{basic_block_forward.1} parent=39 // pred_check_branch
          %265 = sbr.rel (%p263) target = $region52
        $region51: #{basic_block_forward.1} parent=39 // pred_region
          %266 = dma.done [#allocation8], 16
        $region52: #{basic_block_forward.1} parent=39 // pred_fallthru
          _
        // Predicated region
        $region53: #{basic_block_forward.1} parent=39 // pred_check
          %p267 = pneg %p108
        $region54: #{basic_block_forward.1} parent=39 // pred_check_branch
          %269 = sbr.rel (%p267) target = $region56
        $region55: #{basic_block_forward.1} parent=39 // pred_region
          %270 = dma.done [#allocation11], 288
        $region56: #{basic_block_forward.1} parent=39 // pred_fallthru
          _
        // Predicated region
        $region57: #{basic_block_forward.1} parent=39 // pred_check
          %p271 = pneg %p129
        $region58: #{basic_block_forward.1} parent=39 // pred_check_branch
          %273 = sbr.rel (%p271) target = $region60
        $region59: #{basic_block_forward.1} parent=39 // pred_region
          %274 = dma.done [#allocation11], 16
        $region60: #{basic_block_forward.1} parent=39 // pred_fallthru
          _
        %s275 = sand.u32 %s32, 1
        %s276 = scalar_lea.sflag [#allocation5], %s275
        %s277 = sand.u32 %s32, 1
        %s278 = smul.addr %s277, 128
        %s279 = scalar_lea.vmem [#allocation4], %s278
        %p280 = pneg %p45
        %p281 = pneg %p42
        %p282 = pneg %p66
        %p283 = pneg %p63
        %p284 = pneg %p87
        %p285 = pneg %p84
        %p286 = pneg %p108
        %p287 = pneg %p105
        %p288 = pneg %p129
        %p289 = pneg %p126
        %p290 = pneg %p155
        %p291 = pneg %p152
        %s292 = sand.u32 %s142, 1
        %s293 = scalar_lea.sflag [#allocation6], %s292
        %s294 = sand.u32 %s142, 1
        %s295 = smul.addr %s294, 128
        %s296 = scalar_lea.vmem [#allocation13], %s295
        %vm298 = vcmask 27648
        %299 = vst.msk [vmem:[#allocation2] sm:$0xf] %vm298, 0
        %300 = vst.msk [vmem:[#allocation2 + $0x4] sm:$0xf] %vm298, 0
        %vm301 = vcmask 24576
        %302 = vst.msk [vmem:[#allocation2 + $0x8] sm:$0x1] %vm301, 0
        %s303 = scalar_lea.vmem [#allocation2], 204
        %304 = vst.msk [vmem:[%s303] sm:$0xf] %vm298, 0
        %305 = vst.msk [vmem:[%s303 + $0x4] sm:$0xf] %vm298, 0
        %306 = vst.msk [vmem:[%s303 + $0x8] sm:$0x1] %vm301, 0
        %vm307 = vcmask 24576
        %vm308 = vsmask.f32 256
        %vm309 = vmand %vm307, %vm308
        %v310 = vld [vmem:[#allocation2] sm:$0x1]
        %v311 = vsel %vm309, 0, %v310
        %312 = vst [vmem:[#allocation2] sm:$0x1] %v311
        %v313 = vld [vmem:[#allocation2 + $0xc] sm:$0x1]
        %v314 = vsel %vm309, 0, %v313
        %315 = vst [vmem:[#allocation2 + $0xc] sm:$0x1] %v314
        %v316 = vld [vmem:[#allocation2 + $0x18] sm:$0x1]
        %v317 = vsel %vm309, 0, %v316
        %318 = vst [vmem:[#allocation2 + $0x18] sm:$0x1] %v317
        %v319 = vld [vmem:[#allocation2 + $0x24] sm:$0x1]
        %v320 = vsel %vm309, 0, %v319
        %321 = vst [vmem:[#allocation2 + $0x24] sm:$0x1] %v320
        %v322 = vld [vmem:[#allocation2 + $0x30] sm:$0x1]
        %v323 = vsel %vm309, 0, %v322
        %324 = vst [vmem:[#allocation2 + $0x30] sm:$0x1] %v323
        %v325 = vld [vmem:[#allocation2 + $0x3c] sm:$0x1]
        %v326 = vsel %vm309, 0, %v325
        %327 = vst [vmem:[#allocation2 + $0x3c] sm:$0x1] %v326
        %v328 = vld [vmem:[#allocation2 + $0x48] sm:$0x1]
        %v329 = vsel %vm309, 0, %v328
        %330 = vst [vmem:[#allocation2 + $0x48] sm:$0x1] %v329
        %v331 = vld [vmem:[#allocation2 + $0x54] sm:$0x1]
        %v332 = vsel %vm309, 0, %v331
        %333 = vst [vmem:[#allocation2 + $0x54] sm:$0x1] %v332
        %v334 = vld [vmem:[#allocation2 + $0x60] sm:$0x1]
        %v335 = vsel %vm309, 0, %v334
        %336 = vst [vmem:[#allocation2 + $0x60] sm:$0x1] %v335
        %v337 = vld [vmem:[#allocation2 + $0x6c] sm:$0x1]
        %v338 = vsel %vm309, 0, %v337
        %339 = vst [vmem:[#allocation2 + $0x6c] sm:$0x1] %v338
        %v340 = vld [vmem:[#allocation2 + $0x78] sm:$0x1]
        %v341 = vsel %vm309, 0, %v340
        %342 = vst [vmem:[#allocation2 + $0x78] sm:$0x1] %v341
        %v343 = vld [vmem:[#allocation2 + $0x84] sm:$0x1]
        %v344 = vsel %vm309, 0, %v343
        %345 = vst [vmem:[#allocation2 + $0x84] sm:$0x1] %v344
        %v346 = vld [vmem:[#allocation2 + $0x90] sm:$0x1]
        %v347 = vsel %vm309, 0, %v346
        %348 = vst [vmem:[#allocation2 + $0x90] sm:$0x1] %v347
        %v349 = vld [vmem:[#allocation2 + $0x9c] sm:$0x1]
        %v350 = vsel %vm309, 0, %v349
        %351 = vst [vmem:[#allocation2 + $0x9c] sm:$0x1] %v350
        %v352 = vld [vmem:[#allocation2 + $0xa8] sm:$0x1]
        %v353 = vsel %vm309, 0, %v352
        %354 = vst [vmem:[#allocation2 + $0xa8] sm:$0x1] %v353
        %v355 = vld [vmem:[#allocation2 + $0xb4] sm:$0x1]
        %v356 = vsel %vm309, 0, %v355
        %357 = vst [vmem:[#allocation2 + $0xb4] sm:$0x1] %v356
        %v358 = vld [vmem:[#allocation2 + $0xc0] sm:$0x1]
        %v359 = vsel %vm309, 0, %v358
        %360 = vst [vmem:[#allocation2 + $0xc0] sm:$0x1] %v359
        %v361 = vld [vmem:[#allocation2 + $0xcc] sm:$0x1]
        %v362 = vsel %vm309, 0, %v361
        %363 = vst [vmem:[#allocation2 + $0xcc] sm:$0x1] %v362
        %vm364 = vsmask.f32 7938
        %vm365 = vmand %vm307, %vm364
        %v366 = vld [vmem:[#allocation2 + $0x8] sm:$0x1]
        %v367 = vsel %vm365, 0, %v366
        %368 = vst [vmem:[#allocation2 + $0x8] sm:$0x1] %v367
        %v369 = vld [vmem:[#allocation2 + $0x14] sm:$0x1]
        %v370 = vsel %vm365, 0, %v369
        %371 = vst [vmem:[#allocation2 + $0x14] sm:$0x1] %v370
        %v372 = vld [vmem:[#allocation2 + $0x20] sm:$0x1]
        %v373 = vsel %vm365, 0, %v372
        %374 = vst [vmem:[#allocation2 + $0x20] sm:$0x1] %v373
        %v375 = vld [vmem:[#allocation2 + $0x2c] sm:$0x1]
        %v376 = vsel %vm365, 0, %v375
        %377 = vst [vmem:[#allocation2 + $0x2c] sm:$0x1] %v376
        %v378 = vld [vmem:[#allocation2 + $0x38] sm:$0x1]
        %v379 = vsel %vm365, 0, %v378
        %380 = vst [vmem:[#allocation2 + $0x38] sm:$0x1] %v379
        %v381 = vld [vmem:[#allocation2 + $0x44] sm:$0x1]
        %v382 = vsel %vm365, 0, %v381
        %383 = vst [vmem:[#allocation2 + $0x44] sm:$0x1] %v382
        %v384 = vld [vmem:[#allocation2 + $0x50] sm:$0x1]
        %v385 = vsel %vm365, 0, %v384
        %386 = vst [vmem:[#allocation2 + $0x50] sm:$0x1] %v385
        %v387 = vld [vmem:[#allocation2 + $0x5c] sm:$0x1]
        %v388 = vsel %vm365, 0, %v387
        %389 = vst [vmem:[#allocation2 + $0x5c] sm:$0x1] %v388
        %v390 = vld [vmem:[#allocation2 + $0x68] sm:$0x1]
        %v391 = vsel %vm365, 0, %v390
        %392 = vst [vmem:[#allocation2 + $0x68] sm:$0x1] %v391
        %v393 = vld [vmem:[#allocation2 + $0x74] sm:$0x1]
        %v394 = vsel %vm365, 0, %v393
        %395 = vst [vmem:[#allocation2 + $0x74] sm:$0x1] %v394
        %v396 = vld [vmem:[#allocation2 + $0x80] sm:$0x1]
        %v397 = vsel %vm365, 0, %v396
        %398 = vst [vmem:[#allocation2 + $0x80] sm:$0x1] %v397
        %v399 = vld [vmem:[#allocation2 + $0x8c] sm:$0x1]
        %v400 = vsel %vm365, 0, %v399
        %401 = vst [vmem:[#allocation2 + $0x8c] sm:$0x1] %v400
        %v402 = vld [vmem:[#allocation2 + $0x98] sm:$0x1]
        %v403 = vsel %vm365, 0, %v402
        %404 = vst [vmem:[#allocation2 + $0x98] sm:$0x1] %v403
        %v405 = vld [vmem:[#allocation2 + $0xa4] sm:$0x1]
        %v406 = vsel %vm365, 0, %v405
        %407 = vst [vmem:[#allocation2 + $0xa4] sm:$0x1] %v406
        %v408 = vld [vmem:[#allocation2 + $0xb0] sm:$0x1]
        %v409 = vsel %vm365, 0, %v408
        %410 = vst [vmem:[#allocation2 + $0xb0] sm:$0x1] %v409
        %v411 = vld [vmem:[#allocation2 + $0xbc] sm:$0x1]
        %v412 = vsel %vm365, 0, %v411
        %413 = vst [vmem:[#allocation2 + $0xbc] sm:$0x1] %v412
        %v414 = vld [vmem:[#allocation2 + $0xc8] sm:$0x1]
        %v415 = vsel %vm365, 0, %v414
        %416 = vst [vmem:[#allocation2 + $0xc8] sm:$0x1] %v415
        %v417 = vld [vmem:[#allocation2 + $0xd4] sm:$0x1]
        %v418 = vsel %vm365, 0, %v417
        %419 = vst [vmem:[#allocation2 + $0xd4] sm:$0x1] %v418
        %420 = vst.msk [vmem:[#allocation3] sm:$0xf] %vm298, 0
        %421 = vst.msk [vmem:[#allocation3 + $0x4] sm:$0xf] %vm298, 0
        %422 = vst.msk [vmem:[#allocation3 + $0x8] sm:$0x1] %vm301, 0
        %s423 = scalar_lea.vmem [#allocation3], 204
        %424 = vst.msk [vmem:[%s423] sm:$0xf] %vm298, 0
        %425 = vst.msk [vmem:[%s423 + $0x4] sm:$0xf] %vm298, 0
        %426 = vst.msk [vmem:[%s423 + $0x8] sm:$0x1] %vm301, 0
        %v427 = vld [vmem:[#allocation3] sm:$0x1]
        %v428 = vsel %vm309, 0, %v427
        %429 = vst [vmem:[#allocation3] sm:$0x1] %v428
        %v430 = vld [vmem:[#allocation3 + $0xc] sm:$0x1]
        %v431 = vsel %vm309, 0, %v430
        %432 = vst [vmem:[#allocation3 + $0xc] sm:$0x1] %v431
        %v433 = vld [vmem:[#allocation3 + $0x18] sm:$0x1]
        %v434 = vsel %vm309, 0, %v433
        %435 = vst [vmem:[#allocation3 + $0x18] sm:$0x1] %v434
        %v436 = vld [vmem:[#allocation3 + $0x24] sm:$0x1]
        %v437 = vsel %vm309, 0, %v436
        %438 = vst [vmem:[#allocation3 + $0x24] sm:$0x1] %v437
        %v439 = vld [vmem:[#allocation3 + $0x30] sm:$0x1]
        %v440 = vsel %vm309, 0, %v439
        %441 = vst [vmem:[#allocation3 + $0x30] sm:$0x1] %v440
        %v442 = vld [vmem:[#allocation3 + $0x3c] sm:$0x1]
        %v443 = vsel %vm309, 0, %v442
        %444 = vst [vmem:[#allocation3 + $0x3c] sm:$0x1] %v443
        %v445 = vld [vmem:[#allocation3 + $0x48] sm:$0x1]
        %v446 = vsel %vm309, 0, %v445
        %447 = vst [vmem:[#allocation3 + $0x48] sm:$0x1] %v446
        %v448 = vld [vmem:[#allocation3 + $0x54] sm:$0x1]
        %v449 = vsel %vm309, 0, %v448
        %450 = vst [vmem:[#allocation3 + $0x54] sm:$0x1] %v449
        %v451 = vld [vmem:[#allocation3 + $0x60] sm:$0x1]
        %v452 = vsel %vm309, 0, %v451
        %453 = vst [vmem:[#allocation3 + $0x60] sm:$0x1] %v452
        %v454 = vld [vmem:[#allocation3 + $0x6c] sm:$0x1]
        %v455 = vsel %vm309, 0, %v454
        %456 = vst [vmem:[#allocation3 + $0x6c] sm:$0x1] %v455
        %v457 = vld [vmem:[#allocation3 + $0x78] sm:$0x1]
        %v458 = vsel %vm309, 0, %v457
        %459 = vst [vmem:[#allocation3 + $0x78] sm:$0x1] %v458
        %v460 = vld [vmem:[#allocation3 + $0x84] sm:$0x1]
        %v461 = vsel %vm309, 0, %v460
        %462 = vst [vmem:[#allocation3 + $0x84] sm:$0x1] %v461
        %v463 = vld [vmem:[#allocation3 + $0x90] sm:$0x1]
        %v464 = vsel %vm309, 0, %v463
        %465 = vst [vmem:[#allocation3 + $0x90] sm:$0x1] %v464
        %v466 = vld [vmem:[#allocation3 + $0x9c] sm:$0x1]
        %v467 = vsel %vm309, 0, %v466
        %468 = vst [vmem:[#allocation3 + $0x9c] sm:$0x1] %v467
        %v469 = vld [vmem:[#allocation3 + $0xa8] sm:$0x1]
        %v470 = vsel %vm309, 0, %v469
        %471 = vst [vmem:[#allocation3 + $0xa8] sm:$0x1] %v470
        %v472 = vld [vmem:[#allocation3 + $0xb4] sm:$0x1]
        %v473 = vsel %vm309, 0, %v472
        %474 = vst [vmem:[#allocation3 + $0xb4] sm:$0x1] %v473
        %v475 = vld [vmem:[#allocation3 + $0xc0] sm:$0x1]
        %v476 = vsel %vm309, 0, %v475
        %477 = vst [vmem:[#allocation3 + $0xc0] sm:$0x1] %v476
        %v478 = vld [vmem:[#allocation3 + $0xcc] sm:$0x1]
        %v479 = vsel %vm309, 0, %v478
        %480 = vst [vmem:[#allocation3 + $0xcc] sm:$0x1] %v479
        %v481 = vld [vmem:[#allocation3 + $0x8] sm:$0x1]
        %v482 = vsel %vm365, 0, %v481
        %483 = vst [vmem:[#allocation3 + $0x8] sm:$0x1] %v482
        %v484 = vld [vmem:[#allocation3 + $0x14] sm:$0x1]
        %v485 = vsel %vm365, 0, %v484
        %486 = vst [vmem:[#allocation3 + $0x14] sm:$0x1] %v485
        %v487 = vld [vmem:[#allocation3 + $0x20] sm:$0x1]
        %v488 = vsel %vm365, 0, %v487
        %489 = vst [vmem:[#allocation3 + $0x20] sm:$0x1] %v488
        %v490 = vld [vmem:[#allocation3 + $0x2c] sm:$0x1]
        %v491 = vsel %vm365, 0, %v490
        %492 = vst [vmem:[#allocation3 + $0x2c] sm:$0x1] %v491
        %v493 = vld [vmem:[#allocation3 + $0x38] sm:$0x1]
        %v494 = vsel %vm365, 0, %v493
        %495 = vst [vmem:[#allocation3 + $0x38] sm:$0x1] %v494
        %v496 = vld [vmem:[#allocation3 + $0x44] sm:$0x1]
        %v497 = vsel %vm365, 0, %v496
        %498 = vst [vmem:[#allocation3 + $0x44] sm:$0x1] %v497
        %v499 = vld [vmem:[#allocation3 + $0x50] sm:$0x1]
        %v500 = vsel %vm365, 0, %v499
        %501 = vst [vmem:[#allocation3 + $0x50] sm:$0x1] %v500
        %v502 = vld [vmem:[#allocation3 + $0x5c] sm:$0x1]
        %v503 = vsel %vm365, 0, %v502
        %504 = vst [vmem:[#allocation3 + $0x5c] sm:$0x1] %v503
        %v505 = vld [vmem:[#allocation3 + $0x68] sm:$0x1]
        %v506 = vsel %vm365, 0, %v505
        %507 = vst [vmem:[#allocation3 + $0x68] sm:$0x1] %v506
        %v508 = vld [vmem:[#allocation3 + $0x74] sm:$0x1]
        %v509 = vsel %vm365, 0, %v508
        %510 = vst [vmem:[#allocation3 + $0x74] sm:$0x1] %v509
        %v511 = vld [vmem:[#allocation3 + $0x80] sm:$0x1]
        %v512 = vsel %vm365, 0, %v511
        %513 = vst [vmem:[#allocation3 + $0x80] sm:$0x1] %v512
        %v514 = vld [vmem:[#allocation3 + $0x8c] sm:$0x1]
        %v515 = vsel %vm365, 0, %v514
        %516 = vst [vmem:[#allocation3 + $0x8c] sm:$0x1] %v515
        %v517 = vld [vmem:[#allocation3 + $0x98] sm:$0x1]
        %v518 = vsel %vm365, 0, %v517
        %519 = vst [vmem:[#allocation3 + $0x98] sm:$0x1] %v518
        %v520 = vld [vmem:[#allocation3 + $0xa4] sm:$0x1]
        %v521 = vsel %vm365, 0, %v520
        %522 = vst [vmem:[#allocation3 + $0xa4] sm:$0x1] %v521
        %v523 = vld [vmem:[#allocation3 + $0xb0] sm:$0x1]
        %v524 = vsel %vm365, 0, %v523
        %525 = vst [vmem:[#allocation3 + $0xb0] sm:$0x1] %v524
        %v526 = vld [vmem:[#allocation3 + $0xbc] sm:$0x1]
        %v527 = vsel %vm365, 0, %v526
        %528 = vst [vmem:[#allocation3 + $0xbc] sm:$0x1] %v527
        %v529 = vld [vmem:[#allocation3 + $0xc8] sm:$0x1]
        %v530 = vsel %vm365, 0, %v529
        %531 = vst [vmem:[#allocation3 + $0xc8] sm:$0x1] %v530
        %v532 = vld [vmem:[#allocation3 + $0xd4] sm:$0x1]
        %v533 = vsel %vm365, 0, %v532
        %534 = vst [vmem:[#allocation3 + $0xd4] sm:$0x1] %v533
        %v535 = vld [vmem:[%s254] sm:$0xf]
        %v536 = vld [vmem:[%s254 + $0x4] sm:$0xf]
        %v537 = vld [vmem:[%s254 + $0x8] sm:$0xf]
        %v538 = vld [vmem:[%s254 + $0xc] sm:$0xf]
        %v539 = vld [vmem:[%s254 + $0x10] sm:$0xf]
        %v540 = vld [vmem:[%s254 + $0x14] sm:$0xf]
        %v541 = vld [vmem:[%s254 + $0x18] sm:$0xf]
        %v542 = vld [vmem:[%s254 + $0x1c] sm:$0xf]
        %v543 = vld [vmem:[%s254 + $0x20] sm:$0xf]
        %v544 = vld [vmem:[%s254 + $0x24] sm:$0xf]
        %v545 = vld [vmem:[%s254 + $0x28] sm:$0xf]
        %v546 = vld [vmem:[%s254 + $0x2c] sm:$0xf]
        %v547 = vld [vmem:[%s254 + $0x30] sm:$0xf]
        %v548 = vld [vmem:[%s254 + $0x34] sm:$0xf]
        %v549 = vld [vmem:[%s254 + $0x38] sm:$0xf]
        %v550 = vld [vmem:[%s254 + $0x3c] sm:$0xf]
        %v551 = vld [vmem:[%s254 + $0x40] sm:$0xf]
        %v552 = vld [vmem:[%s254 + $0x44] sm:$0xf]
        %v553 = vld [vmem:[%s254 + $0x48] sm:$0xf]
        %v554 = vld [vmem:[%s254 + $0x4c] sm:$0xf]
        %v555 = vld [vmem:[%s254 + $0x50] sm:$0xf]
        %v556 = vld [vmem:[%s254 + $0x54] sm:$0xf]
        %v557 = vld [vmem:[%s254 + $0x58] sm:$0xf]
        %v558 = vld [vmem:[%s254 + $0x5c] sm:$0xf]
        %v559 = vld [vmem:[%s254 + $0x60] sm:$0xf]
        %v560 = vld [vmem:[%s254 + $0x64] sm:$0xf]
        %v561 = vld [vmem:[%s254 + $0x68] sm:$0xf]
        %v562 = vld [vmem:[%s254 + $0x6c] sm:$0xf]
        %v563 = vld [vmem:[%s254 + $0x70] sm:$0xf]
        %v564 = vld [vmem:[%s254 + $0x74] sm:$0xf]
        %v565 = vld [vmem:[%s254 + $0x78] sm:$0xf]
        %v566 = vld [vmem:[%s254 + $0x7c] sm:$0xf]
        %vm567 = vsmask.f32 4368
        %vm568 = vmor %vm308, %vm567
        %v570 = vshrl.u32 %v535, 16
        %v572 = vrot.slane %v570, 7
        %v573 = vshll.u32 %v535, 16
        %v575 = vor.u32 %v572, %v573
        %v576 = vrot.slane %v572, 4
        %v578 = vshrl.u32 %v536, 16
        %v580 = vrot.slane %v578, 7
        %v581 = vshll.u32 %v536, 16
        %v583 = vor.u32 %v580, %v581
        %v584 = vsel %vm568, %v576, %v583
        %v585 = vrot.slane %v580, 4
        %v587 = vshrl.u32 %v537, 16
        %v589 = vrot.slane %v587, 7
        %v590 = vshll.u32 %v537, 16
        %v592 = vor.u32 %v589, %v590
        %v593 = vrot.slane %v589, 4
        %v595 = vshrl.u32 %v538, 16
        %v597 = vrot.slane %v595, 7
        %v598 = vshll.u32 %v538, 16
        %v600 = vor.u32 %v597, %v598
        %v601 = vsel %vm568, %v593, %v600
        %v602 = vrot.slane %v597, 4
        %v604 = vshrl.u32 %v539, 16
        %v606 = vrot.slane %v604, 7
        %v607 = vshll.u32 %v539, 16
        %v609 = vor.u32 %v606, %v607
        %v610 = vrot.slane %v606, 4
        %v612 = vshrl.u32 %v540, 16
        %v614 = vrot.slane %v612, 7
        %v615 = vshll.u32 %v540, 16
        %v617 = vor.u32 %v614, %v615
        %v618 = vsel %vm568, %v610, %v617
        %v619 = vrot.slane %v614, 4
        %v621 = vshrl.u32 %v541, 16
        %v623 = vrot.slane %v621, 7
        %v624 = vshll.u32 %v541, 16
        %v626 = vor.u32 %v623, %v624
        %v627 = vrot.slane %v623, 4
        %v629 = vshrl.u32 %v542, 16
        %v631 = vrot.slane %v629, 7
        %v632 = vshll.u32 %v542, 16
        %v634 = vor.u32 %v631, %v632
        %v635 = vsel %vm568, %v627, %v634
        %v636 = vrot.slane %v631, 4
        %v638 = vshrl.u32 %v543, 16
        %v640 = vrot.slane %v638, 7
        %v641 = vshll.u32 %v543, 16
        %v643 = vor.u32 %v640, %v641
        %v644 = vrot.slane %v640, 4
        %v646 = vshrl.u32 %v544, 16
        %v648 = vrot.slane %v646, 7
        %v649 = vshll.u32 %v544, 16
        %v651 = vor.u32 %v648, %v649
        %v652 = vsel %vm568, %v644, %v651
        %v653 = vrot.slane %v648, 4
        %v655 = vshrl.u32 %v545, 16
        %v657 = vrot.slane %v655, 7
        %v658 = vshll.u32 %v545, 16
        %v660 = vor.u32 %v657, %v658
        %v661 = vrot.slane %v657, 4
        %v663 = vshrl.u32 %v546, 16
        %v665 = vrot.slane %v663, 7
        %v666 = vshll.u32 %v546, 16
        %v668 = vor.u32 %v665, %v666
        %v669 = vsel %vm568, %v661, %v668
        %v670 = vrot.slane %v665, 4
        %v672 = vshrl.u32 %v547, 16
        %v674 = vrot.slane %v672, 7
        %v675 = vshll.u32 %v547, 16
        %v677 = vor.u32 %v674, %v675
        %v678 = vrot.slane %v674, 4
        %v680 = vshrl.u32 %v548, 16
        %v682 = vrot.slane %v680, 7
        %v683 = vshll.u32 %v548, 16
        %v685 = vor.u32 %v682, %v683
        %v686 = vsel %vm568, %v678, %v685
        %v687 = vrot.slane %v682, 4
        %v689 = vshrl.u32 %v549, 16
        %v691 = vrot.slane %v689, 7
        %v692 = vshll.u32 %v549, 16
        %v694 = vor.u32 %v691, %v692
        %v695 = vrot.slane %v691, 4
        %v697 = vshrl.u32 %v550, 16
        %v699 = vrot.slane %v697, 7
        %v700 = vshll.u32 %v550, 16
        %v702 = vor.u32 %v699, %v700
        %v703 = vsel %vm568, %v695, %v702
        %v704 = vrot.slane %v699, 4
        %v706 = vshrl.u32 %v551, 16
        %v708 = vrot.slane %v706, 7
        %v709 = vshll.u32 %v551, 16
        %v711 = vor.u32 %v708, %v709
        %v712 = vrot.slane %v708, 4
        %v714 = vshrl.u32 %v552, 16
        %v716 = vrot.slane %v714, 7
        %v717 = vshll.u32 %v552, 16
        %v719 = vor.u32 %v716, %v717
        %v720 = vsel %vm568, %v712, %v719
        %v721 = vrot.slane %v716, 4
        %v723 = vshrl.u32 %v553, 16
        %v725 = vrot.slane %v723, 7
        %v726 = vshll.u32 %v553, 16
        %v728 = vor.u32 %v725, %v726
        %v729 = vrot.slane %v725, 4
        %v731 = vshrl.u32 %v554, 16
        %v733 = vrot.slane %v731, 7
        %v734 = vshll.u32 %v554, 16
        %v736 = vor.u32 %v733, %v734
        %v737 = vsel %vm568, %v729, %v736
        %v738 = vrot.slane %v733, 4
        %v740 = vshrl.u32 %v555, 16
        %v742 = vrot.slane %v740, 7
        %v743 = vshll.u32 %v555, 16
        %v745 = vor.u32 %v742, %v743
        %v746 = vrot.slane %v742, 4
        %v748 = vshrl.u32 %v556, 16
        %v750 = vrot.slane %v748, 7
        %v751 = vshll.u32 %v556, 16
        %v753 = vor.u32 %v750, %v751
        %v754 = vsel %vm568, %v746, %v753
        %v755 = vrot.slane %v750, 4
        %v757 = vshrl.u32 %v557, 16
        %v759 = vrot.slane %v757, 7
        %v760 = vshll.u32 %v557, 16
        %v762 = vor.u32 %v759, %v760
        %v763 = vrot.slane %v759, 4
        %v765 = vshrl.u32 %v558, 16
        %v767 = vrot.slane %v765, 7
        %v768 = vshll.u32 %v558, 16
        %v770 = vor.u32 %v767, %v768
        %v771 = vsel %vm568, %v763, %v770
        %v772 = vrot.slane %v767, 4
        %v774 = vshrl.u32 %v559, 16
        %v776 = vrot.slane %v774, 7
        %v777 = vshll.u32 %v559, 16
        %v779 = vor.u32 %v776, %v777
        %v780 = vrot.slane %v776, 4
        %v782 = vshrl.u32 %v560, 16
        %v784 = vrot.slane %v782, 7
        %v785 = vshll.u32 %v560, 16
        %v787 = vor.u32 %v784, %v785
        %v788 = vsel %vm568, %v780, %v787
        %v789 = vrot.slane %v784, 4
        %v791 = vshrl.u32 %v561, 16
        %v793 = vrot.slane %v791, 7
        %v794 = vshll.u32 %v561, 16
        %v796 = vor.u32 %v793, %v794
        %v797 = vrot.slane %v793, 4
        %v799 = vshrl.u32 %v562, 16
        %v801 = vrot.slane %v799, 7
        %v802 = vshll.u32 %v562, 16
        %v804 = vor.u32 %v801, %v802
        %v805 = vsel %vm568, %v797, %v804
        %v806 = vrot.slane %v801, 4
        %v808 = vshrl.u32 %v563, 16
        %v810 = vrot.slane %v808, 7
        %v811 = vshll.u32 %v563, 16
        %v813 = vor.u32 %v810, %v811
        %v814 = vrot.slane %v810, 4
        %v816 = vshrl.u32 %v564, 16
        %v818 = vrot.slane %v816, 7
        %v819 = vshll.u32 %v564, 16
        %v821 = vor.u32 %v818, %v819
        %v822 = vsel %vm568, %v814, %v821
        %v823 = vrot.slane %v818, 4
        %v825 = vshrl.u32 %v565, 16
        %v827 = vrot.slane %v825, 7
        %v828 = vshll.u32 %v565, 16
        %v830 = vor.u32 %v827, %v828
        %v831 = vrot.slane %v827, 4
        %v833 = vshrl.u32 %v566, 16
        %v835 = vrot.slane %v833, 7
        %v836 = vshll.u32 %v566, 16
        %v838 = vor.u32 %v835, %v836
        %v839 = vsel %vm568, %v831, %v838
        %v840 = vrot.slane %v835, 4
        %s889 = scalar_lea.vmem [#allocation2], 12
        %vm890 = vcmask 27648
        %vm891 = vmand %vm890, %vm364
        %v892 = vld [vmem:[%s889] sm:$0xf]
        %v893 = vsel %vm891, %v575, %v892
        %894 = vst [vmem:[%s889] sm:$0xf] %v893
        %895 = vst.msk [vmem:[%s889 + $0x4] sm:$0xf] %vm298, %v584
        %v896 = vld [vmem:[%s889 + $0x8] sm:$0x1]
        %v897 = vsel %vm309, %v585, %v896
        %898 = vst [vmem:[%s889 + $0x8] sm:$0x1] %v897
        %v899 = vld [vmem:[%s889 + $0xc] sm:$0xf]
        %v900 = vsel %vm891, %v592, %v899
        %901 = vst [vmem:[%s889 + $0xc] sm:$0xf] %v900
        %902 = vst.msk [vmem:[%s889 + $0x10] sm:$0xf] %vm298, %v601
        %v903 = vld [vmem:[%s889 + $0x14] sm:$0x1]
        %v904 = vsel %vm309, %v602, %v903
        %905 = vst [vmem:[%s889 + $0x14] sm:$0x1] %v904
        %v906 = vld [vmem:[%s889 + $0x18] sm:$0xf]
        %v907 = vsel %vm891, %v609, %v906
        %908 = vst [vmem:[%s889 + $0x18] sm:$0xf] %v907
        %909 = vst.msk [vmem:[%s889 + $0x1c] sm:$0xf] %vm298, %v618
        %v910 = vld [vmem:[%s889 + $0x20] sm:$0x1]
        %v911 = vsel %vm309, %v619, %v910
        %912 = vst [vmem:[%s889 + $0x20] sm:$0x1] %v911
        %v913 = vld [vmem:[%s889 + $0x24] sm:$0xf]
        %v914 = vsel %vm891, %v626, %v913
        %915 = vst [vmem:[%s889 + $0x24] sm:$0xf] %v914
        %916 = vst.msk [vmem:[%s889 + $0x28] sm:$0xf] %vm298, %v635
        %v917 = vld [vmem:[%s889 + $0x2c] sm:$0x1]
        %v918 = vsel %vm309, %v636, %v917
        %919 = vst [vmem:[%s889 + $0x2c] sm:$0x1] %v918
        %v920 = vld [vmem:[%s889 + $0x30] sm:$0xf]
        %v921 = vsel %vm891, %v643, %v920
        %922 = vst [vmem:[%s889 + $0x30] sm:$0xf] %v921
        %923 = vst.msk [vmem:[%s889 + $0x34] sm:$0xf] %vm298, %v652
        %v924 = vld [vmem:[%s889 + $0x38] sm:$0x1]
        %v925 = vsel %vm309, %v653, %v924
        %926 = vst [vmem:[%s889 + $0x38] sm:$0x1] %v925
        %v927 = vld [vmem:[%s889 + $0x3c] sm:$0xf]
        %v928 = vsel %vm891, %v660, %v927
        %929 = vst [vmem:[%s889 + $0x3c] sm:$0xf] %v928
        %930 = vst.msk [vmem:[%s889 + $0x40] sm:$0xf] %vm298, %v669
        %v931 = vld [vmem:[%s889 + $0x44] sm:$0x1]
        %v932 = vsel %vm309, %v670, %v931
        %933 = vst [vmem:[%s889 + $0x44] sm:$0x1] %v932
        %v934 = vld [vmem:[%s889 + $0x48] sm:$0xf]
        %v935 = vsel %vm891, %v677, %v934
        %936 = vst [vmem:[%s889 + $0x48] sm:$0xf] %v935
        %937 = vst.msk [vmem:[%s889 + $0x4c] sm:$0xf] %vm298, %v686
        %v938 = vld [vmem:[%s889 + $0x50] sm:$0x1]
        %v939 = vsel %vm309, %v687, %v938
        %940 = vst [vmem:[%s889 + $0x50] sm:$0x1] %v939
        %v941 = vld [vmem:[%s889 + $0x54] sm:$0xf]
        %v942 = vsel %vm891, %v694, %v941
        %943 = vst [vmem:[%s889 + $0x54] sm:$0xf] %v942
        %944 = vst.msk [vmem:[%s889 + $0x58] sm:$0xf] %vm298, %v703
        %v945 = vld [vmem:[%s889 + $0x5c] sm:$0x1]
        %v946 = vsel %vm309, %v704, %v945
        %947 = vst [vmem:[%s889 + $0x5c] sm:$0x1] %v946
        %v948 = vld [vmem:[%s889 + $0x60] sm:$0xf]
        %v949 = vsel %vm891, %v711, %v948
        %950 = vst [vmem:[%s889 + $0x60] sm:$0xf] %v949
        %951 = vst.msk [vmem:[%s889 + $0x64] sm:$0xf] %vm298, %v720
        %v952 = vld [vmem:[%s889 + $0x68] sm:$0x1]
        %v953 = vsel %vm309, %v721, %v952
        %954 = vst [vmem:[%s889 + $0x68] sm:$0x1] %v953
        %v955 = vld [vmem:[%s889 + $0x6c] sm:$0xf]
        %v956 = vsel %vm891, %v728, %v955
        %957 = vst [vmem:[%s889 + $0x6c] sm:$0xf] %v956
        %958 = vst.msk [vmem:[%s889 + $0x70] sm:$0xf] %vm298, %v737
        %v959 = vld [vmem:[%s889 + $0x74] sm:$0x1]
        %v960 = vsel %vm309, %v738, %v959
        %961 = vst [vmem:[%s889 + $0x74] sm:$0x1] %v960
        %v962 = vld [vmem:[%s889 + $0x78] sm:$0xf]
        %v963 = vsel %vm891, %v745, %v962
        %964 = vst [vmem:[%s889 + $0x78] sm:$0xf] %v963
        %965 = vst.msk [vmem:[%s889 + $0x7c] sm:$0xf] %vm298, %v754
        %v966 = vld [vmem:[%s889 + $0x80] sm:$0x1]
        %v967 = vsel %vm309, %v755, %v966
        %968 = vst [vmem:[%s889 + $0x80] sm:$0x1] %v967
        %v969 = vld [vmem:[%s889 + $0x84] sm:$0xf]
        %v970 = vsel %vm891, %v762, %v969
        %971 = vst [vmem:[%s889 + $0x84] sm:$0xf] %v970
        %972 = vst.msk [vmem:[%s889 + $0x88] sm:$0xf] %vm298, %v771
        %v973 = vld [vmem:[%s889 + $0x8c] sm:$0x1]
        %v974 = vsel %vm309, %v772, %v973
        %975 = vst [vmem:[%s889 + $0x8c] sm:$0x1] %v974
        %v976 = vld [vmem:[%s889 + $0x90] sm:$0xf]
        %v977 = vsel %vm891, %v779, %v976
        %978 = vst [vmem:[%s889 + $0x90] sm:$0xf] %v977
        %979 = vst.msk [vmem:[%s889 + $0x94] sm:$0xf] %vm298, %v788
        %v980 = vld [vmem:[%s889 + $0x98] sm:$0x1]
        %v981 = vsel %vm309, %v789, %v980
        %982 = vst [vmem:[%s889 + $0x98] sm:$0x1] %v981
        %v983 = vld [vmem:[%s889 + $0x9c] sm:$0xf]
        %v984 = vsel %vm891, %v796, %v983
        %985 = vst [vmem:[%s889 + $0x9c] sm:$0xf] %v984
        %986 = vst.msk [vmem:[%s889 + $0xa0] sm:$0xf] %vm298, %v805
        %v987 = vld [vmem:[%s889 + $0xa4] sm:$0x1]
        %v988 = vsel %vm309, %v806, %v987
        %989 = vst [vmem:[%s889 + $0xa4] sm:$0x1] %v988
        %v990 = vld [vmem:[%s889 + $0xa8] sm:$0xf]
        %v991 = vsel %vm891, %v813, %v990
        %992 = vst [vmem:[%s889 + $0xa8] sm:$0xf] %v991
        %993 = vst.msk [vmem:[%s889 + $0xac] sm:$0xf] %vm298, %v822
        %v994 = vld [vmem:[%s889 + $0xb0] sm:$0x1]
        %v995 = vsel %vm309, %v823, %v994
        %996 = vst [vmem:[%s889 + $0xb0] sm:$0x1] %v995
        %v997 = vld [vmem:[%s889 + $0xb4] sm:$0xf]
        %v998 = vsel %vm891, %v830, %v997
        %999 = vst [vmem:[%s889 + $0xb4] sm:$0xf] %v998
        %1000 = vst.msk [vmem:[%s889 + $0xb8] sm:$0xf] %vm298, %v839
        %v1001 = vld [vmem:[%s889 + $0xbc] sm:$0x1]
        %v1002 = vsel %vm309, %v840, %v1001
        %1003 = vst [vmem:[%s889 + $0xbc] sm:$0x1] %v1002
        %v1004 = vld [vmem:[#allocation2] sm:$0xf]
        %v1005 = vld [vmem:[#allocation2 + $0x4] sm:$0xf]
        %v1006 = vld [vmem:[#allocation2 + $0xc] sm:$0xf]
        %v1007 = vld [vmem:[#allocation2 + $0x10] sm:$0xf]
        %v1008 = vld [vmem:[#allocation2 + $0x18] sm:$0xf]
        %v1009 = vld [vmem:[#allocation2 + $0x1c] sm:$0xf]
        %v1010 = vld [vmem:[#allocation2 + $0x24] sm:$0xf]
        %v1011 = vld [vmem:[#allocation2 + $0x28] sm:$0xf]
        %v1012 = vld [vmem:[#allocation2 + $0x30] sm:$0xf]
        %v1013 = vld [vmem:[#allocation2 + $0x34] sm:$0xf]
        %v1014 = vld [vmem:[#allocation2 + $0x3c] sm:$0xf]
        %v1015 = vld [vmem:[#allocation2 + $0x40] sm:$0xf]
        %v1016 = vld [vmem:[#allocation2 + $0x48] sm:$0xf]
        %v1017 = vld [vmem:[#allocation2 + $0x4c] sm:$0xf]
        %v1018 = vld [vmem:[#allocation2 + $0x54] sm:$0xf]
        %v1019 = vld [vmem:[#allocation2 + $0x58] sm:$0xf]
        %v1020 = vld [vmem:[#allocation2 + $0x60] sm:$0xf]
        %v1021 = vld [vmem:[#allocation2 + $0x64] sm:$0xf]
        %v1022 = vld [vmem:[#allocation2 + $0x6c] sm:$0xf]
        %v1023 = vld [vmem:[#allocation2 + $0x70] sm:$0xf]
        %v1024 = vld [vmem:[#allocation2 + $0x78] sm:$0xf]
        %v1025 = vld [vmem:[#allocation2 + $0x7c] sm:$0xf]
        %v1026 = vld [vmem:[#allocation2 + $0x84] sm:$0xf]
        %v1027 = vld [vmem:[#allocation2 + $0x88] sm:$0xf]
        %v1028 = vld [vmem:[#allocation2 + $0x90] sm:$0xf]
        %v1029 = vld [vmem:[#allocation2 + $0x94] sm:$0xf]
        %v1030 = vld [vmem:[#allocation2 + $0x9c] sm:$0xf]
        %v1031 = vld [vmem:[#allocation2 + $0xa0] sm:$0xf]
        %v1032 = vld [vmem:[#allocation2 + $0xa8] sm:$0xf]
        %v1033 = vld [vmem:[#allocation2 + $0xac] sm:$0xf]
        %v1034 = vld [vmem:[#allocation2 + $0xb4] sm:$0xf]
        %v1035 = vld [vmem:[#allocation2 + $0xb8] sm:$0xf]
        %v1036 = vld [vmem:[#allocation7] sm:$0x3]
        %v1037 = vld [vmem:[#allocation2 + $0x8] sm:$0x1]
        %v1038 = vld [vmem:[#allocation2 + $0x14] sm:$0x1]
        %v1039 = vld [vmem:[#allocation2 + $0x20] sm:$0x1]
        %v1040 = vld [vmem:[#allocation2 + $0x2c] sm:$0x1]
        %v1041 = vld [vmem:[#allocation2 + $0x38] sm:$0x1]
        %v1042 = vld [vmem:[#allocation2 + $0x44] sm:$0x1]
        %v1043 = vld [vmem:[#allocation2 + $0x50] sm:$0x1]
        %v1044 = vld [vmem:[#allocation2 + $0x5c] sm:$0x1]
        %v1045 = vld [vmem:[#allocation2 + $0x68] sm:$0x1]
        %v1046 = vld [vmem:[#allocation2 + $0x74] sm:$0x1]
        %v1047 = vld [vmem:[#allocation2 + $0x80] sm:$0x1]
        %v1048 = vld [vmem:[#allocation2 + $0x8c] sm:$0x1]
        %v1049 = vld [vmem:[#allocation2 + $0x98] sm:$0x1]
        %v1050 = vld [vmem:[#allocation2 + $0xa4] sm:$0x1]
        %v1051 = vld [vmem:[#allocation2 + $0xb0] sm:$0x1]
        %v1052 = vld [vmem:[#allocation2 + $0xbc] sm:$0x1]
        %vm1053 = vsmask.f32 3328
        %vm1054 = vsmask.f32 7440
        %vm1055 = vmor %vm1053, %vm1054
        %v1057 = vshrl.u32 %v1004, 16
        %v1059 = vrot.slane %v1057, 4
        %v1060 = vshll.u32 %v1004, 16
        %v1062 = vrot.slane %v1060, 5
        %v1063 = vor.u32 %v1059, %v1062
        %v1064 = vrot.slane %v1063, 4
        %v1066 = vshll.u32 %v1005, 16
        %v1068 = vrot.slane %v1066, 5
        %v1069 = vsel %vm1055, %v1064, %v1068
        %v1070 = vshrl.u32 %v1005, 16
        %v1072 = vrot.slane %v1070, 4
        %v1073 = vor.u32 %v1072, %v1068
        %v1074 = vrot.slane %v1073, 4
        %v1076 = vshll.u32 %v1037, 16
        %v1078 = vrot.slane %v1076, 5
        %v1079 = vsel %vm1055, %v1074, %v1078
        %v1081 = vshrl.u32 %v1006, 16
        %v1083 = vrot.slane %v1081, 4
        %v1084 = vshll.u32 %v1006, 16
        %v1086 = vrot.slane %v1084, 5
        %v1087 = vor.u32 %v1083, %v1086
        %v1088 = vrot.slane %v1087, 4
        %v1090 = vshll.u32 %v1007, 16
        %v1092 = vrot.slane %v1090, 5
        %v1093 = vsel %vm1055, %v1088, %v1092
        %v1094 = vshrl.u32 %v1007, 16
        %v1096 = vrot.slane %v1094, 4
        %v1097 = vor.u32 %v1096, %v1092
        %v1098 = vrot.slane %v1097, 4
        %v1100 = vshll.u32 %v1038, 16
        %v1102 = vrot.slane %v1100, 5
        %v1103 = vsel %vm1055, %v1098, %v1102
        %v1105 = vshrl.u32 %v1008, 16
        %v1107 = vrot.slane %v1105, 4
        %v1108 = vshll.u32 %v1008, 16
        %v1110 = vrot.slane %v1108, 5
        %v1111 = vor.u32 %v1107, %v1110
        %v1112 = vrot.slane %v1111, 4
        %v1114 = vshll.u32 %v1009, 16
        %v1116 = vrot.slane %v1114, 5
        %v1117 = vsel %vm1055, %v1112, %v1116
        %v1118 = vshrl.u32 %v1009, 16
        %v1120 = vrot.slane %v1118, 4
        %v1121 = vor.u32 %v1120, %v1116
        %v1122 = vrot.slane %v1121, 4
        %v1124 = vshll.u32 %v1039, 16
        %v1126 = vrot.slane %v1124, 5
        %v1127 = vsel %vm1055, %v1122, %v1126
        %v1129 = vshrl.u32 %v1010, 16
        %v1131 = vrot.slane %v1129, 4
        %v1132 = vshll.u32 %v1010, 16
        %v1134 = vrot.slane %v1132, 5
        %v1135 = vor.u32 %v1131, %v1134
        %v1136 = vrot.slane %v1135, 4
        %v1138 = vshll.u32 %v1011, 16
        %v1140 = vrot.slane %v1138, 5
        %v1141 = vsel %vm1055, %v1136, %v1140
        %v1142 = vshrl.u32 %v1011, 16
        %v1144 = vrot.slane %v1142, 4
        %v1145 = vor.u32 %v1144, %v1140
        %v1146 = vrot.slane %v1145, 4
        %v1148 = vshll.u32 %v1040, 16
        %v1150 = vrot.slane %v1148, 5
        %v1151 = vsel %vm1055, %v1146, %v1150
        %v1153 = vshrl.u32 %v1012, 16
        %v1155 = vrot.slane %v1153, 4
        %v1156 = vshll.u32 %v1012, 16
        %v1158 = vrot.slane %v1156, 5
        %v1159 = vor.u32 %v1155, %v1158
        %v1160 = vrot.slane %v1159, 4
        %v1162 = vshll.u32 %v1013, 16
        %v1164 = vrot.slane %v1162, 5
        %v1165 = vsel %vm1055, %v1160, %v1164
        %v1166 = vshrl.u32 %v1013, 16
        %v1168 = vrot.slane %v1166, 4
        %v1169 = vor.u32 %v1168, %v1164
        %v1170 = vrot.slane %v1169, 4
        %v1172 = vshll.u32 %v1041, 16
        %v1174 = vrot.slane %v1172, 5
        %v1175 = vsel %vm1055, %v1170, %v1174
        %v1177 = vshrl.u32 %v1014, 16
        %v1179 = vrot.slane %v1177, 4
        %v1180 = vshll.u32 %v1014, 16
        %v1182 = vrot.slane %v1180, 5
        %v1183 = vor.u32 %v1179, %v1182
        %v1184 = vrot.slane %v1183, 4
        %v1186 = vshll.u32 %v1015, 16
        %v1188 = vrot.slane %v1186, 5
        %v1189 = vsel %vm1055, %v1184, %v1188
        %v1190 = vshrl.u32 %v1015, 16
        %v1192 = vrot.slane %v1190, 4
        %v1193 = vor.u32 %v1192, %v1188
        %v1194 = vrot.slane %v1193, 4
        %v1196 = vshll.u32 %v1042, 16
        %v1198 = vrot.slane %v1196, 5
        %v1199 = vsel %vm1055, %v1194, %v1198
        %v1201 = vshrl.u32 %v1016, 16
        %v1203 = vrot.slane %v1201, 4
        %v1204 = vshll.u32 %v1016, 16
        %v1206 = vrot.slane %v1204, 5
        %v1207 = vor.u32 %v1203, %v1206
        %v1208 = vrot.slane %v1207, 4
        %v1210 = vshll.u32 %v1017, 16
        %v1212 = vrot.slane %v1210, 5
        %v1213 = vsel %vm1055, %v1208, %v1212
        %v1214 = vshrl.u32 %v1017, 16
        %v1216 = vrot.slane %v1214, 4
        %v1217 = vor.u32 %v1216, %v1212
        %v1218 = vrot.slane %v1217, 4
        %v1220 = vshll.u32 %v1043, 16
        %v1222 = vrot.slane %v1220, 5
        %v1223 = vsel %vm1055, %v1218, %v1222
        %v1225 = vshrl.u32 %v1018, 16
        %v1227 = vrot.slane %v1225, 4
        %v1228 = vshll.u32 %v1018, 16
        %v1230 = vrot.slane %v1228, 5
        %v1231 = vor.u32 %v1227, %v1230
        %v1232 = vrot.slane %v1231, 4
        %v1234 = vshll.u32 %v1019, 16
        %v1236 = vrot.slane %v1234, 5
        %v1237 = vsel %vm1055, %v1232, %v1236
        %v1238 = vshrl.u32 %v1019, 16
        %v1240 = vrot.slane %v1238, 4
        %v1241 = vor.u32 %v1240, %v1236
        %v1242 = vrot.slane %v1241, 4
        %v1244 = vshll.u32 %v1044, 16
        %v1246 = vrot.slane %v1244, 5
        %v1247 = vsel %vm1055, %v1242, %v1246
        %v1249 = vshrl.u32 %v1020, 16
        %v1251 = vrot.slane %v1249, 4
        %v1252 = vshll.u32 %v1020, 16
        %v1254 = vrot.slane %v1252, 5
        %v1255 = vor.u32 %v1251, %v1254
        %v1256 = vrot.slane %v1255, 4
        %v1258 = vshll.u32 %v1021, 16
        %v1260 = vrot.slane %v1258, 5
        %v1261 = vsel %vm1055, %v1256, %v1260
        %v1262 = vshrl.u32 %v1021, 16
        %v1264 = vrot.slane %v1262, 4
        %v1265 = vor.u32 %v1264, %v1260
        %v1266 = vrot.slane %v1265, 4
        %v1268 = vshll.u32 %v1045, 16
        %v1270 = vrot.slane %v1268, 5
        %v1271 = vsel %vm1055, %v1266, %v1270
        %v1273 = vshrl.u32 %v1022, 16
        %v1275 = vrot.slane %v1273, 4
        %v1276 = vshll.u32 %v1022, 16
        %v1278 = vrot.slane %v1276, 5
        %v1279 = vor.u32 %v1275, %v1278
        %v1280 = vrot.slane %v1279, 4
        %v1282 = vshll.u32 %v1023, 16
        %v1284 = vrot.slane %v1282, 5
        %v1285 = vsel %vm1055, %v1280, %v1284
        %v1286 = vshrl.u32 %v1023, 16
        %v1288 = vrot.slane %v1286, 4
        %v1289 = vor.u32 %v1288, %v1284
        %v1290 = vrot.slane %v1289, 4
        %v1292 = vshll.u32 %v1046, 16
        %v1294 = vrot.slane %v1292, 5
        %v1295 = vsel %vm1055, %v1290, %v1294
        %v1297 = vshrl.u32 %v1024, 16
        %v1299 = vrot.slane %v1297, 4
        %v1300 = vshll.u32 %v1024, 16
        %v1302 = vrot.slane %v1300, 5
        %v1303 = vor.u32 %v1299, %v1302
        %v1304 = vrot.slane %v1303, 4
        %v1306 = vshll.u32 %v1025, 16
        %v1308 = vrot.slane %v1306, 5
        %v1309 = vsel %vm1055, %v1304, %v1308
        %v1310 = vshrl.u32 %v1025, 16
        %v1312 = vrot.slane %v1310, 4
        %v1313 = vor.u32 %v1312, %v1308
        %v1314 = vrot.slane %v1313, 4
        %v1316 = vshll.u32 %v1047, 16
        %v1318 = vrot.slane %v1316, 5
        %v1319 = vsel %vm1055, %v1314, %v1318
        %v1321 = vshrl.u32 %v1026, 16
        %v1323 = vrot.slane %v1321, 4
        %v1324 = vshll.u32 %v1026, 16
        %v1326 = vrot.slane %v1324, 5
        %v1327 = vor.u32 %v1323, %v1326
        %v1328 = vrot.slane %v1327, 4
        %v1330 = vshll.u32 %v1027, 16
        %v1332 = vrot.slane %v1330, 5
        %v1333 = vsel %vm1055, %v1328, %v1332
        %v1334 = vshrl.u32 %v1027, 16
        %v1336 = vrot.slane %v1334, 4
        %v1337 = vor.u32 %v1336, %v1332
        %v1338 = vrot.slane %v1337, 4
        %v1340 = vshll.u32 %v1048, 16
        %v1342 = vrot.slane %v1340, 5
        %v1343 = vsel %vm1055, %v1338, %v1342
        %v1345 = vshrl.u32 %v1028, 16
        %v1347 = vrot.slane %v1345, 4
        %v1348 = vshll.u32 %v1028, 16
        %v1350 = vrot.slane %v1348, 5
        %v1351 = vor.u32 %v1347, %v1350
        %v1352 = vrot.slane %v1351, 4
        %v1354 = vshll.u32 %v1029, 16
        %v1356 = vrot.slane %v1354, 5
        %v1357 = vsel %vm1055, %v1352, %v1356
        %v1358 = vshrl.u32 %v1029, 16
        %v1360 = vrot.slane %v1358, 4
        %v1361 = vor.u32 %v1360, %v1356
        %v1362 = vrot.slane %v1361, 4
        %v1364 = vshll.u32 %v1049, 16
        %v1366 = vrot.slane %v1364, 5
        %v1367 = vsel %vm1055, %v1362, %v1366
        %v1369 = vshrl.u32 %v1030, 16
        %v1371 = vrot.slane %v1369, 4
        %v1372 = vshll.u32 %v1030, 16
        %v1374 = vrot.slane %v1372, 5
        %v1375 = vor.u32 %v1371, %v1374
        %v1376 = vrot.slane %v1375, 4
        %v1378 = vshll.u32 %v1031, 16
        %v1380 = vrot.slane %v1378, 5
        %v1381 = vsel %vm1055, %v1376, %v1380
        %v1382 = vshrl.u32 %v1031, 16
        %v1384 = vrot.slane %v1382, 4
        %v1385 = vor.u32 %v1384, %v1380
        %v1386 = vrot.slane %v1385, 4
        %v1388 = vshll.u32 %v1050, 16
        %v1390 = vrot.slane %v1388, 5
        %v1391 = vsel %vm1055, %v1386, %v1390
        %v1393 = vshrl.u32 %v1032, 16
        %v1395 = vrot.slane %v1393, 4
        %v1396 = vshll.u32 %v1032, 16
        %v1398 = vrot.slane %v1396, 5
        %v1399 = vor.u32 %v1395, %v1398
        %v1400 = vrot.slane %v1399, 4
        %v1402 = vshll.u32 %v1033, 16
        %v1404 = vrot.slane %v1402, 5
        %v1405 = vsel %vm1055, %v1400, %v1404
        %v1406 = vshrl.u32 %v1033, 16
        %v1408 = vrot.slane %v1406, 4
        %v1409 = vor.u32 %v1408, %v1404
        %v1410 = vrot.slane %v1409, 4
        %v1412 = vshll.u32 %v1051, 16
        %v1414 = vrot.slane %v1412, 5
        %v1415 = vsel %vm1055, %v1410, %v1414
        %v1417 = vshrl.u32 %v1034, 16
        %v1419 = vrot.slane %v1417, 4
        %v1420 = vshll.u32 %v1034, 16
        %v1422 = vrot.slane %v1420, 5
        %v1423 = vor.u32 %v1419, %v1422
        %v1424 = vrot.slane %v1423, 4
        %v1426 = vshll.u32 %v1035, 16
        %v1428 = vrot.slane %v1426, 5
        %v1429 = vsel %vm1055, %v1424, %v1428
        %v1430 = vshrl.u32 %v1035, 16
        %v1432 = vrot.slane %v1430, 4
        %v1433 = vor.u32 %v1432, %v1428
        %v1434 = vrot.slane %v1433, 4
        %v1436 = vshll.u32 %v1052, 16
        %v1438 = vrot.slane %v1436, 5
        %v1439 = vsel %vm1055, %v1434, %v1438
        %s1440 = scalar_lea.vmem [#allocation7], 2
        %v1441 = vld [vmem:[%s1440] sm:$0x3]
        %v1442 = vunpack.c.l.b16 %v1069
        %v1443 = vunpack.c.l.b16 %v1079
        %v1444 = vunpack.c.l.b16 %v1093
        %v1445 = vunpack.c.l.b16 %v1103
        %v1446 = vunpack.c.l.b16 %v1117
        %v1447 = vunpack.c.l.b16 %v1127
        %v1448 = vunpack.c.l.b16 %v1141
        %v1449 = vunpack.c.l.b16 %v1151
        %v1450 = vunpack.c.l.b16 %v1165
        %v1451 = vunpack.c.l.b16 %v1175
        %v1452 = vunpack.c.l.b16 %v1189
        %v1453 = vunpack.c.l.b16 %v1199
        %v1454 = vunpack.c.l.b16 %v1213
        %v1455 = vunpack.c.l.b16 %v1223
        %v1456 = vunpack.c.l.b16 %v1237
        %v1457 = vunpack.c.l.b16 %v1247
        %v1458 = vunpack.c.l.b16 %v1261
        %v1459 = vunpack.c.l.b16 %v1271
        %v1460 = vunpack.c.l.b16 %v1285
        %v1461 = vunpack.c.l.b16 %v1295
        %v1462 = vunpack.c.l.b16 %v1309
        %v1463 = vunpack.c.l.b16 %v1319
        %v1464 = vunpack.c.l.b16 %v1333
        %v1465 = vunpack.c.l.b16 %v1343
        %v1466 = vunpack.c.l.b16 %v1357
        %v1467 = vunpack.c.l.b16 %v1367
        %v1468 = vunpack.c.l.b16 %v1381
        %v1469 = vunpack.c.l.b16 %v1391
        %v1470 = vunpack.c.l.b16 %v1405
        %v1471 = vunpack.c.l.b16 %v1415
        %v1472 = vunpack.c.l.b16 %v1429
        %v1473 = vunpack.c.l.b16 %v1439
        %v1474 = vpack.c.b16 %v1443, %v1442
        %v1475 = vpack.c.b16 %v1445, %v1444
        %v1476 = vpack.c.b16 %v1447, %v1446
        %v1477 = vpack.c.b16 %v1449, %v1448
        %v1478 = vpack.c.b16 %v1451, %v1450
        %v1479 = vpack.c.b16 %v1453, %v1452
        %v1480 = vpack.c.b16 %v1455, %v1454
        %v1481 = vpack.c.b16 %v1457, %v1456
        %v1482 = vpack.c.b16 %v1459, %v1458
        %v1483 = vpack.c.b16 %v1461, %v1460
        %v1484 = vpack.c.b16 %v1463, %v1462
        %v1485 = vpack.c.b16 %v1465, %v1464
        %v1486 = vpack.c.b16 %v1467, %v1466
        %v1487 = vpack.c.b16 %v1469, %v1468
        %v1488 = vpack.c.b16 %v1471, %v1470
        %v1489 = vpack.c.b16 %v1473, %v1472
        %vm1490 = vcmask 31744
        %v1492 = vsel %vm1490, %v1474, 0
        %v1495 = vsel %vm1490, %v1475, 0
        %v1498 = vsel %vm1490, %v1476, 0
        %v1501 = vsel %vm1490, %v1477, 0
        %v1504 = vsel %vm1490, %v1478, 0
        %v1507 = vsel %vm1490, %v1479, 0
        %v1510 = vsel %vm1490, %v1480, 0
        %v1513 = vsel %vm1490, %v1481, 0
        %v1516 = vsel %vm1490, %v1482, 0
        %v1519 = vsel %vm1490, %v1483, 0
        %v1522 = vsel %vm1490, %v1484, 0
        %v1525 = vsel %vm1490, %v1485, 0
        %v1528 = vsel %vm1490, %v1486, 0
        %v1531 = vsel %vm1490, %v1487, 0
        %v1534 = vsel %vm1490, %v1488, 0
        %v1537 = vsel %vm1490, %v1489, 0
        %vm1539 = vcmask 1041408
        %v1541 = vsel %vm1539, %v1441, 0
        %1543 = vmatprep.subr.bf16.mxu0 0
        %1544 = vmatpush1.bf16.msra.mxu0 %v1541
        %1545 = vmatprep.subr.bf16.mxu0 0
        %1546 = vmatpush1.bf16.msra.mxu0 0
        %1547 = vmatprep.subr.bf16.mxu0 0
        %1548 = vmatpush1.bf16.msra.mxu0 0
        %1549 = vmatprep.subr.bf16.mxu0 0
        %1550 = vmatpush1.bf16.msra.mxu0 0
        %1551 = vmatprep.subr.bf16.mxu0 0
        %1552 = vmatpush1.bf16.msra.mxu0 0
        %1553 = vmatprep.subr.bf16.mxu0 0
        %1554 = vmatpush1.bf16.msra.mxu0 0
        %1555 = vmatprep.subr.bf16.mxu0 0
        %1556 = vmatpush1.bf16.msra.mxu0 0
        %1557 = vmatprep.subr.bf16.mxu0 0
        %1558 = vmatpush1.bf16.msra.mxu0 0
        %1559 = vmatprep.subr.bf16.mxu0 0
        %1560 = vmatpush1.bf16.msra.mxu0 0
        %1561 = vmatprep.subr.bf16.mxu0 0
        %1562 = vmatpush1.bf16.msra.mxu0 0
        %1563 = vmatprep.subr.bf16.mxu0 0
        %1564 = vmatpush1.bf16.msra.mxu0 0
        %1565 = vmatprep.subr.bf16.mxu0 0
        %1566 = vmatpush1.bf16.msra.mxu0 0
        %1567 = vmatprep.subr.bf16.mxu0 0
        %1568 = vmatpush1.bf16.msra.mxu0 0
        %1569 = vmatprep.subr.bf16.mxu0 0
        %1570 = vmatpush1.bf16.msra.mxu0 0
        %1571 = vmatprep.subr.bf16.mxu0 0
        %1572 = vmatpush1.bf16.msra.mxu0 0
        %1573 = vmatprep.subr.bf16.mxu0 0
        %1574 = vmatpush1.bf16.msra.mxu0 0
        %1575 = vmatprep.mubr.bf16.mxu0 0
        %1576 = vmatmul.mubr.bf16.gmra.mrb[0].mxu0 %v1492
        %v1577 = vpop.f32.mrb[0].mxu0
        %v1578 = vadd.f32 0.0, %v1577
        %v1579 = vpop.f32.mrb[0].mxu0
        %v1580 = vpop.f32.mrb[0].mxu0
        %v1581 = vadd.f32 0.0, %v1580
        %v1582 = vpop.f32.mrb[0].mxu0
        %1583 = vmatprep.mubr.bf16.mxu0 0
        %1584 = vmatmul.mubr.bf16.gmra.mrb[0].mxu0 %v1495
        %v1585 = vpop.f32.mrb[0].mxu0
        %v1586 = vadd.f32 0.0, %v1585
        %v1587 = vpop.f32.mrb[0].mxu0
        %v1588 = vpop.f32.mrb[0].mxu0
        %v1589 = vadd.f32 0.0, %v1588
        %v1590 = vpop.f32.mrb[0].mxu0
        %1591 = vmatprep.mubr.bf16.mxu0 0
        %1592 = vmatmul.mubr.bf16.gmra.mrb[0].mxu0 %v1498
        %v1593 = vpop.f32.mrb[0].mxu0
        %v1594 = vadd.f32 0.0, %v1593
        %v1595 = vpop.f32.mrb[0].mxu0
        %v1596 = vpop.f32.mrb[0].mxu0
        %v1597 = vadd.f32 0.0, %v1596
        %v1598 = vpop.f32.mrb[0].mxu0
        %1599 = vmatprep.mubr.bf16.mxu0 0
        %1600 = vmatmul.mubr.bf16.gmra.mrb[0].mxu0 %v1501
        %v1601 = vpop.f32.mrb[0].mxu0
        %v1602 = vadd.f32 0.0, %v1601
        %v1603 = vpop.f32.mrb[0].mxu0
        %v1604 = vpop.f32.mrb[0].mxu0
        %v1605 = vadd.f32 0.0, %v1604
        %v1606 = vpop.f32.mrb[0].mxu0
        %1607 = vmatprep.mubr.bf16.mxu0 0
        %1608 = vmatmul.mubr.bf16.gmra.mrb[0].mxu0 %v1504
        %v1609 = vpop.f32.mrb[0].mxu0
        %v1610 = vadd.f32 0.0, %v1609
        %v1611 = vpop.f32.mrb[0].mxu0
        %v1612 = vpop.f32.mrb[0].mxu0
        %v1613 = vadd.f32 0.0, %v1612
        %v1614 = vpop.f32.mrb[0].mxu0
        %1615 = vmatprep.mubr.bf16.mxu0 0
        %1616 = vmatmul.mubr.bf16.gmra.mrb[0].mxu0 %v1507
        %v1617 = vpop.f32.mrb[0].mxu0
        %v1618 = vadd.f32 0.0, %v1617
        %v1619 = vpop.f32.mrb[0].mxu0
        %v1620 = vpop.f32.mrb[0].mxu0
        %v1621 = vadd.f32 0.0, %v1620
        %v1622 = vpop.f32.mrb[0].mxu0
        %1623 = vmatprep.mubr.bf16.mxu0 0
        %1624 = vmatmul.mubr.bf16.gmra.mrb[0].mxu0 %v1510
        %v1625 = vpop.f32.mrb[0].mxu0
        %v1626 = vadd.f32 0.0, %v1625
        %v1627 = vpop.f32.mrb[0].mxu0
        %v1628 = vpop.f32.mrb[0].mxu0
        %v1629 = vadd.f32 0.0, %v1628
        %v1630 = vpop.f32.mrb[0].mxu0
        %1631 = vmatprep.mubr.bf16.mxu0 0
        %1632 = vmatmul.mubr.bf16.gmra.mrb[0].mxu0 %v1513
        %v1633 = vpop.f32.mrb[0].mxu0
        %v1634 = vadd.f32 0.0, %v1633
        %v1635 = vpop.f32.mrb[0].mxu0
        %v1636 = vpop.f32.mrb[0].mxu0
        %v1637 = vadd.f32 0.0, %v1636
        %v1638 = vpop.f32.mrb[0].mxu0
        %1639 = vmatprep.mubr.bf16.mxu0 0
        %1640 = vmatmul.mubr.bf16.gmra.mrb[0].mxu0 %v1516
        %v1641 = vpop.f32.mrb[0].mxu0
        %v1642 = vadd.f32 0.0, %v1641
        %v1643 = vpop.f32.mrb[0].mxu0
        %v1644 = vpop.f32.mrb[0].mxu0
        %v1645 = vadd.f32 0.0, %v1644
        %v1646 = vpop.f32.mrb[0].mxu0
        %1647 = vmatprep.mubr.bf16.mxu0 0
        %1648 = vmatmul.mubr.bf16.gmra.mrb[0].mxu0 %v1519
        %v1649 = vpop.f32.mrb[0].mxu0
        %v1650 = vadd.f32 0.0, %v1649
        %v1651 = vpop.f32.mrb[0].mxu0
        %v1652 = vpop.f32.mrb[0].mxu0
        %v1653 = vadd.f32 0.0, %v1652
        %v1654 = vpop.f32.mrb[0].mxu0
        %1655 = vmatprep.mubr.bf16.mxu0 0
        %1656 = vmatmul.mubr.bf16.gmra.mrb[0].mxu0 %v1522
        %v1657 = vpop.f32.mrb[0].mxu0
        %v1658 = vadd.f32 0.0, %v1657
        %v1659 = vpop.f32.mrb[0].mxu0
        %v1660 = vpop.f32.mrb[0].mxu0
        %v1661 = vadd.f32 0.0, %v1660
        %v1662 = vpop.f32.mrb[0].mxu0
        %1663 = vmatprep.mubr.bf16.mxu0 0
        %1664 = vmatmul.mubr.bf16.gmra.mrb[0].mxu0 %v1525
        %v1665 = vpop.f32.mrb[0].mxu0
        %v1666 = vadd.f32 0.0, %v1665
        %v1667 = vpop.f32.mrb[0].mxu0
        %v1668 = vpop.f32.mrb[0].mxu0
        %v1669 = vadd.f32 0.0, %v1668
        %v1670 = vpop.f32.mrb[0].mxu0
        %1671 = vmatprep.mubr.bf16.mxu0 0
        %1672 = vmatmul.mubr.bf16.gmra.mrb[0].mxu0 %v1528
        %v1673 = vpop.f32.mrb[0].mxu0
        %v1674 = vadd.f32 0.0, %v1673
        %v1675 = vpop.f32.mrb[0].mxu0
        %v1676 = vpop.f32.mrb[0].mxu0
        %v1677 = vadd.f32 0.0, %v1676
        %v1678 = vpop.f32.mrb[0].mxu0
        %1679 = vmatprep.mubr.bf16.mxu0 0
        %1680 = vmatmul.mubr.bf16.gmra.mrb[0].mxu0 %v1531
        %v1681 = vpop.f32.mrb[0].mxu0
        %v1682 = vadd.f32 0.0, %v1681
        %v1683 = vpop.f32.mrb[0].mxu0
        %v1684 = vpop.f32.mrb[0].mxu0
        %v1685 = vadd.f32 0.0, %v1684
        %v1686 = vpop.f32.mrb[0].mxu0
        %1687 = vmatprep.mubr.bf16.mxu0 0
        %1688 = vmatmul.mubr.bf16.gmra.mrb[0].mxu0 %v1534
        %v1689 = vpop.f32.mrb[0].mxu0
        %v1690 = vadd.f32 0.0, %v1689
        %v1691 = vpop.f32.mrb[0].mxu0
        %v1692 = vpop.f32.mrb[0].mxu0
        %v1693 = vadd.f32 0.0, %v1692
        %v1694 = vpop.f32.mrb[0].mxu0
        %1695 = vmatprep.mubr.bf16.mxu0 0
        %1696 = vmatmul.mubr.bf16.gmra.mrb[0].mxu0 %v1537
        %v1697 = vpop.f32.mrb[0].mxu0
        %v1698 = vadd.f32 0.0, %v1697
        %v1699 = vpop.f32.mrb[0].mxu0
        %v1700 = vpop.f32.mrb[0].mxu0
        %v1701 = vadd.f32 0.0, %v1700
        %v1702 = vpop.f32.mrb[0].mxu0
        %1703 = vdwg.mxu0
        %v1736 = vunpack.c.l.b16 %v1004
        %v1737 = vunpack.c.l.b16 %v1005
        %v1738 = vunpack.c.l.b16 %v1006
        %v1739 = vunpack.c.l.b16 %v1007
        %v1740 = vunpack.c.l.b16 %v1008
        %v1741 = vunpack.c.l.b16 %v1009
        %v1742 = vunpack.c.l.b16 %v1010
        %v1743 = vunpack.c.l.b16 %v1011
        %v1744 = vunpack.c.l.b16 %v1012
        %v1745 = vunpack.c.l.b16 %v1013
        %v1746 = vunpack.c.l.b16 %v1014
        %v1747 = vunpack.c.l.b16 %v1015
        %v1748 = vunpack.c.l.b16 %v1016
        %v1749 = vunpack.c.l.b16 %v1017
        %v1750 = vunpack.c.l.b16 %v1018
        %v1751 = vunpack.c.l.b16 %v1019
        %v1752 = vunpack.c.l.b16 %v1020
        %v1753 = vunpack.c.l.b16 %v1021
        %v1754 = vunpack.c.l.b16 %v1022
        %v1755 = vunpack.c.l.b16 %v1023
        %v1756 = vunpack.c.l.b16 %v1024
        %v1757 = vunpack.c.l.b16 %v1025
        %v1758 = vunpack.c.l.b16 %v1026
        %v1759 = vunpack.c.l.b16 %v1027
        %v1760 = vunpack.c.l.b16 %v1028
        %v1761 = vunpack.c.l.b16 %v1029
        %v1762 = vunpack.c.l.b16 %v1030
        %v1763 = vunpack.c.l.b16 %v1031
        %v1764 = vunpack.c.l.b16 %v1032
        %v1765 = vunpack.c.l.b16 %v1033
        %v1766 = vunpack.c.l.b16 %v1034
        %v1767 = vunpack.c.l.b16 %v1035
        %v1768 = vpack.c.b16 %v1737, %v1736
        %v1769 = vpack.c.b16 %v1739, %v1738
        %v1770 = vpack.c.b16 %v1741, %v1740
        %v1771 = vpack.c.b16 %v1743, %v1742
        %v1772 = vpack.c.b16 %v1745, %v1744
        %v1773 = vpack.c.b16 %v1747, %v1746
        %v1774 = vpack.c.b16 %v1749, %v1748
        %v1775 = vpack.c.b16 %v1751, %v1750
        %v1776 = vpack.c.b16 %v1753, %v1752
        %v1777 = vpack.c.b16 %v1755, %v1754
        %v1778 = vpack.c.b16 %v1757, %v1756
        %v1779 = vpack.c.b16 %v1759, %v1758
        %v1780 = vpack.c.b16 %v1761, %v1760
        %v1781 = vpack.c.b16 %v1763, %v1762
        %v1782 = vpack.c.b16 %v1765, %v1764
        %v1783 = vpack.c.b16 %v1767, %v1766
        %v1785 = vsel %vm1490, %v1768, 0
        %v1788 = vsel %vm1490, %v1769, 0
        %v1791 = vsel %vm1490, %v1770, 0
        %v1794 = vsel %vm1490, %v1771, 0
        %v1797 = vsel %vm1490, %v1772, 0
        %v1800 = vsel %vm1490, %v1773, 0
        %v1803 = vsel %vm1490, %v1774, 0
        %v1806 = vsel %vm1490, %v1775, 0
        %v1809 = vsel %vm1490, %v1776, 0
        %v1812 = vsel %vm1490, %v1777, 0
        %v1815 = vsel %vm1490, %v1778, 0
        %v1818 = vsel %vm1490, %v1779, 0
        %v1821 = vsel %vm1490, %v1780, 0
        %v1824 = vsel %vm1490, %v1781, 0
        %v1827 = vsel %vm1490, %v1782, 0
        %v1830 = vsel %vm1490, %v1783, 0
        %v1833 = vsel %vm1539, %v1036, 0
        %1835 = vmatprep.subr.bf16.mxu0 0
        %1836 = vmatpush1.bf16.msra.mxu0 %v1833
        %1837 = vmatprep.subr.bf16.mxu0 0
        %1838 = vmatpush1.bf16.msra.mxu0 0
        %1839 = vmatprep.subr.bf16.mxu0 0
        %1840 = vmatpush1.bf16.msra.mxu0 0
        %1841 = vmatprep.subr.bf16.mxu0 0
        %1842 = vmatpush1.bf16.msra.mxu0 0
        %1843 = vmatprep.subr.bf16.mxu0 0
        %1844 = vmatpush1.bf16.msra.mxu0 0
        %1845 = vmatprep.subr.bf16.mxu0 0
        %1846 = vmatpush1.bf16.msra.mxu0 0
        %1847 = vmatprep.subr.bf16.mxu0 0
        %1848 = vmatpush1.bf16.msra.mxu0 0
        %1849 = vmatprep.subr.bf16.mxu0 0
        %1850 = vmatpush1.bf16.msra.mxu0 0
        %1851 = vmatprep.subr.bf16.mxu0 0
        %1852 = vmatpush1.bf16.msra.mxu0 0
        %1853 = vmatprep.subr.bf16.mxu0 0
        %1854 = vmatpush1.bf16.msra.mxu0 0
        %1855 = vmatprep.subr.bf16.mxu0 0
        %1856 = vmatpush1.bf16.msra.mxu0 0
        %1857 = vmatprep.subr.bf16.mxu0 0
        %1858 = vmatpush1.bf16.msra.mxu0 0
        %1859 = vmatprep.subr.bf16.mxu0 0
        %1860 = vmatpush1.bf16.msra.mxu0 0
        %1861 = vmatprep.subr.bf16.mxu0 0
        %1862 = vmatpush1.bf16.msra.mxu0 0
        %1863 = vmatprep.subr.bf16.mxu0 0
        %1864 = vmatpush1.bf16.msra.mxu0 0
        %1865 = vmatprep.subr.bf16.mxu0 0
        %1866 = vmatpush1.bf16.msra.mxu0 0
        %1867 = vmatprep.mubr.bf16.mxu0 0
        %1868 = vmatmul.mubr.bf16.gmra.mrb[0].mxu0 %v1785
        %v1869 = vpop.f32.mrb[0].mxu0
        %v1870 = vadd.f32 %v1578, %v1869
        %v1871 = vpop.f32.mrb[0].mxu0
        %v1872 = vpop.f32.mrb[0].mxu0
        %v1873 = vadd.f32 %v1581, %v1872
        %v1874 = vpop.f32.mrb[0].mxu0
        %1875 = vmatprep.mubr.bf16.mxu0 0
        %1876 = vmatmul.mubr.bf16.gmra.mrb[0].mxu0 %v1788
        %v1877 = vpop.f32.mrb[0].mxu0
        %v1878 = vadd.f32 %v1586, %v1877
        %v1879 = vpop.f32.mrb[0].mxu0
        %v1880 = vpop.f32.mrb[0].mxu0
        %v1881 = vadd.f32 %v1589, %v1880
        %v1882 = vpop.f32.mrb[0].mxu0
        %1883 = vmatprep.mubr.bf16.mxu0 0
        %1884 = vmatmul.mubr.bf16.gmra.mrb[0].mxu0 %v1791
        %v1885 = vpop.f32.mrb[0].mxu0
        %v1886 = vadd.f32 %v1594, %v1885
        %v1887 = vpop.f32.mrb[0].mxu0
        %v1888 = vpop.f32.mrb[0].mxu0
        %v1889 = vadd.f32 %v1597, %v1888
        %v1890 = vpop.f32.mrb[0].mxu0
        %1891 = vmatprep.mubr.bf16.mxu0 0
        %1892 = vmatmul.mubr.bf16.gmra.mrb[0].mxu0 %v1794
        %v1893 = vpop.f32.mrb[0].mxu0
        %v1894 = vadd.f32 %v1602, %v1893
        %v1895 = vpop.f32.mrb[0].mxu0
        %v1896 = vpop.f32.mrb[0].mxu0
        %v1897 = vadd.f32 %v1605, %v1896
        %v1898 = vpop.f32.mrb[0].mxu0
        %1899 = vmatprep.mubr.bf16.mxu0 0
        %1900 = vmatmul.mubr.bf16.gmra.mrb[0].mxu0 %v1797
        %v1901 = vpop.f32.mrb[0].mxu0
        %v1902 = vadd.f32 %v1610, %v1901
        %v1903 = vpop.f32.mrb[0].mxu0
        %v1904 = vpop.f32.mrb[0].mxu0
        %v1905 = vadd.f32 %v1613, %v1904
        %v1906 = vpop.f32.mrb[0].mxu0
        %1907 = vmatprep.mubr.bf16.mxu0 0
        %1908 = vmatmul.mubr.bf16.gmra.mrb[0].mxu0 %v1800
        %v1909 = vpop.f32.mrb[0].mxu0
        %v1910 = vadd.f32 %v1618, %v1909
        %v1911 = vpop.f32.mrb[0].mxu0
        %v1912 = vpop.f32.mrb[0].mxu0
        %v1913 = vadd.f32 %v1621, %v1912
        %v1914 = vpop.f32.mrb[0].mxu0
        %1915 = vmatprep.mubr.bf16.mxu0 0
        %1916 = vmatmul.mubr.bf16.gmra.mrb[0].mxu0 %v1803
        %v1917 = vpop.f32.mrb[0].mxu0
        %v1918 = vadd.f32 %v1626, %v1917
        %v1919 = vpop.f32.mrb[0].mxu0
        %v1920 = vpop.f32.mrb[0].mxu0
        %v1921 = vadd.f32 %v1629, %v1920
        %v1922 = vpop.f32.mrb[0].mxu0
        %1923 = vmatprep.mubr.bf16.mxu0 0
        %1924 = vmatmul.mubr.bf16.gmra.mrb[0].mxu0 %v1806
        %v1925 = vpop.f32.mrb[0].mxu0
        %v1926 = vadd.f32 %v1634, %v1925
        %v1927 = vpop.f32.mrb[0].mxu0
        %v1928 = vpop.f32.mrb[0].mxu0
        %v1929 = vadd.f32 %v1637, %v1928
        %v1930 = vpop.f32.mrb[0].mxu0
        %1931 = vmatprep.mubr.bf16.mxu0 0
        %1932 = vmatmul.mubr.bf16.gmra.mrb[0].mxu0 %v1809
        %v1933 = vpop.f32.mrb[0].mxu0
        %v1934 = vadd.f32 %v1642, %v1933
        %v1935 = vpop.f32.mrb[0].mxu0
        %v1936 = vpop.f32.mrb[0].mxu0
        %v1937 = vadd.f32 %v1645, %v1936
        %v1938 = vpop.f32.mrb[0].mxu0
        %1939 = vmatprep.mubr.bf16.mxu0 0
        %1940 = vmatmul.mubr.bf16.gmra.mrb[0].mxu0 %v1812
        %v1941 = vpop.f32.mrb[0].mxu0
        %v1942 = vadd.f32 %v1650, %v1941
        %v1943 = vpop.f32.mrb[0].mxu0
        %v1944 = vpop.f32.mrb[0].mxu0
        %v1945 = vadd.f32 %v1653, %v1944
        %v1946 = vpop.f32.mrb[0].mxu0
        %1947 = vmatprep.mubr.bf16.mxu0 0
        %1948 = vmatmul.mubr.bf16.gmra.mrb[0].mxu0 %v1815
        %v1949 = vpop.f32.mrb[0].mxu0
        %v1950 = vadd.f32 %v1658, %v1949
        %v1951 = vpop.f32.mrb[0].mxu0
        %v1952 = vpop.f32.mrb[0].mxu0
        %v1953 = vadd.f32 %v1661, %v1952
        %v1954 = vpop.f32.mrb[0].mxu0
        %1955 = vmatprep.mubr.bf16.mxu0 0
        %1956 = vmatmul.mubr.bf16.gmra.mrb[0].mxu0 %v1818
        %v1957 = vpop.f32.mrb[0].mxu0
        %v1958 = vadd.f32 %v1666, %v1957
        %v1959 = vpop.f32.mrb[0].mxu0
        %v1960 = vpop.f32.mrb[0].mxu0
        %v1961 = vadd.f32 %v1669, %v1960
        %v1962 = vpop.f32.mrb[0].mxu0
        %1963 = vmatprep.mubr.bf16.mxu0 0
        %1964 = vmatmul.mubr.bf16.gmra.mrb[0].mxu0 %v1821
        %v1965 = vpop.f32.mrb[0].mxu0
        %v1966 = vadd.f32 %v1674, %v1965
        %v1967 = vpop.f32.mrb[0].mxu0
        %v1968 = vpop.f32.mrb[0].mxu0
        %v1969 = vadd.f32 %v1677, %v1968
        %v1970 = vpop.f32.mrb[0].mxu0
        %1971 = vmatprep.mubr.bf16.mxu0 0
        %1972 = vmatmul.mubr.bf16.gmra.mrb[0].mxu0 %v1824
        %v1973 = vpop.f32.mrb[0].mxu0
        %v1974 = vadd.f32 %v1682, %v1973
        %v1975 = vpop.f32.mrb[0].mxu0
        %v1976 = vpop.f32.mrb[0].mxu0
        %v1977 = vadd.f32 %v1685, %v1976
        %v1978 = vpop.f32.mrb[0].mxu0
        %1979 = vmatprep.mubr.bf16.mxu0 0
        %1980 = vmatmul.mubr.bf16.gmra.mrb[0].mxu0 %v1827
        %v1981 = vpop.f32.mrb[0].mxu0
        %v1982 = vadd.f32 %v1690, %v1981
        %v1983 = vpop.f32.mrb[0].mxu0
        %v1984 = vpop.f32.mrb[0].mxu0
        %v1985 = vadd.f32 %v1693, %v1984
        %v1986 = vpop.f32.mrb[0].mxu0
        %1987 = vmatprep.mubr.bf16.mxu0 0
        %1988 = vmatmul.mubr.bf16.gmra.mrb[0].mxu0 %v1830
        %v1989 = vpop.f32.mrb[0].mxu0
        %v1990 = vadd.f32 %v1698, %v1989
        %v1991 = vpop.f32.mrb[0].mxu0
        %v1992 = vpop.f32.mrb[0].mxu0
        %v1993 = vadd.f32 %v1701, %v1992
        %v1994 = vpop.f32.mrb[0].mxu0
        %1995 = vdwg.mxu0
        %v1996 = vld [vmem:[#allocation2] sm:$0xe]
        %v1997 = vld [vmem:[#allocation2 + $0xc] sm:$0xe]
        %v1998 = vld [vmem:[#allocation2 + $0x18] sm:$0xe]
        %v1999 = vld [vmem:[#allocation2 + $0x24] sm:$0xe]
        %v2000 = vld [vmem:[#allocation2 + $0x30] sm:$0xe]
        %v2001 = vld [vmem:[#allocation2 + $0x3c] sm:$0xe]
        %v2002 = vld [vmem:[#allocation2 + $0x48] sm:$0xe]
        %v2003 = vld [vmem:[#allocation2 + $0x54] sm:$0xe]
        %v2004 = vld [vmem:[#allocation2 + $0x60] sm:$0xe]
        %v2005 = vld [vmem:[#allocation2 + $0x6c] sm:$0xe]
        %v2006 = vld [vmem:[#allocation2 + $0x78] sm:$0xe]
        %v2007 = vld [vmem:[#allocation2 + $0x84] sm:$0xe]
        %v2008 = vld [vmem:[#allocation2 + $0x90] sm:$0xe]
        %v2009 = vld [vmem:[#allocation2 + $0x9c] sm:$0xe]
        %v2010 = vld [vmem:[#allocation2 + $0xa8] sm:$0xe]
        %v2011 = vld [vmem:[#allocation2 + $0xb4] sm:$0xe]
        %vm2044 = vcmask 1042432
        %vm2045 = vcmask 1046532
        %vm2046 = vmor %vm2044, %vm2045
        %v2047 = vrot.slane %v1996, 5
        %v2048 = vrot.slane %v2047, 4
        %v2049 = vrot.slane %v1005, 5
        %v2050 = vsel %vm2046, %v2048, %v2049
        %v2051 = vrot.slane %v2049, 4
        %v2052 = vrot.slane %v1037, 5
        %v2053 = vsel %vm2046, %v2051, %v2052
        %v2054 = vrot.slane %v1997, 5
        %v2055 = vrot.slane %v2054, 4
        %v2056 = vrot.slane %v1007, 5
        %v2057 = vsel %vm2046, %v2055, %v2056
        %v2058 = vrot.slane %v2056, 4
        %v2059 = vrot.slane %v1038, 5
        %v2060 = vsel %vm2046, %v2058, %v2059
        %v2061 = vrot.slane %v1998, 5
        %v2062 = vrot.slane %v2061, 4
        %v2063 = vrot.slane %v1009, 5
        %v2064 = vsel %vm2046, %v2062, %v2063
        %v2065 = vrot.slane %v2063, 4
        %v2066 = vrot.slane %v1039, 5
        %v2067 = vsel %vm2046, %v2065, %v2066
        %v2068 = vrot.slane %v1999, 5
        %v2069 = vrot.slane %v2068, 4
        %v2070 = vrot.slane %v1011, 5
        %v2071 = vsel %vm2046, %v2069, %v2070
        %v2072 = vrot.slane %v2070, 4
        %v2073 = vrot.slane %v1040, 5
        %v2074 = vsel %vm2046, %v2072, %v2073
        %v2075 = vrot.slane %v2000, 5
        %v2076 = vrot.slane %v2075, 4
        %v2077 = vrot.slane %v1013, 5
        %v2078 = vsel %vm2046, %v2076, %v2077
        %v2079 = vrot.slane %v2077, 4
        %v2080 = vrot.slane %v1041, 5
        %v2081 = vsel %vm2046, %v2079, %v2080
        %v2082 = vrot.slane %v2001, 5
        %v2083 = vrot.slane %v2082, 4
        %v2084 = vrot.slane %v1015, 5
        %v2085 = vsel %vm2046, %v2083, %v2084
        %v2086 = vrot.slane %v2084, 4
        %v2087 = vrot.slane %v1042, 5
        %v2088 = vsel %vm2046, %v2086, %v2087
        %v2089 = vrot.slane %v2002, 5
        %v2090 = vrot.slane %v2089, 4
        %v2091 = vrot.slane %v1017, 5
        %v2092 = vsel %vm2046, %v2090, %v2091
        %v2093 = vrot.slane %v2091, 4
        %v2094 = vrot.slane %v1043, 5
        %v2095 = vsel %vm2046, %v2093, %v2094
        %v2096 = vrot.slane %v2003, 5
        %v2097 = vrot.slane %v2096, 4
        %v2098 = vrot.slane %v1019, 5
        %v2099 = vsel %vm2046, %v2097, %v2098
        %v2100 = vrot.slane %v2098, 4
        %v2101 = vrot.slane %v1044, 5
        %v2102 = vsel %vm2046, %v2100, %v2101
        %v2103 = vrot.slane %v2004, 5
        %v2104 = vrot.slane %v2103, 4
        %v2105 = vrot.slane %v1021, 5
        %v2106 = vsel %vm2046, %v2104, %v2105
        %v2107 = vrot.slane %v2105, 4
        %v2108 = vrot.slane %v1045, 5
        %v2109 = vsel %vm2046, %v2107, %v2108
        %v2110 = vrot.slane %v2005, 5
        %v2111 = vrot.slane %v2110, 4
        %v2112 = vrot.slane %v1023, 5
        %v2113 = vsel %vm2046, %v2111, %v2112
        %v2114 = vrot.slane %v2112, 4
        %v2115 = vrot.slane %v1046, 5
        %v2116 = vsel %vm2046, %v2114, %v2115
        %v2117 = vrot.slane %v2006, 5
        %v2118 = vrot.slane %v2117, 4
        %v2119 = vrot.slane %v1025, 5
        %v2120 = vsel %vm2046, %v2118, %v2119
        %v2121 = vrot.slane %v2119, 4
        %v2122 = vrot.slane %v1047, 5
        %v2123 = vsel %vm2046, %v2121, %v2122
        %v2124 = vrot.slane %v2007, 5
        %v2125 = vrot.slane %v2124, 4
        %v2126 = vrot.slane %v1027, 5
        %v2127 = vsel %vm2046, %v2125, %v2126
        %v2128 = vrot.slane %v2126, 4
        %v2129 = vrot.slane %v1048, 5
        %v2130 = vsel %vm2046, %v2128, %v2129
        %v2131 = vrot.slane %v2008, 5
        %v2132 = vrot.slane %v2131, 4
        %v2133 = vrot.slane %v1029, 5
        %v2134 = vsel %vm2046, %v2132, %v2133
        %v2135 = vrot.slane %v2133, 4
        %v2136 = vrot.slane %v1049, 5
        %v2137 = vsel %vm2046, %v2135, %v2136
        %v2138 = vrot.slane %v2009, 5
        %v2139 = vrot.slane %v2138, 4
        %v2140 = vrot.slane %v1031, 5
        %v2141 = vsel %vm2046, %v2139, %v2140
        %v2142 = vrot.slane %v2140, 4
        %v2143 = vrot.slane %v1050, 5
        %v2144 = vsel %vm2046, %v2142, %v2143
        %v2145 = vrot.slane %v2010, 5
        %v2146 = vrot.slane %v2145, 4
        %v2147 = vrot.slane %v1033, 5
        %v2148 = vsel %vm2046, %v2146, %v2147
        %v2149 = vrot.slane %v2147, 4
        %v2150 = vrot.slane %v1051, 5
        %v2151 = vsel %vm2046, %v2149, %v2150
        %v2152 = vrot.slane %v2011, 5
        %v2153 = vrot.slane %v2152, 4
        %v2154 = vrot.slane %v1035, 5
        %v2155 = vsel %vm2046, %v2153, %v2154
        %v2156 = vrot.slane %v2154, 4
        %v2157 = vrot.slane %v1052, 5
        %v2158 = vsel %vm2046, %v2156, %v2157
        %s2159 = scalar_lea.vmem [#allocation7], 4
        %v2160 = vld [vmem:[%s2159] sm:$0x3]
        %v2161 = vunpack.c.l.b16 %v2050
        %v2162 = vunpack.c.l.b16 %v2053
        %v2163 = vunpack.c.l.b16 %v2057
        %v2164 = vunpack.c.l.b16 %v2060
        %v2165 = vunpack.c.l.b16 %v2064
        %v2166 = vunpack.c.l.b16 %v2067
        %v2167 = vunpack.c.l.b16 %v2071
        %v2168 = vunpack.c.l.b16 %v2074
        %v2169 = vunpack.c.l.b16 %v2078
        %v2170 = vunpack.c.l.b16 %v2081
        %v2171 = vunpack.c.l.b16 %v2085
        %v2172 = vunpack.c.l.b16 %v2088
        %v2173 = vunpack.c.l.b16 %v2092
        %v2174 = vunpack.c.l.b16 %v2095
        %v2175 = vunpack.c.l.b16 %v2099
        %v2176 = vunpack.c.l.b16 %v2102
        %v2177 = vunpack.c.l.b16 %v2106
        %v2178 = vunpack.c.l.b16 %v2109
        %v2179 = vunpack.c.l.b16 %v2113
        %v2180 = vunpack.c.l.b16 %v2116
        %v2181 = vunpack.c.l.b16 %v2120
        %v2182 = vunpack.c.l.b16 %v2123
        %v2183 = vunpack.c.l.b16 %v2127
        %v2184 = vunpack.c.l.b16 %v2130
        %v2185 = vunpack.c.l.b16 %v2134
        %v2186 = vunpack.c.l.b16 %v2137
        %v2187 = vunpack.c.l.b16 %v2141
        %v2188 = vunpack.c.l.b16 %v2144
        %v2189 = vunpack.c.l.b16 %v2148
        %v2190 = vunpack.c.l.b16 %v2151
        %v2191 = vunpack.c.l.b16 %v2155
        %v2192 = vunpack.c.l.b16 %v2158
        %v2193 = vpack.c.b16 %v2162, %v2161
        %v2194 = vpack.c.b16 %v2164, %v2163
        %v2195 = vpack.c.b16 %v2166, %v2165
        %v2196 = vpack.c.b16 %v2168, %v2167
        %v2197 = vpack.c.b16 %v2170, %v2169
        %v2198 = vpack.c.b16 %v2172, %v2171
        %v2199 = vpack.c.b16 %v2174, %v2173
        %v2200 = vpack.c.b16 %v2176, %v2175
        %v2201 = vpack.c.b16 %v2178, %v2177
        %v2202 = vpack.c.b16 %v2180, %v2179
        %v2203 = vpack.c.b16 %v2182, %v2181
        %v2204 = vpack.c.b16 %v2184, %v2183
        %v2205 = vpack.c.b16 %v2186, %v2185
        %v2206 = vpack.c.b16 %v2188, %v2187
        %v2207 = vpack.c.b16 %v2190, %v2189
        %v2208 = vpack.c.b16 %v2192, %v2191
        %v2210 = vsel %vm1490, %v2193, 0
        %v2213 = vsel %vm1490, %v2194, 0
        %v2216 = vsel %vm1490, %v2195, 0
        %v2219 = vsel %vm1490, %v2196, 0
        %v2222 = vsel %vm1490, %v2197, 0
        %v2225 = vsel %vm1490, %v2198, 0
        %v2228 = vsel %vm1490, %v2199, 0
        %v2231 = vsel %vm1490, %v2200, 0
        %v2234 = vsel %vm1490, %v2201, 0
        %v2237 = vsel %vm1490, %v2202, 0
        %v2240 = vsel %vm1490, %v2203, 0
        %v2243 = vsel %vm1490, %v2204, 0
        %v2246 = vsel %vm1490, %v2205, 0
        %v2249 = vsel %vm1490, %v2206, 0
        %v2252 = vsel %vm1490, %v2207, 0
        %v2255 = vsel %vm1490, %v2208, 0
        %v2258 = vsel %vm1539, %v2160, 0
        %2260 = vmatprep.subr.bf16.mxu0 0
        %2261 = vmatpush1.bf16.msra.mxu0 %v2258
        %2262 = vmatprep.subr.bf16.mxu0 0
        %2263 = vmatpush1.bf16.msra.mxu0 0
        %2264 = vmatprep.subr.bf16.mxu0 0
        %2265 = vmatpush1.bf16.msra.mxu0 0
        %2266 = vmatprep.subr.bf16.mxu0 0
        %2267 = vmatpush1.bf16.msra.mxu0 0
        %2268 = vmatprep.subr.bf16.mxu0 0
        %2269 = vmatpush1.bf16.msra.mxu0 0
        %2270 = vmatprep.subr.bf16.mxu0 0
        %2271 = vmatpush1.bf16.msra.mxu0 0
        %2272 = vmatprep.subr.bf16.mxu0 0
        %2273 = vmatpush1.bf16.msra.mxu0 0
        %2274 = vmatprep.subr.bf16.mxu0 0
        %2275 = vmatpush1.bf16.msra.mxu0 0
        %2276 = vmatprep.subr.bf16.mxu0 0
        %2277 = vmatpush1.bf16.msra.mxu0 0
        %2278 = vmatprep.subr.bf16.mxu0 0
        %2279 = vmatpush1.bf16.msra.mxu0 0
        %2280 = vmatprep.subr.bf16.mxu0 0
        %2281 = vmatpush1.bf16.msra.mxu0 0
        %2282 = vmatprep.subr.bf16.mxu0 0
        %2283 = vmatpush1.bf16.msra.mxu0 0
        %2284 = vmatprep.subr.bf16.mxu0 0
        %2285 = vmatpush1.bf16.msra.mxu0 0
        %2286 = vmatprep.subr.bf16.mxu0 0
        %2287 = vmatpush1.bf16.msra.mxu0 0
        %2288 = vmatprep.subr.bf16.mxu0 0
        %2289 = vmatpush1.bf16.msra.mxu0 0
        %2290 = vmatprep.subr.bf16.mxu0 0
        %2291 = vmatpush1.bf16.msra.mxu0 0
        %2292 = vmatprep.mubr.bf16.mxu0 0
        %2293 = vmatmul.mubr.bf16.gmra.mrb[0].mxu0 %v2210
        %v2294 = vpop.f32.mrb[0].mxu0
        %v2295 = vadd.f32 0.0, %v2294
        %v2296 = vpop.f32.mrb[0].mxu0
        %v2297 = vpop.f32.mrb[0].mxu0
        %v2298 = vadd.f32 0.0, %v2297
        %v2299 = vpop.f32.mrb[0].mxu0
        %2300 = vmatprep.mubr.bf16.mxu0 0
        %2301 = vmatmul.mubr.bf16.gmra.mrb[0].mxu0 %v2213
        %v2302 = vpop.f32.mrb[0].mxu0
        %v2303 = vadd.f32 0.0, %v2302
        %v2304 = vpop.f32.mrb[0].mxu0
        %v2305 = vpop.f32.mrb[0].mxu0
        %v2306 = vadd.f32 0.0, %v2305
        %v2307 = vpop.f32.mrb[0].mxu0
        %2308 = vmatprep.mubr.bf16.mxu0 0
        %2309 = vmatmul.mubr.bf16.gmra.mrb[0].mxu0 %v2216
        %v2310 = vpop.f32.mrb[0].mxu0
        %v2311 = vadd.f32 0.0, %v2310
        %v2312 = vpop.f32.mrb[0].mxu0
        %v2313 = vpop.f32.mrb[0].mxu0
        %v2314 = vadd.f32 0.0, %v2313
        %v2315 = vpop.f32.mrb[0].mxu0
        %2316 = vmatprep.mubr.bf16.mxu0 0
        %2317 = vmatmul.mubr.bf16.gmra.mrb[0].mxu0 %v2219
        %v2318 = vpop.f32.mrb[0].mxu0
        %v2319 = vadd.f32 0.0, %v2318
        %v2320 = vpop.f32.mrb[0].mxu0
        %v2321 = vpop.f32.mrb[0].mxu0
        %v2322 = vadd.f32 0.0, %v2321
        %v2323 = vpop.f32.mrb[0].mxu0
        %2324 = vmatprep.mubr.bf16.mxu0 0
        %2325 = vmatmul.mubr.bf16.gmra.mrb[0].mxu0 %v2222
        %v2326 = vpop.f32.mrb[0].mxu0
        %v2327 = vadd.f32 0.0, %v2326
        %v2328 = vpop.f32.mrb[0].mxu0
        %v2329 = vpop.f32.mrb[0].mxu0
        %v2330 = vadd.f32 0.0, %v2329
        %v2331 = vpop.f32.mrb[0].mxu0
        %2332 = vmatprep.mubr.bf16.mxu0 0
        %2333 = vmatmul.mubr.bf16.gmra.mrb[0].mxu0 %v2225
        %v2334 = vpop.f32.mrb[0].mxu0
        %v2335 = vadd.f32 0.0, %v2334
        %v2336 = vpop.f32.mrb[0].mxu0
        %v2337 = vpop.f32.mrb[0].mxu0
        %v2338 = vadd.f32 0.0, %v2337
        %v2339 = vpop.f32.mrb[0].mxu0
        %2340 = vmatprep.mubr.bf16.mxu0 0
        %2341 = vmatmul.mubr.bf16.gmra.mrb[0].mxu0 %v2228
        %v2342 = vpop.f32.mrb[0].mxu0
        %v2343 = vadd.f32 0.0, %v2342
        %v2344 = vpop.f32.mrb[0].mxu0
        %v2345 = vpop.f32.mrb[0].mxu0
        %v2346 = vadd.f32 0.0, %v2345
        %v2347 = vpop.f32.mrb[0].mxu0
        %2348 = vmatprep.mubr.bf16.mxu0 0
        %2349 = vmatmul.mubr.bf16.gmra.mrb[0].mxu0 %v2231
        %v2350 = vpop.f32.mrb[0].mxu0
        %v2351 = vadd.f32 0.0, %v2350
        %v2352 = vpop.f32.mrb[0].mxu0
        %v2353 = vpop.f32.mrb[0].mxu0
        %v2354 = vadd.f32 0.0, %v2353
        %v2355 = vpop.f32.mrb[0].mxu0
        %2356 = vmatprep.mubr.bf16.mxu0 0
        %2357 = vmatmul.mubr.bf16.gmra.mrb[0].mxu0 %v2234
        %v2358 = vpop.f32.mrb[0].mxu0
        %v2359 = vadd.f32 0.0, %v2358
        %v2360 = vpop.f32.mrb[0].mxu0
        %v2361 = vpop.f32.mrb[0].mxu0
        %v2362 = vadd.f32 0.0, %v2361
        %v2363 = vpop.f32.mrb[0].mxu0
        %2364 = vmatprep.mubr.bf16.mxu0 0
        %2365 = vmatmul.mubr.bf16.gmra.mrb[0].mxu0 %v2237
        %v2366 = vpop.f32.mrb[0].mxu0
        %v2367 = vadd.f32 0.0, %v2366
        %v2368 = vpop.f32.mrb[0].mxu0
        %v2369 = vpop.f32.mrb[0].mxu0
        %v2370 = vadd.f32 0.0, %v2369
        %v2371 = vpop.f32.mrb[0].mxu0
        %2372 = vmatprep.mubr.bf16.mxu0 0
        %2373 = vmatmul.mubr.bf16.gmra.mrb[0].mxu0 %v2240
        %v2374 = vpop.f32.mrb[0].mxu0
        %v2375 = vadd.f32 0.0, %v2374
        %v2376 = vpop.f32.mrb[0].mxu0
        %v2377 = vpop.f32.mrb[0].mxu0
        %v2378 = vadd.f32 0.0, %v2377
        %v2379 = vpop.f32.mrb[0].mxu0
        %2380 = vmatprep.mubr.bf16.mxu0 0
        %2381 = vmatmul.mubr.bf16.gmra.mrb[0].mxu0 %v2243
        %v2382 = vpop.f32.mrb[0].mxu0
        %v2383 = vadd.f32 0.0, %v2382
        %v2384 = vpop.f32.mrb[0].mxu0
        %v2385 = vpop.f32.mrb[0].mxu0
        %v2386 = vadd.f32 0.0, %v2385
        %v2387 = vpop.f32.mrb[0].mxu0
        %2388 = vmatprep.mubr.bf16.mxu0 0
        %2389 = vmatmul.mubr.bf16.gmra.mrb[0].mxu0 %v2246
        %v2390 = vpop.f32.mrb[0].mxu0
        %v2391 = vadd.f32 0.0, %v2390
        %v2392 = vpop.f32.mrb[0].mxu0
        %v2393 = vpop.f32.mrb[0].mxu0
        %v2394 = vadd.f32 0.0, %v2393
        %v2395 = vpop.f32.mrb[0].mxu0
        %2396 = vmatprep.mubr.bf16.mxu0 0
        %2397 = vmatmul.mubr.bf16.gmra.mrb[0].mxu0 %v2249
        %v2398 = vpop.f32.mrb[0].mxu0
        %v2399 = vadd.f32 0.0, %v2398
        %v2400 = vpop.f32.mrb[0].mxu0
        %v2401 = vpop.f32.mrb[0].mxu0
        %v2402 = vadd.f32 0.0, %v2401
        %v2403 = vpop.f32.mrb[0].mxu0
        %2404 = vmatprep.mubr.bf16.mxu0 0
        %2405 = vmatmul.mubr.bf16.gmra.mrb[0].mxu0 %v2252
        %v2406 = vpop.f32.mrb[0].mxu0
        %v2407 = vadd.f32 0.0, %v2406
        %v2408 = vpop.f32.mrb[0].mxu0
        %v2409 = vpop.f32.mrb[0].mxu0
        %v2410 = vadd.f32 0.0, %v2409
        %v2411 = vpop.f32.mrb[0].mxu0
        %2412 = vmatprep.mubr.bf16.mxu0 0
        %2413 = vmatmul.mubr.bf16.gmra.mrb[0].mxu0 %v2255
        %v2414 = vpop.f32.mrb[0].mxu0
        %v2415 = vadd.f32 0.0, %v2414
        %v2416 = vpop.f32.mrb[0].mxu0
        %v2417 = vpop.f32.mrb[0].mxu0
        %v2418 = vadd.f32 0.0, %v2417
        %v2419 = vpop.f32.mrb[0].mxu0
        %2420 = vdwg.mxu0
        %v2421 = vadd.f32 %v1870, %v2295
        %v2422 = vadd.f32 %v1873, %v2298
        %v2423 = vadd.f32 %v1878, %v2303
        %v2424 = vadd.f32 %v1881, %v2306
        %v2425 = vadd.f32 %v1886, %v2311
        %v2426 = vadd.f32 %v1889, %v2314
        %v2427 = vadd.f32 %v1894, %v2319
        %v2428 = vadd.f32 %v1897, %v2322
        %v2429 = vadd.f32 %v1902, %v2327
        %v2430 = vadd.f32 %v1905, %v2330
        %v2431 = vadd.f32 %v1910, %v2335
        %v2432 = vadd.f32 %v1913, %v2338
        %v2433 = vadd.f32 %v1918, %v2343
        %v2434 = vadd.f32 %v1921, %v2346
        %v2435 = vadd.f32 %v1926, %v2351
        %v2436 = vadd.f32 %v1929, %v2354
        %v2437 = vadd.f32 %v1934, %v2359
        %v2438 = vadd.f32 %v1937, %v2362
        %v2439 = vadd.f32 %v1942, %v2367
        %v2440 = vadd.f32 %v1945, %v2370
        %v2441 = vadd.f32 %v1950, %v2375
        %v2442 = vadd.f32 %v1953, %v2378
        %v2443 = vadd.f32 %v1958, %v2383
        %v2444 = vadd.f32 %v1961, %v2386
        %v2445 = vadd.f32 %v1966, %v2391
        %v2446 = vadd.f32 %v1969, %v2394
        %v2447 = vadd.f32 %v1974, %v2399
        %v2448 = vadd.f32 %v1977, %v2402
        %v2449 = vadd.f32 %v1982, %v2407
        %v2450 = vadd.f32 %v1985, %v2410
        %v2451 = vadd.f32 %v1990, %v2415
        %v2452 = vadd.f32 %v1993, %v2418
        %v2453 = vld [vmem:[%s889] sm:$0xf]
        %v2454 = vld [vmem:[%s889 + $0x4] sm:$0xf]
        %v2455 = vld [vmem:[%s889 + $0xc] sm:$0xf]
        %v2456 = vld [vmem:[%s889 + $0x10] sm:$0xf]
        %v2457 = vld [vmem:[%s889 + $0x18] sm:$0xf]
        %v2458 = vld [vmem:[%s889 + $0x1c] sm:$0xf]
        %v2459 = vld [vmem:[%s889 + $0x24] sm:$0xf]
        %v2460 = vld [vmem:[%s889 + $0x28] sm:$0xf]
        %v2461 = vld [vmem:[%s889 + $0x30] sm:$0xf]
        %v2462 = vld [vmem:[%s889 + $0x34] sm:$0xf]
        %v2463 = vld [vmem:[%s889 + $0x3c] sm:$0xf]
        %v2464 = vld [vmem:[%s889 + $0x40] sm:$0xf]
        %v2465 = vld [vmem:[%s889 + $0x48] sm:$0xf]
        %v2466 = vld [vmem:[%s889 + $0x4c] sm:$0xf]
        %v2467 = vld [vmem:[%s889 + $0x54] sm:$0xf]
        %v2468 = vld [vmem:[%s889 + $0x58] sm:$0xf]
        %v2469 = vld [vmem:[%s889 + $0x60] sm:$0xf]
        %v2470 = vld [vmem:[%s889 + $0x64] sm:$0xf]
        %v2471 = vld [vmem:[%s889 + $0x6c] sm:$0xf]
        %v2472 = vld [vmem:[%s889 + $0x70] sm:$0xf]
        %v2473 = vld [vmem:[%s889 + $0x78] sm:$0xf]
        %v2474 = vld [vmem:[%s889 + $0x7c] sm:$0xf]
        %v2475 = vld [vmem:[%s889 + $0x84] sm:$0xf]
        %v2476 = vld [vmem:[%s889 + $0x88] sm:$0xf]
        %v2477 = vld [vmem:[%s889 + $0x90] sm:$0xf]
        %v2478 = vld [vmem:[%s889 + $0x94] sm:$0xf]
        %v2479 = vld [vmem:[%s889 + $0x9c] sm:$0xf]
        %v2480 = vld [vmem:[%s889 + $0xa0] sm:$0xf]
        %v2481 = vld [vmem:[%s889 + $0xa8] sm:$0xf]
        %v2482 = vld [vmem:[%s889 + $0xac] sm:$0xf]
        %v2483 = vld [vmem:[%s889 + $0xb4] sm:$0xf]
        %v2484 = vld [vmem:[%s889 + $0xb8] sm:$0xf]
        %s2485 = scalar_lea.vmem [#allocation7], 6
        %v2486 = vld [vmem:[%s2485] sm:$0x3]
        %v2519 = vunpack.c.l.b16 %v2453
        %v2520 = vunpack.c.l.b16 %v2454
        %v2521 = vunpack.c.l.b16 %v2455
        %v2522 = vunpack.c.l.b16 %v2456
        %v2523 = vunpack.c.l.b16 %v2457
        %v2524 = vunpack.c.l.b16 %v2458
        %v2525 = vunpack.c.l.b16 %v2459
        %v2526 = vunpack.c.l.b16 %v2460
        %v2527 = vunpack.c.l.b16 %v2461
        %v2528 = vunpack.c.l.b16 %v2462
        %v2529 = vunpack.c.l.b16 %v2463
        %v2530 = vunpack.c.l.b16 %v2464
        %v2531 = vunpack.c.l.b16 %v2465
        %v2532 = vunpack.c.l.b16 %v2466
        %v2533 = vunpack.c.l.b16 %v2467
        %v2534 = vunpack.c.l.b16 %v2468
        %v2535 = vunpack.c.l.b16 %v2469
        %v2536 = vunpack.c.l.b16 %v2470
        %v2537 = vunpack.c.l.b16 %v2471
        %v2538 = vunpack.c.l.b16 %v2472
        %v2539 = vunpack.c.l.b16 %v2473
        %v2540 = vunpack.c.l.b16 %v2474
        %v2541 = vunpack.c.l.b16 %v2475
        %v2542 = vunpack.c.l.b16 %v2476
        %v2543 = vunpack.c.l.b16 %v2477
        %v2544 = vunpack.c.l.b16 %v2478
        %v2545 = vunpack.c.l.b16 %v2479
        %v2546 = vunpack.c.l.b16 %v2480
        %v2547 = vunpack.c.l.b16 %v2481
        %v2548 = vunpack.c.l.b16 %v2482
        %v2549 = vunpack.c.l.b16 %v2483
        %v2550 = vunpack.c.l.b16 %v2484
        %v2551 = vpack.c.b16 %v2520, %v2519
        %v2552 = vpack.c.b16 %v2522, %v2521
        %v2553 = vpack.c.b16 %v2524, %v2523
        %v2554 = vpack.c.b16 %v2526, %v2525
        %v2555 = vpack.c.b16 %v2528, %v2527
        %v2556 = vpack.c.b16 %v2530, %v2529
        %v2557 = vpack.c.b16 %v2532, %v2531
        %v2558 = vpack.c.b16 %v2534, %v2533
        %v2559 = vpack.c.b16 %v2536, %v2535
        %v2560 = vpack.c.b16 %v2538, %v2537
        %v2561 = vpack.c.b16 %v2540, %v2539
        %v2562 = vpack.c.b16 %v2542, %v2541
        %v2563 = vpack.c.b16 %v2544, %v2543
        %v2564 = vpack.c.b16 %v2546, %v2545
        %v2565 = vpack.c.b16 %v2548, %v2547
        %v2566 = vpack.c.b16 %v2550, %v2549
        %v2568 = vsel %vm1490, %v2551, 0
        %v2571 = vsel %vm1490, %v2552, 0
        %v2574 = vsel %vm1490, %v2553, 0
        %v2577 = vsel %vm1490, %v2554, 0
        %v2580 = vsel %vm1490, %v2555, 0
        %v2583 = vsel %vm1490, %v2556, 0
        %v2586 = vsel %vm1490, %v2557, 0
        %v2589 = vsel %vm1490, %v2558, 0
        %v2592 = vsel %vm1490, %v2559, 0
        %v2595 = vsel %vm1490, %v2560, 0
        %v2598 = vsel %vm1490, %v2561, 0
        %v2601 = vsel %vm1490, %v2562, 0
        %v2604 = vsel %vm1490, %v2563, 0
        %v2607 = vsel %vm1490, %v2564, 0
        %v2610 = vsel %vm1490, %v2565, 0
        %v2613 = vsel %vm1490, %v2566, 0
        %v2616 = vsel %vm1539, %v2486, 0
        %2618 = vmatprep.subr.bf16.mxu0 0
        %2619 = vmatpush1.bf16.msra.mxu0 %v2616
        %2620 = vmatprep.subr.bf16.mxu0 0
        %2621 = vmatpush1.bf16.msra.mxu0 0
        %2622 = vmatprep.subr.bf16.mxu0 0
        %2623 = vmatpush1.bf16.msra.mxu0 0
        %2624 = vmatprep.subr.bf16.mxu0 0
        %2625 = vmatpush1.bf16.msra.mxu0 0
        %2626 = vmatprep.subr.bf16.mxu0 0
        %2627 = vmatpush1.bf16.msra.mxu0 0
        %2628 = vmatprep.subr.bf16.mxu0 0
        %2629 = vmatpush1.bf16.msra.mxu0 0
        %2630 = vmatprep.subr.bf16.mxu0 0
        %2631 = vmatpush1.bf16.msra.mxu0 0
        %2632 = vmatprep.subr.bf16.mxu0 0
        %2633 = vmatpush1.bf16.msra.mxu0 0
        %2634 = vmatprep.subr.bf16.mxu0 0
        %2635 = vmatpush1.bf16.msra.mxu0 0
        %2636 = vmatprep.subr.bf16.mxu0 0
        %2637 = vmatpush1.bf16.msra.mxu0 0
        %2638 = vmatprep.subr.bf16.mxu0 0
        %2639 = vmatpush1.bf16.msra.mxu0 0
        %2640 = vmatprep.subr.bf16.mxu0 0
        %2641 = vmatpush1.bf16.msra.mxu0 0
        %2642 = vmatprep.subr.bf16.mxu0 0
        %2643 = vmatpush1.bf16.msra.mxu0 0
        %2644 = vmatprep.subr.bf16.mxu0 0
        %2645 = vmatpush1.bf16.msra.mxu0 0
        %2646 = vmatprep.subr.bf16.mxu0 0
        %2647 = vmatpush1.bf16.msra.mxu0 0
        %2648 = vmatprep.subr.bf16.mxu0 0
        %2649 = vmatpush1.bf16.msra.mxu0 0
        %2650 = vmatprep.mubr.bf16.mxu0 0
        %2651 = vmatmul.mubr.bf16.gmra.mrb[0].mxu0 %v2568
        %v2652 = vpop.f32.mrb[0].mxu0
        %v2653 = vadd.f32 0.0, %v2652
        %v2654 = vpop.f32.mrb[0].mxu0
        %v2655 = vpop.f32.mrb[0].mxu0
        %v2656 = vadd.f32 0.0, %v2655
        %v2657 = vpop.f32.mrb[0].mxu0
        %2658 = vmatprep.mubr.bf16.mxu0 0
        %2659 = vmatmul.mubr.bf16.gmra.mrb[0].mxu0 %v2571
        %v2660 = vpop.f32.mrb[0].mxu0
        %v2661 = vadd.f32 0.0, %v2660
        %v2662 = vpop.f32.mrb[0].mxu0
        %v2663 = vpop.f32.mrb[0].mxu0
        %v2664 = vadd.f32 0.0, %v2663
        %v2665 = vpop.f32.mrb[0].mxu0
        %2666 = vmatprep.mubr.bf16.mxu0 0
        %2667 = vmatmul.mubr.bf16.gmra.mrb[0].mxu0 %v2574
        %v2668 = vpop.f32.mrb[0].mxu0
        %v2669 = vadd.f32 0.0, %v2668
        %v2670 = vpop.f32.mrb[0].mxu0
        %v2671 = vpop.f32.mrb[0].mxu0
        %v2672 = vadd.f32 0.0, %v2671
        %v2673 = vpop.f32.mrb[0].mxu0
        %2674 = vmatprep.mubr.bf16.mxu0 0
        %2675 = vmatmul.mubr.bf16.gmra.mrb[0].mxu0 %v2577
        %v2676 = vpop.f32.mrb[0].mxu0
        %v2677 = vadd.f32 0.0, %v2676
        %v2678 = vpop.f32.mrb[0].mxu0
        %v2679 = vpop.f32.mrb[0].mxu0
        %v2680 = vadd.f32 0.0, %v2679
        %v2681 = vpop.f32.mrb[0].mxu0
        %2682 = vmatprep.mubr.bf16.mxu0 0
        %2683 = vmatmul.mubr.bf16.gmra.mrb[0].mxu0 %v2580
        %v2684 = vpop.f32.mrb[0].mxu0
        %v2685 = vadd.f32 0.0, %v2684
        %v2686 = vpop.f32.mrb[0].mxu0
        %v2687 = vpop.f32.mrb[0].mxu0
        %v2688 = vadd.f32 0.0, %v2687
        %v2689 = vpop.f32.mrb[0].mxu0
        %2690 = vmatprep.mubr.bf16.mxu0 0
        %2691 = vmatmul.mubr.bf16.gmra.mrb[0].mxu0 %v2583
        %v2692 = vpop.f32.mrb[0].mxu0
        %v2693 = vadd.f32 0.0, %v2692
        %v2694 = vpop.f32.mrb[0].mxu0
        %v2695 = vpop.f32.mrb[0].mxu0
        %v2696 = vadd.f32 0.0, %v2695
        %v2697 = vpop.f32.mrb[0].mxu0
        %2698 = vmatprep.mubr.bf16.mxu0 0
        %2699 = vmatmul.mubr.bf16.gmra.mrb[0].mxu0 %v2586
        %v2700 = vpop.f32.mrb[0].mxu0
        %v2701 = vadd.f32 0.0, %v2700
        %v2702 = vpop.f32.mrb[0].mxu0
        %v2703 = vpop.f32.mrb[0].mxu0
        %v2704 = vadd.f32 0.0, %v2703
        %v2705 = vpop.f32.mrb[0].mxu0
        %2706 = vmatprep.mubr.bf16.mxu0 0
        %2707 = vmatmul.mubr.bf16.gmra.mrb[0].mxu0 %v2589
        %v2708 = vpop.f32.mrb[0].mxu0
        %v2709 = vadd.f32 0.0, %v2708
        %v2710 = vpop.f32.mrb[0].mxu0
        %v2711 = vpop.f32.mrb[0].mxu0
        %v2712 = vadd.f32 0.0, %v2711
        %v2713 = vpop.f32.mrb[0].mxu0
        %2714 = vmatprep.mubr.bf16.mxu0 0
        %2715 = vmatmul.mubr.bf16.gmra.mrb[0].mxu0 %v2592
        %v2716 = vpop.f32.mrb[0].mxu0
        %v2717 = vadd.f32 0.0, %v2716
        %v2718 = vpop.f32.mrb[0].mxu0
        %v2719 = vpop.f32.mrb[0].mxu0
        %v2720 = vadd.f32 0.0, %v2719
        %v2721 = vpop.f32.mrb[0].mxu0
        %2722 = vmatprep.mubr.bf16.mxu0 0
        %2723 = vmatmul.mubr.bf16.gmra.mrb[0].mxu0 %v2595
        %v2724 = vpop.f32.mrb[0].mxu0
        %v2725 = vadd.f32 0.0, %v2724
        %v2726 = vpop.f32.mrb[0].mxu0
        %v2727 = vpop.f32.mrb[0].mxu0
        %v2728 = vadd.f32 0.0, %v2727
        %v2729 = vpop.f32.mrb[0].mxu0
        %2730 = vmatprep.mubr.bf16.mxu0 0
        %2731 = vmatmul.mubr.bf16.gmra.mrb[0].mxu0 %v2598
        %v2732 = vpop.f32.mrb[0].mxu0
        %v2733 = vadd.f32 0.0, %v2732
        %v2734 = vpop.f32.mrb[0].mxu0
        %v2735 = vpop.f32.mrb[0].mxu0
        %v2736 = vadd.f32 0.0, %v2735
        %v2737 = vpop.f32.mrb[0].mxu0
        %2738 = vmatprep.mubr.bf16.mxu0 0
        %2739 = vmatmul.mubr.bf16.gmra.mrb[0].mxu0 %v2601
        %v2740 = vpop.f32.mrb[0].mxu0
        %v2741 = vadd.f32 0.0, %v2740
        %v2742 = vpop.f32.mrb[0].mxu0
        %v2743 = vpop.f32.mrb[0].mxu0
        %v2744 = vadd.f32 0.0, %v2743
        %v2745 = vpop.f32.mrb[0].mxu0
        %2746 = vmatprep.mubr.bf16.mxu0 0
        %2747 = vmatmul.mubr.bf16.gmra.mrb[0].mxu0 %v2604
        %v2748 = vpop.f32.mrb[0].mxu0
        %v2749 = vadd.f32 0.0, %v2748
        %v2750 = vpop.f32.mrb[0].mxu0
        %v2751 = vpop.f32.mrb[0].mxu0
        %v2752 = vadd.f32 0.0, %v2751
        %v2753 = vpop.f32.mrb[0].mxu0
        %2754 = vmatprep.mubr.bf16.mxu0 0
        %2755 = vmatmul.mubr.bf16.gmra.mrb[0].mxu0 %v2607
        %v2756 = vpop.f32.mrb[0].mxu0
        %v2757 = vadd.f32 0.0, %v2756
        %v2758 = vpop.f32.mrb[0].mxu0
        %v2759 = vpop.f32.mrb[0].mxu0
        %v2760 = vadd.f32 0.0, %v2759
        %v2761 = vpop.f32.mrb[0].mxu0
        %2762 = vmatprep.mubr.bf16.mxu0 0
        %2763 = vmatmul.mubr.bf16.gmra.mrb[0].mxu0 %v2610
        %v2764 = vpop.f32.mrb[0].mxu0
        %v2765 = vadd.f32 0.0, %v2764
        %v2766 = vpop.f32.mrb[0].mxu0
        %v2767 = vpop.f32.mrb[0].mxu0
        %v2768 = vadd.f32 0.0, %v2767
        %v2769 = vpop.f32.mrb[0].mxu0
        %2770 = vmatprep.mubr.bf16.mxu0 0
        %2771 = vmatmul.mubr.bf16.gmra.mrb[0].mxu0 %v2613
        %v2772 = vpop.f32.mrb[0].mxu0
        %v2773 = vadd.f32 0.0, %v2772
        %v2774 = vpop.f32.mrb[0].mxu0
        %v2775 = vpop.f32.mrb[0].mxu0
        %v2776 = vadd.f32 0.0, %v2775
        %v2777 = vpop.f32.mrb[0].mxu0
        %2778 = vdwg.mxu0
        %v2779 = vadd.f32 %v2421, %v2653
        %v2780 = vadd.f32 %v2422, %v2656
        %v2781 = vadd.f32 %v2423, %v2661
        %v2782 = vadd.f32 %v2424, %v2664
        %v2783 = vadd.f32 %v2425, %v2669
        %v2784 = vadd.f32 %v2426, %v2672
        %v2785 = vadd.f32 %v2427, %v2677
        %v2786 = vadd.f32 %v2428, %v2680
        %v2787 = vadd.f32 %v2429, %v2685
        %v2788 = vadd.f32 %v2430, %v2688
        %v2789 = vadd.f32 %v2431, %v2693
        %v2790 = vadd.f32 %v2432, %v2696
        %v2791 = vadd.f32 %v2433, %v2701
        %v2792 = vadd.f32 %v2434, %v2704
        %v2793 = vadd.f32 %v2435, %v2709
        %v2794 = vadd.f32 %v2436, %v2712
        %v2795 = vadd.f32 %v2437, %v2717
        %v2796 = vadd.f32 %v2438, %v2720
        %v2797 = vadd.f32 %v2439, %v2725
        %v2798 = vadd.f32 %v2440, %v2728
        %v2799 = vadd.f32 %v2441, %v2733
        %v2800 = vadd.f32 %v2442, %v2736
        %v2801 = vadd.f32 %v2443, %v2741
        %v2802 = vadd.f32 %v2444, %v2744
        %v2803 = vadd.f32 %v2445, %v2749
        %v2804 = vadd.f32 %v2446, %v2752
        %v2805 = vadd.f32 %v2447, %v2757
        %v2806 = vadd.f32 %v2448, %v2760
        %v2807 = vadd.f32 %v2449, %v2765
        %v2808 = vadd.f32 %v2450, %v2768
        %v2809 = vadd.f32 %v2451, %v2773
        %v2810 = vadd.f32 %v2452, %v2776
        %v2811 = vld [vmem:[%s889] sm:$0xf]
        %v2812 = vld [vmem:[%s889 + $0x4] sm:$0xf]
        %v2813 = vld [vmem:[%s889 + $0x8] sm:$0x1]
        %v2814 = vld [vmem:[%s889 + $0xc] sm:$0xf]
        %v2815 = vld [vmem:[%s889 + $0x10] sm:$0xf]
        %v2816 = vld [vmem:[%s889 + $0x14] sm:$0x1]
        %v2817 = vld [vmem:[%s889 + $0x18] sm:$0xf]
        %v2818 = vld [vmem:[%s889 + $0x1c] sm:$0xf]
        %v2819 = vld [vmem:[%s889 + $0x20] sm:$0x1]
        %v2820 = vld [vmem:[%s889 + $0x24] sm:$0xf]
        %v2821 = vld [vmem:[%s889 + $0x28] sm:$0xf]
        %v2822 = vld [vmem:[%s889 + $0x2c] sm:$0x1]
        %v2823 = vld [vmem:[%s889 + $0x30] sm:$0xf]
        %v2824 = vld [vmem:[%s889 + $0x34] sm:$0xf]
        %v2825 = vld [vmem:[%s889 + $0x38] sm:$0x1]
        %v2826 = vld [vmem:[%s889 + $0x3c] sm:$0xf]
        %v2827 = vld [vmem:[%s889 + $0x40] sm:$0xf]
        %v2828 = vld [vmem:[%s889 + $0x44] sm:$0x1]
        %v2829 = vld [vmem:[%s889 + $0x48] sm:$0xf]
        %v2830 = vld [vmem:[%s889 + $0x4c] sm:$0xf]
        %v2831 = vld [vmem:[%s889 + $0x50] sm:$0x1]
        %v2832 = vld [vmem:[%s889 + $0x54] sm:$0xf]
        %v2833 = vld [vmem:[%s889 + $0x58] sm:$0xf]
        %v2834 = vld [vmem:[%s889 + $0x5c] sm:$0x1]
        %v2835 = vld [vmem:[%s889 + $0x60] sm:$0xf]
        %v2836 = vld [vmem:[%s889 + $0x64] sm:$0xf]
        %v2837 = vld [vmem:[%s889 + $0x68] sm:$0x1]
        %v2838 = vld [vmem:[%s889 + $0x6c] sm:$0xf]
        %v2839 = vld [vmem:[%s889 + $0x70] sm:$0xf]
        %v2840 = vld [vmem:[%s889 + $0x74] sm:$0x1]
        %v2841 = vld [vmem:[%s889 + $0x78] sm:$0xf]
        %v2842 = vld [vmem:[%s889 + $0x7c] sm:$0xf]
        %v2843 = vld [vmem:[%s889 + $0x80] sm:$0x1]
        %v2844 = vld [vmem:[%s889 + $0x84] sm:$0xf]
        %v2845 = vld [vmem:[%s889 + $0x88] sm:$0xf]
        %v2846 = vld [vmem:[%s889 + $0x8c] sm:$0x1]
        %v2847 = vld [vmem:[%s889 + $0x90] sm:$0xf]
        %v2848 = vld [vmem:[%s889 + $0x94] sm:$0xf]
        %v2849 = vld [vmem:[%s889 + $0x98] sm:$0x1]
        %v2850 = vld [vmem:[%s889 + $0x9c] sm:$0xf]
        %v2851 = vld [vmem:[%s889 + $0xa0] sm:$0xf]
        %v2852 = vld [vmem:[%s889 + $0xa4] sm:$0x1]
        %v2853 = vld [vmem:[%s889 + $0xa8] sm:$0xf]
        %v2854 = vld [vmem:[%s889 + $0xac] sm:$0xf]
        %v2855 = vld [vmem:[%s889 + $0xb0] sm:$0x1]
        %v2856 = vld [vmem:[%s889 + $0xb4] sm:$0xf]
        %v2857 = vld [vmem:[%s889 + $0xb8] sm:$0xf]
        %v2858 = vld [vmem:[%s889 + $0xbc] sm:$0x1]
        %v2860 = vshrl.u32 %v2811, 16
        %v2862 = vrot.slane %v2860, 4
        %v2863 = vshll.u32 %v2811, 16
        %v2865 = vrot.slane %v2863, 5
        %v2866 = vor.u32 %v2862, %v2865
        %v2867 = vrot.slane %v2866, 4
        %v2869 = vshll.u32 %v2812, 16
        %v2871 = vrot.slane %v2869, 5
        %v2872 = vsel %vm1055, %v2867, %v2871
        %v2873 = vshrl.u32 %v2812, 16
        %v2875 = vrot.slane %v2873, 4
        %v2876 = vor.u32 %v2875, %v2871
        %v2877 = vrot.slane %v2876, 4
        %v2879 = vshll.u32 %v2813, 16
        %v2881 = vrot.slane %v2879, 5
        %v2882 = vsel %vm1055, %v2877, %v2881
        %v2884 = vshrl.u32 %v2814, 16
        %v2886 = vrot.slane %v2884, 4
        %v2887 = vshll.u32 %v2814, 16
        %v2889 = vrot.slane %v2887, 5
        %v2890 = vor.u32 %v2886, %v2889
        %v2891 = vrot.slane %v2890, 4
        %v2893 = vshll.u32 %v2815, 16
        %v2895 = vrot.slane %v2893, 5
        %v2896 = vsel %vm1055, %v2891, %v2895
        %v2897 = vshrl.u32 %v2815, 16
        %v2899 = vrot.slane %v2897, 4
        %v2900 = vor.u32 %v2899, %v2895
        %v2901 = vrot.slane %v2900, 4
        %v2903 = vshll.u32 %v2816, 16
        %v2905 = vrot.slane %v2903, 5
        %v2906 = vsel %vm1055, %v2901, %v2905
        %v2908 = vshrl.u32 %v2817, 16
        %v2910 = vrot.slane %v2908, 4
        %v2911 = vshll.u32 %v2817, 16
        %v2913 = vrot.slane %v2911, 5
        %v2914 = vor.u32 %v2910, %v2913
        %v2915 = vrot.slane %v2914, 4
        %v2917 = vshll.u32 %v2818, 16
        %v2919 = vrot.slane %v2917, 5
        %v2920 = vsel %vm1055, %v2915, %v2919
        %v2921 = vshrl.u32 %v2818, 16
        %v2923 = vrot.slane %v2921, 4
        %v2924 = vor.u32 %v2923, %v2919
        %v2925 = vrot.slane %v2924, 4
        %v2927 = vshll.u32 %v2819, 16
        %v2929 = vrot.slane %v2927, 5
        %v2930 = vsel %vm1055, %v2925, %v2929
        %v2932 = vshrl.u32 %v2820, 16
        %v2934 = vrot.slane %v2932, 4
        %v2935 = vshll.u32 %v2820, 16
        %v2937 = vrot.slane %v2935, 5
        %v2938 = vor.u32 %v2934, %v2937
        %v2939 = vrot.slane %v2938, 4
        %v2941 = vshll.u32 %v2821, 16
        %v2943 = vrot.slane %v2941, 5
        %v2944 = vsel %vm1055, %v2939, %v2943
        %v2945 = vshrl.u32 %v2821, 16
        %v2947 = vrot.slane %v2945, 4
        %v2948 = vor.u32 %v2947, %v2943
        %v2949 = vrot.slane %v2948, 4
        %v2951 = vshll.u32 %v2822, 16
        %v2953 = vrot.slane %v2951, 5
        %v2954 = vsel %vm1055, %v2949, %v2953
        %v2956 = vshrl.u32 %v2823, 16
        %v2958 = vrot.slane %v2956, 4
        %v2959 = vshll.u32 %v2823, 16
        %v2961 = vrot.slane %v2959, 5
        %v2962 = vor.u32 %v2958, %v2961
        %v2963 = vrot.slane %v2962, 4
        %v2965 = vshll.u32 %v2824, 16
        %v2967 = vrot.slane %v2965, 5
        %v2968 = vsel %vm1055, %v2963, %v2967
        %v2969 = vshrl.u32 %v2824, 16
        %v2971 = vrot.slane %v2969, 4
        %v2972 = vor.u32 %v2971, %v2967
        %v2973 = vrot.slane %v2972, 4
        %v2975 = vshll.u32 %v2825, 16
        %v2977 = vrot.slane %v2975, 5
        %v2978 = vsel %vm1055, %v2973, %v2977
        %v2980 = vshrl.u32 %v2826, 16
        %v2982 = vrot.slane %v2980, 4
        %v2983 = vshll.u32 %v2826, 16
        %v2985 = vrot.slane %v2983, 5
        %v2986 = vor.u32 %v2982, %v2985
        %v2987 = vrot.slane %v2986, 4
        %v2989 = vshll.u32 %v2827, 16
        %v2991 = vrot.slane %v2989, 5
        %v2992 = vsel %vm1055, %v2987, %v2991
        %v2993 = vshrl.u32 %v2827, 16
        %v2995 = vrot.slane %v2993, 4
        %v2996 = vor.u32 %v2995, %v2991
        %v2997 = vrot.slane %v2996, 4
        %v2999 = vshll.u32 %v2828, 16
        %v3001 = vrot.slane %v2999, 5
        %v3002 = vsel %vm1055, %v2997, %v3001
        %v3004 = vshrl.u32 %v2829, 16
        %v3006 = vrot.slane %v3004, 4
        %v3007 = vshll.u32 %v2829, 16
        %v3009 = vrot.slane %v3007, 5
        %v3010 = vor.u32 %v3006, %v3009
        %v3011 = vrot.slane %v3010, 4
        %v3013 = vshll.u32 %v2830, 16
        %v3015 = vrot.slane %v3013, 5
        %v3016 = vsel %vm1055, %v3011, %v3015
        %v3017 = vshrl.u32 %v2830, 16
        %v3019 = vrot.slane %v3017, 4
        %v3020 = vor.u32 %v3019, %v3015
        %v3021 = vrot.slane %v3020, 4
        %v3023 = vshll.u32 %v2831, 16
        %v3025 = vrot.slane %v3023, 5
        %v3026 = vsel %vm1055, %v3021, %v3025
        %v3028 = vshrl.u32 %v2832, 16
        %v3030 = vrot.slane %v3028, 4
        %v3031 = vshll.u32 %v2832, 16
        %v3033 = vrot.slane %v3031, 5
        %v3034 = vor.u32 %v3030, %v3033
        %v3035 = vrot.slane %v3034, 4
        %v3037 = vshll.u32 %v2833, 16
        %v3039 = vrot.slane %v3037, 5
        %v3040 = vsel %vm1055, %v3035, %v3039
        %v3041 = vshrl.u32 %v2833, 16
        %v3043 = vrot.slane %v3041, 4
        %v3044 = vor.u32 %v3043, %v3039
        %v3045 = vrot.slane %v3044, 4
        %v3047 = vshll.u32 %v2834, 16
        %v3049 = vrot.slane %v3047, 5
        %v3050 = vsel %vm1055, %v3045, %v3049
        %v3052 = vshrl.u32 %v2835, 16
        %v3054 = vrot.slane %v3052, 4
        %v3055 = vshll.u32 %v2835, 16
        %v3057 = vrot.slane %v3055, 5
        %v3058 = vor.u32 %v3054, %v3057
        %v3059 = vrot.slane %v3058, 4
        %v3061 = vshll.u32 %v2836, 16
        %v3063 = vrot.slane %v3061, 5
        %v3064 = vsel %vm1055, %v3059, %v3063
        %v3065 = vshrl.u32 %v2836, 16
        %v3067 = vrot.slane %v3065, 4
        %v3068 = vor.u32 %v3067, %v3063
        %v3069 = vrot.slane %v3068, 4
        %v3071 = vshll.u32 %v2837, 16
        %v3073 = vrot.slane %v3071, 5
        %v3074 = vsel %vm1055, %v3069, %v3073
        %v3076 = vshrl.u32 %v2838, 16
        %v3078 = vrot.slane %v3076, 4
        %v3079 = vshll.u32 %v2838, 16
        %v3081 = vrot.slane %v3079, 5
        %v3082 = vor.u32 %v3078, %v3081
        %v3083 = vrot.slane %v3082, 4
        %v3085 = vshll.u32 %v2839, 16
        %v3087 = vrot.slane %v3085, 5
        %v3088 = vsel %vm1055, %v3083, %v3087
        %v3089 = vshrl.u32 %v2839, 16
        %v3091 = vrot.slane %v3089, 4
        %v3092 = vor.u32 %v3091, %v3087
        %v3093 = vrot.slane %v3092, 4
        %v3095 = vshll.u32 %v2840, 16
        %v3097 = vrot.slane %v3095, 5
        %v3098 = vsel %vm1055, %v3093, %v3097
        %v3100 = vshrl.u32 %v2841, 16
        %v3102 = vrot.slane %v3100, 4
        %v3103 = vshll.u32 %v2841, 16
        %v3105 = vrot.slane %v3103, 5
        %v3106 = vor.u32 %v3102, %v3105
        %v3107 = vrot.slane %v3106, 4
        %v3109 = vshll.u32 %v2842, 16
        %v3111 = vrot.slane %v3109, 5
        %v3112 = vsel %vm1055, %v3107, %v3111
        %v3113 = vshrl.u32 %v2842, 16
        %v3115 = vrot.slane %v3113, 4
        %v3116 = vor.u32 %v3115, %v3111
        %v3117 = vrot.slane %v3116, 4
        %v3119 = vshll.u32 %v2843, 16
        %v3121 = vrot.slane %v3119, 5
        %v3122 = vsel %vm1055, %v3117, %v3121
        %v3124 = vshrl.u32 %v2844, 16
        %v3126 = vrot.slane %v3124, 4
        %v3127 = vshll.u32 %v2844, 16
        %v3129 = vrot.slane %v3127, 5
        %v3130 = vor.u32 %v3126, %v3129
        %v3131 = vrot.slane %v3130, 4
        %v3133 = vshll.u32 %v2845, 16
        %v3135 = vrot.slane %v3133, 5
        %v3136 = vsel %vm1055, %v3131, %v3135
        %v3137 = vshrl.u32 %v2845, 16
        %v3139 = vrot.slane %v3137, 4
        %v3140 = vor.u32 %v3139, %v3135
        %v3141 = vrot.slane %v3140, 4
        %v3143 = vshll.u32 %v2846, 16
        %v3145 = vrot.slane %v3143, 5
        %v3146 = vsel %vm1055, %v3141, %v3145
        %v3148 = vshrl.u32 %v2847, 16
        %v3150 = vrot.slane %v3148, 4
        %v3151 = vshll.u32 %v2847, 16
        %v3153 = vrot.slane %v3151, 5
        %v3154 = vor.u32 %v3150, %v3153
        %v3155 = vrot.slane %v3154, 4
        %v3157 = vshll.u32 %v2848, 16
        %v3159 = vrot.slane %v3157, 5
        %v3160 = vsel %vm1055, %v3155, %v3159
        %v3161 = vshrl.u32 %v2848, 16
        %v3163 = vrot.slane %v3161, 4
        %v3164 = vor.u32 %v3163, %v3159
        %v3165 = vrot.slane %v3164, 4
        %v3167 = vshll.u32 %v2849, 16
        %v3169 = vrot.slane %v3167, 5
        %v3170 = vsel %vm1055, %v3165, %v3169
        %v3172 = vshrl.u32 %v2850, 16
        %v3174 = vrot.slane %v3172, 4
        %v3175 = vshll.u32 %v2850, 16
        %v3177 = vrot.slane %v3175, 5
        %v3178 = vor.u32 %v3174, %v3177
        %v3179 = vrot.slane %v3178, 4
        %v3181 = vshll.u32 %v2851, 16
        %v3183 = vrot.slane %v3181, 5
        %v3184 = vsel %vm1055, %v3179, %v3183
        %v3185 = vshrl.u32 %v2851, 16
        %v3187 = vrot.slane %v3185, 4
        %v3188 = vor.u32 %v3187, %v3183
        %v3189 = vrot.slane %v3188, 4
        %v3191 = vshll.u32 %v2852, 16
        %v3193 = vrot.slane %v3191, 5
        %v3194 = vsel %vm1055, %v3189, %v3193
        %v3196 = vshrl.u32 %v2853, 16
        %v3198 = vrot.slane %v3196, 4
        %v3199 = vshll.u32 %v2853, 16
        %v3201 = vrot.slane %v3199, 5
        %v3202 = vor.u32 %v3198, %v3201
        %v3203 = vrot.slane %v3202, 4
        %v3205 = vshll.u32 %v2854, 16
        %v3207 = vrot.slane %v3205, 5
        %v3208 = vsel %vm1055, %v3203, %v3207
        %v3209 = vshrl.u32 %v2854, 16
        %v3211 = vrot.slane %v3209, 4
        %v3212 = vor.u32 %v3211, %v3207
        %v3213 = vrot.slane %v3212, 4
        %v3215 = vshll.u32 %v2855, 16
        %v3217 = vrot.slane %v3215, 5
        %v3218 = vsel %vm1055, %v3213, %v3217
        %v3220 = vshrl.u32 %v2856, 16
        %v3222 = vrot.slane %v3220, 4
        %v3223 = vshll.u32 %v2856, 16
        %v3225 = vrot.slane %v3223, 5
        %v3226 = vor.u32 %v3222, %v3225
        %v3227 = vrot.slane %v3226, 4
        %v3229 = vshll.u32 %v2857, 16
        %v3231 = vrot.slane %v3229, 5
        %v3232 = vsel %vm1055, %v3227, %v3231
        %v3233 = vshrl.u32 %v2857, 16
        %v3235 = vrot.slane %v3233, 4
        %v3236 = vor.u32 %v3235, %v3231
        %v3237 = vrot.slane %v3236, 4
        %v3239 = vshll.u32 %v2858, 16
        %v3241 = vrot.slane %v3239, 5
        %v3242 = vsel %vm1055, %v3237, %v3241
        %s3243 = scalar_lea.vmem [#allocation7], 8
        %v3244 = vld [vmem:[%s3243] sm:$0x3]
        %v3245 = vunpack.c.l.b16 %v2872
        %v3246 = vunpack.c.l.b16 %v2882
        %v3247 = vunpack.c.l.b16 %v2896
        %v3248 = vunpack.c.l.b16 %v2906
        %v3249 = vunpack.c.l.b16 %v2920
        %v3250 = vunpack.c.l.b16 %v2930
        %v3251 = vunpack.c.l.b16 %v2944
        %v3252 = vunpack.c.l.b16 %v2954
        %v3253 = vunpack.c.l.b16 %v2968
        %v3254 = vunpack.c.l.b16 %v2978
        %v3255 = vunpack.c.l.b16 %v2992
        %v3256 = vunpack.c.l.b16 %v3002
        %v3257 = vunpack.c.l.b16 %v3016
        %v3258 = vunpack.c.l.b16 %v3026
        %v3259 = vunpack.c.l.b16 %v3040
        %v3260 = vunpack.c.l.b16 %v3050
        %v3261 = vunpack.c.l.b16 %v3064
        %v3262 = vunpack.c.l.b16 %v3074
        %v3263 = vunpack.c.l.b16 %v3088
        %v3264 = vunpack.c.l.b16 %v3098
        %v3265 = vunpack.c.l.b16 %v3112
        %v3266 = vunpack.c.l.b16 %v3122
        %v3267 = vunpack.c.l.b16 %v3136
        %v3268 = vunpack.c.l.b16 %v3146
        %v3269 = vunpack.c.l.b16 %v3160
        %v3270 = vunpack.c.l.b16 %v3170
        %v3271 = vunpack.c.l.b16 %v3184
        %v3272 = vunpack.c.l.b16 %v3194
        %v3273 = vunpack.c.l.b16 %v3208
        %v3274 = vunpack.c.l.b16 %v3218
        %v3275 = vunpack.c.l.b16 %v3232
        %v3276 = vunpack.c.l.b16 %v3242
        %v3277 = vpack.c.b16 %v3246, %v3245
        %v3278 = vpack.c.b16 %v3248, %v3247
        %v3279 = vpack.c.b16 %v3250, %v3249
        %v3280 = vpack.c.b16 %v3252, %v3251
        %v3281 = vpack.c.b16 %v3254, %v3253
        %v3282 = vpack.c.b16 %v3256, %v3255
        %v3283 = vpack.c.b16 %v3258, %v3257
        %v3284 = vpack.c.b16 %v3260, %v3259
        %v3285 = vpack.c.b16 %v3262, %v3261
        %v3286 = vpack.c.b16 %v3264, %v3263
        %v3287 = vpack.c.b16 %v3266, %v3265
        %v3288 = vpack.c.b16 %v3268, %v3267
        %v3289 = vpack.c.b16 %v3270, %v3269
        %v3290 = vpack.c.b16 %v3272, %v3271
        %v3291 = vpack.c.b16 %v3274, %v3273
        %v3292 = vpack.c.b16 %v3276, %v3275
        %v3294 = vsel %vm1490, %v3277, 0
        %v3297 = vsel %vm1490, %v3278, 0
        %v3300 = vsel %vm1490, %v3279, 0
        %v3303 = vsel %vm1490, %v3280, 0
        %v3306 = vsel %vm1490, %v3281, 0
        %v3309 = vsel %vm1490, %v3282, 0
        %v3312 = vsel %vm1490, %v3283, 0
        %v3315 = vsel %vm1490, %v3284, 0
        %v3318 = vsel %vm1490, %v3285, 0
        %v3321 = vsel %vm1490, %v3286, 0
        %v3324 = vsel %vm1490, %v3287, 0
        %v3327 = vsel %vm1490, %v3288, 0
        %v3330 = vsel %vm1490, %v3289, 0
        %v3333 = vsel %vm1490, %v3290, 0
        %v3336 = vsel %vm1490, %v3291, 0
        %v3339 = vsel %vm1490, %v3292, 0
        %v3342 = vsel %vm1539, %v3244, 0
        %3344 = vmatprep.subr.bf16.mxu0 0
        %3345 = vmatpush1.bf16.msra.mxu0 %v3342
        %3346 = vmatprep.subr.bf16.mxu0 0
        %3347 = vmatpush1.bf16.msra.mxu0 0
        %3348 = vmatprep.subr.bf16.mxu0 0
        %3349 = vmatpush1.bf16.msra.mxu0 0
        %3350 = vmatprep.subr.bf16.mxu0 0
        %3351 = vmatpush1.bf16.msra.mxu0 0
        %3352 = vmatprep.subr.bf16.mxu0 0
        %3353 = vmatpush1.bf16.msra.mxu0 0
        %3354 = vmatprep.subr.bf16.mxu0 0
        %3355 = vmatpush1.bf16.msra.mxu0 0
        %3356 = vmatprep.subr.bf16.mxu0 0
        %3357 = vmatpush1.bf16.msra.mxu0 0
        %3358 = vmatprep.subr.bf16.mxu0 0
        %3359 = vmatpush1.bf16.msra.mxu0 0
        %3360 = vmatprep.subr.bf16.mxu0 0
        %3361 = vmatpush1.bf16.msra.mxu0 0
        %3362 = vmatprep.subr.bf16.mxu0 0
        %3363 = vmatpush1.bf16.msra.mxu0 0
        %3364 = vmatprep.subr.bf16.mxu0 0
        %3365 = vmatpush1.bf16.msra.mxu0 0
        %3366 = vmatprep.subr.bf16.mxu0 0
        %3367 = vmatpush1.bf16.msra.mxu0 0
        %3368 = vmatprep.subr.bf16.mxu0 0
        %3369 = vmatpush1.bf16.msra.mxu0 0
        %3370 = vmatprep.subr.bf16.mxu0 0
        %3371 = vmatpush1.bf16.msra.mxu0 0
        %3372 = vmatprep.subr.bf16.mxu0 0
        %3373 = vmatpush1.bf16.msra.mxu0 0
        %3374 = vmatprep.subr.bf16.mxu0 0
        %3375 = vmatpush1.bf16.msra.mxu0 0
        %3376 = vmatprep.mubr.bf16.mxu0 0
        %3377 = vmatmul.mubr.bf16.gmra.mrb[0].mxu0 %v3294
        %v3378 = vpop.f32.mrb[0].mxu0
        %v3379 = vadd.f32 0.0, %v3378
        %v3380 = vpop.f32.mrb[0].mxu0
        %v3381 = vpop.f32.mrb[0].mxu0
        %v3382 = vadd.f32 0.0, %v3381
        %v3383 = vpop.f32.mrb[0].mxu0
        %3384 = vmatprep.mubr.bf16.mxu0 0
        %3385 = vmatmul.mubr.bf16.gmra.mrb[0].mxu0 %v3297
        %v3386 = vpop.f32.mrb[0].mxu0
        %v3387 = vadd.f32 0.0, %v3386
        %v3388 = vpop.f32.mrb[0].mxu0
        %v3389 = vpop.f32.mrb[0].mxu0
        %v3390 = vadd.f32 0.0, %v3389
        %v3391 = vpop.f32.mrb[0].mxu0
        %3392 = vmatprep.mubr.bf16.mxu0 0
        %3393 = vmatmul.mubr.bf16.gmra.mrb[0].mxu0 %v3300
        %v3394 = vpop.f32.mrb[0].mxu0
        %v3395 = vadd.f32 0.0, %v3394
        %v3396 = vpop.f32.mrb[0].mxu0
        %v3397 = vpop.f32.mrb[0].mxu0
        %v3398 = vadd.f32 0.0, %v3397
        %v3399 = vpop.f32.mrb[0].mxu0
        %3400 = vmatprep.mubr.bf16.mxu0 0
        %3401 = vmatmul.mubr.bf16.gmra.mrb[0].mxu0 %v3303
        %v3402 = vpop.f32.mrb[0].mxu0
        %v3403 = vadd.f32 0.0, %v3402
        %v3404 = vpop.f32.mrb[0].mxu0
        %v3405 = vpop.f32.mrb[0].mxu0
        %v3406 = vadd.f32 0.0, %v3405
        %v3407 = vpop.f32.mrb[0].mxu0
        %3408 = vmatprep.mubr.bf16.mxu0 0
        %3409 = vmatmul.mubr.bf16.gmra.mrb[0].mxu0 %v3306
        %v3410 = vpop.f32.mrb[0].mxu0
        %v3411 = vadd.f32 0.0, %v3410
        %v3412 = vpop.f32.mrb[0].mxu0
        %v3413 = vpop.f32.mrb[0].mxu0
        %v3414 = vadd.f32 0.0, %v3413
        %v3415 = vpop.f32.mrb[0].mxu0
        %3416 = vmatprep.mubr.bf16.mxu0 0
        %3417 = vmatmul.mubr.bf16.gmra.mrb[0].mxu0 %v3309
        %v3418 = vpop.f32.mrb[0].mxu0
        %v3419 = vadd.f32 0.0, %v3418
        %v3420 = vpop.f32.mrb[0].mxu0
        %v3421 = vpop.f32.mrb[0].mxu0
        %v3422 = vadd.f32 0.0, %v3421
        %v3423 = vpop.f32.mrb[0].mxu0
        %3424 = vmatprep.mubr.bf16.mxu0 0
        %3425 = vmatmul.mubr.bf16.gmra.mrb[0].mxu0 %v3312
        %v3426 = vpop.f32.mrb[0].mxu0
        %v3427 = vadd.f32 0.0, %v3426
        %v3428 = vpop.f32.mrb[0].mxu0
        %v3429 = vpop.f32.mrb[0].mxu0
        %v3430 = vadd.f32 0.0, %v3429
        %v3431 = vpop.f32.mrb[0].mxu0
        %3432 = vmatprep.mubr.bf16.mxu0 0
        %3433 = vmatmul.mubr.bf16.gmra.mrb[0].mxu0 %v3315
        %v3434 = vpop.f32.mrb[0].mxu0
        %v3435 = vadd.f32 0.0, %v3434
        %v3436 = vpop.f32.mrb[0].mxu0
        %v3437 = vpop.f32.mrb[0].mxu0
        %v3438 = vadd.f32 0.0, %v3437
        %v3439 = vpop.f32.mrb[0].mxu0
        %3440 = vmatprep.mubr.bf16.mxu0 0
        %3441 = vmatmul.mubr.bf16.gmra.mrb[0].mxu0 %v3318
        %v3442 = vpop.f32.mrb[0].mxu0
        %v3443 = vadd.f32 0.0, %v3442
        %v3444 = vpop.f32.mrb[0].mxu0
        %v3445 = vpop.f32.mrb[0].mxu0
        %v3446 = vadd.f32 0.0, %v3445
        %v3447 = vpop.f32.mrb[0].mxu0
        %3448 = vmatprep.mubr.bf16.mxu0 0
        %3449 = vmatmul.mubr.bf16.gmra.mrb[0].mxu0 %v3321
        %v3450 = vpop.f32.mrb[0].mxu0
        %v3451 = vadd.f32 0.0, %v3450
        %v3452 = vpop.f32.mrb[0].mxu0
        %v3453 = vpop.f32.mrb[0].mxu0
        %v3454 = vadd.f32 0.0, %v3453
        %v3455 = vpop.f32.mrb[0].mxu0
        %3456 = vmatprep.mubr.bf16.mxu0 0
        %3457 = vmatmul.mubr.bf16.gmra.mrb[0].mxu0 %v3324
        %v3458 = vpop.f32.mrb[0].mxu0
        %v3459 = vadd.f32 0.0, %v3458
        %v3460 = vpop.f32.mrb[0].mxu0
        %v3461 = vpop.f32.mrb[0].mxu0
        %v3462 = vadd.f32 0.0, %v3461
        %v3463 = vpop.f32.mrb[0].mxu0
        %3464 = vmatprep.mubr.bf16.mxu0 0
        %3465 = vmatmul.mubr.bf16.gmra.mrb[0].mxu0 %v3327
        %v3466 = vpop.f32.mrb[0].mxu0
        %v3467 = vadd.f32 0.0, %v3466
        %v3468 = vpop.f32.mrb[0].mxu0
        %v3469 = vpop.f32.mrb[0].mxu0
        %v3470 = vadd.f32 0.0, %v3469
        %v3471 = vpop.f32.mrb[0].mxu0
        %3472 = vmatprep.mubr.bf16.mxu0 0
        %3473 = vmatmul.mubr.bf16.gmra.mrb[0].mxu0 %v3330
        %v3474 = vpop.f32.mrb[0].mxu0
        %v3475 = vadd.f32 0.0, %v3474
        %v3476 = vpop.f32.mrb[0].mxu0
        %v3477 = vpop.f32.mrb[0].mxu0
        %v3478 = vadd.f32 0.0, %v3477
        %v3479 = vpop.f32.mrb[0].mxu0
        %3480 = vmatprep.mubr.bf16.mxu0 0
        %3481 = vmatmul.mubr.bf16.gmra.mrb[0].mxu0 %v3333
        %v3482 = vpop.f32.mrb[0].mxu0
        %v3483 = vadd.f32 0.0, %v3482
        %v3484 = vpop.f32.mrb[0].mxu0
        %v3485 = vpop.f32.mrb[0].mxu0
        %v3486 = vadd.f32 0.0, %v3485
        %v3487 = vpop.f32.mrb[0].mxu0
        %3488 = vmatprep.mubr.bf16.mxu0 0
        %3489 = vmatmul.mubr.bf16.gmra.mrb[0].mxu0 %v3336
        %v3490 = vpop.f32.mrb[0].mxu0
        %v3491 = vadd.f32 0.0, %v3490
        %v3492 = vpop.f32.mrb[0].mxu0
        %v3493 = vpop.f32.mrb[0].mxu0
        %v3494 = vadd.f32 0.0, %v3493
        %v3495 = vpop.f32.mrb[0].mxu0
        %3496 = vmatprep.mubr.bf16.mxu0 0
        %3497 = vmatmul.mubr.bf16.gmra.mrb[0].mxu0 %v3339
        %v3498 = vpop.f32.mrb[0].mxu0
        %v3499 = vadd.f32 0.0, %v3498
        %v3500 = vpop.f32.mrb[0].mxu0
        %v3501 = vpop.f32.mrb[0].mxu0
        %v3502 = vadd.f32 0.0, %v3501
        %v3503 = vpop.f32.mrb[0].mxu0
        %3504 = vdwg.mxu0
        %v3505 = vadd.f32 %v2779, %v3379
        %v3506 = vadd.f32 %v2780, %v3382
        %v3507 = vadd.f32 %v2781, %v3387
        %v3508 = vadd.f32 %v2782, %v3390
        %v3509 = vadd.f32 %v2783, %v3395
        %v3510 = vadd.f32 %v2784, %v3398
        %v3511 = vadd.f32 %v2785, %v3403
        %v3512 = vadd.f32 %v2786, %v3406
        %v3513 = vadd.f32 %v2787, %v3411
        %v3514 = vadd.f32 %v2788, %v3414
        %v3515 = vadd.f32 %v2789, %v3419
        %v3516 = vadd.f32 %v2790, %v3422
        %v3517 = vadd.f32 %v2791, %v3427
        %v3518 = vadd.f32 %v2792, %v3430
        %v3519 = vadd.f32 %v2793, %v3435
        %v3520 = vadd.f32 %v2794, %v3438
        %v3521 = vadd.f32 %v2795, %v3443
        %v3522 = vadd.f32 %v2796, %v3446
        %v3523 = vadd.f32 %v2797, %v3451
        %v3524 = vadd.f32 %v2798, %v3454
        %v3525 = vadd.f32 %v2799, %v3459
        %v3526 = vadd.f32 %v2800, %v3462
        %v3527 = vadd.f32 %v2801, %v3467
        %v3528 = vadd.f32 %v2802, %v3470
        %v3529 = vadd.f32 %v2803, %v3475
        %v3530 = vadd.f32 %v2804, %v3478
        %v3531 = vadd.f32 %v2805, %v3483
        %v3532 = vadd.f32 %v2806, %v3486
        %v3533 = vadd.f32 %v2807, %v3491
        %v3534 = vadd.f32 %v2808, %v3494
        %v3535 = vadd.f32 %v2809, %v3499
        %v3536 = vadd.f32 %v2810, %v3502
        %v3537 = vld [vmem:[%s889] sm:$0xe]
        %v3538 = vld [vmem:[%s889 + $0xc] sm:$0xe]
        %v3539 = vld [vmem:[%s889 + $0x18] sm:$0xe]
        %v3540 = vld [vmem:[%s889 + $0x24] sm:$0xe]
        %v3541 = vld [vmem:[%s889 + $0x30] sm:$0xe]
        %v3542 = vld [vmem:[%s889 + $0x3c] sm:$0xe]
        %v3543 = vld [vmem:[%s889 + $0x48] sm:$0xe]
        %v3544 = vld [vmem:[%s889 + $0x54] sm:$0xe]
        %v3545 = vld [vmem:[%s889 + $0x60] sm:$0xe]
        %v3546 = vld [vmem:[%s889 + $0x6c] sm:$0xe]
        %v3547 = vld [vmem:[%s889 + $0x78] sm:$0xe]
        %v3548 = vld [vmem:[%s889 + $0x84] sm:$0xe]
        %v3549 = vld [vmem:[%s889 + $0x90] sm:$0xe]
        %v3550 = vld [vmem:[%s889 + $0x9c] sm:$0xe]
        %v3551 = vld [vmem:[%s889 + $0xa8] sm:$0xe]
        %v3552 = vld [vmem:[%s889 + $0xb4] sm:$0xe]
        %v3601 = vrot.slane %v3537, 5
        %v3602 = vrot.slane %v3601, 4
        %v3603 = vrot.slane %v2812, 5
        %v3604 = vsel %vm2046, %v3602, %v3603
        %v3605 = vrot.slane %v3603, 4
        %v3606 = vrot.slane %v2813, 5
        %v3607 = vsel %vm2046, %v3605, %v3606
        %v3608 = vrot.slane %v3538, 5
        %v3609 = vrot.slane %v3608, 4
        %v3610 = vrot.slane %v2815, 5
        %v3611 = vsel %vm2046, %v3609, %v3610
        %v3612 = vrot.slane %v3610, 4
        %v3613 = vrot.slane %v2816, 5
        %v3614 = vsel %vm2046, %v3612, %v3613
        %v3615 = vrot.slane %v3539, 5
        %v3616 = vrot.slane %v3615, 4
        %v3617 = vrot.slane %v2818, 5
        %v3618 = vsel %vm2046, %v3616, %v3617
        %v3619 = vrot.slane %v3617, 4
        %v3620 = vrot.slane %v2819, 5
        %v3621 = vsel %vm2046, %v3619, %v3620
        %v3622 = vrot.slane %v3540, 5
        %v3623 = vrot.slane %v3622, 4
        %v3624 = vrot.slane %v2821, 5
        %v3625 = vsel %vm2046, %v3623, %v3624
        %v3626 = vrot.slane %v3624, 4
        %v3627 = vrot.slane %v2822, 5
        %v3628 = vsel %vm2046, %v3626, %v3627
        %v3629 = vrot.slane %v3541, 5
        %v3630 = vrot.slane %v3629, 4
        %v3631 = vrot.slane %v2824, 5
        %v3632 = vsel %vm2046, %v3630, %v3631
        %v3633 = vrot.slane %v3631, 4
        %v3634 = vrot.slane %v2825, 5
        %v3635 = vsel %vm2046, %v3633, %v3634
        %v3636 = vrot.slane %v3542, 5
        %v3637 = vrot.slane %v3636, 4
        %v3638 = vrot.slane %v2827, 5
        %v3639 = vsel %vm2046, %v3637, %v3638
        %v3640 = vrot.slane %v3638, 4
        %v3641 = vrot.slane %v2828, 5
        %v3642 = vsel %vm2046, %v3640, %v3641
        %v3643 = vrot.slane %v3543, 5
        %v3644 = vrot.slane %v3643, 4
        %v3645 = vrot.slane %v2830, 5
        %v3646 = vsel %vm2046, %v3644, %v3645
        %v3647 = vrot.slane %v3645, 4
        %v3648 = vrot.slane %v2831, 5
        %v3649 = vsel %vm2046, %v3647, %v3648
        %v3650 = vrot.slane %v3544, 5
        %v3651 = vrot.slane %v3650, 4
        %v3652 = vrot.slane %v2833, 5
        %v3653 = vsel %vm2046, %v3651, %v3652
        %v3654 = vrot.slane %v3652, 4
        %v3655 = vrot.slane %v2834, 5
        %v3656 = vsel %vm2046, %v3654, %v3655
        %v3657 = vrot.slane %v3545, 5
        %v3658 = vrot.slane %v3657, 4
        %v3659 = vrot.slane %v2836, 5
        %v3660 = vsel %vm2046, %v3658, %v3659
        %v3661 = vrot.slane %v3659, 4
        %v3662 = vrot.slane %v2837, 5
        %v3663 = vsel %vm2046, %v3661, %v3662
        %v3664 = vrot.slane %v3546, 5
        %v3665 = vrot.slane %v3664, 4
        %v3666 = vrot.slane %v2839, 5
        %v3667 = vsel %vm2046, %v3665, %v3666
        %v3668 = vrot.slane %v3666, 4
        %v3669 = vrot.slane %v2840, 5
        %v3670 = vsel %vm2046, %v3668, %v3669
        %v3671 = vrot.slane %v3547, 5
        %v3672 = vrot.slane %v3671, 4
        %v3673 = vrot.slane %v2842, 5
        %v3674 = vsel %vm2046, %v3672, %v3673
        %v3675 = vrot.slane %v3673, 4
        %v3676 = vrot.slane %v2843, 5
        %v3677 = vsel %vm2046, %v3675, %v3676
        %v3678 = vrot.slane %v3548, 5
        %v3679 = vrot.slane %v3678, 4
        %v3680 = vrot.slane %v2845, 5
        %v3681 = vsel %vm2046, %v3679, %v3680
        %v3682 = vrot.slane %v3680, 4
        %v3683 = vrot.slane %v2846, 5
        %v3684 = vsel %vm2046, %v3682, %v3683
        %v3685 = vrot.slane %v3549, 5
        %v3686 = vrot.slane %v3685, 4
        %v3687 = vrot.slane %v2848, 5
        %v3688 = vsel %vm2046, %v3686, %v3687
        %v3689 = vrot.slane %v3687, 4
        %v3690 = vrot.slane %v2849, 5
        %v3691 = vsel %vm2046, %v3689, %v3690
        %v3692 = vrot.slane %v3550, 5
        %v3693 = vrot.slane %v3692, 4
        %v3694 = vrot.slane %v2851, 5
        %v3695 = vsel %vm2046, %v3693, %v3694
        %v3696 = vrot.slane %v3694, 4
        %v3697 = vrot.slane %v2852, 5
        %v3698 = vsel %vm2046, %v3696, %v3697
        %v3699 = vrot.slane %v3551, 5
        %v3700 = vrot.slane %v3699, 4
        %v3701 = vrot.slane %v2854, 5
        %v3702 = vsel %vm2046, %v3700, %v3701
        %v3703 = vrot.slane %v3701, 4
        %v3704 = vrot.slane %v2855, 5
        %v3705 = vsel %vm2046, %v3703, %v3704
        %v3706 = vrot.slane %v3552, 5
        %v3707 = vrot.slane %v3706, 4
        %v3708 = vrot.slane %v2857, 5
        %v3709 = vsel %vm2046, %v3707, %v3708
        %v3710 = vrot.slane %v3708, 4
        %v3711 = vrot.slane %v2858, 5
        %v3712 = vsel %vm2046, %v3710, %v3711
        %s3713 = scalar_lea.vmem [#allocation7], 10
        %v3714 = vld [vmem:[%s3713] sm:$0x3]
        %v3715 = vunpack.c.l.b16 %v3604
        %v3716 = vunpack.c.l.b16 %v3607
        %v3717 = vunpack.c.l.b16 %v3611
        %v3718 = vunpack.c.l.b16 %v3614
        %v3719 = vunpack.c.l.b16 %v3618
        %v3720 = vunpack.c.l.b16 %v3621
        %v3721 = vunpack.c.l.b16 %v3625
        %v3722 = vunpack.c.l.b16 %v3628
        %v3723 = vunpack.c.l.b16 %v3632
        %v3724 = vunpack.c.l.b16 %v3635
        %v3725 = vunpack.c.l.b16 %v3639
        %v3726 = vunpack.c.l.b16 %v3642
        %v3727 = vunpack.c.l.b16 %v3646
        %v3728 = vunpack.c.l.b16 %v3649
        %v3729 = vunpack.c.l.b16 %v3653
        %v3730 = vunpack.c.l.b16 %v3656
        %v3731 = vunpack.c.l.b16 %v3660
        %v3732 = vunpack.c.l.b16 %v3663
        %v3733 = vunpack.c.l.b16 %v3667
        %v3734 = vunpack.c.l.b16 %v3670
        %v3735 = vunpack.c.l.b16 %v3674
        %v3736 = vunpack.c.l.b16 %v3677
        %v3737 = vunpack.c.l.b16 %v3681
        %v3738 = vunpack.c.l.b16 %v3684
        %v3739 = vunpack.c.l.b16 %v3688
        %v3740 = vunpack.c.l.b16 %v3691
        %v3741 = vunpack.c.l.b16 %v3695
        %v3742 = vunpack.c.l.b16 %v3698
        %v3743 = vunpack.c.l.b16 %v3702
        %v3744 = vunpack.c.l.b16 %v3705
        %v3745 = vunpack.c.l.b16 %v3709
        %v3746 = vunpack.c.l.b16 %v3712
        %v3747 = vpack.c.b16 %v3716, %v3715
        %v3748 = vpack.c.b16 %v3718, %v3717
        %v3749 = vpack.c.b16 %v3720, %v3719
        %v3750 = vpack.c.b16 %v3722, %v3721
        %v3751 = vpack.c.b16 %v3724, %v3723
        %v3752 = vpack.c.b16 %v3726, %v3725
        %v3753 = vpack.c.b16 %v3728, %v3727
        %v3754 = vpack.c.b16 %v3730, %v3729
        %v3755 = vpack.c.b16 %v3732, %v3731
        %v3756 = vpack.c.b16 %v3734, %v3733
        %v3757 = vpack.c.b16 %v3736, %v3735
        %v3758 = vpack.c.b16 %v3738, %v3737
        %v3759 = vpack.c.b16 %v3740, %v3739
        %v3760 = vpack.c.b16 %v3742, %v3741
        %v3761 = vpack.c.b16 %v3744, %v3743
        %v3762 = vpack.c.b16 %v3746, %v3745
        %v3764 = vsel %vm1490, %v3747, 0
        %v3767 = vsel %vm1490, %v3748, 0
        %v3770 = vsel %vm1490, %v3749, 0
        %v3773 = vsel %vm1490, %v3750, 0
        %v3776 = vsel %vm1490, %v3751, 0
        %v3779 = vsel %vm1490, %v3752, 0
        %v3782 = vsel %vm1490, %v3753, 0
        %v3785 = vsel %vm1490, %v3754, 0
        %v3788 = vsel %vm1490, %v3755, 0
        %v3791 = vsel %vm1490, %v3756, 0
        %v3794 = vsel %vm1490, %v3757, 0
        %v3797 = vsel %vm1490, %v3758, 0
        %v3800 = vsel %vm1490, %v3759, 0
        %v3803 = vsel %vm1490, %v3760, 0
        %v3806 = vsel %vm1490, %v3761, 0
        %v3809 = vsel %vm1490, %v3762, 0
        %v3812 = vsel %vm1539, %v3714, 0
        %3814 = vmatprep.subr.bf16.mxu0 0
        %3815 = vmatpush1.bf16.msra.mxu0 %v3812
        %3816 = vmatprep.subr.bf16.mxu0 0
        %3817 = vmatpush1.bf16.msra.mxu0 0
        %3818 = vmatprep.subr.bf16.mxu0 0
        %3819 = vmatpush1.bf16.msra.mxu0 0
        %3820 = vmatprep.subr.bf16.mxu0 0
        %3821 = vmatpush1.bf16.msra.mxu0 0
        %3822 = vmatprep.subr.bf16.mxu0 0
        %3823 = vmatpush1.bf16.msra.mxu0 0
        %3824 = vmatprep.subr.bf16.mxu0 0
        %3825 = vmatpush1.bf16.msra.mxu0 0
        %3826 = vmatprep.subr.bf16.mxu0 0
        %3827 = vmatpush1.bf16.msra.mxu0 0
        %3828 = vmatprep.subr.bf16.mxu0 0
        %3829 = vmatpush1.bf16.msra.mxu0 0
        %3830 = vmatprep.subr.bf16.mxu0 0
        %3831 = vmatpush1.bf16.msra.mxu0 0
        %3832 = vmatprep.subr.bf16.mxu0 0
        %3833 = vmatpush1.bf16.msra.mxu0 0
        %3834 = vmatprep.subr.bf16.mxu0 0
        %3835 = vmatpush1.bf16.msra.mxu0 0
        %3836 = vmatprep.subr.bf16.mxu0 0
        %3837 = vmatpush1.bf16.msra.mxu0 0
        %3838 = vmatprep.subr.bf16.mxu0 0
        %3839 = vmatpush1.bf16.msra.mxu0 0
        %3840 = vmatprep.subr.bf16.mxu0 0
        %3841 = vmatpush1.bf16.msra.mxu0 0
        %3842 = vmatprep.subr.bf16.mxu0 0
        %3843 = vmatpush1.bf16.msra.mxu0 0
        %3844 = vmatprep.subr.bf16.mxu0 0
        %3845 = vmatpush1.bf16.msra.mxu0 0
        %3846 = vmatprep.mubr.bf16.mxu0 0
        %3847 = vmatmul.mubr.bf16.gmra.mrb[0].mxu0 %v3764
        %v3848 = vpop.f32.mrb[0].mxu0
        %v3849 = vadd.f32 0.0, %v3848
        %v3850 = vpop.f32.mrb[0].mxu0
        %v3851 = vpop.f32.mrb[0].mxu0
        %v3852 = vadd.f32 0.0, %v3851
        %v3853 = vpop.f32.mrb[0].mxu0
        %3854 = vmatprep.mubr.bf16.mxu0 0
        %3855 = vmatmul.mubr.bf16.gmra.mrb[0].mxu0 %v3767
        %v3856 = vpop.f32.mrb[0].mxu0
        %v3857 = vadd.f32 0.0, %v3856
        %v3858 = vpop.f32.mrb[0].mxu0
        %v3859 = vpop.f32.mrb[0].mxu0
        %v3860 = vadd.f32 0.0, %v3859
        %v3861 = vpop.f32.mrb[0].mxu0
        %3862 = vmatprep.mubr.bf16.mxu0 0
        %3863 = vmatmul.mubr.bf16.gmra.mrb[0].mxu0 %v3770
        %v3864 = vpop.f32.mrb[0].mxu0
        %v3865 = vadd.f32 0.0, %v3864
        %v3866 = vpop.f32.mrb[0].mxu0
        %v3867 = vpop.f32.mrb[0].mxu0
        %v3868 = vadd.f32 0.0, %v3867
        %v3869 = vpop.f32.mrb[0].mxu0
        %3870 = vmatprep.mubr.bf16.mxu0 0
        %3871 = vmatmul.mubr.bf16.gmra.mrb[0].mxu0 %v3773
        %v3872 = vpop.f32.mrb[0].mxu0
        %v3873 = vadd.f32 0.0, %v3872
        %v3874 = vpop.f32.mrb[0].mxu0
        %v3875 = vpop.f32.mrb[0].mxu0
        %v3876 = vadd.f32 0.0, %v3875
        %v3877 = vpop.f32.mrb[0].mxu0
        %3878 = vmatprep.mubr.bf16.mxu0 0
        %3879 = vmatmul.mubr.bf16.gmra.mrb[0].mxu0 %v3776
        %v3880 = vpop.f32.mrb[0].mxu0
        %v3881 = vadd.f32 0.0, %v3880
        %v3882 = vpop.f32.mrb[0].mxu0
        %v3883 = vpop.f32.mrb[0].mxu0
        %v3884 = vadd.f32 0.0, %v3883
        %v3885 = vpop.f32.mrb[0].mxu0
        %3886 = vmatprep.mubr.bf16.mxu0 0
        %3887 = vmatmul.mubr.bf16.gmra.mrb[0].mxu0 %v3779
        %v3888 = vpop.f32.mrb[0].mxu0
        %v3889 = vadd.f32 0.0, %v3888
        %v3890 = vpop.f32.mrb[0].mxu0
        %v3891 = vpop.f32.mrb[0].mxu0
        %v3892 = vadd.f32 0.0, %v3891
        %v3893 = vpop.f32.mrb[0].mxu0
        %3894 = vmatprep.mubr.bf16.mxu0 0
        %3895 = vmatmul.mubr.bf16.gmra.mrb[0].mxu0 %v3782
        %v3896 = vpop.f32.mrb[0].mxu0
        %v3897 = vadd.f32 0.0, %v3896
        %v3898 = vpop.f32.mrb[0].mxu0
        %v3899 = vpop.f32.mrb[0].mxu0
        %v3900 = vadd.f32 0.0, %v3899
        %v3901 = vpop.f32.mrb[0].mxu0
        %3902 = vmatprep.mubr.bf16.mxu0 0
        %3903 = vmatmul.mubr.bf16.gmra.mrb[0].mxu0 %v3785
        %v3904 = vpop.f32.mrb[0].mxu0
        %v3905 = vadd.f32 0.0, %v3904
        %v3906 = vpop.f32.mrb[0].mxu0
        %v3907 = vpop.f32.mrb[0].mxu0
        %v3908 = vadd.f32 0.0, %v3907
        %v3909 = vpop.f32.mrb[0].mxu0
        %3910 = vmatprep.mubr.bf16.mxu0 0
        %3911 = vmatmul.mubr.bf16.gmra.mrb[0].mxu0 %v3788
        %v3912 = vpop.f32.mrb[0].mxu0
        %v3913 = vadd.f32 0.0, %v3912
        %v3914 = vpop.f32.mrb[0].mxu0
        %v3915 = vpop.f32.mrb[0].mxu0
        %v3916 = vadd.f32 0.0, %v3915
        %v3917 = vpop.f32.mrb[0].mxu0
        %3918 = vmatprep.mubr.bf16.mxu0 0
        %3919 = vmatmul.mubr.bf16.gmra.mrb[0].mxu0 %v3791
        %v3920 = vpop.f32.mrb[0].mxu0
        %v3921 = vadd.f32 0.0, %v3920
        %v3922 = vpop.f32.mrb[0].mxu0
        %v3923 = vpop.f32.mrb[0].mxu0
        %v3924 = vadd.f32 0.0, %v3923
        %v3925 = vpop.f32.mrb[0].mxu0
        %3926 = vmatprep.mubr.bf16.mxu0 0
        %3927 = vmatmul.mubr.bf16.gmra.mrb[0].mxu0 %v3794
        %v3928 = vpop.f32.mrb[0].mxu0
        %v3929 = vadd.f32 0.0, %v3928
        %v3930 = vpop.f32.mrb[0].mxu0
        %v3931 = vpop.f32.mrb[0].mxu0
        %v3932 = vadd.f32 0.0, %v3931
        %v3933 = vpop.f32.mrb[0].mxu0
        %3934 = vmatprep.mubr.bf16.mxu0 0
        %3935 = vmatmul.mubr.bf16.gmra.mrb[0].mxu0 %v3797
        %v3936 = vpop.f32.mrb[0].mxu0
        %v3937 = vadd.f32 0.0, %v3936
        %v3938 = vpop.f32.mrb[0].mxu0
        %v3939 = vpop.f32.mrb[0].mxu0
        %v3940 = vadd.f32 0.0, %v3939
        %v3941 = vpop.f32.mrb[0].mxu0
        %3942 = vmatprep.mubr.bf16.mxu0 0
        %3943 = vmatmul.mubr.bf16.gmra.mrb[0].mxu0 %v3800
        %v3944 = vpop.f32.mrb[0].mxu0
        %v3945 = vadd.f32 0.0, %v3944
        %v3946 = vpop.f32.mrb[0].mxu0
        %v3947 = vpop.f32.mrb[0].mxu0
        %v3948 = vadd.f32 0.0, %v3947
        %v3949 = vpop.f32.mrb[0].mxu0
        %3950 = vmatprep.mubr.bf16.mxu0 0
        %3951 = vmatmul.mubr.bf16.gmra.mrb[0].mxu0 %v3803
        %v3952 = vpop.f32.mrb[0].mxu0
        %v3953 = vadd.f32 0.0, %v3952
        %v3954 = vpop.f32.mrb[0].mxu0
        %v3955 = vpop.f32.mrb[0].mxu0
        %v3956 = vadd.f32 0.0, %v3955
        %v3957 = vpop.f32.mrb[0].mxu0
        %3958 = vmatprep.mubr.bf16.mxu0 0
        %3959 = vmatmul.mubr.bf16.gmra.mrb[0].mxu0 %v3806
        %v3960 = vpop.f32.mrb[0].mxu0
        %v3961 = vadd.f32 0.0, %v3960
        %v3962 = vpop.f32.mrb[0].mxu0
        %v3963 = vpop.f32.mrb[0].mxu0
        %v3964 = vadd.f32 0.0, %v3963
        %v3965 = vpop.f32.mrb[0].mxu0
        %3966 = vmatprep.mubr.bf16.mxu0 0
        %3967 = vmatmul.mubr.bf16.gmra.mrb[0].mxu0 %v3809
        %v3968 = vpop.f32.mrb[0].mxu0
        %v3969 = vadd.f32 0.0, %v3968
        %v3970 = vpop.f32.mrb[0].mxu0
        %v3971 = vpop.f32.mrb[0].mxu0
        %v3972 = vadd.f32 0.0, %v3971
        %v3973 = vpop.f32.mrb[0].mxu0
        %3974 = vdwg.mxu0
        %v3975 = vadd.f32 %v3505, %v3849
        %v3976 = vadd.f32 %v3506, %v3852
        %v3977 = vadd.f32 %v3507, %v3857
        %v3978 = vadd.f32 %v3508, %v3860
        %v3979 = vadd.f32 %v3509, %v3865
        %v3980 = vadd.f32 %v3510, %v3868
        %v3981 = vadd.f32 %v3511, %v3873
        %v3982 = vadd.f32 %v3512, %v3876
        %v3983 = vadd.f32 %v3513, %v3881
        %v3984 = vadd.f32 %v3514, %v3884
        %v3985 = vadd.f32 %v3515, %v3889
        %v3986 = vadd.f32 %v3516, %v3892
        %v3987 = vadd.f32 %v3517, %v3897
        %v3988 = vadd.f32 %v3518, %v3900
        %v3989 = vadd.f32 %v3519, %v3905
        %v3990 = vadd.f32 %v3520, %v3908
        %v3991 = vadd.f32 %v3521, %v3913
        %v3992 = vadd.f32 %v3522, %v3916
        %v3993 = vadd.f32 %v3523, %v3921
        %v3994 = vadd.f32 %v3524, %v3924
        %v3995 = vadd.f32 %v3525, %v3929
        %v3996 = vadd.f32 %v3526, %v3932
        %v3997 = vadd.f32 %v3527, %v3937
        %v3998 = vadd.f32 %v3528, %v3940
        %v3999 = vadd.f32 %v3529, %v3945
        %v4000 = vadd.f32 %v3530, %v3948
        %v4001 = vadd.f32 %v3531, %v3953
        %v4002 = vadd.f32 %v3532, %v3956
        %v4003 = vadd.f32 %v3533, %v3961
        %v4004 = vadd.f32 %v3534, %v3964
        %v4005 = vadd.f32 %v3535, %v3969
        %v4006 = vadd.f32 %v3536, %v3972
        %s4007 = scalar_lea.vmem [#allocation2], 24
        %v4008 = vld [vmem:[%s4007] sm:$0xf]
        %v4009 = vld [vmem:[%s4007 + $0x4] sm:$0xf]
        %v4010 = vld [vmem:[%s4007 + $0xc] sm:$0xf]
        %v4011 = vld [vmem:[%s4007 + $0x10] sm:$0xf]
        %v4012 = vld [vmem:[%s4007 + $0x18] sm:$0xf]
        %v4013 = vld [vmem:[%s4007 + $0x1c] sm:$0xf]
        %v4014 = vld [vmem:[%s4007 + $0x24] sm:$0xf]
        %v4015 = vld [vmem:[%s4007 + $0x28] sm:$0xf]
        %v4016 = vld [vmem:[%s4007 + $0x30] sm:$0xf]
        %v4017 = vld [vmem:[%s4007 + $0x34] sm:$0xf]
        %v4018 = vld [vmem:[%s4007 + $0x3c] sm:$0xf]
        %v4019 = vld [vmem:[%s4007 + $0x40] sm:$0xf]
        %v4020 = vld [vmem:[%s4007 + $0x48] sm:$0xf]
        %v4021 = vld [vmem:[%s4007 + $0x4c] sm:$0xf]
        %v4022 = vld [vmem:[%s4007 + $0x54] sm:$0xf]
        %v4023 = vld [vmem:[%s4007 + $0x58] sm:$0xf]
        %v4024 = vld [vmem:[%s4007 + $0x60] sm:$0xf]
        %v4025 = vld [vmem:[%s4007 + $0x64] sm:$0xf]
        %v4026 = vld [vmem:[%s4007 + $0x6c] sm:$0xf]
        %v4027 = vld [vmem:[%s4007 + $0x70] sm:$0xf]
        %v4028 = vld [vmem:[%s4007 + $0x78] sm:$0xf]
        %v4029 = vld [vmem:[%s4007 + $0x7c] sm:$0xf]
        %v4030 = vld [vmem:[%s4007 + $0x84] sm:$0xf]
        %v4031 = vld [vmem:[%s4007 + $0x88] sm:$0xf]
        %v4032 = vld [vmem:[%s4007 + $0x90] sm:$0xf]
        %v4033 = vld [vmem:[%s4007 + $0x94] sm:$0xf]
        %v4034 = vld [vmem:[%s4007 + $0x9c] sm:$0xf]
        %v4035 = vld [vmem:[%s4007 + $0xa0] sm:$0xf]
        %v4036 = vld [vmem:[%s4007 + $0xa8] sm:$0xf]
        %v4037 = vld [vmem:[%s4007 + $0xac] sm:$0xf]
        %v4038 = vld [vmem:[%s4007 + $0xb4] sm:$0xf]
        %v4039 = vld [vmem:[%s4007 + $0xb8] sm:$0xf]
        %s4040 = scalar_lea.vmem [#allocation7], 12
        %v4041 = vld [vmem:[%s4040] sm:$0x3]
        %v4074 = vunpack.c.l.b16 %v4008
        %v4075 = vunpack.c.l.b16 %v4009
        %v4076 = vunpack.c.l.b16 %v4010
        %v4077 = vunpack.c.l.b16 %v4011
        %v4078 = vunpack.c.l.b16 %v4012
        %v4079 = vunpack.c.l.b16 %v4013
        %v4080 = vunpack.c.l.b16 %v4014
        %v4081 = vunpack.c.l.b16 %v4015
        %v4082 = vunpack.c.l.b16 %v4016
        %v4083 = vunpack.c.l.b16 %v4017
        %v4084 = vunpack.c.l.b16 %v4018
        %v4085 = vunpack.c.l.b16 %v4019
        %v4086 = vunpack.c.l.b16 %v4020
        %v4087 = vunpack.c.l.b16 %v4021
        %v4088 = vunpack.c.l.b16 %v4022
        %v4089 = vunpack.c.l.b16 %v4023
        %v4090 = vunpack.c.l.b16 %v4024
        %v4091 = vunpack.c.l.b16 %v4025
        %v4092 = vunpack.c.l.b16 %v4026
        %v4093 = vunpack.c.l.b16 %v4027
        %v4094 = vunpack.c.l.b16 %v4028
        %v4095 = vunpack.c.l.b16 %v4029
        %v4096 = vunpack.c.l.b16 %v4030
        %v4097 = vunpack.c.l.b16 %v4031
        %v4098 = vunpack.c.l.b16 %v4032
        %v4099 = vunpack.c.l.b16 %v4033
        %v4100 = vunpack.c.l.b16 %v4034
        %v4101 = vunpack.c.l.b16 %v4035
        %v4102 = vunpack.c.l.b16 %v4036
        %v4103 = vunpack.c.l.b16 %v4037
        %v4104 = vunpack.c.l.b16 %v4038
        %v4105 = vunpack.c.l.b16 %v4039
        %v4106 = vpack.c.b16 %v4075, %v4074
        %v4107 = vpack.c.b16 %v4077, %v4076
        %v4108 = vpack.c.b16 %v4079, %v4078
        %v4109 = vpack.c.b16 %v4081, %v4080
        %v4110 = vpack.c.b16 %v4083, %v4082
        %v4111 = vpack.c.b16 %v4085, %v4084
        %v4112 = vpack.c.b16 %v4087, %v4086
        %v4113 = vpack.c.b16 %v4089, %v4088
        %v4114 = vpack.c.b16 %v4091, %v4090
        %v4115 = vpack.c.b16 %v4093, %v4092
        %v4116 = vpack.c.b16 %v4095, %v4094
        %v4117 = vpack.c.b16 %v4097, %v4096
        %v4118 = vpack.c.b16 %v4099, %v4098
        %v4119 = vpack.c.b16 %v4101, %v4100
        %v4120 = vpack.c.b16 %v4103, %v4102
        %v4121 = vpack.c.b16 %v4105, %v4104
        %v4123 = vsel %vm1490, %v4106, 0
        %v4126 = vsel %vm1490, %v4107, 0
        %v4129 = vsel %vm1490, %v4108, 0
        %v4132 = vsel %vm1490, %v4109, 0
        %v4135 = vsel %vm1490, %v4110, 0
        %v4138 = vsel %vm1490, %v4111, 0
        %v4141 = vsel %vm1490, %v4112, 0
        %v4144 = vsel %vm1490, %v4113, 0
        %v4147 = vsel %vm1490, %v4114, 0
        %v4150 = vsel %vm1490, %v4115, 0
        %v4153 = vsel %vm1490, %v4116, 0
        %v4156 = vsel %vm1490, %v4117, 0
        %v4159 = vsel %vm1490, %v4118, 0
        %v4162 = vsel %vm1490, %v4119, 0
        %v4165 = vsel %vm1490, %v4120, 0
        %v4168 = vsel %vm1490, %v4121, 0
        %v4171 = vsel %vm1539, %v4041, 0
        %4173 = vmatprep.subr.bf16.mxu0 0
        %4174 = vmatpush1.bf16.msra.mxu0 %v4171
        %4175 = vmatprep.subr.bf16.mxu0 0
        %4176 = vmatpush1.bf16.msra.mxu0 0
        %4177 = vmatprep.subr.bf16.mxu0 0
        %4178 = vmatpush1.bf16.msra.mxu0 0
        %4179 = vmatprep.subr.bf16.mxu0 0
        %4180 = vmatpush1.bf16.msra.mxu0 0
        %4181 = vmatprep.subr.bf16.mxu0 0
        %4182 = vmatpush1.bf16.msra.mxu0 0
        %4183 = vmatprep.subr.bf16.mxu0 0
        %4184 = vmatpush1.bf16.msra.mxu0 0
        %4185 = vmatprep.subr.bf16.mxu0 0
        %4186 = vmatpush1.bf16.msra.mxu0 0
        %4187 = vmatprep.subr.bf16.mxu0 0
        %4188 = vmatpush1.bf16.msra.mxu0 0
        %4189 = vmatprep.subr.bf16.mxu0 0
        %4190 = vmatpush1.bf16.msra.mxu0 0
        %4191 = vmatprep.subr.bf16.mxu0 0
        %4192 = vmatpush1.bf16.msra.mxu0 0
        %4193 = vmatprep.subr.bf16.mxu0 0
        %4194 = vmatpush1.bf16.msra.mxu0 0
        %4195 = vmatprep.subr.bf16.mxu0 0
        %4196 = vmatpush1.bf16.msra.mxu0 0
        %4197 = vmatprep.subr.bf16.mxu0 0
        %4198 = vmatpush1.bf16.msra.mxu0 0
        %4199 = vmatprep.subr.bf16.mxu0 0
        %4200 = vmatpush1.bf16.msra.mxu0 0
        %4201 = vmatprep.subr.bf16.mxu0 0
        %4202 = vmatpush1.bf16.msra.mxu0 0
        %4203 = vmatprep.subr.bf16.mxu0 0
        %4204 = vmatpush1.bf16.msra.mxu0 0
        %4205 = vmatprep.mubr.bf16.mxu0 0
        %4206 = vmatmul.mubr.bf16.gmra.mrb[0].mxu0 %v4123
        %v4207 = vpop.f32.mrb[0].mxu0
        %v4208 = vadd.f32 0.0, %v4207
        %v4209 = vpop.f32.mrb[0].mxu0
        %v4210 = vpop.f32.mrb[0].mxu0
        %v4211 = vadd.f32 0.0, %v4210
        %v4212 = vpop.f32.mrb[0].mxu0
        %4213 = vmatprep.mubr.bf16.mxu0 0
        %4214 = vmatmul.mubr.bf16.gmra.mrb[0].mxu0 %v4126
        %v4215 = vpop.f32.mrb[0].mxu0
        %v4216 = vadd.f32 0.0, %v4215
        %v4217 = vpop.f32.mrb[0].mxu0
        %v4218 = vpop.f32.mrb[0].mxu0
        %v4219 = vadd.f32 0.0, %v4218
        %v4220 = vpop.f32.mrb[0].mxu0
        %4221 = vmatprep.mubr.bf16.mxu0 0
        %4222 = vmatmul.mubr.bf16.gmra.mrb[0].mxu0 %v4129
        %v4223 = vpop.f32.mrb[0].mxu0
        %v4224 = vadd.f32 0.0, %v4223
        %v4225 = vpop.f32.mrb[0].mxu0
        %v4226 = vpop.f32.mrb[0].mxu0
        %v4227 = vadd.f32 0.0, %v4226
        %v4228 = vpop.f32.mrb[0].mxu0
        %4229 = vmatprep.mubr.bf16.mxu0 0
        %4230 = vmatmul.mubr.bf16.gmra.mrb[0].mxu0 %v4132
        %v4231 = vpop.f32.mrb[0].mxu0
        %v4232 = vadd.f32 0.0, %v4231
        %v4233 = vpop.f32.mrb[0].mxu0
        %v4234 = vpop.f32.mrb[0].mxu0
        %v4235 = vadd.f32 0.0, %v4234
        %v4236 = vpop.f32.mrb[0].mxu0
        %4237 = vmatprep.mubr.bf16.mxu0 0
        %4238 = vmatmul.mubr.bf16.gmra.mrb[0].mxu0 %v4135
        %v4239 = vpop.f32.mrb[0].mxu0
        %v4240 = vadd.f32 0.0, %v4239
        %v4241 = vpop.f32.mrb[0].mxu0
        %v4242 = vpop.f32.mrb[0].mxu0
        %v4243 = vadd.f32 0.0, %v4242
        %v4244 = vpop.f32.mrb[0].mxu0
        %4245 = vmatprep.mubr.bf16.mxu0 0
        %4246 = vmatmul.mubr.bf16.gmra.mrb[0].mxu0 %v4138
        %v4247 = vpop.f32.mrb[0].mxu0
        %v4248 = vadd.f32 0.0, %v4247
        %v4249 = vpop.f32.mrb[0].mxu0
        %v4250 = vpop.f32.mrb[0].mxu0
        %v4251 = vadd.f32 0.0, %v4250
        %v4252 = vpop.f32.mrb[0].mxu0
        %4253 = vmatprep.mubr.bf16.mxu0 0
        %4254 = vmatmul.mubr.bf16.gmra.mrb[0].mxu0 %v4141
        %v4255 = vpop.f32.mrb[0].mxu0
        %v4256 = vadd.f32 0.0, %v4255
        %v4257 = vpop.f32.mrb[0].mxu0
        %v4258 = vpop.f32.mrb[0].mxu0
        %v4259 = vadd.f32 0.0, %v4258
        %v4260 = vpop.f32.mrb[0].mxu0
        %4261 = vmatprep.mubr.bf16.mxu0 0
        %4262 = vmatmul.mubr.bf16.gmra.mrb[0].mxu0 %v4144
        %v4263 = vpop.f32.mrb[0].mxu0
        %v4264 = vadd.f32 0.0, %v4263
        %v4265 = vpop.f32.mrb[0].mxu0
        %v4266 = vpop.f32.mrb[0].mxu0
        %v4267 = vadd.f32 0.0, %v4266
        %v4268 = vpop.f32.mrb[0].mxu0
        %4269 = vmatprep.mubr.bf16.mxu0 0
        %4270 = vmatmul.mubr.bf16.gmra.mrb[0].mxu0 %v4147
        %v4271 = vpop.f32.mrb[0].mxu0
        %v4272 = vadd.f32 0.0, %v4271
        %v4273 = vpop.f32.mrb[0].mxu0
        %v4274 = vpop.f32.mrb[0].mxu0
        %v4275 = vadd.f32 0.0, %v4274
        %v4276 = vpop.f32.mrb[0].mxu0
        %4277 = vmatprep.mubr.bf16.mxu0 0
        %4278 = vmatmul.mubr.bf16.gmra.mrb[0].mxu0 %v4150
        %v4279 = vpop.f32.mrb[0].mxu0
        %v4280 = vadd.f32 0.0, %v4279
        %v4281 = vpop.f32.mrb[0].mxu0
        %v4282 = vpop.f32.mrb[0].mxu0
        %v4283 = vadd.f32 0.0, %v4282
        %v4284 = vpop.f32.mrb[0].mxu0
        %4285 = vmatprep.mubr.bf16.mxu0 0
        %4286 = vmatmul.mubr.bf16.gmra.mrb[0].mxu0 %v4153
        %v4287 = vpop.f32.mrb[0].mxu0
        %v4288 = vadd.f32 0.0, %v4287
        %v4289 = vpop.f32.mrb[0].mxu0
        %v4290 = vpop.f32.mrb[0].mxu0
        %v4291 = vadd.f32 0.0, %v4290
        %v4292 = vpop.f32.mrb[0].mxu0
        %4293 = vmatprep.mubr.bf16.mxu0 0
        %4294 = vmatmul.mubr.bf16.gmra.mrb[0].mxu0 %v4156
        %v4295 = vpop.f32.mrb[0].mxu0
        %v4296 = vadd.f32 0.0, %v4295
        %v4297 = vpop.f32.mrb[0].mxu0
        %v4298 = vpop.f32.mrb[0].mxu0
        %v4299 = vadd.f32 0.0, %v4298
        %v4300 = vpop.f32.mrb[0].mxu0
        %4301 = vmatprep.mubr.bf16.mxu0 0
        %4302 = vmatmul.mubr.bf16.gmra.mrb[0].mxu0 %v4159
        %v4303 = vpop.f32.mrb[0].mxu0
        %v4304 = vadd.f32 0.0, %v4303
        %v4305 = vpop.f32.mrb[0].mxu0
        %v4306 = vpop.f32.mrb[0].mxu0
        %v4307 = vadd.f32 0.0, %v4306
        %v4308 = vpop.f32.mrb[0].mxu0
        %4309 = vmatprep.mubr.bf16.mxu0 0
        %4310 = vmatmul.mubr.bf16.gmra.mrb[0].mxu0 %v4162
        %v4311 = vpop.f32.mrb[0].mxu0
        %v4312 = vadd.f32 0.0, %v4311
        %v4313 = vpop.f32.mrb[0].mxu0
        %v4314 = vpop.f32.mrb[0].mxu0
        %v4315 = vadd.f32 0.0, %v4314
        %v4316 = vpop.f32.mrb[0].mxu0
        %4317 = vmatprep.mubr.bf16.mxu0 0
        %4318 = vmatmul.mubr.bf16.gmra.mrb[0].mxu0 %v4165
        %v4319 = vpop.f32.mrb[0].mxu0
        %v4320 = vadd.f32 0.0, %v4319
        %v4321 = vpop.f32.mrb[0].mxu0
        %v4322 = vpop.f32.mrb[0].mxu0
        %v4323 = vadd.f32 0.0, %v4322
        %v4324 = vpop.f32.mrb[0].mxu0
        %4325 = vmatprep.mubr.bf16.mxu0 0
        %4326 = vmatmul.mubr.bf16.gmra.mrb[0].mxu0 %v4168
        %v4327 = vpop.f32.mrb[0].mxu0
        %v4328 = vadd.f32 0.0, %v4327
        %v4329 = vpop.f32.mrb[0].mxu0
        %v4330 = vpop.f32.mrb[0].mxu0
        %v4331 = vadd.f32 0.0, %v4330
        %v4332 = vpop.f32.mrb[0].mxu0
        %4333 = vdwg.mxu0
        %v4334 = vadd.f32 %v3975, %v4208
        %v4335 = vadd.f32 %v3976, %v4211
        %v4336 = vadd.f32 %v3977, %v4216
        %v4337 = vadd.f32 %v3978, %v4219
        %v4338 = vadd.f32 %v3979, %v4224
        %v4339 = vadd.f32 %v3980, %v4227
        %v4340 = vadd.f32 %v3981, %v4232
        %v4341 = vadd.f32 %v3982, %v4235
        %v4342 = vadd.f32 %v3983, %v4240
        %v4343 = vadd.f32 %v3984, %v4243
        %v4344 = vadd.f32 %v3985, %v4248
        %v4345 = vadd.f32 %v3986, %v4251
        %v4346 = vadd.f32 %v3987, %v4256
        %v4347 = vadd.f32 %v3988, %v4259
        %v4348 = vadd.f32 %v3989, %v4264
        %v4349 = vadd.f32 %v3990, %v4267
        %v4350 = vadd.f32 %v3991, %v4272
        %v4351 = vadd.f32 %v3992, %v4275
        %v4352 = vadd.f32 %v3993, %v4280
        %v4353 = vadd.f32 %v3994, %v4283
        %v4354 = vadd.f32 %v3995, %v4288
        %v4355 = vadd.f32 %v3996, %v4291
        %v4356 = vadd.f32 %v3997, %v4296
        %v4357 = vadd.f32 %v3998, %v4299
        %v4358 = vadd.f32 %v3999, %v4304
        %v4359 = vadd.f32 %v4000, %v4307
        %v4360 = vadd.f32 %v4001, %v4312
        %v4361 = vadd.f32 %v4002, %v4315
        %v4362 = vadd.f32 %v4003, %v4320
        %v4363 = vadd.f32 %v4004, %v4323
        %v4364 = vadd.f32 %v4005, %v4328
        %v4365 = vadd.f32 %v4006, %v4331
        %v4366 = vld [vmem:[%s4007] sm:$0xf]
        %v4367 = vld [vmem:[%s4007 + $0x4] sm:$0xf]
        %v4368 = vld [vmem:[%s4007 + $0x8] sm:$0x1]
        %v4369 = vld [vmem:[%s4007 + $0xc] sm:$0xf]
        %v4370 = vld [vmem:[%s4007 + $0x10] sm:$0xf]
        %v4371 = vld [vmem:[%s4007 + $0x14] sm:$0x1]
        %v4372 = vld [vmem:[%s4007 + $0x18] sm:$0xf]
        %v4373 = vld [vmem:[%s4007 + $0x1c] sm:$0xf]
        %v4374 = vld [vmem:[%s4007 + $0x20] sm:$0x1]
        %v4375 = vld [vmem:[%s4007 + $0x24] sm:$0xf]
        %v4376 = vld [vmem:[%s4007 + $0x28] sm:$0xf]
        %v4377 = vld [vmem:[%s4007 + $0x2c] sm:$0x1]
        %v4378 = vld [vmem:[%s4007 + $0x30] sm:$0xf]
        %v4379 = vld [vmem:[%s4007 + $0x34] sm:$0xf]
        %v4380 = vld [vmem:[%s4007 + $0x38] sm:$0x1]
        %v4381 = vld [vmem:[%s4007 + $0x3c] sm:$0xf]
        %v4382 = vld [vmem:[%s4007 + $0x40] sm:$0xf]
        %v4383 = vld [vmem:[%s4007 + $0x44] sm:$0x1]
        %v4384 = vld [vmem:[%s4007 + $0x48] sm:$0xf]
        %v4385 = vld [vmem:[%s4007 + $0x4c] sm:$0xf]
        %v4386 = vld [vmem:[%s4007 + $0x50] sm:$0x1]
        %v4387 = vld [vmem:[%s4007 + $0x54] sm:$0xf]
        %v4388 = vld [vmem:[%s4007 + $0x58] sm:$0xf]
        %v4389 = vld [vmem:[%s4007 + $0x5c] sm:$0x1]
        %v4390 = vld [vmem:[%s4007 + $0x60] sm:$0xf]
        %v4391 = vld [vmem:[%s4007 + $0x64] sm:$0xf]
        %v4392 = vld [vmem:[%s4007 + $0x68] sm:$0x1]
        %v4393 = vld [vmem:[%s4007 + $0x6c] sm:$0xf]
        %v4394 = vld [vmem:[%s4007 + $0x70] sm:$0xf]
        %v4395 = vld [vmem:[%s4007 + $0x74] sm:$0x1]
        %v4396 = vld [vmem:[%s4007 + $0x78] sm:$0xf]
        %v4397 = vld [vmem:[%s4007 + $0x7c] sm:$0xf]
        %v4398 = vld [vmem:[%s4007 + $0x80] sm:$0x1]
        %v4399 = vld [vmem:[%s4007 + $0x84] sm:$0xf]
        %v4400 = vld [vmem:[%s4007 + $0x88] sm:$0xf]
        %v4401 = vld [vmem:[%s4007 + $0x8c] sm:$0x1]
        %v4402 = vld [vmem:[%s4007 + $0x90] sm:$0xf]
        %v4403 = vld [vmem:[%s4007 + $0x94] sm:$0xf]
        %v4404 = vld [vmem:[%s4007 + $0x98] sm:$0x1]
        %v4405 = vld [vmem:[%s4007 + $0x9c] sm:$0xf]
        %v4406 = vld [vmem:[%s4007 + $0xa0] sm:$0xf]
        %v4407 = vld [vmem:[%s4007 + $0xa4] sm:$0x1]
        %v4408 = vld [vmem:[%s4007 + $0xa8] sm:$0xf]
        %v4409 = vld [vmem:[%s4007 + $0xac] sm:$0xf]
        %v4410 = vld [vmem:[%s4007 + $0xb0] sm:$0x1]
        %v4411 = vld [vmem:[%s4007 + $0xb4] sm:$0xf]
        %v4412 = vld [vmem:[%s4007 + $0xb8] sm:$0xf]
        %v4413 = vld [vmem:[%s4007 + $0xbc] sm:$0x1]
        %v4415 = vshrl.u32 %v4366, 16
        %v4417 = vrot.slane %v4415, 4
        %v4418 = vshll.u32 %v4366, 16
        %v4420 = vrot.slane %v4418, 5
        %v4421 = vor.u32 %v4417, %v4420
        %v4422 = vrot.slane %v4421, 4
        %v4424 = vshll.u32 %v4367, 16
        %v4426 = vrot.slane %v4424, 5
        %v4427 = vsel %vm1055, %v4422, %v4426
        %v4428 = vshrl.u32 %v4367, 16
        %v4430 = vrot.slane %v4428, 4
        %v4431 = vor.u32 %v4430, %v4426
        %v4432 = vrot.slane %v4431, 4
        %v4434 = vshll.u32 %v4368, 16
        %v4436 = vrot.slane %v4434, 5
        %v4437 = vsel %vm1055, %v4432, %v4436
        %v4439 = vshrl.u32 %v4369, 16
        %v4441 = vrot.slane %v4439, 4
        %v4442 = vshll.u32 %v4369, 16
        %v4444 = vrot.slane %v4442, 5
        %v4445 = vor.u32 %v4441, %v4444
        %v4446 = vrot.slane %v4445, 4
        %v4448 = vshll.u32 %v4370, 16
        %v4450 = vrot.slane %v4448, 5
        %v4451 = vsel %vm1055, %v4446, %v4450
        %v4452 = vshrl.u32 %v4370, 16
        %v4454 = vrot.slane %v4452, 4
        %v4455 = vor.u32 %v4454, %v4450
        %v4456 = vrot.slane %v4455, 4
        %v4458 = vshll.u32 %v4371, 16
        %v4460 = vrot.slane %v4458, 5
        %v4461 = vsel %vm1055, %v4456, %v4460
        %v4463 = vshrl.u32 %v4372, 16
        %v4465 = vrot.slane %v4463, 4
        %v4466 = vshll.u32 %v4372, 16
        %v4468 = vrot.slane %v4466, 5
        %v4469 = vor.u32 %v4465, %v4468
        %v4470 = vrot.slane %v4469, 4
        %v4472 = vshll.u32 %v4373, 16
        %v4474 = vrot.slane %v4472, 5
        %v4475 = vsel %vm1055, %v4470, %v4474
        %v4476 = vshrl.u32 %v4373, 16
        %v4478 = vrot.slane %v4476, 4
        %v4479 = vor.u32 %v4478, %v4474
        %v4480 = vrot.slane %v4479, 4
        %v4482 = vshll.u32 %v4374, 16
        %v4484 = vrot.slane %v4482, 5
        %v4485 = vsel %vm1055, %v4480, %v4484
        %v4487 = vshrl.u32 %v4375, 16
        %v4489 = vrot.slane %v4487, 4
        %v4490 = vshll.u32 %v4375, 16
        %v4492 = vrot.slane %v4490, 5
        %v4493 = vor.u32 %v4489, %v4492
        %v4494 = vrot.slane %v4493, 4
        %v4496 = vshll.u32 %v4376, 16
        %v4498 = vrot.slane %v4496, 5
        %v4499 = vsel %vm1055, %v4494, %v4498
        %v4500 = vshrl.u32 %v4376, 16
        %v4502 = vrot.slane %v4500, 4
        %v4503 = vor.u32 %v4502, %v4498
        %v4504 = vrot.slane %v4503, 4
        %v4506 = vshll.u32 %v4377, 16
        %v4508 = vrot.slane %v4506, 5
        %v4509 = vsel %vm1055, %v4504, %v4508
        %v4511 = vshrl.u32 %v4378, 16
        %v4513 = vrot.slane %v4511, 4
        %v4514 = vshll.u32 %v4378, 16
        %v4516 = vrot.slane %v4514, 5
        %v4517 = vor.u32 %v4513, %v4516
        %v4518 = vrot.slane %v4517, 4
        %v4520 = vshll.u32 %v4379, 16
        %v4522 = vrot.slane %v4520, 5
        %v4523 = vsel %vm1055, %v4518, %v4522
        %v4524 = vshrl.u32 %v4379, 16
        %v4526 = vrot.slane %v4524, 4
        %v4527 = vor.u32 %v4526, %v4522
        %v4528 = vrot.slane %v4527, 4
        %v4530 = vshll.u32 %v4380, 16
        %v4532 = vrot.slane %v4530, 5
        %v4533 = vsel %vm1055, %v4528, %v4532
        %v4535 = vshrl.u32 %v4381, 16
        %v4537 = vrot.slane %v4535, 4
        %v4538 = vshll.u32 %v4381, 16
        %v4540 = vrot.slane %v4538, 5
        %v4541 = vor.u32 %v4537, %v4540
        %v4542 = vrot.slane %v4541, 4
        %v4544 = vshll.u32 %v4382, 16
        %v4546 = vrot.slane %v4544, 5
        %v4547 = vsel %vm1055, %v4542, %v4546
        %v4548 = vshrl.u32 %v4382, 16
        %v4550 = vrot.slane %v4548, 4
        %v4551 = vor.u32 %v4550, %v4546
        %v4552 = vrot.slane %v4551, 4
        %v4554 = vshll.u32 %v4383, 16
        %v4556 = vrot.slane %v4554, 5
        %v4557 = vsel %vm1055, %v4552, %v4556
        %v4559 = vshrl.u32 %v4384, 16
        %v4561 = vrot.slane %v4559, 4
        %v4562 = vshll.u32 %v4384, 16
        %v4564 = vrot.slane %v4562, 5
        %v4565 = vor.u32 %v4561, %v4564
        %v4566 = vrot.slane %v4565, 4
        %v4568 = vshll.u32 %v4385, 16
        %v4570 = vrot.slane %v4568, 5
        %v4571 = vsel %vm1055, %v4566, %v4570
        %v4572 = vshrl.u32 %v4385, 16
        %v4574 = vrot.slane %v4572, 4
        %v4575 = vor.u32 %v4574, %v4570
        %v4576 = vrot.slane %v4575, 4
        %v4578 = vshll.u32 %v4386, 16
        %v4580 = vrot.slane %v4578, 5
        %v4581 = vsel %vm1055, %v4576, %v4580
        %v4583 = vshrl.u32 %v4387, 16
        %v4585 = vrot.slane %v4583, 4
        %v4586 = vshll.u32 %v4387, 16
        %v4588 = vrot.slane %v4586, 5
        %v4589 = vor.u32 %v4585, %v4588
        %v4590 = vrot.slane %v4589, 4
        %v4592 = vshll.u32 %v4388, 16
        %v4594 = vrot.slane %v4592, 5
        %v4595 = vsel %vm1055, %v4590, %v4594
        %v4596 = vshrl.u32 %v4388, 16
        %v4598 = vrot.slane %v4596, 4
        %v4599 = vor.u32 %v4598, %v4594
        %v4600 = vrot.slane %v4599, 4
        %v4602 = vshll.u32 %v4389, 16
        %v4604 = vrot.slane %v4602, 5
        %v4605 = vsel %vm1055, %v4600, %v4604
        %v4607 = vshrl.u32 %v4390, 16
        %v4609 = vrot.slane %v4607, 4
        %v4610 = vshll.u32 %v4390, 16
        %v4612 = vrot.slane %v4610, 5
        %v4613 = vor.u32 %v4609, %v4612
        %v4614 = vrot.slane %v4613, 4
        %v4616 = vshll.u32 %v4391, 16
        %v4618 = vrot.slane %v4616, 5
        %v4619 = vsel %vm1055, %v4614, %v4618
        %v4620 = vshrl.u32 %v4391, 16
        %v4622 = vrot.slane %v4620, 4
        %v4623 = vor.u32 %v4622, %v4618
        %v4624 = vrot.slane %v4623, 4
        %v4626 = vshll.u32 %v4392, 16
        %v4628 = vrot.slane %v4626, 5
        %v4629 = vsel %vm1055, %v4624, %v4628
        %v4631 = vshrl.u32 %v4393, 16
        %v4633 = vrot.slane %v4631, 4
        %v4634 = vshll.u32 %v4393, 16
        %v4636 = vrot.slane %v4634, 5
        %v4637 = vor.u32 %v4633, %v4636
        %v4638 = vrot.slane %v4637, 4
        %v4640 = vshll.u32 %v4394, 16
        %v4642 = vrot.slane %v4640, 5
        %v4643 = vsel %vm1055, %v4638, %v4642
        %v4644 = vshrl.u32 %v4394, 16
        %v4646 = vrot.slane %v4644, 4
        %v4647 = vor.u32 %v4646, %v4642
        %v4648 = vrot.slane %v4647, 4
        %v4650 = vshll.u32 %v4395, 16
        %v4652 = vrot.slane %v4650, 5
        %v4653 = vsel %vm1055, %v4648, %v4652
        %v4655 = vshrl.u32 %v4396, 16
        %v4657 = vrot.slane %v4655, 4
        %v4658 = vshll.u32 %v4396, 16
        %v4660 = vrot.slane %v4658, 5
        %v4661 = vor.u32 %v4657, %v4660
        %v4662 = vrot.slane %v4661, 4
        %v4664 = vshll.u32 %v4397, 16
        %v4666 = vrot.slane %v4664, 5
        %v4667 = vsel %vm1055, %v4662, %v4666
        %v4668 = vshrl.u32 %v4397, 16
        %v4670 = vrot.slane %v4668, 4
        %v4671 = vor.u32 %v4670, %v4666
        %v4672 = vrot.slane %v4671, 4
        %v4674 = vshll.u32 %v4398, 16
        %v4676 = vrot.slane %v4674, 5
        %v4677 = vsel %vm1055, %v4672, %v4676
        %v4679 = vshrl.u32 %v4399, 16
        %v4681 = vrot.slane %v4679, 4
        %v4682 = vshll.u32 %v4399, 16
        %v4684 = vrot.slane %v4682, 5
        %v4685 = vor.u32 %v4681, %v4684
        %v4686 = vrot.slane %v4685, 4
        %v4688 = vshll.u32 %v4400, 16
        %v4690 = vrot.slane %v4688, 5
        %v4691 = vsel %vm1055, %v4686, %v4690
        %v4692 = vshrl.u32 %v4400, 16
        %v4694 = vrot.slane %v4692, 4
        %v4695 = vor.u32 %v4694, %v4690
        %v4696 = vrot.slane %v4695, 4
        %v4698 = vshll.u32 %v4401, 16
        %v4700 = vrot.slane %v4698, 5
        %v4701 = vsel %vm1055, %v4696, %v4700
        %v4703 = vshrl.u32 %v4402, 16
        %v4705 = vrot.slane %v4703, 4
        %v4706 = vshll.u32 %v4402, 16
        %v4708 = vrot.slane %v4706, 5
        %v4709 = vor.u32 %v4705, %v4708
        %v4710 = vrot.slane %v4709, 4
        %v4712 = vshll.u32 %v4403, 16
        %v4714 = vrot.slane %v4712, 5
        %v4715 = vsel %vm1055, %v4710, %v4714
        %v4716 = vshrl.u32 %v4403, 16
        %v4718 = vrot.slane %v4716, 4
        %v4719 = vor.u32 %v4718, %v4714
        %v4720 = vrot.slane %v4719, 4
        %v4722 = vshll.u32 %v4404, 16
        %v4724 = vrot.slane %v4722, 5
        %v4725 = vsel %vm1055, %v4720, %v4724
        %v4727 = vshrl.u32 %v4405, 16
        %v4729 = vrot.slane %v4727, 4
        %v4730 = vshll.u32 %v4405, 16
        %v4732 = vrot.slane %v4730, 5
        %v4733 = vor.u32 %v4729, %v4732
        %v4734 = vrot.slane %v4733, 4
        %v4736 = vshll.u32 %v4406, 16
        %v4738 = vrot.slane %v4736, 5
        %v4739 = vsel %vm1055, %v4734, %v4738
        %v4740 = vshrl.u32 %v4406, 16
        %v4742 = vrot.slane %v4740, 4
        %v4743 = vor.u32 %v4742, %v4738
        %v4744 = vrot.slane %v4743, 4
        %v4746 = vshll.u32 %v4407, 16
        %v4748 = vrot.slane %v4746, 5
        %v4749 = vsel %vm1055, %v4744, %v4748
        %v4751 = vshrl.u32 %v4408, 16
        %v4753 = vrot.slane %v4751, 4
        %v4754 = vshll.u32 %v4408, 16
        %v4756 = vrot.slane %v4754, 5
        %v4757 = vor.u32 %v4753, %v4756
        %v4758 = vrot.slane %v4757, 4
        %v4760 = vshll.u32 %v4409, 16
        %v4762 = vrot.slane %v4760, 5
        %v4763 = vsel %vm1055, %v4758, %v4762
        %v4764 = vshrl.u32 %v4409, 16
        %v4766 = vrot.slane %v4764, 4
        %v4767 = vor.u32 %v4766, %v4762
        %v4768 = vrot.slane %v4767, 4
        %v4770 = vshll.u32 %v4410, 16
        %v4772 = vrot.slane %v4770, 5
        %v4773 = vsel %vm1055, %v4768, %v4772
        %v4775 = vshrl.u32 %v4411, 16
        %v4777 = vrot.slane %v4775, 4
        %v4778 = vshll.u32 %v4411, 16
        %v4780 = vrot.slane %v4778, 5
        %v4781 = vor.u32 %v4777, %v4780
        %v4782 = vrot.slane %v4781, 4
        %v4784 = vshll.u32 %v4412, 16
        %v4786 = vrot.slane %v4784, 5
        %v4787 = vsel %vm1055, %v4782, %v4786
        %v4788 = vshrl.u32 %v4412, 16
        %v4790 = vrot.slane %v4788, 4
        %v4791 = vor.u32 %v4790, %v4786
        %v4792 = vrot.slane %v4791, 4
        %v4794 = vshll.u32 %v4413, 16
        %v4796 = vrot.slane %v4794, 5
        %v4797 = vsel %vm1055, %v4792, %v4796
        %s4798 = scalar_lea.vmem [#allocation7], 14
        %v4799 = vld [vmem:[%s4798] sm:$0x3]
        %v4800 = vunpack.c.l.b16 %v4427
        %v4801 = vunpack.c.l.b16 %v4437
        %v4802 = vunpack.c.l.b16 %v4451
        %v4803 = vunpack.c.l.b16 %v4461
        %v4804 = vunpack.c.l.b16 %v4475
        %v4805 = vunpack.c.l.b16 %v4485
        %v4806 = vunpack.c.l.b16 %v4499
        %v4807 = vunpack.c.l.b16 %v4509
        %v4808 = vunpack.c.l.b16 %v4523
        %v4809 = vunpack.c.l.b16 %v4533
        %v4810 = vunpack.c.l.b16 %v4547
        %v4811 = vunpack.c.l.b16 %v4557
        %v4812 = vunpack.c.l.b16 %v4571
        %v4813 = vunpack.c.l.b16 %v4581
        %v4814 = vunpack.c.l.b16 %v4595
        %v4815 = vunpack.c.l.b16 %v4605
        %v4816 = vunpack.c.l.b16 %v4619
        %v4817 = vunpack.c.l.b16 %v4629
        %v4818 = vunpack.c.l.b16 %v4643
        %v4819 = vunpack.c.l.b16 %v4653
        %v4820 = vunpack.c.l.b16 %v4667
        %v4821 = vunpack.c.l.b16 %v4677
        %v4822 = vunpack.c.l.b16 %v4691
        %v4823 = vunpack.c.l.b16 %v4701
        %v4824 = vunpack.c.l.b16 %v4715
        %v4825 = vunpack.c.l.b16 %v4725
        %v4826 = vunpack.c.l.b16 %v4739
        %v4827 = vunpack.c.l.b16 %v4749
        %v4828 = vunpack.c.l.b16 %v4763
        %v4829 = vunpack.c.l.b16 %v4773
        %v4830 = vunpack.c.l.b16 %v4787
        %v4831 = vunpack.c.l.b16 %v4797
        %v4832 = vpack.c.b16 %v4801, %v4800
        %v4833 = vpack.c.b16 %v4803, %v4802
        %v4834 = vpack.c.b16 %v4805, %v4804
        %v4835 = vpack.c.b16 %v4807, %v4806
        %v4836 = vpack.c.b16 %v4809, %v4808
        %v4837 = vpack.c.b16 %v4811, %v4810
        %v4838 = vpack.c.b16 %v4813, %v4812
        %v4839 = vpack.c.b16 %v4815, %v4814
        %v4840 = vpack.c.b16 %v4817, %v4816
        %v4841 = vpack.c.b16 %v4819, %v4818
        %v4842 = vpack.c.b16 %v4821, %v4820
        %v4843 = vpack.c.b16 %v4823, %v4822
        %v4844 = vpack.c.b16 %v4825, %v4824
        %v4845 = vpack.c.b16 %v4827, %v4826
        %v4846 = vpack.c.b16 %v4829, %v4828
        %v4847 = vpack.c.b16 %v4831, %v4830
        %v4849 = vsel %vm1490, %v4832, 0
        %v4852 = vsel %vm1490, %v4833, 0
        %v4855 = vsel %vm1490, %v4834, 0
        %v4858 = vsel %vm1490, %v4835, 0
        %v4861 = vsel %vm1490, %v4836, 0
        %v4864 = vsel %vm1490, %v4837, 0
        %v4867 = vsel %vm1490, %v4838, 0
        %v4870 = vsel %vm1490, %v4839, 0
        %v4873 = vsel %vm1490, %v4840, 0
        %v4876 = vsel %vm1490, %v4841, 0
        %v4879 = vsel %vm1490, %v4842, 0
        %v4882 = vsel %vm1490, %v4843, 0
        %v4885 = vsel %vm1490, %v4844, 0
        %v4888 = vsel %vm1490, %v4845, 0
        %v4891 = vsel %vm1490, %v4846, 0
        %v4894 = vsel %vm1490, %v4847, 0
        %v4897 = vsel %vm1539, %v4799, 0
        %4899 = vmatprep.subr.bf16.mxu0 0
        %4900 = vmatpush1.bf16.msra.mxu0 %v4897
        %4901 = vmatprep.subr.bf16.mxu0 0
        %4902 = vmatpush1.bf16.msra.mxu0 0
        %4903 = vmatprep.subr.bf16.mxu0 0
        %4904 = vmatpush1.bf16.msra.mxu0 0
        %4905 = vmatprep.subr.bf16.mxu0 0
        %4906 = vmatpush1.bf16.msra.mxu0 0
        %4907 = vmatprep.subr.bf16.mxu0 0
        %4908 = vmatpush1.bf16.msra.mxu0 0
        %4909 = vmatprep.subr.bf16.mxu0 0
        %4910 = vmatpush1.bf16.msra.mxu0 0
        %4911 = vmatprep.subr.bf16.mxu0 0
        %4912 = vmatpush1.bf16.msra.mxu0 0
        %4913 = vmatprep.subr.bf16.mxu0 0
        %4914 = vmatpush1.bf16.msra.mxu0 0
        %4915 = vmatprep.subr.bf16.mxu0 0
        %4916 = vmatpush1.bf16.msra.mxu0 0
        %4917 = vmatprep.subr.bf16.mxu0 0
        %4918 = vmatpush1.bf16.msra.mxu0 0
        %4919 = vmatprep.subr.bf16.mxu0 0
        %4920 = vmatpush1.bf16.msra.mxu0 0
        %4921 = vmatprep.subr.bf16.mxu0 0
        %4922 = vmatpush1.bf16.msra.mxu0 0
        %4923 = vmatprep.subr.bf16.mxu0 0
        %4924 = vmatpush1.bf16.msra.mxu0 0
        %4925 = vmatprep.subr.bf16.mxu0 0
        %4926 = vmatpush1.bf16.msra.mxu0 0
        %4927 = vmatprep.subr.bf16.mxu0 0
        %4928 = vmatpush1.bf16.msra.mxu0 0
        %4929 = vmatprep.subr.bf16.mxu0 0
        %4930 = vmatpush1.bf16.msra.mxu0 0
        %4931 = vmatprep.mubr.bf16.mxu0 0
        %4932 = vmatmul.mubr.bf16.gmra.mrb[0].mxu0 %v4849
        %v4933 = vpop.f32.mrb[0].mxu0
        %v4934 = vadd.f32 0.0, %v4933
        %v4935 = vpop.f32.mrb[0].mxu0
        %v4936 = vpop.f32.mrb[0].mxu0
        %v4937 = vadd.f32 0.0, %v4936
        %v4938 = vpop.f32.mrb[0].mxu0
        %4939 = vmatprep.mubr.bf16.mxu0 0
        %4940 = vmatmul.mubr.bf16.gmra.mrb[0].mxu0 %v4852
        %v4941 = vpop.f32.mrb[0].mxu0
        %v4942 = vadd.f32 0.0, %v4941
        %v4943 = vpop.f32.mrb[0].mxu0
        %v4944 = vpop.f32.mrb[0].mxu0
        %v4945 = vadd.f32 0.0, %v4944
        %v4946 = vpop.f32.mrb[0].mxu0
        %4947 = vmatprep.mubr.bf16.mxu0 0
        %4948 = vmatmul.mubr.bf16.gmra.mrb[0].mxu0 %v4855
        %v4949 = vpop.f32.mrb[0].mxu0
        %v4950 = vadd.f32 0.0, %v4949
        %v4951 = vpop.f32.mrb[0].mxu0
        %v4952 = vpop.f32.mrb[0].mxu0
        %v4953 = vadd.f32 0.0, %v4952
        %v4954 = vpop.f32.mrb[0].mxu0
        %4955 = vmatprep.mubr.bf16.mxu0 0
        %4956 = vmatmul.mubr.bf16.gmra.mrb[0].mxu0 %v4858
        %v4957 = vpop.f32.mrb[0].mxu0
        %v4958 = vadd.f32 0.0, %v4957
        %v4959 = vpop.f32.mrb[0].mxu0
        %v4960 = vpop.f32.mrb[0].mxu0
        %v4961 = vadd.f32 0.0, %v4960
        %v4962 = vpop.f32.mrb[0].mxu0
        %4963 = vmatprep.mubr.bf16.mxu0 0
        %4964 = vmatmul.mubr.bf16.gmra.mrb[0].mxu0 %v4861
        %v4965 = vpop.f32.mrb[0].mxu0
        %v4966 = vadd.f32 0.0, %v4965
        %v4967 = vpop.f32.mrb[0].mxu0
        %v4968 = vpop.f32.mrb[0].mxu0
        %v4969 = vadd.f32 0.0, %v4968
        %v4970 = vpop.f32.mrb[0].mxu0
        %4971 = vmatprep.mubr.bf16.mxu0 0
        %4972 = vmatmul.mubr.bf16.gmra.mrb[0].mxu0 %v4864
        %v4973 = vpop.f32.mrb[0].mxu0
        %v4974 = vadd.f32 0.0, %v4973
        %v4975 = vpop.f32.mrb[0].mxu0
        %v4976 = vpop.f32.mrb[0].mxu0
        %v4977 = vadd.f32 0.0, %v4976
        %v4978 = vpop.f32.mrb[0].mxu0
        %4979 = vmatprep.mubr.bf16.mxu0 0
        %4980 = vmatmul.mubr.bf16.gmra.mrb[0].mxu0 %v4867
        %v4981 = vpop.f32.mrb[0].mxu0
        %v4982 = vadd.f32 0.0, %v4981
        %v4983 = vpop.f32.mrb[0].mxu0
        %v4984 = vpop.f32.mrb[0].mxu0
        %v4985 = vadd.f32 0.0, %v4984
        %v4986 = vpop.f32.mrb[0].mxu0
        %4987 = vmatprep.mubr.bf16.mxu0 0
        %4988 = vmatmul.mubr.bf16.gmra.mrb[0].mxu0 %v4870
        %v4989 = vpop.f32.mrb[0].mxu0
        %v4990 = vadd.f32 0.0, %v4989
        %v4991 = vpop.f32.mrb[0].mxu0
        %v4992 = vpop.f32.mrb[0].mxu0
        %v4993 = vadd.f32 0.0, %v4992
        %v4994 = vpop.f32.mrb[0].mxu0
        %4995 = vmatprep.mubr.bf16.mxu0 0
        %4996 = vmatmul.mubr.bf16.gmra.mrb[0].mxu0 %v4873
        %v4997 = vpop.f32.mrb[0].mxu0
        %v4998 = vadd.f32 0.0, %v4997
        %v4999 = vpop.f32.mrb[0].mxu0
        %v5000 = vpop.f32.mrb[0].mxu0
        %v5001 = vadd.f32 0.0, %v5000
        %v5002 = vpop.f32.mrb[0].mxu0
        %5003 = vmatprep.mubr.bf16.mxu0 0
        %5004 = vmatmul.mubr.bf16.gmra.mrb[0].mxu0 %v4876
        %v5005 = vpop.f32.mrb[0].mxu0
        %v5006 = vadd.f32 0.0, %v5005
        %v5007 = vpop.f32.mrb[0].mxu0
        %v5008 = vpop.f32.mrb[0].mxu0
        %v5009 = vadd.f32 0.0, %v5008
        %v5010 = vpop.f32.mrb[0].mxu0
        %5011 = vmatprep.mubr.bf16.mxu0 0
        %5012 = vmatmul.mubr.bf16.gmra.mrb[0].mxu0 %v4879
        %v5013 = vpop.f32.mrb[0].mxu0
        %v5014 = vadd.f32 0.0, %v5013
        %v5015 = vpop.f32.mrb[0].mxu0
        %v5016 = vpop.f32.mrb[0].mxu0
        %v5017 = vadd.f32 0.0, %v5016
        %v5018 = vpop.f32.mrb[0].mxu0
        %5019 = vmatprep.mubr.bf16.mxu0 0
        %5020 = vmatmul.mubr.bf16.gmra.mrb[0].mxu0 %v4882
        %v5021 = vpop.f32.mrb[0].mxu0
        %v5022 = vadd.f32 0.0, %v5021
        %v5023 = vpop.f32.mrb[0].mxu0
        %v5024 = vpop.f32.mrb[0].mxu0
        %v5025 = vadd.f32 0.0, %v5024
        %v5026 = vpop.f32.mrb[0].mxu0
        %5027 = vmatprep.mubr.bf16.mxu0 0
        %5028 = vmatmul.mubr.bf16.gmra.mrb[0].mxu0 %v4885
        %v5029 = vpop.f32.mrb[0].mxu0
        %v5030 = vadd.f32 0.0, %v5029
        %v5031 = vpop.f32.mrb[0].mxu0
        %v5032 = vpop.f32.mrb[0].mxu0
        %v5033 = vadd.f32 0.0, %v5032
        %v5034 = vpop.f32.mrb[0].mxu0
        %5035 = vmatprep.mubr.bf16.mxu0 0
        %5036 = vmatmul.mubr.bf16.gmra.mrb[0].mxu0 %v4888
        %v5037 = vpop.f32.mrb[0].mxu0
        %v5038 = vadd.f32 0.0, %v5037
        %v5039 = vpop.f32.mrb[0].mxu0
        %v5040 = vpop.f32.mrb[0].mxu0
        %v5041 = vadd.f32 0.0, %v5040
        %v5042 = vpop.f32.mrb[0].mxu0
        %5043 = vmatprep.mubr.bf16.mxu0 0
        %5044 = vmatmul.mubr.bf16.gmra.mrb[0].mxu0 %v4891
        %v5045 = vpop.f32.mrb[0].mxu0
        %v5046 = vadd.f32 0.0, %v5045
        %v5047 = vpop.f32.mrb[0].mxu0
        %v5048 = vpop.f32.mrb[0].mxu0
        %v5049 = vadd.f32 0.0, %v5048
        %v5050 = vpop.f32.mrb[0].mxu0
        %5051 = vmatprep.mubr.bf16.mxu0 0
        %5052 = vmatmul.mubr.bf16.gmra.mrb[0].mxu0 %v4894
        %v5053 = vpop.f32.mrb[0].mxu0
        %v5054 = vadd.f32 0.0, %v5053
        %v5055 = vpop.f32.mrb[0].mxu0
        %v5056 = vpop.f32.mrb[0].mxu0
        %v5057 = vadd.f32 0.0, %v5056
        %v5058 = vpop.f32.mrb[0].mxu0
        %5059 = vdwg.mxu0
        %v5060 = vadd.f32 %v4334, %v4934
        %v5061 = vadd.f32 %v4335, %v4937
        %v5062 = vadd.f32 %v4336, %v4942
        %v5063 = vadd.f32 %v4337, %v4945
        %v5064 = vadd.f32 %v4338, %v4950
        %v5065 = vadd.f32 %v4339, %v4953
        %v5066 = vadd.f32 %v4340, %v4958
        %v5067 = vadd.f32 %v4341, %v4961
        %v5068 = vadd.f32 %v4342, %v4966
        %v5069 = vadd.f32 %v4343, %v4969
        %v5070 = vadd.f32 %v4344, %v4974
        %v5071 = vadd.f32 %v4345, %v4977
        %v5072 = vadd.f32 %v4346, %v4982
        %v5073 = vadd.f32 %v4347, %v4985
        %v5074 = vadd.f32 %v4348, %v4990
        %v5075 = vadd.f32 %v4349, %v4993
        %v5076 = vadd.f32 %v4350, %v4998
        %v5077 = vadd.f32 %v4351, %v5001
        %v5078 = vadd.f32 %v4352, %v5006
        %v5079 = vadd.f32 %v4353, %v5009
        %v5080 = vadd.f32 %v4354, %v5014
        %v5081 = vadd.f32 %v4355, %v5017
        %v5082 = vadd.f32 %v4356, %v5022
        %v5083 = vadd.f32 %v4357, %v5025
        %v5084 = vadd.f32 %v4358, %v5030
        %v5085 = vadd.f32 %v4359, %v5033
        %v5086 = vadd.f32 %v4360, %v5038
        %v5087 = vadd.f32 %v4361, %v5041
        %v5088 = vadd.f32 %v4362, %v5046
        %v5089 = vadd.f32 %v4363, %v5049
        %v5090 = vadd.f32 %v4364, %v5054
        %v5091 = vadd.f32 %v4365, %v5057
        %v5092 = vld [vmem:[%s4007] sm:$0xe]
        %v5093 = vld [vmem:[%s4007 + $0xc] sm:$0xe]
        %v5094 = vld [vmem:[%s4007 + $0x18] sm:$0xe]
        %v5095 = vld [vmem:[%s4007 + $0x24] sm:$0xe]
        %v5096 = vld [vmem:[%s4007 + $0x30] sm:$0xe]
        %v5097 = vld [vmem:[%s4007 + $0x3c] sm:$0xe]
        %v5098 = vld [vmem:[%s4007 + $0x48] sm:$0xe]
        %v5099 = vld [vmem:[%s4007 + $0x54] sm:$0xe]
        %v5100 = vld [vmem:[%s4007 + $0x60] sm:$0xe]
        %v5101 = vld [vmem:[%s4007 + $0x6c] sm:$0xe]
        %v5102 = vld [vmem:[%s4007 + $0x78] sm:$0xe]
        %v5103 = vld [vmem:[%s4007 + $0x84] sm:$0xe]
        %v5104 = vld [vmem:[%s4007 + $0x90] sm:$0xe]
        %v5105 = vld [vmem:[%s4007 + $0x9c] sm:$0xe]
        %v5106 = vld [vmem:[%s4007 + $0xa8] sm:$0xe]
        %v5107 = vld [vmem:[%s4007 + $0xb4] sm:$0xe]
        %v5156 = vrot.slane %v5092, 5
        %v5157 = vrot.slane %v5156, 4
        %v5158 = vrot.slane %v4367, 5
        %v5159 = vsel %vm2046, %v5157, %v5158
        %v5160 = vrot.slane %v5158, 4
        %v5161 = vrot.slane %v4368, 5
        %v5162 = vsel %vm2046, %v5160, %v5161
        %v5163 = vrot.slane %v5093, 5
        %v5164 = vrot.slane %v5163, 4
        %v5165 = vrot.slane %v4370, 5
        %v5166 = vsel %vm2046, %v5164, %v5165
        %v5167 = vrot.slane %v5165, 4
        %v5168 = vrot.slane %v4371, 5
        %v5169 = vsel %vm2046, %v5167, %v5168
        %v5170 = vrot.slane %v5094, 5
        %v5171 = vrot.slane %v5170, 4
        %v5172 = vrot.slane %v4373, 5
        %v5173 = vsel %vm2046, %v5171, %v5172
        %v5174 = vrot.slane %v5172, 4
        %v5175 = vrot.slane %v4374, 5
        %v5176 = vsel %vm2046, %v5174, %v5175
        %v5177 = vrot.slane %v5095, 5
        %v5178 = vrot.slane %v5177, 4
        %v5179 = vrot.slane %v4376, 5
        %v5180 = vsel %vm2046, %v5178, %v5179
        %v5181 = vrot.slane %v5179, 4
        %v5182 = vrot.slane %v4377, 5
        %v5183 = vsel %vm2046, %v5181, %v5182
        %v5184 = vrot.slane %v5096, 5
        %v5185 = vrot.slane %v5184, 4
        %v5186 = vrot.slane %v4379, 5
        %v5187 = vsel %vm2046, %v5185, %v5186
        %v5188 = vrot.slane %v5186, 4
        %v5189 = vrot.slane %v4380, 5
        %v5190 = vsel %vm2046, %v5188, %v5189
        %v5191 = vrot.slane %v5097, 5
        %v5192 = vrot.slane %v5191, 4
        %v5193 = vrot.slane %v4382, 5
        %v5194 = vsel %vm2046, %v5192, %v5193
        %v5195 = vrot.slane %v5193, 4
        %v5196 = vrot.slane %v4383, 5
        %v5197 = vsel %vm2046, %v5195, %v5196
        %v5198 = vrot.slane %v5098, 5
        %v5199 = vrot.slane %v5198, 4
        %v5200 = vrot.slane %v4385, 5
        %v5201 = vsel %vm2046, %v5199, %v5200
        %v5202 = vrot.slane %v5200, 4
        %v5203 = vrot.slane %v4386, 5
        %v5204 = vsel %vm2046, %v5202, %v5203
        %v5205 = vrot.slane %v5099, 5
        %v5206 = vrot.slane %v5205, 4
        %v5207 = vrot.slane %v4388, 5
        %v5208 = vsel %vm2046, %v5206, %v5207
        %v5209 = vrot.slane %v5207, 4
        %v5210 = vrot.slane %v4389, 5
        %v5211 = vsel %vm2046, %v5209, %v5210
        %v5212 = vrot.slane %v5100, 5
        %v5213 = vrot.slane %v5212, 4
        %v5214 = vrot.slane %v4391, 5
        %v5215 = vsel %vm2046, %v5213, %v5214
        %v5216 = vrot.slane %v5214, 4
        %v5217 = vrot.slane %v4392, 5
        %v5218 = vsel %vm2046, %v5216, %v5217
        %v5219 = vrot.slane %v5101, 5
        %v5220 = vrot.slane %v5219, 4
        %v5221 = vrot.slane %v4394, 5
        %v5222 = vsel %vm2046, %v5220, %v5221
        %v5223 = vrot.slane %v5221, 4
        %v5224 = vrot.slane %v4395, 5
        %v5225 = vsel %vm2046, %v5223, %v5224
        %v5226 = vrot.slane %v5102, 5
        %v5227 = vrot.slane %v5226, 4
        %v5228 = vrot.slane %v4397, 5
        %v5229 = vsel %vm2046, %v5227, %v5228
        %v5230 = vrot.slane %v5228, 4
        %v5231 = vrot.slane %v4398, 5
        %v5232 = vsel %vm2046, %v5230, %v5231
        %v5233 = vrot.slane %v5103, 5
        %v5234 = vrot.slane %v5233, 4
        %v5235 = vrot.slane %v4400, 5
        %v5236 = vsel %vm2046, %v5234, %v5235
        %v5237 = vrot.slane %v5235, 4
        %v5238 = vrot.slane %v4401, 5
        %v5239 = vsel %vm2046, %v5237, %v5238
        %v5240 = vrot.slane %v5104, 5
        %v5241 = vrot.slane %v5240, 4
        %v5242 = vrot.slane %v4403, 5
        %v5243 = vsel %vm2046, %v5241, %v5242
        %v5244 = vrot.slane %v5242, 4
        %v5245 = vrot.slane %v4404, 5
        %v5246 = vsel %vm2046, %v5244, %v5245
        %v5247 = vrot.slane %v5105, 5
        %v5248 = vrot.slane %v5247, 4
        %v5249 = vrot.slane %v4406, 5
        %v5250 = vsel %vm2046, %v5248, %v5249
        %v5251 = vrot.slane %v5249, 4
        %v5252 = vrot.slane %v4407, 5
        %v5253 = vsel %vm2046, %v5251, %v5252
        %v5254 = vrot.slane %v5106, 5
        %v5255 = vrot.slane %v5254, 4
        %v5256 = vrot.slane %v4409, 5
        %v5257 = vsel %vm2046, %v5255, %v5256
        %v5258 = vrot.slane %v5256, 4
        %v5259 = vrot.slane %v4410, 5
        %v5260 = vsel %vm2046, %v5258, %v5259
        %v5261 = vrot.slane %v5107, 5
        %v5262 = vrot.slane %v5261, 4
        %v5263 = vrot.slane %v4412, 5
        %v5264 = vsel %vm2046, %v5262, %v5263
        %v5265 = vrot.slane %v5263, 4
        %v5266 = vrot.slane %v4413, 5
        %v5267 = vsel %vm2046, %v5265, %v5266
        %s5268 = scalar_lea.vmem [#allocation7], 16
        %v5269 = vld [vmem:[%s5268] sm:$0x3]
        %v5270 = vunpack.c.l.b16 %v5159
        %v5271 = vunpack.c.l.b16 %v5162
        %v5272 = vunpack.c.l.b16 %v5166
        %v5273 = vunpack.c.l.b16 %v5169
        %v5274 = vunpack.c.l.b16 %v5173
        %v5275 = vunpack.c.l.b16 %v5176
        %v5276 = vunpack.c.l.b16 %v5180
        %v5277 = vunpack.c.l.b16 %v5183
        %v5278 = vunpack.c.l.b16 %v5187
        %v5279 = vunpack.c.l.b16 %v5190
        %v5280 = vunpack.c.l.b16 %v5194
        %v5281 = vunpack.c.l.b16 %v5197
        %v5282 = vunpack.c.l.b16 %v5201
        %v5283 = vunpack.c.l.b16 %v5204
        %v5284 = vunpack.c.l.b16 %v5208
        %v5285 = vunpack.c.l.b16 %v5211
        %v5286 = vunpack.c.l.b16 %v5215
        %v5287 = vunpack.c.l.b16 %v5218
        %v5288 = vunpack.c.l.b16 %v5222
        %v5289 = vunpack.c.l.b16 %v5225
        %v5290 = vunpack.c.l.b16 %v5229
        %v5291 = vunpack.c.l.b16 %v5232
        %v5292 = vunpack.c.l.b16 %v5236
        %v5293 = vunpack.c.l.b16 %v5239
        %v5294 = vunpack.c.l.b16 %v5243
        %v5295 = vunpack.c.l.b16 %v5246
        %v5296 = vunpack.c.l.b16 %v5250
        %v5297 = vunpack.c.l.b16 %v5253
        %v5298 = vunpack.c.l.b16 %v5257
        %v5299 = vunpack.c.l.b16 %v5260
        %v5300 = vunpack.c.l.b16 %v5264
        %v5301 = vunpack.c.l.b16 %v5267
        %v5302 = vpack.c.b16 %v5271, %v5270
        %v5303 = vpack.c.b16 %v5273, %v5272
        %v5304 = vpack.c.b16 %v5275, %v5274
        %v5305 = vpack.c.b16 %v5277, %v5276
        %v5306 = vpack.c.b16 %v5279, %v5278
        %v5307 = vpack.c.b16 %v5281, %v5280
        %v5308 = vpack.c.b16 %v5283, %v5282
        %v5309 = vpack.c.b16 %v5285, %v5284
        %v5310 = vpack.c.b16 %v5287, %v5286
        %v5311 = vpack.c.b16 %v5289, %v5288
        %v5312 = vpack.c.b16 %v5291, %v5290
        %v5313 = vpack.c.b16 %v5293, %v5292
        %v5314 = vpack.c.b16 %v5295, %v5294
        %v5315 = vpack.c.b16 %v5297, %v5296
        %v5316 = vpack.c.b16 %v5299, %v5298
        %v5317 = vpack.c.b16 %v5301, %v5300
        %v5319 = vsel %vm1490, %v5302, 0
        %v5322 = vsel %vm1490, %v5303, 0
        %v5325 = vsel %vm1490, %v5304, 0
        %v5328 = vsel %vm1490, %v5305, 0
        %v5331 = vsel %vm1490, %v5306, 0
        %v5334 = vsel %vm1490, %v5307, 0
        %v5337 = vsel %vm1490, %v5308, 0
        %v5340 = vsel %vm1490, %v5309, 0
        %v5343 = vsel %vm1490, %v5310, 0
        %v5346 = vsel %vm1490, %v5311, 0
        %v5349 = vsel %vm1490, %v5312, 0
        %v5352 = vsel %vm1490, %v5313, 0
        %v5355 = vsel %vm1490, %v5314, 0
        %v5358 = vsel %vm1490, %v5315, 0
        %v5361 = vsel %vm1490, %v5316, 0
        %v5364 = vsel %vm1490, %v5317, 0
        %v5367 = vsel %vm1539, %v5269, 0
        %5369 = vmatprep.subr.bf16.mxu0 0
        %5370 = vmatpush1.bf16.msra.mxu0 %v5367
        %5371 = vmatprep.subr.bf16.mxu0 0
        %5372 = vmatpush1.bf16.msra.mxu0 0
        %5373 = vmatprep.subr.bf16.mxu0 0
        %5374 = vmatpush1.bf16.msra.mxu0 0
        %5375 = vmatprep.subr.bf16.mxu0 0
        %5376 = vmatpush1.bf16.msra.mxu0 0
        %5377 = vmatprep.subr.bf16.mxu0 0
        %5378 = vmatpush1.bf16.msra.mxu0 0
        %5379 = vmatprep.subr.bf16.mxu0 0
        %5380 = vmatpush1.bf16.msra.mxu0 0
        %5381 = vmatprep.subr.bf16.mxu0 0
        %5382 = vmatpush1.bf16.msra.mxu0 0
        %5383 = vmatprep.subr.bf16.mxu0 0
        %5384 = vmatpush1.bf16.msra.mxu0 0
        %5385 = vmatprep.subr.bf16.mxu0 0
        %5386 = vmatpush1.bf16.msra.mxu0 0
        %5387 = vmatprep.subr.bf16.mxu0 0
        %5388 = vmatpush1.bf16.msra.mxu0 0
        %5389 = vmatprep.subr.bf16.mxu0 0
        %5390 = vmatpush1.bf16.msra.mxu0 0
        %5391 = vmatprep.subr.bf16.mxu0 0
        %5392 = vmatpush1.bf16.msra.mxu0 0
        %5393 = vmatprep.subr.bf16.mxu0 0
        %5394 = vmatpush1.bf16.msra.mxu0 0
        %5395 = vmatprep.subr.bf16.mxu0 0
        %5396 = vmatpush1.bf16.msra.mxu0 0
        %5397 = vmatprep.subr.bf16.mxu0 0
        %5398 = vmatpush1.bf16.msra.mxu0 0
        %5399 = vmatprep.subr.bf16.mxu0 0
        %5400 = vmatpush1.bf16.msra.mxu0 0
        %5401 = vmatprep.mubr.bf16.mxu0 0
        %5402 = vmatmul.mubr.bf16.gmra.mrb[0].mxu0 %v5319
        %v5403 = vpop.f32.mrb[0].mxu0
        %v5404 = vadd.f32 0.0, %v5403
        %v5405 = vpop.f32.mrb[0].mxu0
        %v5406 = vpop.f32.mrb[0].mxu0
        %v5407 = vadd.f32 0.0, %v5406
        %v5408 = vpop.f32.mrb[0].mxu0
        %5409 = vmatprep.mubr.bf16.mxu0 0
        %5410 = vmatmul.mubr.bf16.gmra.mrb[0].mxu0 %v5322
        %v5411 = vpop.f32.mrb[0].mxu0
        %v5412 = vadd.f32 0.0, %v5411
        %v5413 = vpop.f32.mrb[0].mxu0
        %v5414 = vpop.f32.mrb[0].mxu0
        %v5415 = vadd.f32 0.0, %v5414
        %v5416 = vpop.f32.mrb[0].mxu0
        %5417 = vmatprep.mubr.bf16.mxu0 0
        %5418 = vmatmul.mubr.bf16.gmra.mrb[0].mxu0 %v5325
        %v5419 = vpop.f32.mrb[0].mxu0
        %v5420 = vadd.f32 0.0, %v5419
        %v5421 = vpop.f32.mrb[0].mxu0
        %v5422 = vpop.f32.mrb[0].mxu0
        %v5423 = vadd.f32 0.0, %v5422
        %v5424 = vpop.f32.mrb[0].mxu0
        %5425 = vmatprep.mubr.bf16.mxu0 0
        %5426 = vmatmul.mubr.bf16.gmra.mrb[0].mxu0 %v5328
        %v5427 = vpop.f32.mrb[0].mxu0
        %v5428 = vadd.f32 0.0, %v5427
        %v5429 = vpop.f32.mrb[0].mxu0
        %v5430 = vpop.f32.mrb[0].mxu0
        %v5431 = vadd.f32 0.0, %v5430
        %v5432 = vpop.f32.mrb[0].mxu0
        %5433 = vmatprep.mubr.bf16.mxu0 0
        %5434 = vmatmul.mubr.bf16.gmra.mrb[0].mxu0 %v5331
        %v5435 = vpop.f32.mrb[0].mxu0
        %v5436 = vadd.f32 0.0, %v5435
        %v5437 = vpop.f32.mrb[0].mxu0
        %v5438 = vpop.f32.mrb[0].mxu0
        %v5439 = vadd.f32 0.0, %v5438
        %v5440 = vpop.f32.mrb[0].mxu0
        %5441 = vmatprep.mubr.bf16.mxu0 0
        %5442 = vmatmul.mubr.bf16.gmra.mrb[0].mxu0 %v5334
        %v5443 = vpop.f32.mrb[0].mxu0
        %v5444 = vadd.f32 0.0, %v5443
        %v5445 = vpop.f32.mrb[0].mxu0
        %v5446 = vpop.f32.mrb[0].mxu0
        %v5447 = vadd.f32 0.0, %v5446
        %v5448 = vpop.f32.mrb[0].mxu0
        %5449 = vmatprep.mubr.bf16.mxu0 0
        %5450 = vmatmul.mubr.bf16.gmra.mrb[0].mxu0 %v5337
        %v5451 = vpop.f32.mrb[0].mxu0
        %v5452 = vadd.f32 0.0, %v5451
        %v5453 = vpop.f32.mrb[0].mxu0
        %v5454 = vpop.f32.mrb[0].mxu0
        %v5455 = vadd.f32 0.0, %v5454
        %v5456 = vpop.f32.mrb[0].mxu0
        %5457 = vmatprep.mubr.bf16.mxu0 0
        %5458 = vmatmul.mubr.bf16.gmra.mrb[0].mxu0 %v5340
        %v5459 = vpop.f32.mrb[0].mxu0
        %v5460 = vadd.f32 0.0, %v5459
        %v5461 = vpop.f32.mrb[0].mxu0
        %v5462 = vpop.f32.mrb[0].mxu0
        %v5463 = vadd.f32 0.0, %v5462
        %v5464 = vpop.f32.mrb[0].mxu0
        %5465 = vmatprep.mubr.bf16.mxu0 0
        %5466 = vmatmul.mubr.bf16.gmra.mrb[0].mxu0 %v5343
        %v5467 = vpop.f32.mrb[0].mxu0
        %v5468 = vadd.f32 0.0, %v5467
        %v5469 = vpop.f32.mrb[0].mxu0
        %v5470 = vpop.f32.mrb[0].mxu0
        %v5471 = vadd.f32 0.0, %v5470
        %v5472 = vpop.f32.mrb[0].mxu0
        %5473 = vmatprep.mubr.bf16.mxu0 0
        %5474 = vmatmul.mubr.bf16.gmra.mrb[0].mxu0 %v5346
        %v5475 = vpop.f32.mrb[0].mxu0
        %v5476 = vadd.f32 0.0, %v5475
        %v5477 = vpop.f32.mrb[0].mxu0
        %v5478 = vpop.f32.mrb[0].mxu0
        %v5479 = vadd.f32 0.0, %v5478
        %v5480 = vpop.f32.mrb[0].mxu0
        %5481 = vmatprep.mubr.bf16.mxu0 0
        %5482 = vmatmul.mubr.bf16.gmra.mrb[0].mxu0 %v5349
        %v5483 = vpop.f32.mrb[0].mxu0
        %v5484 = vadd.f32 0.0, %v5483
        %v5485 = vpop.f32.mrb[0].mxu0
        %v5486 = vpop.f32.mrb[0].mxu0
        %v5487 = vadd.f32 0.0, %v5486
        %v5488 = vpop.f32.mrb[0].mxu0
        %5489 = vmatprep.mubr.bf16.mxu0 0
        %5490 = vmatmul.mubr.bf16.gmra.mrb[0].mxu0 %v5352
        %v5491 = vpop.f32.mrb[0].mxu0
        %v5492 = vadd.f32 0.0, %v5491
        %v5493 = vpop.f32.mrb[0].mxu0
        %v5494 = vpop.f32.mrb[0].mxu0
        %v5495 = vadd.f32 0.0, %v5494
        %v5496 = vpop.f32.mrb[0].mxu0
        %5497 = vmatprep.mubr.bf16.mxu0 0
        %5498 = vmatmul.mubr.bf16.gmra.mrb[0].mxu0 %v5355
        %v5499 = vpop.f32.mrb[0].mxu0
        %v5500 = vadd.f32 0.0, %v5499
        %v5501 = vpop.f32.mrb[0].mxu0
        %v5502 = vpop.f32.mrb[0].mxu0
        %v5503 = vadd.f32 0.0, %v5502
        %v5504 = vpop.f32.mrb[0].mxu0
        %5505 = vmatprep.mubr.bf16.mxu0 0
        %5506 = vmatmul.mubr.bf16.gmra.mrb[0].mxu0 %v5358
        %v5507 = vpop.f32.mrb[0].mxu0
        %v5508 = vadd.f32 0.0, %v5507
        %v5509 = vpop.f32.mrb[0].mxu0
        %v5510 = vpop.f32.mrb[0].mxu0
        %v5511 = vadd.f32 0.0, %v5510
        %v5512 = vpop.f32.mrb[0].mxu0
        %5513 = vmatprep.mubr.bf16.mxu0 0
        %5514 = vmatmul.mubr.bf16.gmra.mrb[0].mxu0 %v5361
        %v5515 = vpop.f32.mrb[0].mxu0
        %v5516 = vadd.f32 0.0, %v5515
        %v5517 = vpop.f32.mrb[0].mxu0
        %v5518 = vpop.f32.mrb[0].mxu0
        %v5519 = vadd.f32 0.0, %v5518
        %v5520 = vpop.f32.mrb[0].mxu0
        %5521 = vmatprep.mubr.bf16.mxu0 0
        %5522 = vmatmul.mubr.bf16.gmra.mrb[0].mxu0 %v5364
        %v5523 = vpop.f32.mrb[0].mxu0
        %v5524 = vadd.f32 0.0, %v5523
        %v5525 = vpop.f32.mrb[0].mxu0
        %v5526 = vpop.f32.mrb[0].mxu0
        %v5527 = vadd.f32 0.0, %v5526
        %v5528 = vpop.f32.mrb[0].mxu0
        %5529 = vdwg.mxu0
        %v5530 = vadd.f32 %v5060, %v5404
        %v5531 = vadd.f32 %v5061, %v5407
        %v5532 = vadd.f32 %v5062, %v5412
        %v5533 = vadd.f32 %v5063, %v5415
        %v5534 = vadd.f32 %v5064, %v5420
        %v5535 = vadd.f32 %v5065, %v5423
        %v5536 = vadd.f32 %v5066, %v5428
        %v5537 = vadd.f32 %v5067, %v5431
        %v5538 = vadd.f32 %v5068, %v5436
        %v5539 = vadd.f32 %v5069, %v5439
        %v5540 = vadd.f32 %v5070, %v5444
        %v5541 = vadd.f32 %v5071, %v5447
        %v5542 = vadd.f32 %v5072, %v5452
        %v5543 = vadd.f32 %v5073, %v5455
        %v5544 = vadd.f32 %v5074, %v5460
        %v5545 = vadd.f32 %v5075, %v5463
        %v5546 = vadd.f32 %v5076, %v5468
        %v5547 = vadd.f32 %v5077, %v5471
        %v5548 = vadd.f32 %v5078, %v5476
        %v5549 = vadd.f32 %v5079, %v5479
        %v5550 = vadd.f32 %v5080, %v5484
        %v5551 = vadd.f32 %v5081, %v5487
        %v5552 = vadd.f32 %v5082, %v5492
        %v5553 = vadd.f32 %v5083, %v5495
        %v5554 = vadd.f32 %v5084, %v5500
        %v5555 = vadd.f32 %v5085, %v5503
        %v5556 = vadd.f32 %v5086, %v5508
        %v5557 = vadd.f32 %v5087, %v5511
        %v5558 = vadd.f32 %v5088, %v5516
        %v5559 = vadd.f32 %v5089, %v5519
        %v5560 = vadd.f32 %v5090, %v5524
        %v5561 = vadd.f32 %v5091, %v5527
        %v5562 = vld [vmem:[#allocation9] sm:$0x1]
        %v5564 = vlaneseq
        %v5565 = vshrl.u32 %v5564, 7
        %v5566 = vsub.s32 0, %v5565
        %v5567 = vrot.slane %v5562, %v5566
        %v5569 = vadd.f32 %v5530, %v5567
        %v5570 = vadd.f32 %v5531, %v5567
        %v5571 = vadd.f32 %v5532, %v5567
        %v5572 = vadd.f32 %v5533, %v5567
        %v5573 = vadd.f32 %v5534, %v5567
        %v5574 = vadd.f32 %v5535, %v5567
        %v5575 = vadd.f32 %v5536, %v5567
        %v5576 = vadd.f32 %v5537, %v5567
        %v5577 = vadd.f32 %v5538, %v5567
        %v5578 = vadd.f32 %v5539, %v5567
        %v5579 = vadd.f32 %v5540, %v5567
        %v5580 = vadd.f32 %v5541, %v5567
        %v5581 = vadd.f32 %v5542, %v5567
        %v5582 = vadd.f32 %v5543, %v5567
        %v5583 = vadd.f32 %v5544, %v5567
        %v5584 = vadd.f32 %v5545, %v5567
        %v5585 = vadd.f32 %v5546, %v5567
        %v5586 = vadd.f32 %v5547, %v5567
        %v5587 = vadd.f32 %v5548, %v5567
        %v5588 = vadd.f32 %v5549, %v5567
        %v5589 = vadd.f32 %v5550, %v5567
        %v5590 = vadd.f32 %v5551, %v5567
        %v5591 = vadd.f32 %v5552, %v5567
        %v5592 = vadd.f32 %v5553, %v5567
        %v5593 = vadd.f32 %v5554, %v5567
        %v5594 = vadd.f32 %v5555, %v5567
        %v5595 = vadd.f32 %v5556, %v5567
        %v5596 = vadd.f32 %v5557, %v5567
        %v5597 = vadd.f32 %v5558, %v5567
        %v5598 = vadd.f32 %v5559, %v5567
        %v5599 = vadd.f32 %v5560, %v5567
        %v5600 = vadd.f32 %v5561, %v5567
        %v5601 = vmax.f32 %v5569, 0.0
        %v5602 = vmax.f32 %v5570, 0.0
        %v5603 = vmax.f32 %v5571, 0.0
        %v5604 = vmax.f32 %v5572, 0.0
        %v5605 = vmax.f32 %v5573, 0.0
        %v5606 = vmax.f32 %v5574, 0.0
        %v5607 = vmax.f32 %v5575, 0.0
        %v5608 = vmax.f32 %v5576, 0.0
        %v5609 = vmax.f32 %v5577, 0.0
        %v5610 = vmax.f32 %v5578, 0.0
        %v5611 = vmax.f32 %v5579, 0.0
        %v5612 = vmax.f32 %v5580, 0.0
        %v5613 = vmax.f32 %v5581, 0.0
        %v5614 = vmax.f32 %v5582, 0.0
        %v5615 = vmax.f32 %v5583, 0.0
        %v5616 = vmax.f32 %v5584, 0.0
        %v5617 = vmax.f32 %v5585, 0.0
        %v5618 = vmax.f32 %v5586, 0.0
        %v5619 = vmax.f32 %v5587, 0.0
        %v5620 = vmax.f32 %v5588, 0.0
        %v5621 = vmax.f32 %v5589, 0.0
        %v5622 = vmax.f32 %v5590, 0.0
        %v5623 = vmax.f32 %v5591, 0.0
        %v5624 = vmax.f32 %v5592, 0.0
        %v5625 = vmax.f32 %v5593, 0.0
        %v5626 = vmax.f32 %v5594, 0.0
        %v5627 = vmax.f32 %v5595, 0.0
        %v5628 = vmax.f32 %v5596, 0.0
        %v5629 = vmax.f32 %v5597, 0.0
        %v5630 = vmax.f32 %v5598, 0.0
        %v5631 = vmax.f32 %v5599, 0.0
        %v5632 = vmax.f32 %v5600, 0.0
        %v5633 = vpack.c.bf16 %v5602, %v5601
        %v5634 = vpack.c.bf16 %v5604, %v5603
        %v5635 = vpack.c.bf16 %v5606, %v5605
        %v5636 = vpack.c.bf16 %v5608, %v5607
        %v5637 = vpack.c.bf16 %v5610, %v5609
        %v5638 = vpack.c.bf16 %v5612, %v5611
        %v5639 = vpack.c.bf16 %v5614, %v5613
        %v5640 = vpack.c.bf16 %v5616, %v5615
        %v5641 = vpack.c.bf16 %v5618, %v5617
        %v5642 = vpack.c.bf16 %v5620, %v5619
        %v5643 = vpack.c.bf16 %v5622, %v5621
        %v5644 = vpack.c.bf16 %v5624, %v5623
        %v5645 = vpack.c.bf16 %v5626, %v5625
        %v5646 = vpack.c.bf16 %v5628, %v5627
        %v5647 = vpack.c.bf16 %v5630, %v5629
        %v5648 = vpack.c.bf16 %v5632, %v5631
        %v5665 = vunpack.c.l.b16 %v5633
        %v5666 = vunpack.c.h.b16 %v5633
        %v5667 = vunpack.c.l.b16 %v5634
        %v5668 = vunpack.c.h.b16 %v5634
        %v5669 = vunpack.c.l.b16 %v5635
        %v5670 = vunpack.c.h.b16 %v5635
        %v5671 = vunpack.c.l.b16 %v5636
        %v5672 = vunpack.c.h.b16 %v5636
        %v5673 = vunpack.c.l.b16 %v5637
        %v5674 = vunpack.c.h.b16 %v5637
        %v5675 = vunpack.c.l.b16 %v5638
        %v5676 = vunpack.c.h.b16 %v5638
        %v5677 = vunpack.c.l.b16 %v5639
        %v5678 = vunpack.c.h.b16 %v5639
        %v5679 = vunpack.c.l.b16 %v5640
        %v5680 = vunpack.c.h.b16 %v5640
        %v5681 = vunpack.c.l.b16 %v5641
        %v5682 = vunpack.c.h.b16 %v5641
        %v5683 = vunpack.c.l.b16 %v5642
        %v5684 = vunpack.c.h.b16 %v5642
        %v5685 = vunpack.c.l.b16 %v5643
        %v5686 = vunpack.c.h.b16 %v5643
        %v5687 = vunpack.c.l.b16 %v5644
        %v5688 = vunpack.c.h.b16 %v5644
        %v5689 = vunpack.c.l.b16 %v5645
        %v5690 = vunpack.c.h.b16 %v5645
        %v5691 = vunpack.c.l.b16 %v5646
        %v5692 = vunpack.c.h.b16 %v5646
        %v5693 = vunpack.c.l.b16 %v5647
        %v5694 = vunpack.c.h.b16 %v5647
        %v5695 = vunpack.c.l.b16 %v5648
        %v5696 = vunpack.c.h.b16 %v5648
        %v5697 = vpack.c.b16 %v5665, %v5665
        %v5698 = vpack.c.b16 %v5666, %v5666
        %v5699 = vpack.c.b16 %v5667, %v5667
        %v5700 = vpack.c.b16 %v5668, %v5668
        %v5701 = vpack.c.b16 %v5669, %v5669
        %v5702 = vpack.c.b16 %v5670, %v5670
        %v5703 = vpack.c.b16 %v5671, %v5671
        %v5704 = vpack.c.b16 %v5672, %v5672
        %v5705 = vpack.c.b16 %v5673, %v5673
        %v5706 = vpack.c.b16 %v5674, %v5674
        %v5707 = vpack.c.b16 %v5675, %v5675
        %v5708 = vpack.c.b16 %v5676, %v5676
        %v5709 = vpack.c.b16 %v5677, %v5677
        %v5710 = vpack.c.b16 %v5678, %v5678
        %v5711 = vpack.c.b16 %v5679, %v5679
        %v5712 = vpack.c.b16 %v5680, %v5680
        %v5713 = vpack.c.b16 %v5681, %v5681
        %v5714 = vpack.c.b16 %v5682, %v5682
        %v5715 = vpack.c.b16 %v5683, %v5683
        %v5716 = vpack.c.b16 %v5684, %v5684
        %v5717 = vpack.c.b16 %v5685, %v5685
        %v5718 = vpack.c.b16 %v5686, %v5686
        %v5719 = vpack.c.b16 %v5687, %v5687
        %v5720 = vpack.c.b16 %v5688, %v5688
        %v5721 = vpack.c.b16 %v5689, %v5689
        %v5722 = vpack.c.b16 %v5690, %v5690
        %v5723 = vpack.c.b16 %v5691, %v5691
        %v5724 = vpack.c.b16 %v5692, %v5692
        %v5725 = vpack.c.b16 %v5693, %v5693
        %v5726 = vpack.c.b16 %v5694, %v5694
        %v5727 = vpack.c.b16 %v5695, %v5695
        %v5728 = vpack.c.b16 %v5696, %v5696
        %v5730 = vshrl.u32 %v5697, 16
        %v5732 = vrot.slane %v5730, 7
        %v5733 = vshll.u32 %v5697, 16
        %v5735 = vor.u32 %v5732, %v5733
        %v5736 = vrot.slane %v5732, 4
        %v5738 = vshrl.u32 %v5698, 16
        %v5740 = vrot.slane %v5738, 7
        %v5741 = vshll.u32 %v5698, 16
        %v5743 = vor.u32 %v5740, %v5741
        %v5744 = vsel %vm568, %v5736, %v5743
        %v5745 = vrot.slane %v5740, 4
        %v5747 = vshrl.u32 %v5699, 16
        %v5749 = vrot.slane %v5747, 7
        %v5750 = vshll.u32 %v5699, 16
        %v5752 = vor.u32 %v5749, %v5750
        %v5753 = vrot.slane %v5749, 4
        %v5755 = vshrl.u32 %v5700, 16
        %v5757 = vrot.slane %v5755, 7
        %v5758 = vshll.u32 %v5700, 16
        %v5760 = vor.u32 %v5757, %v5758
        %v5761 = vsel %vm568, %v5753, %v5760
        %v5762 = vrot.slane %v5757, 4
        %v5764 = vshrl.u32 %v5701, 16
        %v5766 = vrot.slane %v5764, 7
        %v5767 = vshll.u32 %v5701, 16
        %v5769 = vor.u32 %v5766, %v5767
        %v5770 = vrot.slane %v5766, 4
        %v5772 = vshrl.u32 %v5702, 16
        %v5774 = vrot.slane %v5772, 7
        %v5775 = vshll.u32 %v5702, 16
        %v5777 = vor.u32 %v5774, %v5775
        %v5778 = vsel %vm568, %v5770, %v5777
        %v5779 = vrot.slane %v5774, 4
        %v5781 = vshrl.u32 %v5703, 16
        %v5783 = vrot.slane %v5781, 7
        %v5784 = vshll.u32 %v5703, 16
        %v5786 = vor.u32 %v5783, %v5784
        %v5787 = vrot.slane %v5783, 4
        %v5789 = vshrl.u32 %v5704, 16
        %v5791 = vrot.slane %v5789, 7
        %v5792 = vshll.u32 %v5704, 16
        %v5794 = vor.u32 %v5791, %v5792
        %v5795 = vsel %vm568, %v5787, %v5794
        %v5796 = vrot.slane %v5791, 4
        %v5798 = vshrl.u32 %v5705, 16
        %v5800 = vrot.slane %v5798, 7
        %v5801 = vshll.u32 %v5705, 16
        %v5803 = vor.u32 %v5800, %v5801
        %v5804 = vrot.slane %v5800, 4
        %v5806 = vshrl.u32 %v5706, 16
        %v5808 = vrot.slane %v5806, 7
        %v5809 = vshll.u32 %v5706, 16
        %v5811 = vor.u32 %v5808, %v5809
        %v5812 = vsel %vm568, %v5804, %v5811
        %v5813 = vrot.slane %v5808, 4
        %v5815 = vshrl.u32 %v5707, 16
        %v5817 = vrot.slane %v5815, 7
        %v5818 = vshll.u32 %v5707, 16
        %v5820 = vor.u32 %v5817, %v5818
        %v5821 = vrot.slane %v5817, 4
        %v5823 = vshrl.u32 %v5708, 16
        %v5825 = vrot.slane %v5823, 7
        %v5826 = vshll.u32 %v5708, 16
        %v5828 = vor.u32 %v5825, %v5826
        %v5829 = vsel %vm568, %v5821, %v5828
        %v5830 = vrot.slane %v5825, 4
        %v5832 = vshrl.u32 %v5709, 16
        %v5834 = vrot.slane %v5832, 7
        %v5835 = vshll.u32 %v5709, 16
        %v5837 = vor.u32 %v5834, %v5835
        %v5838 = vrot.slane %v5834, 4
        %v5840 = vshrl.u32 %v5710, 16
        %v5842 = vrot.slane %v5840, 7
        %v5843 = vshll.u32 %v5710, 16
        %v5845 = vor.u32 %v5842, %v5843
        %v5846 = vsel %vm568, %v5838, %v5845
        %v5847 = vrot.slane %v5842, 4
        %v5849 = vshrl.u32 %v5711, 16
        %v5851 = vrot.slane %v5849, 7
        %v5852 = vshll.u32 %v5711, 16
        %v5854 = vor.u32 %v5851, %v5852
        %v5855 = vrot.slane %v5851, 4
        %v5857 = vshrl.u32 %v5712, 16
        %v5859 = vrot.slane %v5857, 7
        %v5860 = vshll.u32 %v5712, 16
        %v5862 = vor.u32 %v5859, %v5860
        %v5863 = vsel %vm568, %v5855, %v5862
        %v5864 = vrot.slane %v5859, 4
        %v5866 = vshrl.u32 %v5713, 16
        %v5868 = vrot.slane %v5866, 7
        %v5869 = vshll.u32 %v5713, 16
        %v5871 = vor.u32 %v5868, %v5869
        %v5872 = vrot.slane %v5868, 4
        %v5874 = vshrl.u32 %v5714, 16
        %v5876 = vrot.slane %v5874, 7
        %v5877 = vshll.u32 %v5714, 16
        %v5879 = vor.u32 %v5876, %v5877
        %v5880 = vsel %vm568, %v5872, %v5879
        %v5881 = vrot.slane %v5876, 4
        %v5883 = vshrl.u32 %v5715, 16
        %v5885 = vrot.slane %v5883, 7
        %v5886 = vshll.u32 %v5715, 16
        %v5888 = vor.u32 %v5885, %v5886
        %v5889 = vrot.slane %v5885, 4
        %v5891 = vshrl.u32 %v5716, 16
        %v5893 = vrot.slane %v5891, 7
        %v5894 = vshll.u32 %v5716, 16
        %v5896 = vor.u32 %v5893, %v5894
        %v5897 = vsel %vm568, %v5889, %v5896
        %v5898 = vrot.slane %v5893, 4
        %v5900 = vshrl.u32 %v5717, 16
        %v5902 = vrot.slane %v5900, 7
        %v5903 = vshll.u32 %v5717, 16
        %v5905 = vor.u32 %v5902, %v5903
        %v5906 = vrot.slane %v5902, 4
        %v5908 = vshrl.u32 %v5718, 16
        %v5910 = vrot.slane %v5908, 7
        %v5911 = vshll.u32 %v5718, 16
        %v5913 = vor.u32 %v5910, %v5911
        %v5914 = vsel %vm568, %v5906, %v5913
        %v5915 = vrot.slane %v5910, 4
        %v5917 = vshrl.u32 %v5719, 16
        %v5919 = vrot.slane %v5917, 7
        %v5920 = vshll.u32 %v5719, 16
        %v5922 = vor.u32 %v5919, %v5920
        %v5923 = vrot.slane %v5919, 4
        %v5925 = vshrl.u32 %v5720, 16
        %v5927 = vrot.slane %v5925, 7
        %v5928 = vshll.u32 %v5720, 16
        %v5930 = vor.u32 %v5927, %v5928
        %v5931 = vsel %vm568, %v5923, %v5930
        %v5932 = vrot.slane %v5927, 4
        %v5934 = vshrl.u32 %v5721, 16
        %v5936 = vrot.slane %v5934, 7
        %v5937 = vshll.u32 %v5721, 16
        %v5939 = vor.u32 %v5936, %v5937
        %v5940 = vrot.slane %v5936, 4
        %v5942 = vshrl.u32 %v5722, 16
        %v5944 = vrot.slane %v5942, 7
        %v5945 = vshll.u32 %v5722, 16
        %v5947 = vor.u32 %v5944, %v5945
        %v5948 = vsel %vm568, %v5940, %v5947
        %v5949 = vrot.slane %v5944, 4
        %v5951 = vshrl.u32 %v5723, 16
        %v5953 = vrot.slane %v5951, 7
        %v5954 = vshll.u32 %v5723, 16
        %v5956 = vor.u32 %v5953, %v5954
        %v5957 = vrot.slane %v5953, 4
        %v5959 = vshrl.u32 %v5724, 16
        %v5961 = vrot.slane %v5959, 7
        %v5962 = vshll.u32 %v5724, 16
        %v5964 = vor.u32 %v5961, %v5962
        %v5965 = vsel %vm568, %v5957, %v5964
        %v5966 = vrot.slane %v5961, 4
        %v5968 = vshrl.u32 %v5725, 16
        %v5970 = vrot.slane %v5968, 7
        %v5971 = vshll.u32 %v5725, 16
        %v5973 = vor.u32 %v5970, %v5971
        %v5974 = vrot.slane %v5970, 4
        %v5976 = vshrl.u32 %v5726, 16
        %v5978 = vrot.slane %v5976, 7
        %v5979 = vshll.u32 %v5726, 16
        %v5981 = vor.u32 %v5978, %v5979
        %v5982 = vsel %vm568, %v5974, %v5981
        %v5983 = vrot.slane %v5978, 4
        %v5985 = vshrl.u32 %v5727, 16
        %v5987 = vrot.slane %v5985, 7
        %v5988 = vshll.u32 %v5727, 16
        %v5990 = vor.u32 %v5987, %v5988
        %v5991 = vrot.slane %v5987, 4
        %v5993 = vshrl.u32 %v5728, 16
        %v5995 = vrot.slane %v5993, 7
        %v5996 = vshll.u32 %v5728, 16
        %v5998 = vor.u32 %v5995, %v5996
        %v5999 = vsel %vm568, %v5991, %v5998
        %v6000 = vrot.slane %v5995, 4
        %s6049 = scalar_lea.vmem [#allocation3], 12
        %v6050 = vld [vmem:[%s6049] sm:$0xf]
        %v6051 = vsel %vm891, %v5735, %v6050
        %6052 = vst [vmem:[%s6049] sm:$0xf] %v6051
        %6053 = vst.msk [vmem:[%s6049 + $0x4] sm:$0xf] %vm298, %v5744
        %v6054 = vld [vmem:[%s6049 + $0x8] sm:$0x1]
        %v6055 = vsel %vm309, %v5745, %v6054
        %6056 = vst [vmem:[%s6049 + $0x8] sm:$0x1] %v6055
        %v6057 = vld [vmem:[%s6049 + $0xc] sm:$0xf]
        %v6058 = vsel %vm891, %v5752, %v6057
        %6059 = vst [vmem:[%s6049 + $0xc] sm:$0xf] %v6058
        %6060 = vst.msk [vmem:[%s6049 + $0x10] sm:$0xf] %vm298, %v5761
        %v6061 = vld [vmem:[%s6049 + $0x14] sm:$0x1]
        %v6062 = vsel %vm309, %v5762, %v6061
        %6063 = vst [vmem:[%s6049 + $0x14] sm:$0x1] %v6062
        %v6064 = vld [vmem:[%s6049 + $0x18] sm:$0xf]
        %v6065 = vsel %vm891, %v5769, %v6064
        %6066 = vst [vmem:[%s6049 + $0x18] sm:$0xf] %v6065
        %6067 = vst.msk [vmem:[%s6049 + $0x1c] sm:$0xf] %vm298, %v5778
        %v6068 = vld [vmem:[%s6049 + $0x20] sm:$0x1]
        %v6069 = vsel %vm309, %v5779, %v6068
        %6070 = vst [vmem:[%s6049 + $0x20] sm:$0x1] %v6069
        %v6071 = vld [vmem:[%s6049 + $0x24] sm:$0xf]
        %v6072 = vsel %vm891, %v5786, %v6071
        %6073 = vst [vmem:[%s6049 + $0x24] sm:$0xf] %v6072
        %6074 = vst.msk [vmem:[%s6049 + $0x28] sm:$0xf] %vm298, %v5795
        %v6075 = vld [vmem:[%s6049 + $0x2c] sm:$0x1]
        %v6076 = vsel %vm309, %v5796, %v6075
        %6077 = vst [vmem:[%s6049 + $0x2c] sm:$0x1] %v6076
        %v6078 = vld [vmem:[%s6049 + $0x30] sm:$0xf]
        %v6079 = vsel %vm891, %v5803, %v6078
        %6080 = vst [vmem:[%s6049 + $0x30] sm:$0xf] %v6079
        %6081 = vst.msk [vmem:[%s6049 + $0x34] sm:$0xf] %vm298, %v5812
        %v6082 = vld [vmem:[%s6049 + $0x38] sm:$0x1]
        %v6083 = vsel %vm309, %v5813, %v6082
        %6084 = vst [vmem:[%s6049 + $0x38] sm:$0x1] %v6083
        %v6085 = vld [vmem:[%s6049 + $0x3c] sm:$0xf]
        %v6086 = vsel %vm891, %v5820, %v6085
        %6087 = vst [vmem:[%s6049 + $0x3c] sm:$0xf] %v6086
        %6088 = vst.msk [vmem:[%s6049 + $0x40] sm:$0xf] %vm298, %v5829
        %v6089 = vld [vmem:[%s6049 + $0x44] sm:$0x1]
        %v6090 = vsel %vm309, %v5830, %v6089
        %6091 = vst [vmem:[%s6049 + $0x44] sm:$0x1] %v6090
        %v6092 = vld [vmem:[%s6049 + $0x48] sm:$0xf]
        %v6093 = vsel %vm891, %v5837, %v6092
        %6094 = vst [vmem:[%s6049 + $0x48] sm:$0xf] %v6093
        %6095 = vst.msk [vmem:[%s6049 + $0x4c] sm:$0xf] %vm298, %v5846
        %v6096 = vld [vmem:[%s6049 + $0x50] sm:$0x1]
        %v6097 = vsel %vm309, %v5847, %v6096
        %6098 = vst [vmem:[%s6049 + $0x50] sm:$0x1] %v6097
        %v6099 = vld [vmem:[%s6049 + $0x54] sm:$0xf]
        %v6100 = vsel %vm891, %v5854, %v6099
        %6101 = vst [vmem:[%s6049 + $0x54] sm:$0xf] %v6100
        %6102 = vst.msk [vmem:[%s6049 + $0x58] sm:$0xf] %vm298, %v5863
        %v6103 = vld [vmem:[%s6049 + $0x5c] sm:$0x1]
        %v6104 = vsel %vm309, %v5864, %v6103
        %6105 = vst [vmem:[%s6049 + $0x5c] sm:$0x1] %v6104
        %v6106 = vld [vmem:[%s6049 + $0x60] sm:$0xf]
        %v6107 = vsel %vm891, %v5871, %v6106
        %6108 = vst [vmem:[%s6049 + $0x60] sm:$0xf] %v6107
        %6109 = vst.msk [vmem:[%s6049 + $0x64] sm:$0xf] %vm298, %v5880
        %v6110 = vld [vmem:[%s6049 + $0x68] sm:$0x1]
        %v6111 = vsel %vm309, %v5881, %v6110
        %6112 = vst [vmem:[%s6049 + $0x68] sm:$0x1] %v6111
        %v6113 = vld [vmem:[%s6049 + $0x6c] sm:$0xf]
        %v6114 = vsel %vm891, %v5888, %v6113
        %6115 = vst [vmem:[%s6049 + $0x6c] sm:$0xf] %v6114
        %6116 = vst.msk [vmem:[%s6049 + $0x70] sm:$0xf] %vm298, %v5897
        %v6117 = vld [vmem:[%s6049 + $0x74] sm:$0x1]
        %v6118 = vsel %vm309, %v5898, %v6117
        %6119 = vst [vmem:[%s6049 + $0x74] sm:$0x1] %v6118
        %v6120 = vld [vmem:[%s6049 + $0x78] sm:$0xf]
        %v6121 = vsel %vm891, %v5905, %v6120
        %6122 = vst [vmem:[%s6049 + $0x78] sm:$0xf] %v6121
        %6123 = vst.msk [vmem:[%s6049 + $0x7c] sm:$0xf] %vm298, %v5914
        %v6124 = vld [vmem:[%s6049 + $0x80] sm:$0x1]
        %v6125 = vsel %vm309, %v5915, %v6124
        %6126 = vst [vmem:[%s6049 + $0x80] sm:$0x1] %v6125
        %v6127 = vld [vmem:[%s6049 + $0x84] sm:$0xf]
        %v6128 = vsel %vm891, %v5922, %v6127
        %6129 = vst [vmem:[%s6049 + $0x84] sm:$0xf] %v6128
        %6130 = vst.msk [vmem:[%s6049 + $0x88] sm:$0xf] %vm298, %v5931
        %v6131 = vld [vmem:[%s6049 + $0x8c] sm:$0x1]
        %v6132 = vsel %vm309, %v5932, %v6131
        %6133 = vst [vmem:[%s6049 + $0x8c] sm:$0x1] %v6132
        %v6134 = vld [vmem:[%s6049 + $0x90] sm:$0xf]
        %v6135 = vsel %vm891, %v5939, %v6134
        %6136 = vst [vmem:[%s6049 + $0x90] sm:$0xf] %v6135
        %6137 = vst.msk [vmem:[%s6049 + $0x94] sm:$0xf] %vm298, %v5948
        %v6138 = vld [vmem:[%s6049 + $0x98] sm:$0x1]
        %v6139 = vsel %vm309, %v5949, %v6138
        %6140 = vst [vmem:[%s6049 + $0x98] sm:$0x1] %v6139
        %v6141 = vld [vmem:[%s6049 + $0x9c] sm:$0xf]
        %v6142 = vsel %vm891, %v5956, %v6141
        %6143 = vst [vmem:[%s6049 + $0x9c] sm:$0xf] %v6142
        %6144 = vst.msk [vmem:[%s6049 + $0xa0] sm:$0xf] %vm298, %v5965
        %v6145 = vld [vmem:[%s6049 + $0xa4] sm:$0x1]
        %v6146 = vsel %vm309, %v5966, %v6145
        %6147 = vst [vmem:[%s6049 + $0xa4] sm:$0x1] %v6146
        %v6148 = vld [vmem:[%s6049 + $0xa8] sm:$0xf]
        %v6149 = vsel %vm891, %v5973, %v6148
        %6150 = vst [vmem:[%s6049 + $0xa8] sm:$0xf] %v6149
        %6151 = vst.msk [vmem:[%s6049 + $0xac] sm:$0xf] %vm298, %v5982
        %v6152 = vld [vmem:[%s6049 + $0xb0] sm:$0x1]
        %v6153 = vsel %vm309, %v5983, %v6152
        %6154 = vst [vmem:[%s6049 + $0xb0] sm:$0x1] %v6153
        %v6155 = vld [vmem:[%s6049 + $0xb4] sm:$0xf]
        %v6156 = vsel %vm891, %v5990, %v6155
        %6157 = vst [vmem:[%s6049 + $0xb4] sm:$0xf] %v6156
        %6158 = vst.msk [vmem:[%s6049 + $0xb8] sm:$0xf] %vm298, %v5999
        %v6159 = vld [vmem:[%s6049 + $0xbc] sm:$0x1]
        %v6160 = vsel %vm309, %v6000, %v6159
        %6161 = vst [vmem:[%s6049 + $0xbc] sm:$0x1] %v6160
        %v6162 = vld [vmem:[#allocation3] sm:$0xf]
        %v6163 = vld [vmem:[#allocation3 + $0x4] sm:$0xf]
        %v6164 = vld [vmem:[#allocation3 + $0xc] sm:$0xf]
        %v6165 = vld [vmem:[#allocation3 + $0x10] sm:$0xf]
        %v6166 = vld [vmem:[#allocation3 + $0x18] sm:$0xf]
        %v6167 = vld [vmem:[#allocation3 + $0x1c] sm:$0xf]
        %v6168 = vld [vmem:[#allocation3 + $0x24] sm:$0xf]
        %v6169 = vld [vmem:[#allocation3 + $0x28] sm:$0xf]
        %v6170 = vld [vmem:[#allocation3 + $0x30] sm:$0xf]
        %v6171 = vld [vmem:[#allocation3 + $0x34] sm:$0xf]
        %v6172 = vld [vmem:[#allocation3 + $0x3c] sm:$0xf]
        %v6173 = vld [vmem:[#allocation3 + $0x40] sm:$0xf]
        %v6174 = vld [vmem:[#allocation3 + $0x48] sm:$0xf]
        %v6175 = vld [vmem:[#allocation3 + $0x4c] sm:$0xf]
        %v6176 = vld [vmem:[#allocation3 + $0x54] sm:$0xf]
        %v6177 = vld [vmem:[#allocation3 + $0x58] sm:$0xf]
        %v6178 = vld [vmem:[#allocation3 + $0x60] sm:$0xf]
        %v6179 = vld [vmem:[#allocation3 + $0x64] sm:$0xf]
        %v6180 = vld [vmem:[#allocation3 + $0x6c] sm:$0xf]
        %v6181 = vld [vmem:[#allocation3 + $0x70] sm:$0xf]
        %v6182 = vld [vmem:[#allocation3 + $0x78] sm:$0xf]
        %v6183 = vld [vmem:[#allocation3 + $0x7c] sm:$0xf]
        %v6184 = vld [vmem:[#allocation3 + $0x84] sm:$0xf]
        %v6185 = vld [vmem:[#allocation3 + $0x88] sm:$0xf]
        %v6186 = vld [vmem:[#allocation3 + $0x90] sm:$0xf]
        %v6187 = vld [vmem:[#allocation3 + $0x94] sm:$0xf]
        %v6188 = vld [vmem:[#allocation3 + $0x9c] sm:$0xf]
        %v6189 = vld [vmem:[#allocation3 + $0xa0] sm:$0xf]
        %v6190 = vld [vmem:[#allocation3 + $0xa8] sm:$0xf]
        %v6191 = vld [vmem:[#allocation3 + $0xac] sm:$0xf]
        %v6192 = vld [vmem:[#allocation3 + $0xb4] sm:$0xf]
        %v6193 = vld [vmem:[#allocation3 + $0xb8] sm:$0xf]
        %v6194 = vld [vmem:[#allocation10] sm:$0x3]
        %v6195 = vld [vmem:[#allocation3 + $0x8] sm:$0x1]
        %v6196 = vld [vmem:[#allocation3 + $0x14] sm:$0x1]
        %v6197 = vld [vmem:[#allocation3 + $0x20] sm:$0x1]
        %v6198 = vld [vmem:[#allocation3 + $0x2c] sm:$0x1]
        %v6199 = vld [vmem:[#allocation3 + $0x38] sm:$0x1]
        %v6200 = vld [vmem:[#allocation3 + $0x44] sm:$0x1]
        %v6201 = vld [vmem:[#allocation3 + $0x50] sm:$0x1]
        %v6202 = vld [vmem:[#allocation3 + $0x5c] sm:$0x1]
        %v6203 = vld [vmem:[#allocation3 + $0x68] sm:$0x1]
        %v6204 = vld [vmem:[#allocation3 + $0x74] sm:$0x1]
        %v6205 = vld [vmem:[#allocation3 + $0x80] sm:$0x1]
        %v6206 = vld [vmem:[#allocation3 + $0x8c] sm:$0x1]
        %v6207 = vld [vmem:[#allocation3 + $0x98] sm:$0x1]
        %v6208 = vld [vmem:[#allocation3 + $0xa4] sm:$0x1]
        %v6209 = vld [vmem:[#allocation3 + $0xb0] sm:$0x1]
        %v6210 = vld [vmem:[#allocation3 + $0xbc] sm:$0x1]
        %v6212 = vshrl.u32 %v6162, 16
        %v6214 = vrot.slane %v6212, 4
        %v6215 = vshll.u32 %v6162, 16
        %v6217 = vrot.slane %v6215, 5
        %v6218 = vor.u32 %v6214, %v6217
        %v6219 = vrot.slane %v6218, 4
        %v6221 = vshll.u32 %v6163, 16
        %v6223 = vrot.slane %v6221, 5
        %v6224 = vsel %vm1055, %v6219, %v6223
        %v6225 = vshrl.u32 %v6163, 16
        %v6227 = vrot.slane %v6225, 4
        %v6228 = vor.u32 %v6227, %v6223
        %v6229 = vrot.slane %v6228, 4
        %v6231 = vshll.u32 %v6195, 16
        %v6233 = vrot.slane %v6231, 5
        %v6234 = vsel %vm1055, %v6229, %v6233
        %v6236 = vshrl.u32 %v6164, 16
        %v6238 = vrot.slane %v6236, 4
        %v6239 = vshll.u32 %v6164, 16
        %v6241 = vrot.slane %v6239, 5
        %v6242 = vor.u32 %v6238, %v6241
        %v6243 = vrot.slane %v6242, 4
        %v6245 = vshll.u32 %v6165, 16
        %v6247 = vrot.slane %v6245, 5
        %v6248 = vsel %vm1055, %v6243, %v6247
        %v6249 = vshrl.u32 %v6165, 16
        %v6251 = vrot.slane %v6249, 4
        %v6252 = vor.u32 %v6251, %v6247
        %v6253 = vrot.slane %v6252, 4
        %v6255 = vshll.u32 %v6196, 16
        %v6257 = vrot.slane %v6255, 5
        %v6258 = vsel %vm1055, %v6253, %v6257
        %v6260 = vshrl.u32 %v6166, 16
        %v6262 = vrot.slane %v6260, 4
        %v6263 = vshll.u32 %v6166, 16
        %v6265 = vrot.slane %v6263, 5
        %v6266 = vor.u32 %v6262, %v6265
        %v6267 = vrot.slane %v6266, 4
        %v6269 = vshll.u32 %v6167, 16
        %v6271 = vrot.slane %v6269, 5
        %v6272 = vsel %vm1055, %v6267, %v6271
        %v6273 = vshrl.u32 %v6167, 16
        %v6275 = vrot.slane %v6273, 4
        %v6276 = vor.u32 %v6275, %v6271
        %v6277 = vrot.slane %v6276, 4
        %v6279 = vshll.u32 %v6197, 16
        %v6281 = vrot.slane %v6279, 5
        %v6282 = vsel %vm1055, %v6277, %v6281
        %v6284 = vshrl.u32 %v6168, 16
        %v6286 = vrot.slane %v6284, 4
        %v6287 = vshll.u32 %v6168, 16
        %v6289 = vrot.slane %v6287, 5
        %v6290 = vor.u32 %v6286, %v6289
        %v6291 = vrot.slane %v6290, 4
        %v6293 = vshll.u32 %v6169, 16
        %v6295 = vrot.slane %v6293, 5
        %v6296 = vsel %vm1055, %v6291, %v6295
        %v6297 = vshrl.u32 %v6169, 16
        %v6299 = vrot.slane %v6297, 4
        %v6300 = vor.u32 %v6299, %v6295
        %v6301 = vrot.slane %v6300, 4
        %v6303 = vshll.u32 %v6198, 16
        %v6305 = vrot.slane %v6303, 5
        %v6306 = vsel %vm1055, %v6301, %v6305
        %v6308 = vshrl.u32 %v6170, 16
        %v6310 = vrot.slane %v6308, 4
        %v6311 = vshll.u32 %v6170, 16
        %v6313 = vrot.slane %v6311, 5
        %v6314 = vor.u32 %v6310, %v6313
        %v6315 = vrot.slane %v6314, 4
        %v6317 = vshll.u32 %v6171, 16
        %v6319 = vrot.slane %v6317, 5
        %v6320 = vsel %vm1055, %v6315, %v6319
        %v6321 = vshrl.u32 %v6171, 16
        %v6323 = vrot.slane %v6321, 4
        %v6324 = vor.u32 %v6323, %v6319
        %v6325 = vrot.slane %v6324, 4
        %v6327 = vshll.u32 %v6199, 16
        %v6329 = vrot.slane %v6327, 5
        %v6330 = vsel %vm1055, %v6325, %v6329
        %v6332 = vshrl.u32 %v6172, 16
        %v6334 = vrot.slane %v6332, 4
        %v6335 = vshll.u32 %v6172, 16
        %v6337 = vrot.slane %v6335, 5
        %v6338 = vor.u32 %v6334, %v6337
        %v6339 = vrot.slane %v6338, 4
        %v6341 = vshll.u32 %v6173, 16
        %v6343 = vrot.slane %v6341, 5
        %v6344 = vsel %vm1055, %v6339, %v6343
        %v6345 = vshrl.u32 %v6173, 16
        %v6347 = vrot.slane %v6345, 4
        %v6348 = vor.u32 %v6347, %v6343
        %v6349 = vrot.slane %v6348, 4
        %v6351 = vshll.u32 %v6200, 16
        %v6353 = vrot.slane %v6351, 5
        %v6354 = vsel %vm1055, %v6349, %v6353
        %v6356 = vshrl.u32 %v6174, 16
        %v6358 = vrot.slane %v6356, 4
        %v6359 = vshll.u32 %v6174, 16
        %v6361 = vrot.slane %v6359, 5
        %v6362 = vor.u32 %v6358, %v6361
        %v6363 = vrot.slane %v6362, 4
        %v6365 = vshll.u32 %v6175, 16
        %v6367 = vrot.slane %v6365, 5
        %v6368 = vsel %vm1055, %v6363, %v6367
        %v6369 = vshrl.u32 %v6175, 16
        %v6371 = vrot.slane %v6369, 4
        %v6372 = vor.u32 %v6371, %v6367
        %v6373 = vrot.slane %v6372, 4
        %v6375 = vshll.u32 %v6201, 16
        %v6377 = vrot.slane %v6375, 5
        %v6378 = vsel %vm1055, %v6373, %v6377
        %v6380 = vshrl.u32 %v6176, 16
        %v6382 = vrot.slane %v6380, 4
        %v6383 = vshll.u32 %v6176, 16
        %v6385 = vrot.slane %v6383, 5
        %v6386 = vor.u32 %v6382, %v6385
        %v6387 = vrot.slane %v6386, 4
        %v6389 = vshll.u32 %v6177, 16
        %v6391 = vrot.slane %v6389, 5
        %v6392 = vsel %vm1055, %v6387, %v6391
        %v6393 = vshrl.u32 %v6177, 16
        %v6395 = vrot.slane %v6393, 4
        %v6396 = vor.u32 %v6395, %v6391
        %v6397 = vrot.slane %v6396, 4
        %v6399 = vshll.u32 %v6202, 16
        %v6401 = vrot.slane %v6399, 5
        %v6402 = vsel %vm1055, %v6397, %v6401
        %v6404 = vshrl.u32 %v6178, 16
        %v6406 = vrot.slane %v6404, 4
        %v6407 = vshll.u32 %v6178, 16
        %v6409 = vrot.slane %v6407, 5
        %v6410 = vor.u32 %v6406, %v6409
        %v6411 = vrot.slane %v6410, 4
        %v6413 = vshll.u32 %v6179, 16
        %v6415 = vrot.slane %v6413, 5
        %v6416 = vsel %vm1055, %v6411, %v6415
        %v6417 = vshrl.u32 %v6179, 16
        %v6419 = vrot.slane %v6417, 4
        %v6420 = vor.u32 %v6419, %v6415
        %v6421 = vrot.slane %v6420, 4
        %v6423 = vshll.u32 %v6203, 16
        %v6425 = vrot.slane %v6423, 5
        %v6426 = vsel %vm1055, %v6421, %v6425
        %v6428 = vshrl.u32 %v6180, 16
        %v6430 = vrot.slane %v6428, 4
        %v6431 = vshll.u32 %v6180, 16
        %v6433 = vrot.slane %v6431, 5
        %v6434 = vor.u32 %v6430, %v6433
        %v6435 = vrot.slane %v6434, 4
        %v6437 = vshll.u32 %v6181, 16
        %v6439 = vrot.slane %v6437, 5
        %v6440 = vsel %vm1055, %v6435, %v6439
        %v6441 = vshrl.u32 %v6181, 16
        %v6443 = vrot.slane %v6441, 4
        %v6444 = vor.u32 %v6443, %v6439
        %v6445 = vrot.slane %v6444, 4
        %v6447 = vshll.u32 %v6204, 16
        %v6449 = vrot.slane %v6447, 5
        %v6450 = vsel %vm1055, %v6445, %v6449
        %v6452 = vshrl.u32 %v6182, 16
        %v6454 = vrot.slane %v6452, 4
        %v6455 = vshll.u32 %v6182, 16
        %v6457 = vrot.slane %v6455, 5
        %v6458 = vor.u32 %v6454, %v6457
        %v6459 = vrot.slane %v6458, 4
        %v6461 = vshll.u32 %v6183, 16
        %v6463 = vrot.slane %v6461, 5
        %v6464 = vsel %vm1055, %v6459, %v6463
        %v6465 = vshrl.u32 %v6183, 16
        %v6467 = vrot.slane %v6465, 4
        %v6468 = vor.u32 %v6467, %v6463
        %v6469 = vrot.slane %v6468, 4
        %v6471 = vshll.u32 %v6205, 16
        %v6473 = vrot.slane %v6471, 5
        %v6474 = vsel %vm1055, %v6469, %v6473
        %v6476 = vshrl.u32 %v6184, 16
        %v6478 = vrot.slane %v6476, 4
        %v6479 = vshll.u32 %v6184, 16
        %v6481 = vrot.slane %v6479, 5
        %v6482 = vor.u32 %v6478, %v6481
        %v6483 = vrot.slane %v6482, 4
        %v6485 = vshll.u32 %v6185, 16
        %v6487 = vrot.slane %v6485, 5
        %v6488 = vsel %vm1055, %v6483, %v6487
        %v6489 = vshrl.u32 %v6185, 16
        %v6491 = vrot.slane %v6489, 4
        %v6492 = vor.u32 %v6491, %v6487
        %v6493 = vrot.slane %v6492, 4
        %v6495 = vshll.u32 %v6206, 16
        %v6497 = vrot.slane %v6495, 5
        %v6498 = vsel %vm1055, %v6493, %v6497
        %v6500 = vshrl.u32 %v6186, 16
        %v6502 = vrot.slane %v6500, 4
        %v6503 = vshll.u32 %v6186, 16
        %v6505 = vrot.slane %v6503, 5
        %v6506 = vor.u32 %v6502, %v6505
        %v6507 = vrot.slane %v6506, 4
        %v6509 = vshll.u32 %v6187, 16
        %v6511 = vrot.slane %v6509, 5
        %v6512 = vsel %vm1055, %v6507, %v6511
        %v6513 = vshrl.u32 %v6187, 16
        %v6515 = vrot.slane %v6513, 4
        %v6516 = vor.u32 %v6515, %v6511
        %v6517 = vrot.slane %v6516, 4
        %v6519 = vshll.u32 %v6207, 16
        %v6521 = vrot.slane %v6519, 5
        %v6522 = vsel %vm1055, %v6517, %v6521
        %v6524 = vshrl.u32 %v6188, 16
        %v6526 = vrot.slane %v6524, 4
        %v6527 = vshll.u32 %v6188, 16
        %v6529 = vrot.slane %v6527, 5
        %v6530 = vor.u32 %v6526, %v6529
        %v6531 = vrot.slane %v6530, 4
        %v6533 = vshll.u32 %v6189, 16
        %v6535 = vrot.slane %v6533, 5
        %v6536 = vsel %vm1055, %v6531, %v6535
        %v6537 = vshrl.u32 %v6189, 16
        %v6539 = vrot.slane %v6537, 4
        %v6540 = vor.u32 %v6539, %v6535
        %v6541 = vrot.slane %v6540, 4
        %v6543 = vshll.u32 %v6208, 16
        %v6545 = vrot.slane %v6543, 5
        %v6546 = vsel %vm1055, %v6541, %v6545
        %v6548 = vshrl.u32 %v6190, 16
        %v6550 = vrot.slane %v6548, 4
        %v6551 = vshll.u32 %v6190, 16
        %v6553 = vrot.slane %v6551, 5
        %v6554 = vor.u32 %v6550, %v6553
        %v6555 = vrot.slane %v6554, 4
        %v6557 = vshll.u32 %v6191, 16
        %v6559 = vrot.slane %v6557, 5
        %v6560 = vsel %vm1055, %v6555, %v6559
        %v6561 = vshrl.u32 %v6191, 16
        %v6563 = vrot.slane %v6561, 4
        %v6564 = vor.u32 %v6563, %v6559
        %v6565 = vrot.slane %v6564, 4
        %v6567 = vshll.u32 %v6209, 16
        %v6569 = vrot.slane %v6567, 5
        %v6570 = vsel %vm1055, %v6565, %v6569
        %v6572 = vshrl.u32 %v6192, 16
        %v6574 = vrot.slane %v6572, 4
        %v6575 = vshll.u32 %v6192, 16
        %v6577 = vrot.slane %v6575, 5
        %v6578 = vor.u32 %v6574, %v6577
        %v6579 = vrot.slane %v6578, 4
        %v6581 = vshll.u32 %v6193, 16
        %v6583 = vrot.slane %v6581, 5
        %v6584 = vsel %vm1055, %v6579, %v6583
        %v6585 = vshrl.u32 %v6193, 16
        %v6587 = vrot.slane %v6585, 4
        %v6588 = vor.u32 %v6587, %v6583
        %v6589 = vrot.slane %v6588, 4
        %v6591 = vshll.u32 %v6210, 16
        %v6593 = vrot.slane %v6591, 5
        %v6594 = vsel %vm1055, %v6589, %v6593
        %s6595 = scalar_lea.vmem [#allocation10], 2
        %v6596 = vld [vmem:[%s6595] sm:$0x3]
        %v6597 = vunpack.c.l.b16 %v6224
        %v6598 = vunpack.c.l.b16 %v6234
        %v6599 = vunpack.c.l.b16 %v6248
        %v6600 = vunpack.c.l.b16 %v6258
        %v6601 = vunpack.c.l.b16 %v6272
        %v6602 = vunpack.c.l.b16 %v6282
        %v6603 = vunpack.c.l.b16 %v6296
        %v6604 = vunpack.c.l.b16 %v6306
        %v6605 = vunpack.c.l.b16 %v6320
        %v6606 = vunpack.c.l.b16 %v6330
        %v6607 = vunpack.c.l.b16 %v6344
        %v6608 = vunpack.c.l.b16 %v6354
        %v6609 = vunpack.c.l.b16 %v6368
        %v6610 = vunpack.c.l.b16 %v6378
        %v6611 = vunpack.c.l.b16 %v6392
        %v6612 = vunpack.c.l.b16 %v6402
        %v6613 = vunpack.c.l.b16 %v6416
        %v6614 = vunpack.c.l.b16 %v6426
        %v6615 = vunpack.c.l.b16 %v6440
        %v6616 = vunpack.c.l.b16 %v6450
        %v6617 = vunpack.c.l.b16 %v6464
        %v6618 = vunpack.c.l.b16 %v6474
        %v6619 = vunpack.c.l.b16 %v6488
        %v6620 = vunpack.c.l.b16 %v6498
        %v6621 = vunpack.c.l.b16 %v6512
        %v6622 = vunpack.c.l.b16 %v6522
        %v6623 = vunpack.c.l.b16 %v6536
        %v6624 = vunpack.c.l.b16 %v6546
        %v6625 = vunpack.c.l.b16 %v6560
        %v6626 = vunpack.c.l.b16 %v6570
        %v6627 = vunpack.c.l.b16 %v6584
        %v6628 = vunpack.c.l.b16 %v6594
        %v6629 = vpack.c.b16 %v6598, %v6597
        %v6630 = vpack.c.b16 %v6600, %v6599
        %v6631 = vpack.c.b16 %v6602, %v6601
        %v6632 = vpack.c.b16 %v6604, %v6603
        %v6633 = vpack.c.b16 %v6606, %v6605
        %v6634 = vpack.c.b16 %v6608, %v6607
        %v6635 = vpack.c.b16 %v6610, %v6609
        %v6636 = vpack.c.b16 %v6612, %v6611
        %v6637 = vpack.c.b16 %v6614, %v6613
        %v6638 = vpack.c.b16 %v6616, %v6615
        %v6639 = vpack.c.b16 %v6618, %v6617
        %v6640 = vpack.c.b16 %v6620, %v6619
        %v6641 = vpack.c.b16 %v6622, %v6621
        %v6642 = vpack.c.b16 %v6624, %v6623
        %v6643 = vpack.c.b16 %v6626, %v6625
        %v6644 = vpack.c.b16 %v6628, %v6627
        %v6646 = vsel %vm1490, %v6629, 0
        %v6649 = vsel %vm1490, %v6630, 0
        %v6652 = vsel %vm1490, %v6631, 0
        %v6655 = vsel %vm1490, %v6632, 0
        %v6658 = vsel %vm1490, %v6633, 0
        %v6661 = vsel %vm1490, %v6634, 0
        %v6664 = vsel %vm1490, %v6635, 0
        %v6667 = vsel %vm1490, %v6636, 0
        %v6670 = vsel %vm1490, %v6637, 0
        %v6673 = vsel %vm1490, %v6638, 0
        %v6676 = vsel %vm1490, %v6639, 0
        %v6679 = vsel %vm1490, %v6640, 0
        %v6682 = vsel %vm1490, %v6641, 0
        %v6685 = vsel %vm1490, %v6642, 0
        %v6688 = vsel %vm1490, %v6643, 0
        %v6691 = vsel %vm1490, %v6644, 0
        %v6694 = vsel %vm1539, %v6596, 0
        %6696 = vmatprep.subr.bf16.mxu0 0
        %6697 = vmatpush1.bf16.msra.mxu0 %v6694
        %6698 = vmatprep.subr.bf16.mxu0 0
        %6699 = vmatpush1.bf16.msra.mxu0 0
        %6700 = vmatprep.subr.bf16.mxu0 0
        %6701 = vmatpush1.bf16.msra.mxu0 0
        %6702 = vmatprep.subr.bf16.mxu0 0
        %6703 = vmatpush1.bf16.msra.mxu0 0
        %6704 = vmatprep.subr.bf16.mxu0 0
        %6705 = vmatpush1.bf16.msra.mxu0 0
        %6706 = vmatprep.subr.bf16.mxu0 0
        %6707 = vmatpush1.bf16.msra.mxu0 0
        %6708 = vmatprep.subr.bf16.mxu0 0
        %6709 = vmatpush1.bf16.msra.mxu0 0
        %6710 = vmatprep.subr.bf16.mxu0 0
        %6711 = vmatpush1.bf16.msra.mxu0 0
        %6712 = vmatprep.subr.bf16.mxu0 0
        %6713 = vmatpush1.bf16.msra.mxu0 0
        %6714 = vmatprep.subr.bf16.mxu0 0
        %6715 = vmatpush1.bf16.msra.mxu0 0
        %6716 = vmatprep.subr.bf16.mxu0 0
        %6717 = vmatpush1.bf16.msra.mxu0 0
        %6718 = vmatprep.subr.bf16.mxu0 0
        %6719 = vmatpush1.bf16.msra.mxu0 0
        %6720 = vmatprep.subr.bf16.mxu0 0
        %6721 = vmatpush1.bf16.msra.mxu0 0
        %6722 = vmatprep.subr.bf16.mxu0 0
        %6723 = vmatpush1.bf16.msra.mxu0 0
        %6724 = vmatprep.subr.bf16.mxu0 0
        %6725 = vmatpush1.bf16.msra.mxu0 0
        %6726 = vmatprep.subr.bf16.mxu0 0
        %6727 = vmatpush1.bf16.msra.mxu0 0
        %6728 = vmatprep.mubr.bf16.mxu0 0
        %6729 = vmatmul.mubr.bf16.gmra.mrb[0].mxu0 %v6646
        %v6730 = vpop.f32.mrb[0].mxu0
        %v6731 = vadd.f32 0.0, %v6730
        %v6732 = vpop.f32.mrb[0].mxu0
        %v6733 = vpop.f32.mrb[0].mxu0
        %v6734 = vadd.f32 0.0, %v6733
        %v6735 = vpop.f32.mrb[0].mxu0
        %6736 = vmatprep.mubr.bf16.mxu0 0
        %6737 = vmatmul.mubr.bf16.gmra.mrb[0].mxu0 %v6649
        %v6738 = vpop.f32.mrb[0].mxu0
        %v6739 = vadd.f32 0.0, %v6738
        %v6740 = vpop.f32.mrb[0].mxu0
        %v6741 = vpop.f32.mrb[0].mxu0
        %v6742 = vadd.f32 0.0, %v6741
        %v6743 = vpop.f32.mrb[0].mxu0
        %6744 = vmatprep.mubr.bf16.mxu0 0
        %6745 = vmatmul.mubr.bf16.gmra.mrb[0].mxu0 %v6652
        %v6746 = vpop.f32.mrb[0].mxu0
        %v6747 = vadd.f32 0.0, %v6746
        %v6748 = vpop.f32.mrb[0].mxu0
        %v6749 = vpop.f32.mrb[0].mxu0
        %v6750 = vadd.f32 0.0, %v6749
        %v6751 = vpop.f32.mrb[0].mxu0
        %6752 = vmatprep.mubr.bf16.mxu0 0
        %6753 = vmatmul.mubr.bf16.gmra.mrb[0].mxu0 %v6655
        %v6754 = vpop.f32.mrb[0].mxu0
        %v6755 = vadd.f32 0.0, %v6754
        %v6756 = vpop.f32.mrb[0].mxu0
        %v6757 = vpop.f32.mrb[0].mxu0
        %v6758 = vadd.f32 0.0, %v6757
        %v6759 = vpop.f32.mrb[0].mxu0
        %6760 = vmatprep.mubr.bf16.mxu0 0
        %6761 = vmatmul.mubr.bf16.gmra.mrb[0].mxu0 %v6658
        %v6762 = vpop.f32.mrb[0].mxu0
        %v6763 = vadd.f32 0.0, %v6762
        %v6764 = vpop.f32.mrb[0].mxu0
        %v6765 = vpop.f32.mrb[0].mxu0
        %v6766 = vadd.f32 0.0, %v6765
        %v6767 = vpop.f32.mrb[0].mxu0
        %6768 = vmatprep.mubr.bf16.mxu0 0
        %6769 = vmatmul.mubr.bf16.gmra.mrb[0].mxu0 %v6661
        %v6770 = vpop.f32.mrb[0].mxu0
        %v6771 = vadd.f32 0.0, %v6770
        %v6772 = vpop.f32.mrb[0].mxu0
        %v6773 = vpop.f32.mrb[0].mxu0
        %v6774 = vadd.f32 0.0, %v6773
        %v6775 = vpop.f32.mrb[0].mxu0
        %6776 = vmatprep.mubr.bf16.mxu0 0
        %6777 = vmatmul.mubr.bf16.gmra.mrb[0].mxu0 %v6664
        %v6778 = vpop.f32.mrb[0].mxu0
        %v6779 = vadd.f32 0.0, %v6778
        %v6780 = vpop.f32.mrb[0].mxu0
        %v6781 = vpop.f32.mrb[0].mxu0
        %v6782 = vadd.f32 0.0, %v6781
        %v6783 = vpop.f32.mrb[0].mxu0
        %6784 = vmatprep.mubr.bf16.mxu0 0
        %6785 = vmatmul.mubr.bf16.gmra.mrb[0].mxu0 %v6667
        %v6786 = vpop.f32.mrb[0].mxu0
        %v6787 = vadd.f32 0.0, %v6786
        %v6788 = vpop.f32.mrb[0].mxu0
        %v6789 = vpop.f32.mrb[0].mxu0
        %v6790 = vadd.f32 0.0, %v6789
        %v6791 = vpop.f32.mrb[0].mxu0
        %6792 = vmatprep.mubr.bf16.mxu0 0
        %6793 = vmatmul.mubr.bf16.gmra.mrb[0].mxu0 %v6670
        %v6794 = vpop.f32.mrb[0].mxu0
        %v6795 = vadd.f32 0.0, %v6794
        %v6796 = vpop.f32.mrb[0].mxu0
        %v6797 = vpop.f32.mrb[0].mxu0
        %v6798 = vadd.f32 0.0, %v6797
        %v6799 = vpop.f32.mrb[0].mxu0
        %6800 = vmatprep.mubr.bf16.mxu0 0
        %6801 = vmatmul.mubr.bf16.gmra.mrb[0].mxu0 %v6673
        %v6802 = vpop.f32.mrb[0].mxu0
        %v6803 = vadd.f32 0.0, %v6802
        %v6804 = vpop.f32.mrb[0].mxu0
        %v6805 = vpop.f32.mrb[0].mxu0
        %v6806 = vadd.f32 0.0, %v6805
        %v6807 = vpop.f32.mrb[0].mxu0
        %6808 = vmatprep.mubr.bf16.mxu0 0
        %6809 = vmatmul.mubr.bf16.gmra.mrb[0].mxu0 %v6676
        %v6810 = vpop.f32.mrb[0].mxu0
        %v6811 = vadd.f32 0.0, %v6810
        %v6812 = vpop.f32.mrb[0].mxu0
        %v6813 = vpop.f32.mrb[0].mxu0
        %v6814 = vadd.f32 0.0, %v6813
        %v6815 = vpop.f32.mrb[0].mxu0
        %6816 = vmatprep.mubr.bf16.mxu0 0
        %6817 = vmatmul.mubr.bf16.gmra.mrb[0].mxu0 %v6679
        %v6818 = vpop.f32.mrb[0].mxu0
        %v6819 = vadd.f32 0.0, %v6818
        %v6820 = vpop.f32.mrb[0].mxu0
        %v6821 = vpop.f32.mrb[0].mxu0
        %v6822 = vadd.f32 0.0, %v6821
        %v6823 = vpop.f32.mrb[0].mxu0
        %6824 = vmatprep.mubr.bf16.mxu0 0
        %6825 = vmatmul.mubr.bf16.gmra.mrb[0].mxu0 %v6682
        %v6826 = vpop.f32.mrb[0].mxu0
        %v6827 = vadd.f32 0.0, %v6826
        %v6828 = vpop.f32.mrb[0].mxu0
        %v6829 = vpop.f32.mrb[0].mxu0
        %v6830 = vadd.f32 0.0, %v6829
        %v6831 = vpop.f32.mrb[0].mxu0
        %6832 = vmatprep.mubr.bf16.mxu0 0
        %6833 = vmatmul.mubr.bf16.gmra.mrb[0].mxu0 %v6685
        %v6834 = vpop.f32.mrb[0].mxu0
        %v6835 = vadd.f32 0.0, %v6834
        %v6836 = vpop.f32.mrb[0].mxu0
        %v6837 = vpop.f32.mrb[0].mxu0
        %v6838 = vadd.f32 0.0, %v6837
        %v6839 = vpop.f32.mrb[0].mxu0
        %6840 = vmatprep.mubr.bf16.mxu0 0
        %6841 = vmatmul.mubr.bf16.gmra.mrb[0].mxu0 %v6688
        %v6842 = vpop.f32.mrb[0].mxu0
        %v6843 = vadd.f32 0.0, %v6842
        %v6844 = vpop.f32.mrb[0].mxu0
        %v6845 = vpop.f32.mrb[0].mxu0
        %v6846 = vadd.f32 0.0, %v6845
        %v6847 = vpop.f32.mrb[0].mxu0
        %6848 = vmatprep.mubr.bf16.mxu0 0
        %6849 = vmatmul.mubr.bf16.gmra.mrb[0].mxu0 %v6691
        %v6850 = vpop.f32.mrb[0].mxu0
        %v6851 = vadd.f32 0.0, %v6850
        %v6852 = vpop.f32.mrb[0].mxu0
        %v6853 = vpop.f32.mrb[0].mxu0
        %v6854 = vadd.f32 0.0, %v6853
        %v6855 = vpop.f32.mrb[0].mxu0
        %6856 = vdwg.mxu0
        %v6889 = vunpack.c.l.b16 %v6162
        %v6890 = vunpack.c.l.b16 %v6163
        %v6891 = vunpack.c.l.b16 %v6164
        %v6892 = vunpack.c.l.b16 %v6165
        %v6893 = vunpack.c.l.b16 %v6166
        %v6894 = vunpack.c.l.b16 %v6167
        %v6895 = vunpack.c.l.b16 %v6168
        %v6896 = vunpack.c.l.b16 %v6169
        %v6897 = vunpack.c.l.b16 %v6170
        %v6898 = vunpack.c.l.b16 %v6171
        %v6899 = vunpack.c.l.b16 %v6172
        %v6900 = vunpack.c.l.b16 %v6173
        %v6901 = vunpack.c.l.b16 %v6174
        %v6902 = vunpack.c.l.b16 %v6175
        %v6903 = vunpack.c.l.b16 %v6176
        %v6904 = vunpack.c.l.b16 %v6177
        %v6905 = vunpack.c.l.b16 %v6178
        %v6906 = vunpack.c.l.b16 %v6179
        %v6907 = vunpack.c.l.b16 %v6180
        %v6908 = vunpack.c.l.b16 %v6181
        %v6909 = vunpack.c.l.b16 %v6182
        %v6910 = vunpack.c.l.b16 %v6183
        %v6911 = vunpack.c.l.b16 %v6184
        %v6912 = vunpack.c.l.b16 %v6185
        %v6913 = vunpack.c.l.b16 %v6186
        %v6914 = vunpack.c.l.b16 %v6187
        %v6915 = vunpack.c.l.b16 %v6188
        %v6916 = vunpack.c.l.b16 %v6189
        %v6917 = vunpack.c.l.b16 %v6190
        %v6918 = vunpack.c.l.b16 %v6191
        %v6919 = vunpack.c.l.b16 %v6192
        %v6920 = vunpack.c.l.b16 %v6193
        %v6921 = vpack.c.b16 %v6890, %v6889
        %v6922 = vpack.c.b16 %v6892, %v6891
        %v6923 = vpack.c.b16 %v6894, %v6893
        %v6924 = vpack.c.b16 %v6896, %v6895
        %v6925 = vpack.c.b16 %v6898, %v6897
        %v6926 = vpack.c.b16 %v6900, %v6899
        %v6927 = vpack.c.b16 %v6902, %v6901
        %v6928 = vpack.c.b16 %v6904, %v6903
        %v6929 = vpack.c.b16 %v6906, %v6905
        %v6930 = vpack.c.b16 %v6908, %v6907
        %v6931 = vpack.c.b16 %v6910, %v6909
        %v6932 = vpack.c.b16 %v6912, %v6911
        %v6933 = vpack.c.b16 %v6914, %v6913
        %v6934 = vpack.c.b16 %v6916, %v6915
        %v6935 = vpack.c.b16 %v6918, %v6917
        %v6936 = vpack.c.b16 %v6920, %v6919
        %v6938 = vsel %vm1490, %v6921, 0
        %v6941 = vsel %vm1490, %v6922, 0
        %v6944 = vsel %vm1490, %v6923, 0
        %v6947 = vsel %vm1490, %v6924, 0
        %v6950 = vsel %vm1490, %v6925, 0
        %v6953 = vsel %vm1490, %v6926, 0
        %v6956 = vsel %vm1490, %v6927, 0
        %v6959 = vsel %vm1490, %v6928, 0
        %v6962 = vsel %vm1490, %v6929, 0
        %v6965 = vsel %vm1490, %v6930, 0
        %v6968 = vsel %vm1490, %v6931, 0
        %v6971 = vsel %vm1490, %v6932, 0
        %v6974 = vsel %vm1490, %v6933, 0
        %v6977 = vsel %vm1490, %v6934, 0
        %v6980 = vsel %vm1490, %v6935, 0
        %v6983 = vsel %vm1490, %v6936, 0
        %v6986 = vsel %vm1539, %v6194, 0
        %6988 = vmatprep.subr.bf16.mxu0 0
        %6989 = vmatpush1.bf16.msra.mxu0 %v6986
        %6990 = vmatprep.subr.bf16.mxu0 0
        %6991 = vmatpush1.bf16.msra.mxu0 0
        %6992 = vmatprep.subr.bf16.mxu0 0
        %6993 = vmatpush1.bf16.msra.mxu0 0
        %6994 = vmatprep.subr.bf16.mxu0 0
        %6995 = vmatpush1.bf16.msra.mxu0 0
        %6996 = vmatprep.subr.bf16.mxu0 0
        %6997 = vmatpush1.bf16.msra.mxu0 0
        %6998 = vmatprep.subr.bf16.mxu0 0
        %6999 = vmatpush1.bf16.msra.mxu0 0
        %7000 = vmatprep.subr.bf16.mxu0 0
        %7001 = vmatpush1.bf16.msra.mxu0 0
        %7002 = vmatprep.subr.bf16.mxu0 0
        %7003 = vmatpush1.bf16.msra.mxu0 0
        %7004 = vmatprep.subr.bf16.mxu0 0
        %7005 = vmatpush1.bf16.msra.mxu0 0
        %7006 = vmatprep.subr.bf16.mxu0 0
        %7007 = vmatpush1.bf16.msra.mxu0 0
        %7008 = vmatprep.subr.bf16.mxu0 0
        %7009 = vmatpush1.bf16.msra.mxu0 0
        %7010 = vmatprep.subr.bf16.mxu0 0
        %7011 = vmatpush1.bf16.msra.mxu0 0
        %7012 = vmatprep.subr.bf16.mxu0 0
        %7013 = vmatpush1.bf16.msra.mxu0 0
        %7014 = vmatprep.subr.bf16.mxu0 0
        %7015 = vmatpush1.bf16.msra.mxu0 0
        %7016 = vmatprep.subr.bf16.mxu0 0
        %7017 = vmatpush1.bf16.msra.mxu0 0
        %7018 = vmatprep.subr.bf16.mxu0 0
        %7019 = vmatpush1.bf16.msra.mxu0 0
        %7020 = vmatprep.mubr.bf16.mxu0 0
        %7021 = vmatmul.mubr.bf16.gmra.mrb[0].mxu0 %v6938
        %v7022 = vpop.f32.mrb[0].mxu0
        %v7023 = vadd.f32 %v6731, %v7022
        %v7024 = vpop.f32.mrb[0].mxu0
        %v7025 = vpop.f32.mrb[0].mxu0
        %v7026 = vadd.f32 %v6734, %v7025
        %v7027 = vpop.f32.mrb[0].mxu0
        %7028 = vmatprep.mubr.bf16.mxu0 0
        %7029 = vmatmul.mubr.bf16.gmra.mrb[0].mxu0 %v6941
        %v7030 = vpop.f32.mrb[0].mxu0
        %v7031 = vadd.f32 %v6739, %v7030
        %v7032 = vpop.f32.mrb[0].mxu0
        %v7033 = vpop.f32.mrb[0].mxu0
        %v7034 = vadd.f32 %v6742, %v7033
        %v7035 = vpop.f32.mrb[0].mxu0
        %7036 = vmatprep.mubr.bf16.mxu0 0
        %7037 = vmatmul.mubr.bf16.gmra.mrb[0].mxu0 %v6944
        %v7038 = vpop.f32.mrb[0].mxu0
        %v7039 = vadd.f32 %v6747, %v7038
        %v7040 = vpop.f32.mrb[0].mxu0
        %v7041 = vpop.f32.mrb[0].mxu0
        %v7042 = vadd.f32 %v6750, %v7041
        %v7043 = vpop.f32.mrb[0].mxu0
        %7044 = vmatprep.mubr.bf16.mxu0 0
        %7045 = vmatmul.mubr.bf16.gmra.mrb[0].mxu0 %v6947
        %v7046 = vpop.f32.mrb[0].mxu0
        %v7047 = vadd.f32 %v6755, %v7046
        %v7048 = vpop.f32.mrb[0].mxu0
        %v7049 = vpop.f32.mrb[0].mxu0
        %v7050 = vadd.f32 %v6758, %v7049
        %v7051 = vpop.f32.mrb[0].mxu0
        %7052 = vmatprep.mubr.bf16.mxu0 0
        %7053 = vmatmul.mubr.bf16.gmra.mrb[0].mxu0 %v6950
        %v7054 = vpop.f32.mrb[0].mxu0
        %v7055 = vadd.f32 %v6763, %v7054
        %v7056 = vpop.f32.mrb[0].mxu0
        %v7057 = vpop.f32.mrb[0].mxu0
        %v7058 = vadd.f32 %v6766, %v7057
        %v7059 = vpop.f32.mrb[0].mxu0
        %7060 = vmatprep.mubr.bf16.mxu0 0
        %7061 = vmatmul.mubr.bf16.gmra.mrb[0].mxu0 %v6953
        %v7062 = vpop.f32.mrb[0].mxu0
        %v7063 = vadd.f32 %v6771, %v7062
        %v7064 = vpop.f32.mrb[0].mxu0
        %v7065 = vpop.f32.mrb[0].mxu0
        %v7066 = vadd.f32 %v6774, %v7065
        %v7067 = vpop.f32.mrb[0].mxu0
        %7068 = vmatprep.mubr.bf16.mxu0 0
        %7069 = vmatmul.mubr.bf16.gmra.mrb[0].mxu0 %v6956
        %v7070 = vpop.f32.mrb[0].mxu0
        %v7071 = vadd.f32 %v6779, %v7070
        %v7072 = vpop.f32.mrb[0].mxu0
        %v7073 = vpop.f32.mrb[0].mxu0
        %v7074 = vadd.f32 %v6782, %v7073
        %v7075 = vpop.f32.mrb[0].mxu0
        %7076 = vmatprep.mubr.bf16.mxu0 0
        %7077 = vmatmul.mubr.bf16.gmra.mrb[0].mxu0 %v6959
        %v7078 = vpop.f32.mrb[0].mxu0
        %v7079 = vadd.f32 %v6787, %v7078
        %v7080 = vpop.f32.mrb[0].mxu0
        %v7081 = vpop.f32.mrb[0].mxu0
        %v7082 = vadd.f32 %v6790, %v7081
        %v7083 = vpop.f32.mrb[0].mxu0
        %7084 = vmatprep.mubr.bf16.mxu0 0
        %7085 = vmatmul.mubr.bf16.gmra.mrb[0].mxu0 %v6962
        %v7086 = vpop.f32.mrb[0].mxu0
        %v7087 = vadd.f32 %v6795, %v7086
        %v7088 = vpop.f32.mrb[0].mxu0
        %v7089 = vpop.f32.mrb[0].mxu0
        %v7090 = vadd.f32 %v6798, %v7089
        %v7091 = vpop.f32.mrb[0].mxu0
        %7092 = vmatprep.mubr.bf16.mxu0 0
        %7093 = vmatmul.mubr.bf16.gmra.mrb[0].mxu0 %v6965
        %v7094 = vpop.f32.mrb[0].mxu0
        %v7095 = vadd.f32 %v6803, %v7094
        %v7096 = vpop.f32.mrb[0].mxu0
        %v7097 = vpop.f32.mrb[0].mxu0
        %v7098 = vadd.f32 %v6806, %v7097
        %v7099 = vpop.f32.mrb[0].mxu0
        %7100 = vmatprep.mubr.bf16.mxu0 0
        %7101 = vmatmul.mubr.bf16.gmra.mrb[0].mxu0 %v6968
        %v7102 = vpop.f32.mrb[0].mxu0
        %v7103 = vadd.f32 %v6811, %v7102
        %v7104 = vpop.f32.mrb[0].mxu0
        %v7105 = vpop.f32.mrb[0].mxu0
        %v7106 = vadd.f32 %v6814, %v7105
        %v7107 = vpop.f32.mrb[0].mxu0
        %7108 = vmatprep.mubr.bf16.mxu0 0
        %7109 = vmatmul.mubr.bf16.gmra.mrb[0].mxu0 %v6971
        %v7110 = vpop.f32.mrb[0].mxu0
        %v7111 = vadd.f32 %v6819, %v7110
        %v7112 = vpop.f32.mrb[0].mxu0
        %v7113 = vpop.f32.mrb[0].mxu0
        %v7114 = vadd.f32 %v6822, %v7113
        %v7115 = vpop.f32.mrb[0].mxu0
        %7116 = vmatprep.mubr.bf16.mxu0 0
        %7117 = vmatmul.mubr.bf16.gmra.mrb[0].mxu0 %v6974
        %v7118 = vpop.f32.mrb[0].mxu0
        %v7119 = vadd.f32 %v6827, %v7118
        %v7120 = vpop.f32.mrb[0].mxu0
        %v7121 = vpop.f32.mrb[0].mxu0
        %v7122 = vadd.f32 %v6830, %v7121
        %v7123 = vpop.f32.mrb[0].mxu0
        %7124 = vmatprep.mubr.bf16.mxu0 0
        %7125 = vmatmul.mubr.bf16.gmra.mrb[0].mxu0 %v6977
        %v7126 = vpop.f32.mrb[0].mxu0
        %v7127 = vadd.f32 %v6835, %v7126
        %v7128 = vpop.f32.mrb[0].mxu0
        %v7129 = vpop.f32.mrb[0].mxu0
        %v7130 = vadd.f32 %v6838, %v7129
        %v7131 = vpop.f32.mrb[0].mxu0
        %7132 = vmatprep.mubr.bf16.mxu0 0
        %7133 = vmatmul.mubr.bf16.gmra.mrb[0].mxu0 %v6980
        %v7134 = vpop.f32.mrb[0].mxu0
        %v7135 = vadd.f32 %v6843, %v7134
        %v7136 = vpop.f32.mrb[0].mxu0
        %v7137 = vpop.f32.mrb[0].mxu0
        %v7138 = vadd.f32 %v6846, %v7137
        %v7139 = vpop.f32.mrb[0].mxu0
        %7140 = vmatprep.mubr.bf16.mxu0 0
        %7141 = vmatmul.mubr.bf16.gmra.mrb[0].mxu0 %v6983
        %v7142 = vpop.f32.mrb[0].mxu0
        %v7143 = vadd.f32 %v6851, %v7142
        %v7144 = vpop.f32.mrb[0].mxu0
        %v7145 = vpop.f32.mrb[0].mxu0
        %v7146 = vadd.f32 %v6854, %v7145
        %v7147 = vpop.f32.mrb[0].mxu0
        %7148 = vdwg.mxu0
        %v7149 = vld [vmem:[#allocation3] sm:$0xe]
        %v7150 = vld [vmem:[#allocation3 + $0xc] sm:$0xe]
        %v7151 = vld [vmem:[#allocation3 + $0x18] sm:$0xe]
        %v7152 = vld [vmem:[#allocation3 + $0x24] sm:$0xe]
        %v7153 = vld [vmem:[#allocation3 + $0x30] sm:$0xe]
        %v7154 = vld [vmem:[#allocation3 + $0x3c] sm:$0xe]
        %v7155 = vld [vmem:[#allocation3 + $0x48] sm:$0xe]
        %v7156 = vld [vmem:[#allocation3 + $0x54] sm:$0xe]
        %v7157 = vld [vmem:[#allocation3 + $0x60] sm:$0xe]
        %v7158 = vld [vmem:[#allocation3 + $0x6c] sm:$0xe]
        %v7159 = vld [vmem:[#allocation3 + $0x78] sm:$0xe]
        %v7160 = vld [vmem:[#allocation3 + $0x84] sm:$0xe]
        %v7161 = vld [vmem:[#allocation3 + $0x90] sm:$0xe]
        %v7162 = vld [vmem:[#allocation3 + $0x9c] sm:$0xe]
        %v7163 = vld [vmem:[#allocation3 + $0xa8] sm:$0xe]
        %v7164 = vld [vmem:[#allocation3 + $0xb4] sm:$0xe]
        %v7197 = vrot.slane %v7149, 5
        %v7198 = vrot.slane %v7197, 4
        %v7199 = vrot.slane %v6163, 5
        %v7200 = vsel %vm2046, %v7198, %v7199
        %v7201 = vrot.slane %v7199, 4
        %v7202 = vrot.slane %v6195, 5
        %v7203 = vsel %vm2046, %v7201, %v7202
        %v7204 = vrot.slane %v7150, 5
        %v7205 = vrot.slane %v7204, 4
        %v7206 = vrot.slane %v6165, 5
        %v7207 = vsel %vm2046, %v7205, %v7206
        %v7208 = vrot.slane %v7206, 4
        %v7209 = vrot.slane %v6196, 5
        %v7210 = vsel %vm2046, %v7208, %v7209
        %v7211 = vrot.slane %v7151, 5
        %v7212 = vrot.slane %v7211, 4
        %v7213 = vrot.slane %v6167, 5
        %v7214 = vsel %vm2046, %v7212, %v7213
        %v7215 = vrot.slane %v7213, 4
        %v7216 = vrot.slane %v6197, 5
        %v7217 = vsel %vm2046, %v7215, %v7216
        %v7218 = vrot.slane %v7152, 5
        %v7219 = vrot.slane %v7218, 4
        %v7220 = vrot.slane %v6169, 5
        %v7221 = vsel %vm2046, %v7219, %v7220
        %v7222 = vrot.slane %v7220, 4
        %v7223 = vrot.slane %v6198, 5
        %v7224 = vsel %vm2046, %v7222, %v7223
        %v7225 = vrot.slane %v7153, 5
        %v7226 = vrot.slane %v7225, 4
        %v7227 = vrot.slane %v6171, 5
        %v7228 = vsel %vm2046, %v7226, %v7227
        %v7229 = vrot.slane %v7227, 4
        %v7230 = vrot.slane %v6199, 5
        %v7231 = vsel %vm2046, %v7229, %v7230
        %v7232 = vrot.slane %v7154, 5
        %v7233 = vrot.slane %v7232, 4
        %v7234 = vrot.slane %v6173, 5
        %v7235 = vsel %vm2046, %v7233, %v7234
        %v7236 = vrot.slane %v7234, 4
        %v7237 = vrot.slane %v6200, 5
        %v7238 = vsel %vm2046, %v7236, %v7237
        %v7239 = vrot.slane %v7155, 5
        %v7240 = vrot.slane %v7239, 4
        %v7241 = vrot.slane %v6175, 5
        %v7242 = vsel %vm2046, %v7240, %v7241
        %v7243 = vrot.slane %v7241, 4
        %v7244 = vrot.slane %v6201, 5
        %v7245 = vsel %vm2046, %v7243, %v7244
        %v7246 = vrot.slane %v7156, 5
        %v7247 = vrot.slane %v7246, 4
        %v7248 = vrot.slane %v6177, 5
        %v7249 = vsel %vm2046, %v7247, %v7248
        %v7250 = vrot.slane %v7248, 4
        %v7251 = vrot.slane %v6202, 5
        %v7252 = vsel %vm2046, %v7250, %v7251
        %v7253 = vrot.slane %v7157, 5
        %v7254 = vrot.slane %v7253, 4
        %v7255 = vrot.slane %v6179, 5
        %v7256 = vsel %vm2046, %v7254, %v7255
        %v7257 = vrot.slane %v7255, 4
        %v7258 = vrot.slane %v6203, 5
        %v7259 = vsel %vm2046, %v7257, %v7258
        %v7260 = vrot.slane %v7158, 5
        %v7261 = vrot.slane %v7260, 4
        %v7262 = vrot.slane %v6181, 5
        %v7263 = vsel %vm2046, %v7261, %v7262
        %v7264 = vrot.slane %v7262, 4
        %v7265 = vrot.slane %v6204, 5
        %v7266 = vsel %vm2046, %v7264, %v7265
        %v7267 = vrot.slane %v7159, 5
        %v7268 = vrot.slane %v7267, 4
        %v7269 = vrot.slane %v6183, 5
        %v7270 = vsel %vm2046, %v7268, %v7269
        %v7271 = vrot.slane %v7269, 4
        %v7272 = vrot.slane %v6205, 5
        %v7273 = vsel %vm2046, %v7271, %v7272
        %v7274 = vrot.slane %v7160, 5
        %v7275 = vrot.slane %v7274, 4
        %v7276 = vrot.slane %v6185, 5
        %v7277 = vsel %vm2046, %v7275, %v7276
        %v7278 = vrot.slane %v7276, 4
        %v7279 = vrot.slane %v6206, 5
        %v7280 = vsel %vm2046, %v7278, %v7279
        %v7281 = vrot.slane %v7161, 5
        %v7282 = vrot.slane %v7281, 4
        %v7283 = vrot.slane %v6187, 5
        %v7284 = vsel %vm2046, %v7282, %v7283
        %v7285 = vrot.slane %v7283, 4
        %v7286 = vrot.slane %v6207, 5
        %v7287 = vsel %vm2046, %v7285, %v7286
        %v7288 = vrot.slane %v7162, 5
        %v7289 = vrot.slane %v7288, 4
        %v7290 = vrot.slane %v6189, 5
        %v7291 = vsel %vm2046, %v7289, %v7290
        %v7292 = vrot.slane %v7290, 4
        %v7293 = vrot.slane %v6208, 5
        %v7294 = vsel %vm2046, %v7292, %v7293
        %v7295 = vrot.slane %v7163, 5
        %v7296 = vrot.slane %v7295, 4
        %v7297 = vrot.slane %v6191, 5
        %v7298 = vsel %vm2046, %v7296, %v7297
        %v7299 = vrot.slane %v7297, 4
        %v7300 = vrot.slane %v6209, 5
        %v7301 = vsel %vm2046, %v7299, %v7300
        %v7302 = vrot.slane %v7164, 5
        %v7303 = vrot.slane %v7302, 4
        %v7304 = vrot.slane %v6193, 5
        %v7305 = vsel %vm2046, %v7303, %v7304
        %v7306 = vrot.slane %v7304, 4
        %v7307 = vrot.slane %v6210, 5
        %v7308 = vsel %vm2046, %v7306, %v7307
        %s7309 = scalar_lea.vmem [#allocation10], 4
        %v7310 = vld [vmem:[%s7309] sm:$0x3]
        %v7311 = vunpack.c.l.b16 %v7200
        %v7312 = vunpack.c.l.b16 %v7203
        %v7313 = vunpack.c.l.b16 %v7207
        %v7314 = vunpack.c.l.b16 %v7210
        %v7315 = vunpack.c.l.b16 %v7214
        %v7316 = vunpack.c.l.b16 %v7217
        %v7317 = vunpack.c.l.b16 %v7221
        %v7318 = vunpack.c.l.b16 %v7224
        %v7319 = vunpack.c.l.b16 %v7228
        %v7320 = vunpack.c.l.b16 %v7231
        %v7321 = vunpack.c.l.b16 %v7235
        %v7322 = vunpack.c.l.b16 %v7238
        %v7323 = vunpack.c.l.b16 %v7242
        %v7324 = vunpack.c.l.b16 %v7245
        %v7325 = vunpack.c.l.b16 %v7249
        %v7326 = vunpack.c.l.b16 %v7252
        %v7327 = vunpack.c.l.b16 %v7256
        %v7328 = vunpack.c.l.b16 %v7259
        %v7329 = vunpack.c.l.b16 %v7263
        %v7330 = vunpack.c.l.b16 %v7266
        %v7331 = vunpack.c.l.b16 %v7270
        %v7332 = vunpack.c.l.b16 %v7273
        %v7333 = vunpack.c.l.b16 %v7277
        %v7334 = vunpack.c.l.b16 %v7280
        %v7335 = vunpack.c.l.b16 %v7284
        %v7336 = vunpack.c.l.b16 %v7287
        %v7337 = vunpack.c.l.b16 %v7291
        %v7338 = vunpack.c.l.b16 %v7294
        %v7339 = vunpack.c.l.b16 %v7298
        %v7340 = vunpack.c.l.b16 %v7301
        %v7341 = vunpack.c.l.b16 %v7305
        %v7342 = vunpack.c.l.b16 %v7308
        %v7343 = vpack.c.b16 %v7312, %v7311
        %v7344 = vpack.c.b16 %v7314, %v7313
        %v7345 = vpack.c.b16 %v7316, %v7315
        %v7346 = vpack.c.b16 %v7318, %v7317
        %v7347 = vpack.c.b16 %v7320, %v7319
        %v7348 = vpack.c.b16 %v7322, %v7321
        %v7349 = vpack.c.b16 %v7324, %v7323
        %v7350 = vpack.c.b16 %v7326, %v7325
        %v7351 = vpack.c.b16 %v7328, %v7327
        %v7352 = vpack.c.b16 %v7330, %v7329
        %v7353 = vpack.c.b16 %v7332, %v7331
        %v7354 = vpack.c.b16 %v7334, %v7333
        %v7355 = vpack.c.b16 %v7336, %v7335
        %v7356 = vpack.c.b16 %v7338, %v7337
        %v7357 = vpack.c.b16 %v7340, %v7339
        %v7358 = vpack.c.b16 %v7342, %v7341
        %v7360 = vsel %vm1490, %v7343, 0
        %v7363 = vsel %vm1490, %v7344, 0
        %v7366 = vsel %vm1490, %v7345, 0
        %v7369 = vsel %vm1490, %v7346, 0
        %v7372 = vsel %vm1490, %v7347, 0
        %v7375 = vsel %vm1490, %v7348, 0
        %v7378 = vsel %vm1490, %v7349, 0
        %v7381 = vsel %vm1490, %v7350, 0
        %v7384 = vsel %vm1490, %v7351, 0
        %v7387 = vsel %vm1490, %v7352, 0
        %v7390 = vsel %vm1490, %v7353, 0
        %v7393 = vsel %vm1490, %v7354, 0
        %v7396 = vsel %vm1490, %v7355, 0
        %v7399 = vsel %vm1490, %v7356, 0
        %v7402 = vsel %vm1490, %v7357, 0
        %v7405 = vsel %vm1490, %v7358, 0
        %v7408 = vsel %vm1539, %v7310, 0
        %7410 = vmatprep.subr.bf16.mxu0 0
        %7411 = vmatpush1.bf16.msra.mxu0 %v7408
        %7412 = vmatprep.subr.bf16.mxu0 0
        %7413 = vmatpush1.bf16.msra.mxu0 0
        %7414 = vmatprep.subr.bf16.mxu0 0
        %7415 = vmatpush1.bf16.msra.mxu0 0
        %7416 = vmatprep.subr.bf16.mxu0 0
        %7417 = vmatpush1.bf16.msra.mxu0 0
        %7418 = vmatprep.subr.bf16.mxu0 0
        %7419 = vmatpush1.bf16.msra.mxu0 0
        %7420 = vmatprep.subr.bf16.mxu0 0
        %7421 = vmatpush1.bf16.msra.mxu0 0
        %7422 = vmatprep.subr.bf16.mxu0 0
        %7423 = vmatpush1.bf16.msra.mxu0 0
        %7424 = vmatprep.subr.bf16.mxu0 0
        %7425 = vmatpush1.bf16.msra.mxu0 0
        %7426 = vmatprep.subr.bf16.mxu0 0
        %7427 = vmatpush1.bf16.msra.mxu0 0
        %7428 = vmatprep.subr.bf16.mxu0 0
        %7429 = vmatpush1.bf16.msra.mxu0 0
        %7430 = vmatprep.subr.bf16.mxu0 0
        %7431 = vmatpush1.bf16.msra.mxu0 0
        %7432 = vmatprep.subr.bf16.mxu0 0
        %7433 = vmatpush1.bf16.msra.mxu0 0
        %7434 = vmatprep.subr.bf16.mxu0 0
        %7435 = vmatpush1.bf16.msra.mxu0 0
        %7436 = vmatprep.subr.bf16.mxu0 0
        %7437 = vmatpush1.bf16.msra.mxu0 0
        %7438 = vmatprep.subr.bf16.mxu0 0
        %7439 = vmatpush1.bf16.msra.mxu0 0
        %7440 = vmatprep.subr.bf16.mxu0 0
        %7441 = vmatpush1.bf16.msra.mxu0 0
        %7442 = vmatprep.mubr.bf16.mxu0 0
        %7443 = vmatmul.mubr.bf16.gmra.mrb[0].mxu0 %v7360
        %v7444 = vpop.f32.mrb[0].mxu0
        %v7445 = vadd.f32 0.0, %v7444
        %v7446 = vpop.f32.mrb[0].mxu0
        %v7447 = vpop.f32.mrb[0].mxu0
        %v7448 = vadd.f32 0.0, %v7447
        %v7449 = vpop.f32.mrb[0].mxu0
        %7450 = vmatprep.mubr.bf16.mxu0 0
        %7451 = vmatmul.mubr.bf16.gmra.mrb[0].mxu0 %v7363
        %v7452 = vpop.f32.mrb[0].mxu0
        %v7453 = vadd.f32 0.0, %v7452
        %v7454 = vpop.f32.mrb[0].mxu0
        %v7455 = vpop.f32.mrb[0].mxu0
        %v7456 = vadd.f32 0.0, %v7455
        %v7457 = vpop.f32.mrb[0].mxu0
        %7458 = vmatprep.mubr.bf16.mxu0 0
        %7459 = vmatmul.mubr.bf16.gmra.mrb[0].mxu0 %v7366
        %v7460 = vpop.f32.mrb[0].mxu0
        %v7461 = vadd.f32 0.0, %v7460
        %v7462 = vpop.f32.mrb[0].mxu0
        %v7463 = vpop.f32.mrb[0].mxu0
        %v7464 = vadd.f32 0.0, %v7463
        %v7465 = vpop.f32.mrb[0].mxu0
        %7466 = vmatprep.mubr.bf16.mxu0 0
        %7467 = vmatmul.mubr.bf16.gmra.mrb[0].mxu0 %v7369
        %v7468 = vpop.f32.mrb[0].mxu0
        %v7469 = vadd.f32 0.0, %v7468
        %v7470 = vpop.f32.mrb[0].mxu0
        %v7471 = vpop.f32.mrb[0].mxu0
        %v7472 = vadd.f32 0.0, %v7471
        %v7473 = vpop.f32.mrb[0].mxu0
        %7474 = vmatprep.mubr.bf16.mxu0 0
        %7475 = vmatmul.mubr.bf16.gmra.mrb[0].mxu0 %v7372
        %v7476 = vpop.f32.mrb[0].mxu0
        %v7477 = vadd.f32 0.0, %v7476
        %v7478 = vpop.f32.mrb[0].mxu0
        %v7479 = vpop.f32.mrb[0].mxu0
        %v7480 = vadd.f32 0.0, %v7479
        %v7481 = vpop.f32.mrb[0].mxu0
        %7482 = vmatprep.mubr.bf16.mxu0 0
        %7483 = vmatmul.mubr.bf16.gmra.mrb[0].mxu0 %v7375
        %v7484 = vpop.f32.mrb[0].mxu0
        %v7485 = vadd.f32 0.0, %v7484
        %v7486 = vpop.f32.mrb[0].mxu0
        %v7487 = vpop.f32.mrb[0].mxu0
        %v7488 = vadd.f32 0.0, %v7487
        %v7489 = vpop.f32.mrb[0].mxu0
        %7490 = vmatprep.mubr.bf16.mxu0 0
        %7491 = vmatmul.mubr.bf16.gmra.mrb[0].mxu0 %v7378
        %v7492 = vpop.f32.mrb[0].mxu0
        %v7493 = vadd.f32 0.0, %v7492
        %v7494 = vpop.f32.mrb[0].mxu0
        %v7495 = vpop.f32.mrb[0].mxu0
        %v7496 = vadd.f32 0.0, %v7495
        %v7497 = vpop.f32.mrb[0].mxu0
        %7498 = vmatprep.mubr.bf16.mxu0 0
        %7499 = vmatmul.mubr.bf16.gmra.mrb[0].mxu0 %v7381
        %v7500 = vpop.f32.mrb[0].mxu0
        %v7501 = vadd.f32 0.0, %v7500
        %v7502 = vpop.f32.mrb[0].mxu0
        %v7503 = vpop.f32.mrb[0].mxu0
        %v7504 = vadd.f32 0.0, %v7503
        %v7505 = vpop.f32.mrb[0].mxu0
        %7506 = vmatprep.mubr.bf16.mxu0 0
        %7507 = vmatmul.mubr.bf16.gmra.mrb[0].mxu0 %v7384
        %v7508 = vpop.f32.mrb[0].mxu0
        %v7509 = vadd.f32 0.0, %v7508
        %v7510 = vpop.f32.mrb[0].mxu0
        %v7511 = vpop.f32.mrb[0].mxu0
        %v7512 = vadd.f32 0.0, %v7511
        %v7513 = vpop.f32.mrb[0].mxu0
        %7514 = vmatprep.mubr.bf16.mxu0 0
        %7515 = vmatmul.mubr.bf16.gmra.mrb[0].mxu0 %v7387
        %v7516 = vpop.f32.mrb[0].mxu0
        %v7517 = vadd.f32 0.0, %v7516
        %v7518 = vpop.f32.mrb[0].mxu0
        %v7519 = vpop.f32.mrb[0].mxu0
        %v7520 = vadd.f32 0.0, %v7519
        %v7521 = vpop.f32.mrb[0].mxu0
        %7522 = vmatprep.mubr.bf16.mxu0 0
        %7523 = vmatmul.mubr.bf16.gmra.mrb[0].mxu0 %v7390
        %v7524 = vpop.f32.mrb[0].mxu0
        %v7525 = vadd.f32 0.0, %v7524
        %v7526 = vpop.f32.mrb[0].mxu0
        %v7527 = vpop.f32.mrb[0].mxu0
        %v7528 = vadd.f32 0.0, %v7527
        %v7529 = vpop.f32.mrb[0].mxu0
        %7530 = vmatprep.mubr.bf16.mxu0 0
        %7531 = vmatmul.mubr.bf16.gmra.mrb[0].mxu0 %v7393
        %v7532 = vpop.f32.mrb[0].mxu0
        %v7533 = vadd.f32 0.0, %v7532
        %v7534 = vpop.f32.mrb[0].mxu0
        %v7535 = vpop.f32.mrb[0].mxu0
        %v7536 = vadd.f32 0.0, %v7535
        %v7537 = vpop.f32.mrb[0].mxu0
        %7538 = vmatprep.mubr.bf16.mxu0 0
        %7539 = vmatmul.mubr.bf16.gmra.mrb[0].mxu0 %v7396
        %v7540 = vpop.f32.mrb[0].mxu0
        %v7541 = vadd.f32 0.0, %v7540
        %v7542 = vpop.f32.mrb[0].mxu0
        %v7543 = vpop.f32.mrb[0].mxu0
        %v7544 = vadd.f32 0.0, %v7543
        %v7545 = vpop.f32.mrb[0].mxu0
        %7546 = vmatprep.mubr.bf16.mxu0 0
        %7547 = vmatmul.mubr.bf16.gmra.mrb[0].mxu0 %v7399
        %v7548 = vpop.f32.mrb[0].mxu0
        %v7549 = vadd.f32 0.0, %v7548
        %v7550 = vpop.f32.mrb[0].mxu0
        %v7551 = vpop.f32.mrb[0].mxu0
        %v7552 = vadd.f32 0.0, %v7551
        %v7553 = vpop.f32.mrb[0].mxu0
        %7554 = vmatprep.mubr.bf16.mxu0 0
        %7555 = vmatmul.mubr.bf16.gmra.mrb[0].mxu0 %v7402
        %v7556 = vpop.f32.mrb[0].mxu0
        %v7557 = vadd.f32 0.0, %v7556
        %v7558 = vpop.f32.mrb[0].mxu0
        %v7559 = vpop.f32.mrb[0].mxu0
        %v7560 = vadd.f32 0.0, %v7559
        %v7561 = vpop.f32.mrb[0].mxu0
        %7562 = vmatprep.mubr.bf16.mxu0 0
        %7563 = vmatmul.mubr.bf16.gmra.mrb[0].mxu0 %v7405
        %v7564 = vpop.f32.mrb[0].mxu0
        %v7565 = vadd.f32 0.0, %v7564
        %v7566 = vpop.f32.mrb[0].mxu0
        %v7567 = vpop.f32.mrb[0].mxu0
        %v7568 = vadd.f32 0.0, %v7567
        %v7569 = vpop.f32.mrb[0].mxu0
        %7570 = vdwg.mxu0
        %v7571 = vadd.f32 %v7023, %v7445
        %v7572 = vadd.f32 %v7026, %v7448
        %v7573 = vadd.f32 %v7031, %v7453
        %v7574 = vadd.f32 %v7034, %v7456
        %v7575 = vadd.f32 %v7039, %v7461
        %v7576 = vadd.f32 %v7042, %v7464
        %v7577 = vadd.f32 %v7047, %v7469
        %v7578 = vadd.f32 %v7050, %v7472
        %v7579 = vadd.f32 %v7055, %v7477
        %v7580 = vadd.f32 %v7058, %v7480
        %v7581 = vadd.f32 %v7063, %v7485
        %v7582 = vadd.f32 %v7066, %v7488
        %v7583 = vadd.f32 %v7071, %v7493
        %v7584 = vadd.f32 %v7074, %v7496
        %v7585 = vadd.f32 %v7079, %v7501
        %v7586 = vadd.f32 %v7082, %v7504
        %v7587 = vadd.f32 %v7087, %v7509
        %v7588 = vadd.f32 %v7090, %v7512
        %v7589 = vadd.f32 %v7095, %v7517
        %v7590 = vadd.f32 %v7098, %v7520
        %v7591 = vadd.f32 %v7103, %v7525
        %v7592 = vadd.f32 %v7106, %v7528
        %v7593 = vadd.f32 %v7111, %v7533
        %v7594 = vadd.f32 %v7114, %v7536
        %v7595 = vadd.f32 %v7119, %v7541
        %v7596 = vadd.f32 %v7122, %v7544
        %v7597 = vadd.f32 %v7127, %v7549
        %v7598 = vadd.f32 %v7130, %v7552
        %v7599 = vadd.f32 %v7135, %v7557
        %v7600 = vadd.f32 %v7138, %v7560
        %v7601 = vadd.f32 %v7143, %v7565
        %v7602 = vadd.f32 %v7146, %v7568
        %v7603 = vld [vmem:[%s6049] sm:$0xf]
        %v7604 = vld [vmem:[%s6049 + $0x4] sm:$0xf]
        %v7605 = vld [vmem:[%s6049 + $0xc] sm:$0xf]
        %v7606 = vld [vmem:[%s6049 + $0x10] sm:$0xf]
        %v7607 = vld [vmem:[%s6049 + $0x18] sm:$0xf]
        %v7608 = vld [vmem:[%s6049 + $0x1c] sm:$0xf]
        %v7609 = vld [vmem:[%s6049 + $0x24] sm:$0xf]
        %v7610 = vld [vmem:[%s6049 + $0x28] sm:$0xf]
        %v7611 = vld [vmem:[%s6049 + $0x30] sm:$0xf]
        %v7612 = vld [vmem:[%s6049 + $0x34] sm:$0xf]
        %v7613 = vld [vmem:[%s6049 + $0x3c] sm:$0xf]
        %v7614 = vld [vmem:[%s6049 + $0x40] sm:$0xf]
        %v7615 = vld [vmem:[%s6049 + $0x48] sm:$0xf]
        %v7616 = vld [vmem:[%s6049 + $0x4c] sm:$0xf]
        %v7617 = vld [vmem:[%s6049 + $0x54] sm:$0xf]
        %v7618 = vld [vmem:[%s6049 + $0x58] sm:$0xf]
        %v7619 = vld [vmem:[%s6049 + $0x60] sm:$0xf]
        %v7620 = vld [vmem:[%s6049 + $0x64] sm:$0xf]
        %v7621 = vld [vmem:[%s6049 + $0x6c] sm:$0xf]
        %v7622 = vld [vmem:[%s6049 + $0x70] sm:$0xf]
        %v7623 = vld [vmem:[%s6049 + $0x78] sm:$0xf]
        %v7624 = vld [vmem:[%s6049 + $0x7c] sm:$0xf]
        %v7625 = vld [vmem:[%s6049 + $0x84] sm:$0xf]
        %v7626 = vld [vmem:[%s6049 + $0x88] sm:$0xf]
        %v7627 = vld [vmem:[%s6049 + $0x90] sm:$0xf]
        %v7628 = vld [vmem:[%s6049 + $0x94] sm:$0xf]
        %v7629 = vld [vmem:[%s6049 + $0x9c] sm:$0xf]
        %v7630 = vld [vmem:[%s6049 + $0xa0] sm:$0xf]
        %v7631 = vld [vmem:[%s6049 + $0xa8] sm:$0xf]
        %v7632 = vld [vmem:[%s6049 + $0xac] sm:$0xf]
        %v7633 = vld [vmem:[%s6049 + $0xb4] sm:$0xf]
        %v7634 = vld [vmem:[%s6049 + $0xb8] sm:$0xf]
        %s7635 = scalar_lea.vmem [#allocation10], 6
        %v7636 = vld [vmem:[%s7635] sm:$0x3]
        %v7669 = vunpack.c.l.b16 %v7603
        %v7670 = vunpack.c.l.b16 %v7604
        %v7671 = vunpack.c.l.b16 %v7605
        %v7672 = vunpack.c.l.b16 %v7606
        %v7673 = vunpack.c.l.b16 %v7607
        %v7674 = vunpack.c.l.b16 %v7608
        %v7675 = vunpack.c.l.b16 %v7609
        %v7676 = vunpack.c.l.b16 %v7610
        %v7677 = vunpack.c.l.b16 %v7611
        %v7678 = vunpack.c.l.b16 %v7612
        %v7679 = vunpack.c.l.b16 %v7613
        %v7680 = vunpack.c.l.b16 %v7614
        %v7681 = vunpack.c.l.b16 %v7615
        %v7682 = vunpack.c.l.b16 %v7616
        %v7683 = vunpack.c.l.b16 %v7617
        %v7684 = vunpack.c.l.b16 %v7618
        %v7685 = vunpack.c.l.b16 %v7619
        %v7686 = vunpack.c.l.b16 %v7620
        %v7687 = vunpack.c.l.b16 %v7621
        %v7688 = vunpack.c.l.b16 %v7622
        %v7689 = vunpack.c.l.b16 %v7623
        %v7690 = vunpack.c.l.b16 %v7624
        %v7691 = vunpack.c.l.b16 %v7625
        %v7692 = vunpack.c.l.b16 %v7626
        %v7693 = vunpack.c.l.b16 %v7627
        %v7694 = vunpack.c.l.b16 %v7628
        %v7695 = vunpack.c.l.b16 %v7629
        %v7696 = vunpack.c.l.b16 %v7630
        %v7697 = vunpack.c.l.b16 %v7631
        %v7698 = vunpack.c.l.b16 %v7632
        %v7699 = vunpack.c.l.b16 %v7633
        %v7700 = vunpack.c.l.b16 %v7634
        %v7701 = vpack.c.b16 %v7670, %v7669
        %v7702 = vpack.c.b16 %v7672, %v7671
        %v7703 = vpack.c.b16 %v7674, %v7673
        %v7704 = vpack.c.b16 %v7676, %v7675
        %v7705 = vpack.c.b16 %v7678, %v7677
        %v7706 = vpack.c.b16 %v7680, %v7679
        %v7707 = vpack.c.b16 %v7682, %v7681
        %v7708 = vpack.c.b16 %v7684, %v7683
        %v7709 = vpack.c.b16 %v7686, %v7685
        %v7710 = vpack.c.b16 %v7688, %v7687
        %v7711 = vpack.c.b16 %v7690, %v7689
        %v7712 = vpack.c.b16 %v7692, %v7691
        %v7713 = vpack.c.b16 %v7694, %v7693
        %v7714 = vpack.c.b16 %v7696, %v7695
        %v7715 = vpack.c.b16 %v7698, %v7697
        %v7716 = vpack.c.b16 %v7700, %v7699
        %v7718 = vsel %vm1490, %v7701, 0
        %v7721 = vsel %vm1490, %v7702, 0
        %v7724 = vsel %vm1490, %v7703, 0
        %v7727 = vsel %vm1490, %v7704, 0
        %v7730 = vsel %vm1490, %v7705, 0
        %v7733 = vsel %vm1490, %v7706, 0
        %v7736 = vsel %vm1490, %v7707, 0
        %v7739 = vsel %vm1490, %v7708, 0
        %v7742 = vsel %vm1490, %v7709, 0
        %v7745 = vsel %vm1490, %v7710, 0
        %v7748 = vsel %vm1490, %v7711, 0
        %v7751 = vsel %vm1490, %v7712, 0
        %v7754 = vsel %vm1490, %v7713, 0
        %v7757 = vsel %vm1490, %v7714, 0
        %v7760 = vsel %vm1490, %v7715, 0
        %v7763 = vsel %vm1490, %v7716, 0
        %v7766 = vsel %vm1539, %v7636, 0
        %7768 = vmatprep.subr.bf16.mxu0 0
        %7769 = vmatpush1.bf16.msra.mxu0 %v7766
        %7770 = vmatprep.subr.bf16.mxu0 0
        %7771 = vmatpush1.bf16.msra.mxu0 0
        %7772 = vmatprep.subr.bf16.mxu0 0
        %7773 = vmatpush1.bf16.msra.mxu0 0
        %7774 = vmatprep.subr.bf16.mxu0 0
        %7775 = vmatpush1.bf16.msra.mxu0 0
        %7776 = vmatprep.subr.bf16.mxu0 0
        %7777 = vmatpush1.bf16.msra.mxu0 0
        %7778 = vmatprep.subr.bf16.mxu0 0
        %7779 = vmatpush1.bf16.msra.mxu0 0
        %7780 = vmatprep.subr.bf16.mxu0 0
        %7781 = vmatpush1.bf16.msra.mxu0 0
        %7782 = vmatprep.subr.bf16.mxu0 0
        %7783 = vmatpush1.bf16.msra.mxu0 0
        %7784 = vmatprep.subr.bf16.mxu0 0
        %7785 = vmatpush1.bf16.msra.mxu0 0
        %7786 = vmatprep.subr.bf16.mxu0 0
        %7787 = vmatpush1.bf16.msra.mxu0 0
        %7788 = vmatprep.subr.bf16.mxu0 0
        %7789 = vmatpush1.bf16.msra.mxu0 0
        %7790 = vmatprep.subr.bf16.mxu0 0
        %7791 = vmatpush1.bf16.msra.mxu0 0
        %7792 = vmatprep.subr.bf16.mxu0 0
        %7793 = vmatpush1.bf16.msra.mxu0 0
        %7794 = vmatprep.subr.bf16.mxu0 0
        %7795 = vmatpush1.bf16.msra.mxu0 0
        %7796 = vmatprep.subr.bf16.mxu0 0
        %7797 = vmatpush1.bf16.msra.mxu0 0
        %7798 = vmatprep.subr.bf16.mxu0 0
        %7799 = vmatpush1.bf16.msra.mxu0 0
        %7800 = vmatprep.mubr.bf16.mxu0 0
        %7801 = vmatmul.mubr.bf16.gmra.mrb[0].mxu0 %v7718
        %v7802 = vpop.f32.mrb[0].mxu0
        %v7803 = vadd.f32 0.0, %v7802
        %v7804 = vpop.f32.mrb[0].mxu0
        %v7805 = vpop.f32.mrb[0].mxu0
        %v7806 = vadd.f32 0.0, %v7805
        %v7807 = vpop.f32.mrb[0].mxu0
        %7808 = vmatprep.mubr.bf16.mxu0 0
        %7809 = vmatmul.mubr.bf16.gmra.mrb[0].mxu0 %v7721
        %v7810 = vpop.f32.mrb[0].mxu0
        %v7811 = vadd.f32 0.0, %v7810
        %v7812 = vpop.f32.mrb[0].mxu0
        %v7813 = vpop.f32.mrb[0].mxu0
        %v7814 = vadd.f32 0.0, %v7813
        %v7815 = vpop.f32.mrb[0].mxu0
        %7816 = vmatprep.mubr.bf16.mxu0 0
        %7817 = vmatmul.mubr.bf16.gmra.mrb[0].mxu0 %v7724
        %v7818 = vpop.f32.mrb[0].mxu0
        %v7819 = vadd.f32 0.0, %v7818
        %v7820 = vpop.f32.mrb[0].mxu0
        %v7821 = vpop.f32.mrb[0].mxu0
        %v7822 = vadd.f32 0.0, %v7821
        %v7823 = vpop.f32.mrb[0].mxu0
        %7824 = vmatprep.mubr.bf16.mxu0 0
        %7825 = vmatmul.mubr.bf16.gmra.mrb[0].mxu0 %v7727
        %v7826 = vpop.f32.mrb[0].mxu0
        %v7827 = vadd.f32 0.0, %v7826
        %v7828 = vpop.f32.mrb[0].mxu0
        %v7829 = vpop.f32.mrb[0].mxu0
        %v7830 = vadd.f32 0.0, %v7829
        %v7831 = vpop.f32.mrb[0].mxu0
        %7832 = vmatprep.mubr.bf16.mxu0 0
        %7833 = vmatmul.mubr.bf16.gmra.mrb[0].mxu0 %v7730
        %v7834 = vpop.f32.mrb[0].mxu0
        %v7835 = vadd.f32 0.0, %v7834
        %v7836 = vpop.f32.mrb[0].mxu0
        %v7837 = vpop.f32.mrb[0].mxu0
        %v7838 = vadd.f32 0.0, %v7837
        %v7839 = vpop.f32.mrb[0].mxu0
        %7840 = vmatprep.mubr.bf16.mxu0 0
        %7841 = vmatmul.mubr.bf16.gmra.mrb[0].mxu0 %v7733
        %v7842 = vpop.f32.mrb[0].mxu0
        %v7843 = vadd.f32 0.0, %v7842
        %v7844 = vpop.f32.mrb[0].mxu0
        %v7845 = vpop.f32.mrb[0].mxu0
        %v7846 = vadd.f32 0.0, %v7845
        %v7847 = vpop.f32.mrb[0].mxu0
        %7848 = vmatprep.mubr.bf16.mxu0 0
        %7849 = vmatmul.mubr.bf16.gmra.mrb[0].mxu0 %v7736
        %v7850 = vpop.f32.mrb[0].mxu0
        %v7851 = vadd.f32 0.0, %v7850
        %v7852 = vpop.f32.mrb[0].mxu0
        %v7853 = vpop.f32.mrb[0].mxu0
        %v7854 = vadd.f32 0.0, %v7853
        %v7855 = vpop.f32.mrb[0].mxu0
        %7856 = vmatprep.mubr.bf16.mxu0 0
        %7857 = vmatmul.mubr.bf16.gmra.mrb[0].mxu0 %v7739
        %v7858 = vpop.f32.mrb[0].mxu0
        %v7859 = vadd.f32 0.0, %v7858
        %v7860 = vpop.f32.mrb[0].mxu0
        %v7861 = vpop.f32.mrb[0].mxu0
        %v7862 = vadd.f32 0.0, %v7861
        %v7863 = vpop.f32.mrb[0].mxu0
        %7864 = vmatprep.mubr.bf16.mxu0 0
        %7865 = vmatmul.mubr.bf16.gmra.mrb[0].mxu0 %v7742
        %v7866 = vpop.f32.mrb[0].mxu0
        %v7867 = vadd.f32 0.0, %v7866
        %v7868 = vpop.f32.mrb[0].mxu0
        %v7869 = vpop.f32.mrb[0].mxu0
        %v7870 = vadd.f32 0.0, %v7869
        %v7871 = vpop.f32.mrb[0].mxu0
        %7872 = vmatprep.mubr.bf16.mxu0 0
        %7873 = vmatmul.mubr.bf16.gmra.mrb[0].mxu0 %v7745
        %v7874 = vpop.f32.mrb[0].mxu0
        %v7875 = vadd.f32 0.0, %v7874
        %v7876 = vpop.f32.mrb[0].mxu0
        %v7877 = vpop.f32.mrb[0].mxu0
        %v7878 = vadd.f32 0.0, %v7877
        %v7879 = vpop.f32.mrb[0].mxu0
        %7880 = vmatprep.mubr.bf16.mxu0 0
        %7881 = vmatmul.mubr.bf16.gmra.mrb[0].mxu0 %v7748
        %v7882 = vpop.f32.mrb[0].mxu0
        %v7883 = vadd.f32 0.0, %v7882
        %v7884 = vpop.f32.mrb[0].mxu0
        %v7885 = vpop.f32.mrb[0].mxu0
        %v7886 = vadd.f32 0.0, %v7885
        %v7887 = vpop.f32.mrb[0].mxu0
        %7888 = vmatprep.mubr.bf16.mxu0 0
        %7889 = vmatmul.mubr.bf16.gmra.mrb[0].mxu0 %v7751
        %v7890 = vpop.f32.mrb[0].mxu0
        %v7891 = vadd.f32 0.0, %v7890
        %v7892 = vpop.f32.mrb[0].mxu0
        %v7893 = vpop.f32.mrb[0].mxu0
        %v7894 = vadd.f32 0.0, %v7893
        %v7895 = vpop.f32.mrb[0].mxu0
        %7896 = vmatprep.mubr.bf16.mxu0 0
        %7897 = vmatmul.mubr.bf16.gmra.mrb[0].mxu0 %v7754
        %v7898 = vpop.f32.mrb[0].mxu0
        %v7899 = vadd.f32 0.0, %v7898
        %v7900 = vpop.f32.mrb[0].mxu0
        %v7901 = vpop.f32.mrb[0].mxu0
        %v7902 = vadd.f32 0.0, %v7901
        %v7903 = vpop.f32.mrb[0].mxu0
        %7904 = vmatprep.mubr.bf16.mxu0 0
        %7905 = vmatmul.mubr.bf16.gmra.mrb[0].mxu0 %v7757
        %v7906 = vpop.f32.mrb[0].mxu0
        %v7907 = vadd.f32 0.0, %v7906
        %v7908 = vpop.f32.mrb[0].mxu0
        %v7909 = vpop.f32.mrb[0].mxu0
        %v7910 = vadd.f32 0.0, %v7909
        %v7911 = vpop.f32.mrb[0].mxu0
        %7912 = vmatprep.mubr.bf16.mxu0 0
        %7913 = vmatmul.mubr.bf16.gmra.mrb[0].mxu0 %v7760
        %v7914 = vpop.f32.mrb[0].mxu0
        %v7915 = vadd.f32 0.0, %v7914
        %v7916 = vpop.f32.mrb[0].mxu0
        %v7917 = vpop.f32.mrb[0].mxu0
        %v7918 = vadd.f32 0.0, %v7917
        %v7919 = vpop.f32.mrb[0].mxu0
        %7920 = vmatprep.mubr.bf16.mxu0 0
        %7921 = vmatmul.mubr.bf16.gmra.mrb[0].mxu0 %v7763
        %v7922 = vpop.f32.mrb[0].mxu0
        %v7923 = vadd.f32 0.0, %v7922
        %v7924 = vpop.f32.mrb[0].mxu0
        %v7925 = vpop.f32.mrb[0].mxu0
        %v7926 = vadd.f32 0.0, %v7925
        %v7927 = vpop.f32.mrb[0].mxu0
        %7928 = vdwg.mxu0
        %v7929 = vadd.f32 %v7571, %v7803
        %v7930 = vadd.f32 %v7572, %v7806
        %v7931 = vadd.f32 %v7573, %v7811
        %v7932 = vadd.f32 %v7574, %v7814
        %v7933 = vadd.f32 %v7575, %v7819
        %v7934 = vadd.f32 %v7576, %v7822
        %v7935 = vadd.f32 %v7577, %v7827
        %v7936 = vadd.f32 %v7578, %v7830
        %v7937 = vadd.f32 %v7579, %v7835
        %v7938 = vadd.f32 %v7580, %v7838
        %v7939 = vadd.f32 %v7581, %v7843
        %v7940 = vadd.f32 %v7582, %v7846
        %v7941 = vadd.f32 %v7583, %v7851
        %v7942 = vadd.f32 %v7584, %v7854
        %v7943 = vadd.f32 %v7585, %v7859
        %v7944 = vadd.f32 %v7586, %v7862
        %v7945 = vadd.f32 %v7587, %v7867
        %v7946 = vadd.f32 %v7588, %v7870
        %v7947 = vadd.f32 %v7589, %v7875
        %v7948 = vadd.f32 %v7590, %v7878
        %v7949 = vadd.f32 %v7591, %v7883
        %v7950 = vadd.f32 %v7592, %v7886
        %v7951 = vadd.f32 %v7593, %v7891
        %v7952 = vadd.f32 %v7594, %v7894
        %v7953 = vadd.f32 %v7595, %v7899
        %v7954 = vadd.f32 %v7596, %v7902
        %v7955 = vadd.f32 %v7597, %v7907
        %v7956 = vadd.f32 %v7598, %v7910
        %v7957 = vadd.f32 %v7599, %v7915
        %v7958 = vadd.f32 %v7600, %v7918
        %v7959 = vadd.f32 %v7601, %v7923
        %v7960 = vadd.f32 %v7602, %v7926
        %v7961 = vld [vmem:[%s6049] sm:$0xf]
        %v7962 = vld [vmem:[%s6049 + $0x4] sm:$0xf]
        %v7963 = vld [vmem:[%s6049 + $0x8] sm:$0x1]
        %v7964 = vld [vmem:[%s6049 + $0xc] sm:$0xf]
        %v7965 = vld [vmem:[%s6049 + $0x10] sm:$0xf]
        %v7966 = vld [vmem:[%s6049 + $0x14] sm:$0x1]
        %v7967 = vld [vmem:[%s6049 + $0x18] sm:$0xf]
        %v7968 = vld [vmem:[%s6049 + $0x1c] sm:$0xf]
        %v7969 = vld [vmem:[%s6049 + $0x20] sm:$0x1]
        %v7970 = vld [vmem:[%s6049 + $0x24] sm:$0xf]
        %v7971 = vld [vmem:[%s6049 + $0x28] sm:$0xf]
        %v7972 = vld [vmem:[%s6049 + $0x2c] sm:$0x1]
        %v7973 = vld [vmem:[%s6049 + $0x30] sm:$0xf]
        %v7974 = vld [vmem:[%s6049 + $0x34] sm:$0xf]
        %v7975 = vld [vmem:[%s6049 + $0x38] sm:$0x1]
        %v7976 = vld [vmem:[%s6049 + $0x3c] sm:$0xf]
        %v7977 = vld [vmem:[%s6049 + $0x40] sm:$0xf]
        %v7978 = vld [vmem:[%s6049 + $0x44] sm:$0x1]
        %v7979 = vld [vmem:[%s6049 + $0x48] sm:$0xf]
        %v7980 = vld [vmem:[%s6049 + $0x4c] sm:$0xf]
        %v7981 = vld [vmem:[%s6049 + $0x50] sm:$0x1]
        %v7982 = vld [vmem:[%s6049 + $0x54] sm:$0xf]
        %v7983 = vld [vmem:[%s6049 + $0x58] sm:$0xf]
        %v7984 = vld [vmem:[%s6049 + $0x5c] sm:$0x1]
        %v7985 = vld [vmem:[%s6049 + $0x60] sm:$0xf]
        %v7986 = vld [vmem:[%s6049 + $0x64] sm:$0xf]
        %v7987 = vld [vmem:[%s6049 + $0x68] sm:$0x1]
        %v7988 = vld [vmem:[%s6049 + $0x6c] sm:$0xf]
        %v7989 = vld [vmem:[%s6049 + $0x70] sm:$0xf]
        %v7990 = vld [vmem:[%s6049 + $0x74] sm:$0x1]
        %v7991 = vld [vmem:[%s6049 + $0x78] sm:$0xf]
        %v7992 = vld [vmem:[%s6049 + $0x7c] sm:$0xf]
        %v7993 = vld [vmem:[%s6049 + $0x80] sm:$0x1]
        %v7994 = vld [vmem:[%s6049 + $0x84] sm:$0xf]
        %v7995 = vld [vmem:[%s6049 + $0x88] sm:$0xf]
        %v7996 = vld [vmem:[%s6049 + $0x8c] sm:$0x1]
        %v7997 = vld [vmem:[%s6049 + $0x90] sm:$0xf]
        %v7998 = vld [vmem:[%s6049 + $0x94] sm:$0xf]
        %v7999 = vld [vmem:[%s6049 + $0x98] sm:$0x1]
        %v8000 = vld [vmem:[%s6049 + $0x9c] sm:$0xf]
        %v8001 = vld [vmem:[%s6049 + $0xa0] sm:$0xf]
        %v8002 = vld [vmem:[%s6049 + $0xa4] sm:$0x1]
        %v8003 = vld [vmem:[%s6049 + $0xa8] sm:$0xf]
        %v8004 = vld [vmem:[%s6049 + $0xac] sm:$0xf]
        %v8005 = vld [vmem:[%s6049 + $0xb0] sm:$0x1]
        %v8006 = vld [vmem:[%s6049 + $0xb4] sm:$0xf]
        %v8007 = vld [vmem:[%s6049 + $0xb8] sm:$0xf]
        %v8008 = vld [vmem:[%s6049 + $0xbc] sm:$0x1]
        %v8010 = vshrl.u32 %v7961, 16
        %v8012 = vrot.slane %v8010, 4
        %v8013 = vshll.u32 %v7961, 16
        %v8015 = vrot.slane %v8013, 5
        %v8016 = vor.u32 %v8012, %v8015
        %v8017 = vrot.slane %v8016, 4
        %v8019 = vshll.u32 %v7962, 16
        %v8021 = vrot.slane %v8019, 5
        %v8022 = vsel %vm1055, %v8017, %v8021
        %v8023 = vshrl.u32 %v7962, 16
        %v8025 = vrot.slane %v8023, 4
        %v8026 = vor.u32 %v8025, %v8021
        %v8027 = vrot.slane %v8026, 4
        %v8029 = vshll.u32 %v7963, 16
        %v8031 = vrot.slane %v8029, 5
        %v8032 = vsel %vm1055, %v8027, %v8031
        %v8034 = vshrl.u32 %v7964, 16
        %v8036 = vrot.slane %v8034, 4
        %v8037 = vshll.u32 %v7964, 16
        %v8039 = vrot.slane %v8037, 5
        %v8040 = vor.u32 %v8036, %v8039
        %v8041 = vrot.slane %v8040, 4
        %v8043 = vshll.u32 %v7965, 16
        %v8045 = vrot.slane %v8043, 5
        %v8046 = vsel %vm1055, %v8041, %v8045
        %v8047 = vshrl.u32 %v7965, 16
        %v8049 = vrot.slane %v8047, 4
        %v8050 = vor.u32 %v8049, %v8045
        %v8051 = vrot.slane %v8050, 4
        %v8053 = vshll.u32 %v7966, 16
        %v8055 = vrot.slane %v8053, 5
        %v8056 = vsel %vm1055, %v8051, %v8055
        %v8058 = vshrl.u32 %v7967, 16
        %v8060 = vrot.slane %v8058, 4
        %v8061 = vshll.u32 %v7967, 16
        %v8063 = vrot.slane %v8061, 5
        %v8064 = vor.u32 %v8060, %v8063
        %v8065 = vrot.slane %v8064, 4
        %v8067 = vshll.u32 %v7968, 16
        %v8069 = vrot.slane %v8067, 5
        %v8070 = vsel %vm1055, %v8065, %v8069
        %v8071 = vshrl.u32 %v7968, 16
        %v8073 = vrot.slane %v8071, 4
        %v8074 = vor.u32 %v8073, %v8069
        %v8075 = vrot.slane %v8074, 4
        %v8077 = vshll.u32 %v7969, 16
        %v8079 = vrot.slane %v8077, 5
        %v8080 = vsel %vm1055, %v8075, %v8079
        %v8082 = vshrl.u32 %v7970, 16
        %v8084 = vrot.slane %v8082, 4
        %v8085 = vshll.u32 %v7970, 16
        %v8087 = vrot.slane %v8085, 5
        %v8088 = vor.u32 %v8084, %v8087
        %v8089 = vrot.slane %v8088, 4
        %v8091 = vshll.u32 %v7971, 16
        %v8093 = vrot.slane %v8091, 5
        %v8094 = vsel %vm1055, %v8089, %v8093
        %v8095 = vshrl.u32 %v7971, 16
        %v8097 = vrot.slane %v8095, 4
        %v8098 = vor.u32 %v8097, %v8093
        %v8099 = vrot.slane %v8098, 4
        %v8101 = vshll.u32 %v7972, 16
        %v8103 = vrot.slane %v8101, 5
        %v8104 = vsel %vm1055, %v8099, %v8103
        %v8106 = vshrl.u32 %v7973, 16
        %v8108 = vrot.slane %v8106, 4
        %v8109 = vshll.u32 %v7973, 16
        %v8111 = vrot.slane %v8109, 5
        %v8112 = vor.u32 %v8108, %v8111
        %v8113 = vrot.slane %v8112, 4
        %v8115 = vshll.u32 %v7974, 16
        %v8117 = vrot.slane %v8115, 5
        %v8118 = vsel %vm1055, %v8113, %v8117
        %v8119 = vshrl.u32 %v7974, 16
        %v8121 = vrot.slane %v8119, 4
        %v8122 = vor.u32 %v8121, %v8117
        %v8123 = vrot.slane %v8122, 4
        %v8125 = vshll.u32 %v7975, 16
        %v8127 = vrot.slane %v8125, 5
        %v8128 = vsel %vm1055, %v8123, %v8127
        %v8130 = vshrl.u32 %v7976, 16
        %v8132 = vrot.slane %v8130, 4
        %v8133 = vshll.u32 %v7976, 16
        %v8135 = vrot.slane %v8133, 5
        %v8136 = vor.u32 %v8132, %v8135
        %v8137 = vrot.slane %v8136, 4
        %v8139 = vshll.u32 %v7977, 16
        %v8141 = vrot.slane %v8139, 5
        %v8142 = vsel %vm1055, %v8137, %v8141
        %v8143 = vshrl.u32 %v7977, 16
        %v8145 = vrot.slane %v8143, 4
        %v8146 = vor.u32 %v8145, %v8141
        %v8147 = vrot.slane %v8146, 4
        %v8149 = vshll.u32 %v7978, 16
        %v8151 = vrot.slane %v8149, 5
        %v8152 = vsel %vm1055, %v8147, %v8151
        %v8154 = vshrl.u32 %v7979, 16
        %v8156 = vrot.slane %v8154, 4
        %v8157 = vshll.u32 %v7979, 16
        %v8159 = vrot.slane %v8157, 5
        %v8160 = vor.u32 %v8156, %v8159
        %v8161 = vrot.slane %v8160, 4
        %v8163 = vshll.u32 %v7980, 16
        %v8165 = vrot.slane %v8163, 5
        %v8166 = vsel %vm1055, %v8161, %v8165
        %v8167 = vshrl.u32 %v7980, 16
        %v8169 = vrot.slane %v8167, 4
        %v8170 = vor.u32 %v8169, %v8165
        %v8171 = vrot.slane %v8170, 4
        %v8173 = vshll.u32 %v7981, 16
        %v8175 = vrot.slane %v8173, 5
        %v8176 = vsel %vm1055, %v8171, %v8175
        %v8178 = vshrl.u32 %v7982, 16
        %v8180 = vrot.slane %v8178, 4
        %v8181 = vshll.u32 %v7982, 16
        %v8183 = vrot.slane %v8181, 5
        %v8184 = vor.u32 %v8180, %v8183
        %v8185 = vrot.slane %v8184, 4
        %v8187 = vshll.u32 %v7983, 16
        %v8189 = vrot.slane %v8187, 5
        %v8190 = vsel %vm1055, %v8185, %v8189
        %v8191 = vshrl.u32 %v7983, 16
        %v8193 = vrot.slane %v8191, 4
        %v8194 = vor.u32 %v8193, %v8189
        %v8195 = vrot.slane %v8194, 4
        %v8197 = vshll.u32 %v7984, 16
        %v8199 = vrot.slane %v8197, 5
        %v8200 = vsel %vm1055, %v8195, %v8199
        %v8202 = vshrl.u32 %v7985, 16
        %v8204 = vrot.slane %v8202, 4
        %v8205 = vshll.u32 %v7985, 16
        %v8207 = vrot.slane %v8205, 5
        %v8208 = vor.u32 %v8204, %v8207
        %v8209 = vrot.slane %v8208, 4
        %v8211 = vshll.u32 %v7986, 16
        %v8213 = vrot.slane %v8211, 5
        %v8214 = vsel %vm1055, %v8209, %v8213
        %v8215 = vshrl.u32 %v7986, 16
        %v8217 = vrot.slane %v8215, 4
        %v8218 = vor.u32 %v8217, %v8213
        %v8219 = vrot.slane %v8218, 4
        %v8221 = vshll.u32 %v7987, 16
        %v8223 = vrot.slane %v8221, 5
        %v8224 = vsel %vm1055, %v8219, %v8223
        %v8226 = vshrl.u32 %v7988, 16
        %v8228 = vrot.slane %v8226, 4
        %v8229 = vshll.u32 %v7988, 16
        %v8231 = vrot.slane %v8229, 5
        %v8232 = vor.u32 %v8228, %v8231
        %v8233 = vrot.slane %v8232, 4
        %v8235 = vshll.u32 %v7989, 16
        %v8237 = vrot.slane %v8235, 5
        %v8238 = vsel %vm1055, %v8233, %v8237
        %v8239 = vshrl.u32 %v7989, 16
        %v8241 = vrot.slane %v8239, 4
        %v8242 = vor.u32 %v8241, %v8237
        %v8243 = vrot.slane %v8242, 4
        %v8245 = vshll.u32 %v7990, 16
        %v8247 = vrot.slane %v8245, 5
        %v8248 = vsel %vm1055, %v8243, %v8247
        %v8250 = vshrl.u32 %v7991, 16
        %v8252 = vrot.slane %v8250, 4
        %v8253 = vshll.u32 %v7991, 16
        %v8255 = vrot.slane %v8253, 5
        %v8256 = vor.u32 %v8252, %v8255
        %v8257 = vrot.slane %v8256, 4
        %v8259 = vshll.u32 %v7992, 16
        %v8261 = vrot.slane %v8259, 5
        %v8262 = vsel %vm1055, %v8257, %v8261
        %v8263 = vshrl.u32 %v7992, 16
        %v8265 = vrot.slane %v8263, 4
        %v8266 = vor.u32 %v8265, %v8261
        %v8267 = vrot.slane %v8266, 4
        %v8269 = vshll.u32 %v7993, 16
        %v8271 = vrot.slane %v8269, 5
        %v8272 = vsel %vm1055, %v8267, %v8271
        %v8274 = vshrl.u32 %v7994, 16
        %v8276 = vrot.slane %v8274, 4
        %v8277 = vshll.u32 %v7994, 16
        %v8279 = vrot.slane %v8277, 5
        %v8280 = vor.u32 %v8276, %v8279
        %v8281 = vrot.slane %v8280, 4
        %v8283 = vshll.u32 %v7995, 16
        %v8285 = vrot.slane %v8283, 5
        %v8286 = vsel %vm1055, %v8281, %v8285
        %v8287 = vshrl.u32 %v7995, 16
        %v8289 = vrot.slane %v8287, 4
        %v8290 = vor.u32 %v8289, %v8285
        %v8291 = vrot.slane %v8290, 4
        %v8293 = vshll.u32 %v7996, 16
        %v8295 = vrot.slane %v8293, 5
        %v8296 = vsel %vm1055, %v8291, %v8295
        %v8298 = vshrl.u32 %v7997, 16
        %v8300 = vrot.slane %v8298, 4
        %v8301 = vshll.u32 %v7997, 16
        %v8303 = vrot.slane %v8301, 5
        %v8304 = vor.u32 %v8300, %v8303
        %v8305 = vrot.slane %v8304, 4
        %v8307 = vshll.u32 %v7998, 16
        %v8309 = vrot.slane %v8307, 5
        %v8310 = vsel %vm1055, %v8305, %v8309
        %v8311 = vshrl.u32 %v7998, 16
        %v8313 = vrot.slane %v8311, 4
        %v8314 = vor.u32 %v8313, %v8309
        %v8315 = vrot.slane %v8314, 4
        %v8317 = vshll.u32 %v7999, 16
        %v8319 = vrot.slane %v8317, 5
        %v8320 = vsel %vm1055, %v8315, %v8319
        %v8322 = vshrl.u32 %v8000, 16
        %v8324 = vrot.slane %v8322, 4
        %v8325 = vshll.u32 %v8000, 16
        %v8327 = vrot.slane %v8325, 5
        %v8328 = vor.u32 %v8324, %v8327
        %v8329 = vrot.slane %v8328, 4
        %v8331 = vshll.u32 %v8001, 16
        %v8333 = vrot.slane %v8331, 5
        %v8334 = vsel %vm1055, %v8329, %v8333
        %v8335 = vshrl.u32 %v8001, 16
        %v8337 = vrot.slane %v8335, 4
        %v8338 = vor.u32 %v8337, %v8333
        %v8339 = vrot.slane %v8338, 4
        %v8341 = vshll.u32 %v8002, 16
        %v8343 = vrot.slane %v8341, 5
        %v8344 = vsel %vm1055, %v8339, %v8343
        %v8346 = vshrl.u32 %v8003, 16
        %v8348 = vrot.slane %v8346, 4
        %v8349 = vshll.u32 %v8003, 16
        %v8351 = vrot.slane %v8349, 5
        %v8352 = vor.u32 %v8348, %v8351
        %v8353 = vrot.slane %v8352, 4
        %v8355 = vshll.u32 %v8004, 16
        %v8357 = vrot.slane %v8355, 5
        %v8358 = vsel %vm1055, %v8353, %v8357
        %v8359 = vshrl.u32 %v8004, 16
        %v8361 = vrot.slane %v8359, 4
        %v8362 = vor.u32 %v8361, %v8357
        %v8363 = vrot.slane %v8362, 4
        %v8365 = vshll.u32 %v8005, 16
        %v8367 = vrot.slane %v8365, 5
        %v8368 = vsel %vm1055, %v8363, %v8367
        %v8370 = vshrl.u32 %v8006, 16
        %v8372 = vrot.slane %v8370, 4
        %v8373 = vshll.u32 %v8006, 16
        %v8375 = vrot.slane %v8373, 5
        %v8376 = vor.u32 %v8372, %v8375
        %v8377 = vrot.slane %v8376, 4
        %v8379 = vshll.u32 %v8007, 16
        %v8381 = vrot.slane %v8379, 5
        %v8382 = vsel %vm1055, %v8377, %v8381
        %v8383 = vshrl.u32 %v8007, 16
        %v8385 = vrot.slane %v8383, 4
        %v8386 = vor.u32 %v8385, %v8381
        %v8387 = vrot.slane %v8386, 4
        %v8389 = vshll.u32 %v8008, 16
        %v8391 = vrot.slane %v8389, 5
        %v8392 = vsel %vm1055, %v8387, %v8391
        %s8393 = scalar_lea.vmem [#allocation10], 8
        %v8394 = vld [vmem:[%s8393] sm:$0x3]
        %v8395 = vunpack.c.l.b16 %v8022
        %v8396 = vunpack.c.l.b16 %v8032
        %v8397 = vunpack.c.l.b16 %v8046
        %v8398 = vunpack.c.l.b16 %v8056
        %v8399 = vunpack.c.l.b16 %v8070
        %v8400 = vunpack.c.l.b16 %v8080
        %v8401 = vunpack.c.l.b16 %v8094
        %v8402 = vunpack.c.l.b16 %v8104
        %v8403 = vunpack.c.l.b16 %v8118
        %v8404 = vunpack.c.l.b16 %v8128
        %v8405 = vunpack.c.l.b16 %v8142
        %v8406 = vunpack.c.l.b16 %v8152
        %v8407 = vunpack.c.l.b16 %v8166
        %v8408 = vunpack.c.l.b16 %v8176
        %v8409 = vunpack.c.l.b16 %v8190
        %v8410 = vunpack.c.l.b16 %v8200
        %v8411 = vunpack.c.l.b16 %v8214
        %v8412 = vunpack.c.l.b16 %v8224
        %v8413 = vunpack.c.l.b16 %v8238
        %v8414 = vunpack.c.l.b16 %v8248
        %v8415 = vunpack.c.l.b16 %v8262
        %v8416 = vunpack.c.l.b16 %v8272
        %v8417 = vunpack.c.l.b16 %v8286
        %v8418 = vunpack.c.l.b16 %v8296
        %v8419 = vunpack.c.l.b16 %v8310
        %v8420 = vunpack.c.l.b16 %v8320
        %v8421 = vunpack.c.l.b16 %v8334
        %v8422 = vunpack.c.l.b16 %v8344
        %v8423 = vunpack.c.l.b16 %v8358
        %v8424 = vunpack.c.l.b16 %v8368
        %v8425 = vunpack.c.l.b16 %v8382
        %v8426 = vunpack.c.l.b16 %v8392
        %v8427 = vpack.c.b16 %v8396, %v8395
        %v8428 = vpack.c.b16 %v8398, %v8397
        %v8429 = vpack.c.b16 %v8400, %v8399
        %v8430 = vpack.c.b16 %v8402, %v8401
        %v8431 = vpack.c.b16 %v8404, %v8403
        %v8432 = vpack.c.b16 %v8406, %v8405
        %v8433 = vpack.c.b16 %v8408, %v8407
        %v8434 = vpack.c.b16 %v8410, %v8409
        %v8435 = vpack.c.b16 %v8412, %v8411
        %v8436 = vpack.c.b16 %v8414, %v8413
        %v8437 = vpack.c.b16 %v8416, %v8415
        %v8438 = vpack.c.b16 %v8418, %v8417
        %v8439 = vpack.c.b16 %v8420, %v8419
        %v8440 = vpack.c.b16 %v8422, %v8421
        %v8441 = vpack.c.b16 %v8424, %v8423
        %v8442 = vpack.c.b16 %v8426, %v8425
        %v8444 = vsel %vm1490, %v8427, 0
        %v8447 = vsel %vm1490, %v8428, 0
        %v8450 = vsel %vm1490, %v8429, 0
        %v8453 = vsel %vm1490, %v8430, 0
        %v8456 = vsel %vm1490, %v8431, 0
        %v8459 = vsel %vm1490, %v8432, 0
        %v8462 = vsel %vm1490, %v8433, 0
        %v8465 = vsel %vm1490, %v8434, 0
        %v8468 = vsel %vm1490, %v8435, 0
        %v8471 = vsel %vm1490, %v8436, 0
        %v8474 = vsel %vm1490, %v8437, 0
        %v8477 = vsel %vm1490, %v8438, 0
        %v8480 = vsel %vm1490, %v8439, 0
        %v8483 = vsel %vm1490, %v8440, 0
        %v8486 = vsel %vm1490, %v8441, 0
        %v8489 = vsel %vm1490, %v8442, 0
        %v8492 = vsel %vm1539, %v8394, 0
        %8494 = vmatprep.subr.bf16.mxu0 0
        %8495 = vmatpush1.bf16.msra.mxu0 %v8492
        %8496 = vmatprep.subr.bf16.mxu0 0
        %8497 = vmatpush1.bf16.msra.mxu0 0
        %8498 = vmatprep.subr.bf16.mxu0 0
        %8499 = vmatpush1.bf16.msra.mxu0 0
        %8500 = vmatprep.subr.bf16.mxu0 0
        %8501 = vmatpush1.bf16.msra.mxu0 0
        %8502 = vmatprep.subr.bf16.mxu0 0
        %8503 = vmatpush1.bf16.msra.mxu0 0
        %8504 = vmatprep.subr.bf16.mxu0 0
        %8505 = vmatpush1.bf16.msra.mxu0 0
        %8506 = vmatprep.subr.bf16.mxu0 0
        %8507 = vmatpush1.bf16.msra.mxu0 0
        %8508 = vmatprep.subr.bf16.mxu0 0
        %8509 = vmatpush1.bf16.msra.mxu0 0
        %8510 = vmatprep.subr.bf16.mxu0 0
        %8511 = vmatpush1.bf16.msra.mxu0 0
        %8512 = vmatprep.subr.bf16.mxu0 0
        %8513 = vmatpush1.bf16.msra.mxu0 0
        %8514 = vmatprep.subr.bf16.mxu0 0
        %8515 = vmatpush1.bf16.msra.mxu0 0
        %8516 = vmatprep.subr.bf16.mxu0 0
        %8517 = vmatpush1.bf16.msra.mxu0 0
        %8518 = vmatprep.subr.bf16.mxu0 0
        %8519 = vmatpush1.bf16.msra.mxu0 0
        %8520 = vmatprep.subr.bf16.mxu0 0
        %8521 = vmatpush1.bf16.msra.mxu0 0
        %8522 = vmatprep.subr.bf16.mxu0 0
        %8523 = vmatpush1.bf16.msra.mxu0 0
        %8524 = vmatprep.subr.bf16.mxu0 0
        %8525 = vmatpush1.bf16.msra.mxu0 0
        %8526 = vmatprep.mubr.bf16.mxu0 0
        %8527 = vmatmul.mubr.bf16.gmra.mrb[0].mxu0 %v8444
        %v8528 = vpop.f32.mrb[0].mxu0
        %v8529 = vadd.f32 0.0, %v8528
        %v8530 = vpop.f32.mrb[0].mxu0
        %v8531 = vpop.f32.mrb[0].mxu0
        %v8532 = vadd.f32 0.0, %v8531
        %v8533 = vpop.f32.mrb[0].mxu0
        %8534 = vmatprep.mubr.bf16.mxu0 0
        %8535 = vmatmul.mubr.bf16.gmra.mrb[0].mxu0 %v8447
        %v8536 = vpop.f32.mrb[0].mxu0
        %v8537 = vadd.f32 0.0, %v8536
        %v8538 = vpop.f32.mrb[0].mxu0
        %v8539 = vpop.f32.mrb[0].mxu0
        %v8540 = vadd.f32 0.0, %v8539
        %v8541 = vpop.f32.mrb[0].mxu0
        %8542 = vmatprep.mubr.bf16.mxu0 0
        %8543 = vmatmul.mubr.bf16.gmra.mrb[0].mxu0 %v8450
        %v8544 = vpop.f32.mrb[0].mxu0
        %v8545 = vadd.f32 0.0, %v8544
        %v8546 = vpop.f32.mrb[0].mxu0
        %v8547 = vpop.f32.mrb[0].mxu0
        %v8548 = vadd.f32 0.0, %v8547
        %v8549 = vpop.f32.mrb[0].mxu0
        %8550 = vmatprep.mubr.bf16.mxu0 0
        %8551 = vmatmul.mubr.bf16.gmra.mrb[0].mxu0 %v8453
        %v8552 = vpop.f32.mrb[0].mxu0
        %v8553 = vadd.f32 0.0, %v8552
        %v8554 = vpop.f32.mrb[0].mxu0
        %v8555 = vpop.f32.mrb[0].mxu0
        %v8556 = vadd.f32 0.0, %v8555
        %v8557 = vpop.f32.mrb[0].mxu0
        %8558 = vmatprep.mubr.bf16.mxu0 0
        %8559 = vmatmul.mubr.bf16.gmra.mrb[0].mxu0 %v8456
        %v8560 = vpop.f32.mrb[0].mxu0
        %v8561 = vadd.f32 0.0, %v8560
        %v8562 = vpop.f32.mrb[0].mxu0
        %v8563 = vpop.f32.mrb[0].mxu0
        %v8564 = vadd.f32 0.0, %v8563
        %v8565 = vpop.f32.mrb[0].mxu0
        %8566 = vmatprep.mubr.bf16.mxu0 0
        %8567 = vmatmul.mubr.bf16.gmra.mrb[0].mxu0 %v8459
        %v8568 = vpop.f32.mrb[0].mxu0
        %v8569 = vadd.f32 0.0, %v8568
        %v8570 = vpop.f32.mrb[0].mxu0
        %v8571 = vpop.f32.mrb[0].mxu0
        %v8572 = vadd.f32 0.0, %v8571
        %v8573 = vpop.f32.mrb[0].mxu0
        %8574 = vmatprep.mubr.bf16.mxu0 0
        %8575 = vmatmul.mubr.bf16.gmra.mrb[0].mxu0 %v8462
        %v8576 = vpop.f32.mrb[0].mxu0
        %v8577 = vadd.f32 0.0, %v8576
        %v8578 = vpop.f32.mrb[0].mxu0
        %v8579 = vpop.f32.mrb[0].mxu0
        %v8580 = vadd.f32 0.0, %v8579
        %v8581 = vpop.f32.mrb[0].mxu0
        %8582 = vmatprep.mubr.bf16.mxu0 0
        %8583 = vmatmul.mubr.bf16.gmra.mrb[0].mxu0 %v8465
        %v8584 = vpop.f32.mrb[0].mxu0
        %v8585 = vadd.f32 0.0, %v8584
        %v8586 = vpop.f32.mrb[0].mxu0
        %v8587 = vpop.f32.mrb[0].mxu0
        %v8588 = vadd.f32 0.0, %v8587
        %v8589 = vpop.f32.mrb[0].mxu0
        %8590 = vmatprep.mubr.bf16.mxu0 0
        %8591 = vmatmul.mubr.bf16.gmra.mrb[0].mxu0 %v8468
        %v8592 = vpop.f32.mrb[0].mxu0
        %v8593 = vadd.f32 0.0, %v8592
        %v8594 = vpop.f32.mrb[0].mxu0
        %v8595 = vpop.f32.mrb[0].mxu0
        %v8596 = vadd.f32 0.0, %v8595
        %v8597 = vpop.f32.mrb[0].mxu0
        %8598 = vmatprep.mubr.bf16.mxu0 0
        %8599 = vmatmul.mubr.bf16.gmra.mrb[0].mxu0 %v8471
        %v8600 = vpop.f32.mrb[0].mxu0
        %v8601 = vadd.f32 0.0, %v8600
        %v8602 = vpop.f32.mrb[0].mxu0
        %v8603 = vpop.f32.mrb[0].mxu0
        %v8604 = vadd.f32 0.0, %v8603
        %v8605 = vpop.f32.mrb[0].mxu0
        %8606 = vmatprep.mubr.bf16.mxu0 0
        %8607 = vmatmul.mubr.bf16.gmra.mrb[0].mxu0 %v8474
        %v8608 = vpop.f32.mrb[0].mxu0
        %v8609 = vadd.f32 0.0, %v8608
        %v8610 = vpop.f32.mrb[0].mxu0
        %v8611 = vpop.f32.mrb[0].mxu0
        %v8612 = vadd.f32 0.0, %v8611
        %v8613 = vpop.f32.mrb[0].mxu0
        %8614 = vmatprep.mubr.bf16.mxu0 0
        %8615 = vmatmul.mubr.bf16.gmra.mrb[0].mxu0 %v8477
        %v8616 = vpop.f32.mrb[0].mxu0
        %v8617 = vadd.f32 0.0, %v8616
        %v8618 = vpop.f32.mrb[0].mxu0
        %v8619 = vpop.f32.mrb[0].mxu0
        %v8620 = vadd.f32 0.0, %v8619
        %v8621 = vpop.f32.mrb[0].mxu0
        %8622 = vmatprep.mubr.bf16.mxu0 0
        %8623 = vmatmul.mubr.bf16.gmra.mrb[0].mxu0 %v8480
        %v8624 = vpop.f32.mrb[0].mxu0
        %v8625 = vadd.f32 0.0, %v8624
        %v8626 = vpop.f32.mrb[0].mxu0
        %v8627 = vpop.f32.mrb[0].mxu0
        %v8628 = vadd.f32 0.0, %v8627
        %v8629 = vpop.f32.mrb[0].mxu0
        %8630 = vmatprep.mubr.bf16.mxu0 0
        %8631 = vmatmul.mubr.bf16.gmra.mrb[0].mxu0 %v8483
        %v8632 = vpop.f32.mrb[0].mxu0
        %v8633 = vadd.f32 0.0, %v8632
        %v8634 = vpop.f32.mrb[0].mxu0
        %v8635 = vpop.f32.mrb[0].mxu0
        %v8636 = vadd.f32 0.0, %v8635
        %v8637 = vpop.f32.mrb[0].mxu0
        %8638 = vmatprep.mubr.bf16.mxu0 0
        %8639 = vmatmul.mubr.bf16.gmra.mrb[0].mxu0 %v8486
        %v8640 = vpop.f32.mrb[0].mxu0
        %v8641 = vadd.f32 0.0, %v8640
        %v8642 = vpop.f32.mrb[0].mxu0
        %v8643 = vpop.f32.mrb[0].mxu0
        %v8644 = vadd.f32 0.0, %v8643
        %v8645 = vpop.f32.mrb[0].mxu0
        %8646 = vmatprep.mubr.bf16.mxu0 0
        %8647 = vmatmul.mubr.bf16.gmra.mrb[0].mxu0 %v8489
        %v8648 = vpop.f32.mrb[0].mxu0
        %v8649 = vadd.f32 0.0, %v8648
        %v8650 = vpop.f32.mrb[0].mxu0
        %v8651 = vpop.f32.mrb[0].mxu0
        %v8652 = vadd.f32 0.0, %v8651
        %v8653 = vpop.f32.mrb[0].mxu0
        %8654 = vdwg.mxu0
        %v8655 = vadd.f32 %v7929, %v8529
        %v8656 = vadd.f32 %v7930, %v8532
        %v8657 = vadd.f32 %v7931, %v8537
        %v8658 = vadd.f32 %v7932, %v8540
        %v8659 = vadd.f32 %v7933, %v8545
        %v8660 = vadd.f32 %v7934, %v8548
        %v8661 = vadd.f32 %v7935, %v8553
        %v8662 = vadd.f32 %v7936, %v8556
        %v8663 = vadd.f32 %v7937, %v8561
        %v8664 = vadd.f32 %v7938, %v8564
        %v8665 = vadd.f32 %v7939, %v8569
        %v8666 = vadd.f32 %v7940, %v8572
        %v8667 = vadd.f32 %v7941, %v8577
        %v8668 = vadd.f32 %v7942, %v8580
        %v8669 = vadd.f32 %v7943, %v8585
        %v8670 = vadd.f32 %v7944, %v8588
        %v8671 = vadd.f32 %v7945, %v8593
        %v8672 = vadd.f32 %v7946, %v8596
        %v8673 = vadd.f32 %v7947, %v8601
        %v8674 = vadd.f32 %v7948, %v8604
        %v8675 = vadd.f32 %v7949, %v8609
        %v8676 = vadd.f32 %v7950, %v8612
        %v8677 = vadd.f32 %v7951, %v8617
        %v8678 = vadd.f32 %v7952, %v8620
        %v8679 = vadd.f32 %v7953, %v8625
        %v8680 = vadd.f32 %v7954, %v8628
        %v8681 = vadd.f32 %v7955, %v8633
        %v8682 = vadd.f32 %v7956, %v8636
        %v8683 = vadd.f32 %v7957, %v8641
        %v8684 = vadd.f32 %v7958, %v8644
        %v8685 = vadd.f32 %v7959, %v8649
        %v8686 = vadd.f32 %v7960, %v8652
        %v8687 = vld [vmem:[%s6049] sm:$0xe]
        %v8688 = vld [vmem:[%s6049 + $0xc] sm:$0xe]
        %v8689 = vld [vmem:[%s6049 + $0x18] sm:$0xe]
        %v8690 = vld [vmem:[%s6049 + $0x24] sm:$0xe]
        %v8691 = vld [vmem:[%s6049 + $0x30] sm:$0xe]
        %v8692 = vld [vmem:[%s6049 + $0x3c] sm:$0xe]
        %v8693 = vld [vmem:[%s6049 + $0x48] sm:$0xe]
        %v8694 = vld [vmem:[%s6049 + $0x54] sm:$0xe]
        %v8695 = vld [vmem:[%s6049 + $0x60] sm:$0xe]
        %v8696 = vld [vmem:[%s6049 + $0x6c] sm:$0xe]
        %v8697 = vld [vmem:[%s6049 + $0x78] sm:$0xe]
        %v8698 = vld [vmem:[%s6049 + $0x84] sm:$0xe]
        %v8699 = vld [vmem:[%s6049 + $0x90] sm:$0xe]
        %v8700 = vld [vmem:[%s6049 + $0x9c] sm:$0xe]
        %v8701 = vld [vmem:[%s6049 + $0xa8] sm:$0xe]
        %v8702 = vld [vmem:[%s6049 + $0xb4] sm:$0xe]
        %v8751 = vrot.slane %v8687, 5
        %v8752 = vrot.slane %v8751, 4
        %v8753 = vrot.slane %v7962, 5
        %v8754 = vsel %vm2046, %v8752, %v8753
        %v8755 = vrot.slane %v8753, 4
        %v8756 = vrot.slane %v7963, 5
        %v8757 = vsel %vm2046, %v8755, %v8756
        %v8758 = vrot.slane %v8688, 5
        %v8759 = vrot.slane %v8758, 4
        %v8760 = vrot.slane %v7965, 5
        %v8761 = vsel %vm2046, %v8759, %v8760
        %v8762 = vrot.slane %v8760, 4
        %v8763 = vrot.slane %v7966, 5
        %v8764 = vsel %vm2046, %v8762, %v8763
        %v8765 = vrot.slane %v8689, 5
        %v8766 = vrot.slane %v8765, 4
        %v8767 = vrot.slane %v7968, 5
        %v8768 = vsel %vm2046, %v8766, %v8767
        %v8769 = vrot.slane %v8767, 4
        %v8770 = vrot.slane %v7969, 5
        %v8771 = vsel %vm2046, %v8769, %v8770
        %v8772 = vrot.slane %v8690, 5
        %v8773 = vrot.slane %v8772, 4
        %v8774 = vrot.slane %v7971, 5
        %v8775 = vsel %vm2046, %v8773, %v8774
        %v8776 = vrot.slane %v8774, 4
        %v8777 = vrot.slane %v7972, 5
        %v8778 = vsel %vm2046, %v8776, %v8777
        %v8779 = vrot.slane %v8691, 5
        %v8780 = vrot.slane %v8779, 4
        %v8781 = vrot.slane %v7974, 5
        %v8782 = vsel %vm2046, %v8780, %v8781
        %v8783 = vrot.slane %v8781, 4
        %v8784 = vrot.slane %v7975, 5
        %v8785 = vsel %vm2046, %v8783, %v8784
        %v8786 = vrot.slane %v8692, 5
        %v8787 = vrot.slane %v8786, 4
        %v8788 = vrot.slane %v7977, 5
        %v8789 = vsel %vm2046, %v8787, %v8788
        %v8790 = vrot.slane %v8788, 4
        %v8791 = vrot.slane %v7978, 5
        %v8792 = vsel %vm2046, %v8790, %v8791
        %v8793 = vrot.slane %v8693, 5
        %v8794 = vrot.slane %v8793, 4
        %v8795 = vrot.slane %v7980, 5
        %v8796 = vsel %vm2046, %v8794, %v8795
        %v8797 = vrot.slane %v8795, 4
        %v8798 = vrot.slane %v7981, 5
        %v8799 = vsel %vm2046, %v8797, %v8798
        %v8800 = vrot.slane %v8694, 5
        %v8801 = vrot.slane %v8800, 4
        %v8802 = vrot.slane %v7983, 5
        %v8803 = vsel %vm2046, %v8801, %v8802
        %v8804 = vrot.slane %v8802, 4
        %v8805 = vrot.slane %v7984, 5
        %v8806 = vsel %vm2046, %v8804, %v8805
        %v8807 = vrot.slane %v8695, 5
        %v8808 = vrot.slane %v8807, 4
        %v8809 = vrot.slane %v7986, 5
        %v8810 = vsel %vm2046, %v8808, %v8809
        %v8811 = vrot.slane %v8809, 4
        %v8812 = vrot.slane %v7987, 5
        %v8813 = vsel %vm2046, %v8811, %v8812
        %v8814 = vrot.slane %v8696, 5
        %v8815 = vrot.slane %v8814, 4
        %v8816 = vrot.slane %v7989, 5
        %v8817 = vsel %vm2046, %v8815, %v8816
        %v8818 = vrot.slane %v8816, 4
        %v8819 = vrot.slane %v7990, 5
        %v8820 = vsel %vm2046, %v8818, %v8819
        %v8821 = vrot.slane %v8697, 5
        %v8822 = vrot.slane %v8821, 4
        %v8823 = vrot.slane %v7992, 5
        %v8824 = vsel %vm2046, %v8822, %v8823
        %v8825 = vrot.slane %v8823, 4
        %v8826 = vrot.slane %v7993, 5
        %v8827 = vsel %vm2046, %v8825, %v8826
        %v8828 = vrot.slane %v8698, 5
        %v8829 = vrot.slane %v8828, 4
        %v8830 = vrot.slane %v7995, 5
        %v8831 = vsel %vm2046, %v8829, %v8830
        %v8832 = vrot.slane %v8830, 4
        %v8833 = vrot.slane %v7996, 5
        %v8834 = vsel %vm2046, %v8832, %v8833
        %v8835 = vrot.slane %v8699, 5
        %v8836 = vrot.slane %v8835, 4
        %v8837 = vrot.slane %v7998, 5
        %v8838 = vsel %vm2046, %v8836, %v8837
        %v8839 = vrot.slane %v8837, 4
        %v8840 = vrot.slane %v7999, 5
        %v8841 = vsel %vm2046, %v8839, %v8840
        %v8842 = vrot.slane %v8700, 5
        %v8843 = vrot.slane %v8842, 4
        %v8844 = vrot.slane %v8001, 5
        %v8845 = vsel %vm2046, %v8843, %v8844
        %v8846 = vrot.slane %v8844, 4
        %v8847 = vrot.slane %v8002, 5
        %v8848 = vsel %vm2046, %v8846, %v8847
        %v8849 = vrot.slane %v8701, 5
        %v8850 = vrot.slane %v8849, 4
        %v8851 = vrot.slane %v8004, 5
        %v8852 = vsel %vm2046, %v8850, %v8851
        %v8853 = vrot.slane %v8851, 4
        %v8854 = vrot.slane %v8005, 5
        %v8855 = vsel %vm2046, %v8853, %v8854
        %v8856 = vrot.slane %v8702, 5
        %v8857 = vrot.slane %v8856, 4
        %v8858 = vrot.slane %v8007, 5
        %v8859 = vsel %vm2046, %v8857, %v8858
        %v8860 = vrot.slane %v8858, 4
        %v8861 = vrot.slane %v8008, 5
        %v8862 = vsel %vm2046, %v8860, %v8861
        %s8863 = scalar_lea.vmem [#allocation10], 10
        %v8864 = vld [vmem:[%s8863] sm:$0x3]
        %v8865 = vunpack.c.l.b16 %v8754
        %v8866 = vunpack.c.l.b16 %v8757
        %v8867 = vunpack.c.l.b16 %v8761
        %v8868 = vunpack.c.l.b16 %v8764
        %v8869 = vunpack.c.l.b16 %v8768
        %v8870 = vunpack.c.l.b16 %v8771
        %v8871 = vunpack.c.l.b16 %v8775
        %v8872 = vunpack.c.l.b16 %v8778
        %v8873 = vunpack.c.l.b16 %v8782
        %v8874 = vunpack.c.l.b16 %v8785
        %v8875 = vunpack.c.l.b16 %v8789
        %v8876 = vunpack.c.l.b16 %v8792
        %v8877 = vunpack.c.l.b16 %v8796
        %v8878 = vunpack.c.l.b16 %v8799
        %v8879 = vunpack.c.l.b16 %v8803
        %v8880 = vunpack.c.l.b16 %v8806
        %v8881 = vunpack.c.l.b16 %v8810
        %v8882 = vunpack.c.l.b16 %v8813
        %v8883 = vunpack.c.l.b16 %v8817
        %v8884 = vunpack.c.l.b16 %v8820
        %v8885 = vunpack.c.l.b16 %v8824
        %v8886 = vunpack.c.l.b16 %v8827
        %v8887 = vunpack.c.l.b16 %v8831
        %v8888 = vunpack.c.l.b16 %v8834
        %v8889 = vunpack.c.l.b16 %v8838
        %v8890 = vunpack.c.l.b16 %v8841
        %v8891 = vunpack.c.l.b16 %v8845
        %v8892 = vunpack.c.l.b16 %v8848
        %v8893 = vunpack.c.l.b16 %v8852
        %v8894 = vunpack.c.l.b16 %v8855
        %v8895 = vunpack.c.l.b16 %v8859
        %v8896 = vunpack.c.l.b16 %v8862
        %v8897 = vpack.c.b16 %v8866, %v8865
        %v8898 = vpack.c.b16 %v8868, %v8867
        %v8899 = vpack.c.b16 %v8870, %v8869
        %v8900 = vpack.c.b16 %v8872, %v8871
        %v8901 = vpack.c.b16 %v8874, %v8873
        %v8902 = vpack.c.b16 %v8876, %v8875
        %v8903 = vpack.c.b16 %v8878, %v8877
        %v8904 = vpack.c.b16 %v8880, %v8879
        %v8905 = vpack.c.b16 %v8882, %v8881
        %v8906 = vpack.c.b16 %v8884, %v8883
        %v8907 = vpack.c.b16 %v8886, %v8885
        %v8908 = vpack.c.b16 %v8888, %v8887
        %v8909 = vpack.c.b16 %v8890, %v8889
        %v8910 = vpack.c.b16 %v8892, %v8891
        %v8911 = vpack.c.b16 %v8894, %v8893
        %v8912 = vpack.c.b16 %v8896, %v8895
        %v8914 = vsel %vm1490, %v8897, 0
        %v8917 = vsel %vm1490, %v8898, 0
        %v8920 = vsel %vm1490, %v8899, 0
        %v8923 = vsel %vm1490, %v8900, 0
        %v8926 = vsel %vm1490, %v8901, 0
        %v8929 = vsel %vm1490, %v8902, 0
        %v8932 = vsel %vm1490, %v8903, 0
        %v8935 = vsel %vm1490, %v8904, 0
        %v8938 = vsel %vm1490, %v8905, 0
        %v8941 = vsel %vm1490, %v8906, 0
        %v8944 = vsel %vm1490, %v8907, 0
        %v8947 = vsel %vm1490, %v8908, 0
        %v8950 = vsel %vm1490, %v8909, 0
        %v8953 = vsel %vm1490, %v8910, 0
        %v8956 = vsel %vm1490, %v8911, 0
        %v8959 = vsel %vm1490, %v8912, 0
        %v8962 = vsel %vm1539, %v8864, 0
        %8964 = vmatprep.subr.bf16.mxu0 0
        %8965 = vmatpush1.bf16.msra.mxu0 %v8962
        %8966 = vmatprep.subr.bf16.mxu0 0
        %8967 = vmatpush1.bf16.msra.mxu0 0
        %8968 = vmatprep.subr.bf16.mxu0 0
        %8969 = vmatpush1.bf16.msra.mxu0 0
        %8970 = vmatprep.subr.bf16.mxu0 0
        %8971 = vmatpush1.bf16.msra.mxu0 0
        %8972 = vmatprep.subr.bf16.mxu0 0
        %8973 = vmatpush1.bf16.msra.mxu0 0
        %8974 = vmatprep.subr.bf16.mxu0 0
        %8975 = vmatpush1.bf16.msra.mxu0 0
        %8976 = vmatprep.subr.bf16.mxu0 0
        %8977 = vmatpush1.bf16.msra.mxu0 0
        %8978 = vmatprep.subr.bf16.mxu0 0
        %8979 = vmatpush1.bf16.msra.mxu0 0
        %8980 = vmatprep.subr.bf16.mxu0 0
        %8981 = vmatpush1.bf16.msra.mxu0 0
        %8982 = vmatprep.subr.bf16.mxu0 0
        %8983 = vmatpush1.bf16.msra.mxu0 0
        %8984 = vmatprep.subr.bf16.mxu0 0
        %8985 = vmatpush1.bf16.msra.mxu0 0
        %8986 = vmatprep.subr.bf16.mxu0 0
        %8987 = vmatpush1.bf16.msra.mxu0 0
        %8988 = vmatprep.subr.bf16.mxu0 0
        %8989 = vmatpush1.bf16.msra.mxu0 0
        %8990 = vmatprep.subr.bf16.mxu0 0
        %8991 = vmatpush1.bf16.msra.mxu0 0
        %8992 = vmatprep.subr.bf16.mxu0 0
        %8993 = vmatpush1.bf16.msra.mxu0 0
        %8994 = vmatprep.subr.bf16.mxu0 0
        %8995 = vmatpush1.bf16.msra.mxu0 0
        %8996 = vmatprep.mubr.bf16.mxu0 0
        %8997 = vmatmul.mubr.bf16.gmra.mrb[0].mxu0 %v8914
        %v8998 = vpop.f32.mrb[0].mxu0
        %v8999 = vadd.f32 0.0, %v8998
        %v9000 = vpop.f32.mrb[0].mxu0
        %v9001 = vpop.f32.mrb[0].mxu0
        %v9002 = vadd.f32 0.0, %v9001
        %v9003 = vpop.f32.mrb[0].mxu0
        %9004 = vmatprep.mubr.bf16.mxu0 0
        %9005 = vmatmul.mubr.bf16.gmra.mrb[0].mxu0 %v8917
        %v9006 = vpop.f32.mrb[0].mxu0
        %v9007 = vadd.f32 0.0, %v9006
        %v9008 = vpop.f32.mrb[0].mxu0
        %v9009 = vpop.f32.mrb[0].mxu0
        %v9010 = vadd.f32 0.0, %v9009
        %v9011 = vpop.f32.mrb[0].mxu0
        %9012 = vmatprep.mubr.bf16.mxu0 0
        %9013 = vmatmul.mubr.bf16.gmra.mrb[0].mxu0 %v8920
        %v9014 = vpop.f32.mrb[0].mxu0
        %v9015 = vadd.f32 0.0, %v9014
        %v9016 = vpop.f32.mrb[0].mxu0
        %v9017 = vpop.f32.mrb[0].mxu0
        %v9018 = vadd.f32 0.0, %v9017
        %v9019 = vpop.f32.mrb[0].mxu0
        %9020 = vmatprep.mubr.bf16.mxu0 0
        %9021 = vmatmul.mubr.bf16.gmra.mrb[0].mxu0 %v8923
        %v9022 = vpop.f32.mrb[0].mxu0
        %v9023 = vadd.f32 0.0, %v9022
        %v9024 = vpop.f32.mrb[0].mxu0
        %v9025 = vpop.f32.mrb[0].mxu0
        %v9026 = vadd.f32 0.0, %v9025
        %v9027 = vpop.f32.mrb[0].mxu0
        %9028 = vmatprep.mubr.bf16.mxu0 0
        %9029 = vmatmul.mubr.bf16.gmra.mrb[0].mxu0 %v8926
        %v9030 = vpop.f32.mrb[0].mxu0
        %v9031 = vadd.f32 0.0, %v9030
        %v9032 = vpop.f32.mrb[0].mxu0
        %v9033 = vpop.f32.mrb[0].mxu0
        %v9034 = vadd.f32 0.0, %v9033
        %v9035 = vpop.f32.mrb[0].mxu0
        %9036 = vmatprep.mubr.bf16.mxu0 0
        %9037 = vmatmul.mubr.bf16.gmra.mrb[0].mxu0 %v8929
        %v9038 = vpop.f32.mrb[0].mxu0
        %v9039 = vadd.f32 0.0, %v9038
        %v9040 = vpop.f32.mrb[0].mxu0
        %v9041 = vpop.f32.mrb[0].mxu0
        %v9042 = vadd.f32 0.0, %v9041
        %v9043 = vpop.f32.mrb[0].mxu0
        %9044 = vmatprep.mubr.bf16.mxu0 0
        %9045 = vmatmul.mubr.bf16.gmra.mrb[0].mxu0 %v8932
        %v9046 = vpop.f32.mrb[0].mxu0
        %v9047 = vadd.f32 0.0, %v9046
        %v9048 = vpop.f32.mrb[0].mxu0
        %v9049 = vpop.f32.mrb[0].mxu0
        %v9050 = vadd.f32 0.0, %v9049
        %v9051 = vpop.f32.mrb[0].mxu0
        %9052 = vmatprep.mubr.bf16.mxu0 0
        %9053 = vmatmul.mubr.bf16.gmra.mrb[0].mxu0 %v8935
        %v9054 = vpop.f32.mrb[0].mxu0
        %v9055 = vadd.f32 0.0, %v9054
        %v9056 = vpop.f32.mrb[0].mxu0
        %v9057 = vpop.f32.mrb[0].mxu0
        %v9058 = vadd.f32 0.0, %v9057
        %v9059 = vpop.f32.mrb[0].mxu0
        %9060 = vmatprep.mubr.bf16.mxu0 0
        %9061 = vmatmul.mubr.bf16.gmra.mrb[0].mxu0 %v8938
        %v9062 = vpop.f32.mrb[0].mxu0
        %v9063 = vadd.f32 0.0, %v9062
        %v9064 = vpop.f32.mrb[0].mxu0
        %v9065 = vpop.f32.mrb[0].mxu0
        %v9066 = vadd.f32 0.0, %v9065
        %v9067 = vpop.f32.mrb[0].mxu0
        %9068 = vmatprep.mubr.bf16.mxu0 0
        %9069 = vmatmul.mubr.bf16.gmra.mrb[0].mxu0 %v8941
        %v9070 = vpop.f32.mrb[0].mxu0
        %v9071 = vadd.f32 0.0, %v9070
        %v9072 = vpop.f32.mrb[0].mxu0
        %v9073 = vpop.f32.mrb[0].mxu0
        %v9074 = vadd.f32 0.0, %v9073
        %v9075 = vpop.f32.mrb[0].mxu0
        %9076 = vmatprep.mubr.bf16.mxu0 0
        %9077 = vmatmul.mubr.bf16.gmra.mrb[0].mxu0 %v8944
        %v9078 = vpop.f32.mrb[0].mxu0
        %v9079 = vadd.f32 0.0, %v9078
        %v9080 = vpop.f32.mrb[0].mxu0
        %v9081 = vpop.f32.mrb[0].mxu0
        %v9082 = vadd.f32 0.0, %v9081
        %v9083 = vpop.f32.mrb[0].mxu0
        %9084 = vmatprep.mubr.bf16.mxu0 0
        %9085 = vmatmul.mubr.bf16.gmra.mrb[0].mxu0 %v8947
        %v9086 = vpop.f32.mrb[0].mxu0
        %v9087 = vadd.f32 0.0, %v9086
        %v9088 = vpop.f32.mrb[0].mxu0
        %v9089 = vpop.f32.mrb[0].mxu0
        %v9090 = vadd.f32 0.0, %v9089
        %v9091 = vpop.f32.mrb[0].mxu0
        %9092 = vmatprep.mubr.bf16.mxu0 0
        %9093 = vmatmul.mubr.bf16.gmra.mrb[0].mxu0 %v8950
        %v9094 = vpop.f32.mrb[0].mxu0
        %v9095 = vadd.f32 0.0, %v9094
        %v9096 = vpop.f32.mrb[0].mxu0
        %v9097 = vpop.f32.mrb[0].mxu0
        %v9098 = vadd.f32 0.0, %v9097
        %v9099 = vpop.f32.mrb[0].mxu0
        %9100 = vmatprep.mubr.bf16.mxu0 0
        %9101 = vmatmul.mubr.bf16.gmra.mrb[0].mxu0 %v8953
        %v9102 = vpop.f32.mrb[0].mxu0
        %v9103 = vadd.f32 0.0, %v9102
        %v9104 = vpop.f32.mrb[0].mxu0
        %v9105 = vpop.f32.mrb[0].mxu0
        %v9106 = vadd.f32 0.0, %v9105
        %v9107 = vpop.f32.mrb[0].mxu0
        %9108 = vmatprep.mubr.bf16.mxu0 0
        %9109 = vmatmul.mubr.bf16.gmra.mrb[0].mxu0 %v8956
        %v9110 = vpop.f32.mrb[0].mxu0
        %v9111 = vadd.f32 0.0, %v9110
        %v9112 = vpop.f32.mrb[0].mxu0
        %v9113 = vpop.f32.mrb[0].mxu0
        %v9114 = vadd.f32 0.0, %v9113
        %v9115 = vpop.f32.mrb[0].mxu0
        %9116 = vmatprep.mubr.bf16.mxu0 0
        %9117 = vmatmul.mubr.bf16.gmra.mrb[0].mxu0 %v8959
        %v9118 = vpop.f32.mrb[0].mxu0
        %v9119 = vadd.f32 0.0, %v9118
        %v9120 = vpop.f32.mrb[0].mxu0
        %v9121 = vpop.f32.mrb[0].mxu0
        %v9122 = vadd.f32 0.0, %v9121
        %v9123 = vpop.f32.mrb[0].mxu0
        %9124 = vdwg.mxu0
        %v9125 = vadd.f32 %v8655, %v8999
        %v9126 = vadd.f32 %v8656, %v9002
        %v9127 = vadd.f32 %v8657, %v9007
        %v9128 = vadd.f32 %v8658, %v9010
        %v9129 = vadd.f32 %v8659, %v9015
        %v9130 = vadd.f32 %v8660, %v9018
        %v9131 = vadd.f32 %v8661, %v9023
        %v9132 = vadd.f32 %v8662, %v9026
        %v9133 = vadd.f32 %v8663, %v9031
        %v9134 = vadd.f32 %v8664, %v9034
        %v9135 = vadd.f32 %v8665, %v9039
        %v9136 = vadd.f32 %v8666, %v9042
        %v9137 = vadd.f32 %v8667, %v9047
        %v9138 = vadd.f32 %v8668, %v9050
        %v9139 = vadd.f32 %v8669, %v9055
        %v9140 = vadd.f32 %v8670, %v9058
        %v9141 = vadd.f32 %v8671, %v9063
        %v9142 = vadd.f32 %v8672, %v9066
        %v9143 = vadd.f32 %v8673, %v9071
        %v9144 = vadd.f32 %v8674, %v9074
        %v9145 = vadd.f32 %v8675, %v9079
        %v9146 = vadd.f32 %v8676, %v9082
        %v9147 = vadd.f32 %v8677, %v9087
        %v9148 = vadd.f32 %v8678, %v9090
        %v9149 = vadd.f32 %v8679, %v9095
        %v9150 = vadd.f32 %v8680, %v9098
        %v9151 = vadd.f32 %v8681, %v9103
        %v9152 = vadd.f32 %v8682, %v9106
        %v9153 = vadd.f32 %v8683, %v9111
        %v9154 = vadd.f32 %v8684, %v9114
        %v9155 = vadd.f32 %v8685, %v9119
        %v9156 = vadd.f32 %v8686, %v9122
        %s9157 = scalar_lea.vmem [#allocation3], 24
        %v9158 = vld [vmem:[%s9157] sm:$0xf]
        %v9159 = vld [vmem:[%s9157 + $0x4] sm:$0xf]
        %v9160 = vld [vmem:[%s9157 + $0xc] sm:$0xf]
        %v9161 = vld [vmem:[%s9157 + $0x10] sm:$0xf]
        %v9162 = vld [vmem:[%s9157 + $0x18] sm:$0xf]
        %v9163 = vld [vmem:[%s9157 + $0x1c] sm:$0xf]
        %v9164 = vld [vmem:[%s9157 + $0x24] sm:$0xf]
        %v9165 = vld [vmem:[%s9157 + $0x28] sm:$0xf]
        %v9166 = vld [vmem:[%s9157 + $0x30] sm:$0xf]
        %v9167 = vld [vmem:[%s9157 + $0x34] sm:$0xf]
        %v9168 = vld [vmem:[%s9157 + $0x3c] sm:$0xf]
        %v9169 = vld [vmem:[%s9157 + $0x40] sm:$0xf]
        %v9170 = vld [vmem:[%s9157 + $0x48] sm:$0xf]
        %v9171 = vld [vmem:[%s9157 + $0x4c] sm:$0xf]
        %v9172 = vld [vmem:[%s9157 + $0x54] sm:$0xf]
        %v9173 = vld [vmem:[%s9157 + $0x58] sm:$0xf]
        %v9174 = vld [vmem:[%s9157 + $0x60] sm:$0xf]
        %v9175 = vld [vmem:[%s9157 + $0x64] sm:$0xf]
        %v9176 = vld [vmem:[%s9157 + $0x6c] sm:$0xf]
        %v9177 = vld [vmem:[%s9157 + $0x70] sm:$0xf]
        %v9178 = vld [vmem:[%s9157 + $0x78] sm:$0xf]
        %v9179 = vld [vmem:[%s9157 + $0x7c] sm:$0xf]
        %v9180 = vld [vmem:[%s9157 + $0x84] sm:$0xf]
        %v9181 = vld [vmem:[%s9157 + $0x88] sm:$0xf]
        %v9182 = vld [vmem:[%s9157 + $0x90] sm:$0xf]
        %v9183 = vld [vmem:[%s9157 + $0x94] sm:$0xf]
        %v9184 = vld [vmem:[%s9157 + $0x9c] sm:$0xf]
        %v9185 = vld [vmem:[%s9157 + $0xa0] sm:$0xf]
        %v9186 = vld [vmem:[%s9157 + $0xa8] sm:$0xf]
        %v9187 = vld [vmem:[%s9157 + $0xac] sm:$0xf]
        %v9188 = vld [vmem:[%s9157 + $0xb4] sm:$0xf]
        %v9189 = vld [vmem:[%s9157 + $0xb8] sm:$0xf]
        %s9190 = scalar_lea.vmem [#allocation10], 12
        %v9191 = vld [vmem:[%s9190] sm:$0x3]
        %v9224 = vunpack.c.l.b16 %v9158
        %v9225 = vunpack.c.l.b16 %v9159
        %v9226 = vunpack.c.l.b16 %v9160
        %v9227 = vunpack.c.l.b16 %v9161
        %v9228 = vunpack.c.l.b16 %v9162
        %v9229 = vunpack.c.l.b16 %v9163
        %v9230 = vunpack.c.l.b16 %v9164
        %v9231 = vunpack.c.l.b16 %v9165
        %v9232 = vunpack.c.l.b16 %v9166
        %v9233 = vunpack.c.l.b16 %v9167
        %v9234 = vunpack.c.l.b16 %v9168
        %v9235 = vunpack.c.l.b16 %v9169
        %v9236 = vunpack.c.l.b16 %v9170
        %v9237 = vunpack.c.l.b16 %v9171
        %v9238 = vunpack.c.l.b16 %v9172
        %v9239 = vunpack.c.l.b16 %v9173
        %v9240 = vunpack.c.l.b16 %v9174
        %v9241 = vunpack.c.l.b16 %v9175
        %v9242 = vunpack.c.l.b16 %v9176
        %v9243 = vunpack.c.l.b16 %v9177
        %v9244 = vunpack.c.l.b16 %v9178
        %v9245 = vunpack.c.l.b16 %v9179
        %v9246 = vunpack.c.l.b16 %v9180
        %v9247 = vunpack.c.l.b16 %v9181
        %v9248 = vunpack.c.l.b16 %v9182
        %v9249 = vunpack.c.l.b16 %v9183
        %v9250 = vunpack.c.l.b16 %v9184
        %v9251 = vunpack.c.l.b16 %v9185
        %v9252 = vunpack.c.l.b16 %v9186
        %v9253 = vunpack.c.l.b16 %v9187
        %v9254 = vunpack.c.l.b16 %v9188
        %v9255 = vunpack.c.l.b16 %v9189
        %v9256 = vpack.c.b16 %v9225, %v9224
        %v9257 = vpack.c.b16 %v9227, %v9226
        %v9258 = vpack.c.b16 %v9229, %v9228
        %v9259 = vpack.c.b16 %v9231, %v9230
        %v9260 = vpack.c.b16 %v9233, %v9232
        %v9261 = vpack.c.b16 %v9235, %v9234
        %v9262 = vpack.c.b16 %v9237, %v9236
        %v9263 = vpack.c.b16 %v9239, %v9238
        %v9264 = vpack.c.b16 %v9241, %v9240
        %v9265 = vpack.c.b16 %v9243, %v9242
        %v9266 = vpack.c.b16 %v9245, %v9244
        %v9267 = vpack.c.b16 %v9247, %v9246
        %v9268 = vpack.c.b16 %v9249, %v9248
        %v9269 = vpack.c.b16 %v9251, %v9250
        %v9270 = vpack.c.b16 %v9253, %v9252
        %v9271 = vpack.c.b16 %v9255, %v9254
        %v9273 = vsel %vm1490, %v9256, 0
        %v9276 = vsel %vm1490, %v9257, 0
        %v9279 = vsel %vm1490, %v9258, 0
        %v9282 = vsel %vm1490, %v9259, 0
        %v9285 = vsel %vm1490, %v9260, 0
        %v9288 = vsel %vm1490, %v9261, 0
        %v9291 = vsel %vm1490, %v9262, 0
        %v9294 = vsel %vm1490, %v9263, 0
        %v9297 = vsel %vm1490, %v9264, 0
        %v9300 = vsel %vm1490, %v9265, 0
        %v9303 = vsel %vm1490, %v9266, 0
        %v9306 = vsel %vm1490, %v9267, 0
        %v9309 = vsel %vm1490, %v9268, 0
        %v9312 = vsel %vm1490, %v9269, 0
        %v9315 = vsel %vm1490, %v9270, 0
        %v9318 = vsel %vm1490, %v9271, 0
        %v9321 = vsel %vm1539, %v9191, 0
        %9323 = vmatprep.subr.bf16.mxu0 0
        %9324 = vmatpush1.bf16.msra.mxu0 %v9321
        %9325 = vmatprep.subr.bf16.mxu0 0
        %9326 = vmatpush1.bf16.msra.mxu0 0
        %9327 = vmatprep.subr.bf16.mxu0 0
        %9328 = vmatpush1.bf16.msra.mxu0 0
        %9329 = vmatprep.subr.bf16.mxu0 0
        %9330 = vmatpush1.bf16.msra.mxu0 0
        %9331 = vmatprep.subr.bf16.mxu0 0
        %9332 = vmatpush1.bf16.msra.mxu0 0
        %9333 = vmatprep.subr.bf16.mxu0 0
        %9334 = vmatpush1.bf16.msra.mxu0 0
        %9335 = vmatprep.subr.bf16.mxu0 0
        %9336 = vmatpush1.bf16.msra.mxu0 0
        %9337 = vmatprep.subr.bf16.mxu0 0
        %9338 = vmatpush1.bf16.msra.mxu0 0
        %9339 = vmatprep.subr.bf16.mxu0 0
        %9340 = vmatpush1.bf16.msra.mxu0 0
        %9341 = vmatprep.subr.bf16.mxu0 0
        %9342 = vmatpush1.bf16.msra.mxu0 0
        %9343 = vmatprep.subr.bf16.mxu0 0
        %9344 = vmatpush1.bf16.msra.mxu0 0
        %9345 = vmatprep.subr.bf16.mxu0 0
        %9346 = vmatpush1.bf16.msra.mxu0 0
        %9347 = vmatprep.subr.bf16.mxu0 0
        %9348 = vmatpush1.bf16.msra.mxu0 0
        %9349 = vmatprep.subr.bf16.mxu0 0
        %9350 = vmatpush1.bf16.msra.mxu0 0
        %9351 = vmatprep.subr.bf16.mxu0 0
        %9352 = vmatpush1.bf16.msra.mxu0 0
        %9353 = vmatprep.subr.bf16.mxu0 0
        %9354 = vmatpush1.bf16.msra.mxu0 0
        %9355 = vmatprep.mubr.bf16.mxu0 0
        %9356 = vmatmul.mubr.bf16.gmra.mrb[0].mxu0 %v9273
        %v9357 = vpop.f32.mrb[0].mxu0
        %v9358 = vadd.f32 0.0, %v9357
        %v9359 = vpop.f32.mrb[0].mxu0
        %v9360 = vpop.f32.mrb[0].mxu0
        %v9361 = vadd.f32 0.0, %v9360
        %v9362 = vpop.f32.mrb[0].mxu0
        %9363 = vmatprep.mubr.bf16.mxu0 0
        %9364 = vmatmul.mubr.bf16.gmra.mrb[0].mxu0 %v9276
        %v9365 = vpop.f32.mrb[0].mxu0
        %v9366 = vadd.f32 0.0, %v9365
        %v9367 = vpop.f32.mrb[0].mxu0
        %v9368 = vpop.f32.mrb[0].mxu0
        %v9369 = vadd.f32 0.0, %v9368
        %v9370 = vpop.f32.mrb[0].mxu0
        %9371 = vmatprep.mubr.bf16.mxu0 0
        %9372 = vmatmul.mubr.bf16.gmra.mrb[0].mxu0 %v9279
        %v9373 = vpop.f32.mrb[0].mxu0
        %v9374 = vadd.f32 0.0, %v9373
        %v9375 = vpop.f32.mrb[0].mxu0
        %v9376 = vpop.f32.mrb[0].mxu0
        %v9377 = vadd.f32 0.0, %v9376
        %v9378 = vpop.f32.mrb[0].mxu0
        %9379 = vmatprep.mubr.bf16.mxu0 0
        %9380 = vmatmul.mubr.bf16.gmra.mrb[0].mxu0 %v9282
        %v9381 = vpop.f32.mrb[0].mxu0
        %v9382 = vadd.f32 0.0, %v9381
        %v9383 = vpop.f32.mrb[0].mxu0
        %v9384 = vpop.f32.mrb[0].mxu0
        %v9385 = vadd.f32 0.0, %v9384
        %v9386 = vpop.f32.mrb[0].mxu0
        %9387 = vmatprep.mubr.bf16.mxu0 0
        %9388 = vmatmul.mubr.bf16.gmra.mrb[0].mxu0 %v9285
        %v9389 = vpop.f32.mrb[0].mxu0
        %v9390 = vadd.f32 0.0, %v9389
        %v9391 = vpop.f32.mrb[0].mxu0
        %v9392 = vpop.f32.mrb[0].mxu0
        %v9393 = vadd.f32 0.0, %v9392
        %v9394 = vpop.f32.mrb[0].mxu0
        %9395 = vmatprep.mubr.bf16.mxu0 0
        %9396 = vmatmul.mubr.bf16.gmra.mrb[0].mxu0 %v9288
        %v9397 = vpop.f32.mrb[0].mxu0
        %v9398 = vadd.f32 0.0, %v9397
        %v9399 = vpop.f32.mrb[0].mxu0
        %v9400 = vpop.f32.mrb[0].mxu0
        %v9401 = vadd.f32 0.0, %v9400
        %v9402 = vpop.f32.mrb[0].mxu0
        %9403 = vmatprep.mubr.bf16.mxu0 0
        %9404 = vmatmul.mubr.bf16.gmra.mrb[0].mxu0 %v9291
        %v9405 = vpop.f32.mrb[0].mxu0
        %v9406 = vadd.f32 0.0, %v9405
        %v9407 = vpop.f32.mrb[0].mxu0
        %v9408 = vpop.f32.mrb[0].mxu0
        %v9409 = vadd.f32 0.0, %v9408
        %v9410 = vpop.f32.mrb[0].mxu0
        %9411 = vmatprep.mubr.bf16.mxu0 0
        %9412 = vmatmul.mubr.bf16.gmra.mrb[0].mxu0 %v9294
        %v9413 = vpop.f32.mrb[0].mxu0
        %v9414 = vadd.f32 0.0, %v9413
        %v9415 = vpop.f32.mrb[0].mxu0
        %v9416 = vpop.f32.mrb[0].mxu0
        %v9417 = vadd.f32 0.0, %v9416
        %v9418 = vpop.f32.mrb[0].mxu0
        %9419 = vmatprep.mubr.bf16.mxu0 0
        %9420 = vmatmul.mubr.bf16.gmra.mrb[0].mxu0 %v9297
        %v9421 = vpop.f32.mrb[0].mxu0
        %v9422 = vadd.f32 0.0, %v9421
        %v9423 = vpop.f32.mrb[0].mxu0
        %v9424 = vpop.f32.mrb[0].mxu0
        %v9425 = vadd.f32 0.0, %v9424
        %v9426 = vpop.f32.mrb[0].mxu0
        %9427 = vmatprep.mubr.bf16.mxu0 0
        %9428 = vmatmul.mubr.bf16.gmra.mrb[0].mxu0 %v9300
        %v9429 = vpop.f32.mrb[0].mxu0
        %v9430 = vadd.f32 0.0, %v9429
        %v9431 = vpop.f32.mrb[0].mxu0
        %v9432 = vpop.f32.mrb[0].mxu0
        %v9433 = vadd.f32 0.0, %v9432
        %v9434 = vpop.f32.mrb[0].mxu0
        %9435 = vmatprep.mubr.bf16.mxu0 0
        %9436 = vmatmul.mubr.bf16.gmra.mrb[0].mxu0 %v9303
        %v9437 = vpop.f32.mrb[0].mxu0
        %v9438 = vadd.f32 0.0, %v9437
        %v9439 = vpop.f32.mrb[0].mxu0
        %v9440 = vpop.f32.mrb[0].mxu0
        %v9441 = vadd.f32 0.0, %v9440
        %v9442 = vpop.f32.mrb[0].mxu0
        %9443 = vmatprep.mubr.bf16.mxu0 0
        %9444 = vmatmul.mubr.bf16.gmra.mrb[0].mxu0 %v9306
        %v9445 = vpop.f32.mrb[0].mxu0
        %v9446 = vadd.f32 0.0, %v9445
        %v9447 = vpop.f32.mrb[0].mxu0
        %v9448 = vpop.f32.mrb[0].mxu0
        %v9449 = vadd.f32 0.0, %v9448
        %v9450 = vpop.f32.mrb[0].mxu0
        %9451 = vmatprep.mubr.bf16.mxu0 0
        %9452 = vmatmul.mubr.bf16.gmra.mrb[0].mxu0 %v9309
        %v9453 = vpop.f32.mrb[0].mxu0
        %v9454 = vadd.f32 0.0, %v9453
        %v9455 = vpop.f32.mrb[0].mxu0
        %v9456 = vpop.f32.mrb[0].mxu0
        %v9457 = vadd.f32 0.0, %v9456
        %v9458 = vpop.f32.mrb[0].mxu0
        %9459 = vmatprep.mubr.bf16.mxu0 0
        %9460 = vmatmul.mubr.bf16.gmra.mrb[0].mxu0 %v9312
        %v9461 = vpop.f32.mrb[0].mxu0
        %v9462 = vadd.f32 0.0, %v9461
        %v9463 = vpop.f32.mrb[0].mxu0
        %v9464 = vpop.f32.mrb[0].mxu0
        %v9465 = vadd.f32 0.0, %v9464
        %v9466 = vpop.f32.mrb[0].mxu0
        %9467 = vmatprep.mubr.bf16.mxu0 0
        %9468 = vmatmul.mubr.bf16.gmra.mrb[0].mxu0 %v9315
        %v9469 = vpop.f32.mrb[0].mxu0
        %v9470 = vadd.f32 0.0, %v9469
        %v9471 = vpop.f32.mrb[0].mxu0
        %v9472 = vpop.f32.mrb[0].mxu0
        %v9473 = vadd.f32 0.0, %v9472
        %v9474 = vpop.f32.mrb[0].mxu0
        %9475 = vmatprep.mubr.bf16.mxu0 0
        %9476 = vmatmul.mubr.bf16.gmra.mrb[0].mxu0 %v9318
        %v9477 = vpop.f32.mrb[0].mxu0
        %v9478 = vadd.f32 0.0, %v9477
        %v9479 = vpop.f32.mrb[0].mxu0
        %v9480 = vpop.f32.mrb[0].mxu0
        %v9481 = vadd.f32 0.0, %v9480
        %v9482 = vpop.f32.mrb[0].mxu0
        %9483 = vdwg.mxu0
        %v9484 = vadd.f32 %v9125, %v9358
        %v9485 = vadd.f32 %v9126, %v9361
        %v9486 = vadd.f32 %v9127, %v9366
        %v9487 = vadd.f32 %v9128, %v9369
        %v9488 = vadd.f32 %v9129, %v9374
        %v9489 = vadd.f32 %v9130, %v9377
        %v9490 = vadd.f32 %v9131, %v9382
        %v9491 = vadd.f32 %v9132, %v9385
        %v9492 = vadd.f32 %v9133, %v9390
        %v9493 = vadd.f32 %v9134, %v9393
        %v9494 = vadd.f32 %v9135, %v9398
        %v9495 = vadd.f32 %v9136, %v9401
        %v9496 = vadd.f32 %v9137, %v9406
        %v9497 = vadd.f32 %v9138, %v9409
        %v9498 = vadd.f32 %v9139, %v9414
        %v9499 = vadd.f32 %v9140, %v9417
        %v9500 = vadd.f32 %v9141, %v9422
        %v9501 = vadd.f32 %v9142, %v9425
        %v9502 = vadd.f32 %v9143, %v9430
        %v9503 = vadd.f32 %v9144, %v9433
        %v9504 = vadd.f32 %v9145, %v9438
        %v9505 = vadd.f32 %v9146, %v9441
        %v9506 = vadd.f32 %v9147, %v9446
        %v9507 = vadd.f32 %v9148, %v9449
        %v9508 = vadd.f32 %v9149, %v9454
        %v9509 = vadd.f32 %v9150, %v9457
        %v9510 = vadd.f32 %v9151, %v9462
        %v9511 = vadd.f32 %v9152, %v9465
        %v9512 = vadd.f32 %v9153, %v9470
        %v9513 = vadd.f32 %v9154, %v9473
        %v9514 = vadd.f32 %v9155, %v9478
        %v9515 = vadd.f32 %v9156, %v9481
        %v9516 = vld [vmem:[%s9157] sm:$0xf]
        %v9517 = vld [vmem:[%s9157 + $0x4] sm:$0xf]
        %v9518 = vld [vmem:[%s9157 + $0x8] sm:$0x1]
        %v9519 = vld [vmem:[%s9157 + $0xc] sm:$0xf]
        %v9520 = vld [vmem:[%s9157 + $0x10] sm:$0xf]
        %v9521 = vld [vmem:[%s9157 + $0x14] sm:$0x1]
        %v9522 = vld [vmem:[%s9157 + $0x18] sm:$0xf]
        %v9523 = vld [vmem:[%s9157 + $0x1c] sm:$0xf]
        %v9524 = vld [vmem:[%s9157 + $0x20] sm:$0x1]
        %v9525 = vld [vmem:[%s9157 + $0x24] sm:$0xf]
        %v9526 = vld [vmem:[%s9157 + $0x28] sm:$0xf]
        %v9527 = vld [vmem:[%s9157 + $0x2c] sm:$0x1]
        %v9528 = vld [vmem:[%s9157 + $0x30] sm:$0xf]
        %v9529 = vld [vmem:[%s9157 + $0x34] sm:$0xf]
        %v9530 = vld [vmem:[%s9157 + $0x38] sm:$0x1]
        %v9531 = vld [vmem:[%s9157 + $0x3c] sm:$0xf]
        %v9532 = vld [vmem:[%s9157 + $0x40] sm:$0xf]
        %v9533 = vld [vmem:[%s9157 + $0x44] sm:$0x1]
        %v9534 = vld [vmem:[%s9157 + $0x48] sm:$0xf]
        %v9535 = vld [vmem:[%s9157 + $0x4c] sm:$0xf]
        %v9536 = vld [vmem:[%s9157 + $0x50] sm:$0x1]
        %v9537 = vld [vmem:[%s9157 + $0x54] sm:$0xf]
        %v9538 = vld [vmem:[%s9157 + $0x58] sm:$0xf]
        %v9539 = vld [vmem:[%s9157 + $0x5c] sm:$0x1]
        %v9540 = vld [vmem:[%s9157 + $0x60] sm:$0xf]
        %v9541 = vld [vmem:[%s9157 + $0x64] sm:$0xf]
        %v9542 = vld [vmem:[%s9157 + $0x68] sm:$0x1]
        %v9543 = vld [vmem:[%s9157 + $0x6c] sm:$0xf]
        %v9544 = vld [vmem:[%s9157 + $0x70] sm:$0xf]
        %v9545 = vld [vmem:[%s9157 + $0x74] sm:$0x1]
        %v9546 = vld [vmem:[%s9157 + $0x78] sm:$0xf]
        %v9547 = vld [vmem:[%s9157 + $0x7c] sm:$0xf]
        %v9548 = vld [vmem:[%s9157 + $0x80] sm:$0x1]
        %v9549 = vld [vmem:[%s9157 + $0x84] sm:$0xf]
        %v9550 = vld [vmem:[%s9157 + $0x88] sm:$0xf]
        %v9551 = vld [vmem:[%s9157 + $0x8c] sm:$0x1]
        %v9552 = vld [vmem:[%s9157 + $0x90] sm:$0xf]
        %v9553 = vld [vmem:[%s9157 + $0x94] sm:$0xf]
        %v9554 = vld [vmem:[%s9157 + $0x98] sm:$0x1]
        %v9555 = vld [vmem:[%s9157 + $0x9c] sm:$0xf]
        %v9556 = vld [vmem:[%s9157 + $0xa0] sm:$0xf]
        %v9557 = vld [vmem:[%s9157 + $0xa4] sm:$0x1]
        %v9558 = vld [vmem:[%s9157 + $0xa8] sm:$0xf]
        %v9559 = vld [vmem:[%s9157 + $0xac] sm:$0xf]
        %v9560 = vld [vmem:[%s9157 + $0xb0] sm:$0x1]
        %v9561 = vld [vmem:[%s9157 + $0xb4] sm:$0xf]
        %v9562 = vld [vmem:[%s9157 + $0xb8] sm:$0xf]
        %v9563 = vld [vmem:[%s9157 + $0xbc] sm:$0x1]
        %v9565 = vshrl.u32 %v9516, 16
        %v9567 = vrot.slane %v9565, 4
        %v9568 = vshll.u32 %v9516, 16
        %v9570 = vrot.slane %v9568, 5
        %v9571 = vor.u32 %v9567, %v9570
        %v9572 = vrot.slane %v9571, 4
        %v9574 = vshll.u32 %v9517, 16
        %v9576 = vrot.slane %v9574, 5
        %v9577 = vsel %vm1055, %v9572, %v9576
        %v9578 = vshrl.u32 %v9517, 16
        %v9580 = vrot.slane %v9578, 4
        %v9581 = vor.u32 %v9580, %v9576
        %v9582 = vrot.slane %v9581, 4
        %v9584 = vshll.u32 %v9518, 16
        %v9586 = vrot.slane %v9584, 5
        %v9587 = vsel %vm1055, %v9582, %v9586
        %v9589 = vshrl.u32 %v9519, 16
        %v9591 = vrot.slane %v9589, 4
        %v9592 = vshll.u32 %v9519, 16
        %v9594 = vrot.slane %v9592, 5
        %v9595 = vor.u32 %v9591, %v9594
        %v9596 = vrot.slane %v9595, 4
        %v9598 = vshll.u32 %v9520, 16
        %v9600 = vrot.slane %v9598, 5
        %v9601 = vsel %vm1055, %v9596, %v9600
        %v9602 = vshrl.u32 %v9520, 16
        %v9604 = vrot.slane %v9602, 4
        %v9605 = vor.u32 %v9604, %v9600
        %v9606 = vrot.slane %v9605, 4
        %v9608 = vshll.u32 %v9521, 16
        %v9610 = vrot.slane %v9608, 5
        %v9611 = vsel %vm1055, %v9606, %v9610
        %v9613 = vshrl.u32 %v9522, 16
        %v9615 = vrot.slane %v9613, 4
        %v9616 = vshll.u32 %v9522, 16
        %v9618 = vrot.slane %v9616, 5
        %v9619 = vor.u32 %v9615, %v9618
        %v9620 = vrot.slane %v9619, 4
        %v9622 = vshll.u32 %v9523, 16
        %v9624 = vrot.slane %v9622, 5
        %v9625 = vsel %vm1055, %v9620, %v9624
        %v9626 = vshrl.u32 %v9523, 16
        %v9628 = vrot.slane %v9626, 4
        %v9629 = vor.u32 %v9628, %v9624
        %v9630 = vrot.slane %v9629, 4
        %v9632 = vshll.u32 %v9524, 16
        %v9634 = vrot.slane %v9632, 5
        %v9635 = vsel %vm1055, %v9630, %v9634
        %v9637 = vshrl.u32 %v9525, 16
        %v9639 = vrot.slane %v9637, 4
        %v9640 = vshll.u32 %v9525, 16
        %v9642 = vrot.slane %v9640, 5
        %v9643 = vor.u32 %v9639, %v9642
        %v9644 = vrot.slane %v9643, 4
        %v9646 = vshll.u32 %v9526, 16
        %v9648 = vrot.slane %v9646, 5
        %v9649 = vsel %vm1055, %v9644, %v9648
        %v9650 = vshrl.u32 %v9526, 16
        %v9652 = vrot.slane %v9650, 4
        %v9653 = vor.u32 %v9652, %v9648
        %v9654 = vrot.slane %v9653, 4
        %v9656 = vshll.u32 %v9527, 16
        %v9658 = vrot.slane %v9656, 5
        %v9659 = vsel %vm1055, %v9654, %v9658
        %v9661 = vshrl.u32 %v9528, 16
        %v9663 = vrot.slane %v9661, 4
        %v9664 = vshll.u32 %v9528, 16
        %v9666 = vrot.slane %v9664, 5
        %v9667 = vor.u32 %v9663, %v9666
        %v9668 = vrot.slane %v9667, 4
        %v9670 = vshll.u32 %v9529, 16
        %v9672 = vrot.slane %v9670, 5
        %v9673 = vsel %vm1055, %v9668, %v9672
        %v9674 = vshrl.u32 %v9529, 16
        %v9676 = vrot.slane %v9674, 4
        %v9677 = vor.u32 %v9676, %v9672
        %v9678 = vrot.slane %v9677, 4
        %v9680 = vshll.u32 %v9530, 16
        %v9682 = vrot.slane %v9680, 5
        %v9683 = vsel %vm1055, %v9678, %v9682
        %v9685 = vshrl.u32 %v9531, 16
        %v9687 = vrot.slane %v9685, 4
        %v9688 = vshll.u32 %v9531, 16
        %v9690 = vrot.slane %v9688, 5
        %v9691 = vor.u32 %v9687, %v9690
        %v9692 = vrot.slane %v9691, 4
        %v9694 = vshll.u32 %v9532, 16
        %v9696 = vrot.slane %v9694, 5
        %v9697 = vsel %vm1055, %v9692, %v9696
        %v9698 = vshrl.u32 %v9532, 16
        %v9700 = vrot.slane %v9698, 4
        %v9701 = vor.u32 %v9700, %v9696
        %v9702 = vrot.slane %v9701, 4
        %v9704 = vshll.u32 %v9533, 16
        %v9706 = vrot.slane %v9704, 5
        %v9707 = vsel %vm1055, %v9702, %v9706
        %v9709 = vshrl.u32 %v9534, 16
        %v9711 = vrot.slane %v9709, 4
        %v9712 = vshll.u32 %v9534, 16
        %v9714 = vrot.slane %v9712, 5
        %v9715 = vor.u32 %v9711, %v9714
        %v9716 = vrot.slane %v9715, 4
        %v9718 = vshll.u32 %v9535, 16
        %v9720 = vrot.slane %v9718, 5
        %v9721 = vsel %vm1055, %v9716, %v9720
        %v9722 = vshrl.u32 %v9535, 16
        %v9724 = vrot.slane %v9722, 4
        %v9725 = vor.u32 %v9724, %v9720
        %v9726 = vrot.slane %v9725, 4
        %v9728 = vshll.u32 %v9536, 16
        %v9730 = vrot.slane %v9728, 5
        %v9731 = vsel %vm1055, %v9726, %v9730
        %v9733 = vshrl.u32 %v9537, 16
        %v9735 = vrot.slane %v9733, 4
        %v9736 = vshll.u32 %v9537, 16
        %v9738 = vrot.slane %v9736, 5
        %v9739 = vor.u32 %v9735, %v9738
        %v9740 = vrot.slane %v9739, 4
        %v9742 = vshll.u32 %v9538, 16
        %v9744 = vrot.slane %v9742, 5
        %v9745 = vsel %vm1055, %v9740, %v9744
        %v9746 = vshrl.u32 %v9538, 16
        %v9748 = vrot.slane %v9746, 4
        %v9749 = vor.u32 %v9748, %v9744
        %v9750 = vrot.slane %v9749, 4
        %v9752 = vshll.u32 %v9539, 16
        %v9754 = vrot.slane %v9752, 5
        %v9755 = vsel %vm1055, %v9750, %v9754
        %v9757 = vshrl.u32 %v9540, 16
        %v9759 = vrot.slane %v9757, 4
        %v9760 = vshll.u32 %v9540, 16
        %v9762 = vrot.slane %v9760, 5
        %v9763 = vor.u32 %v9759, %v9762
        %v9764 = vrot.slane %v9763, 4
        %v9766 = vshll.u32 %v9541, 16
        %v9768 = vrot.slane %v9766, 5
        %v9769 = vsel %vm1055, %v9764, %v9768
        %v9770 = vshrl.u32 %v9541, 16
        %v9772 = vrot.slane %v9770, 4
        %v9773 = vor.u32 %v9772, %v9768
        %v9774 = vrot.slane %v9773, 4
        %v9776 = vshll.u32 %v9542, 16
        %v9778 = vrot.slane %v9776, 5
        %v9779 = vsel %vm1055, %v9774, %v9778
        %v9781 = vshrl.u32 %v9543, 16
        %v9783 = vrot.slane %v9781, 4
        %v9784 = vshll.u32 %v9543, 16
        %v9786 = vrot.slane %v9784, 5
        %v9787 = vor.u32 %v9783, %v9786
        %v9788 = vrot.slane %v9787, 4
        %v9790 = vshll.u32 %v9544, 16
        %v9792 = vrot.slane %v9790, 5
        %v9793 = vsel %vm1055, %v9788, %v9792
        %v9794 = vshrl.u32 %v9544, 16
        %v9796 = vrot.slane %v9794, 4
        %v9797 = vor.u32 %v9796, %v9792
        %v9798 = vrot.slane %v9797, 4
        %v9800 = vshll.u32 %v9545, 16
        %v9802 = vrot.slane %v9800, 5
        %v9803 = vsel %vm1055, %v9798, %v9802
        %v9805 = vshrl.u32 %v9546, 16
        %v9807 = vrot.slane %v9805, 4
        %v9808 = vshll.u32 %v9546, 16
        %v9810 = vrot.slane %v9808, 5
        %v9811 = vor.u32 %v9807, %v9810
        %v9812 = vrot.slane %v9811, 4
        %v9814 = vshll.u32 %v9547, 16
        %v9816 = vrot.slane %v9814, 5
        %v9817 = vsel %vm1055, %v9812, %v9816
        %v9818 = vshrl.u32 %v9547, 16
        %v9820 = vrot.slane %v9818, 4
        %v9821 = vor.u32 %v9820, %v9816
        %v9822 = vrot.slane %v9821, 4
        %v9824 = vshll.u32 %v9548, 16
        %v9826 = vrot.slane %v9824, 5
        %v9827 = vsel %vm1055, %v9822, %v9826
        %v9829 = vshrl.u32 %v9549, 16
        %v9831 = vrot.slane %v9829, 4
        %v9832 = vshll.u32 %v9549, 16
        %v9834 = vrot.slane %v9832, 5
        %v9835 = vor.u32 %v9831, %v9834
        %v9836 = vrot.slane %v9835, 4
        %v9838 = vshll.u32 %v9550, 16
        %v9840 = vrot.slane %v9838, 5
        %v9841 = vsel %vm1055, %v9836, %v9840
        %v9842 = vshrl.u32 %v9550, 16
        %v9844 = vrot.slane %v9842, 4
        %v9845 = vor.u32 %v9844, %v9840
        %v9846 = vrot.slane %v9845, 4
        %v9848 = vshll.u32 %v9551, 16
        %v9850 = vrot.slane %v9848, 5
        %v9851 = vsel %vm1055, %v9846, %v9850
        %v9853 = vshrl.u32 %v9552, 16
        %v9855 = vrot.slane %v9853, 4
        %v9856 = vshll.u32 %v9552, 16
        %v9858 = vrot.slane %v9856, 5
        %v9859 = vor.u32 %v9855, %v9858
        %v9860 = vrot.slane %v9859, 4
        %v9862 = vshll.u32 %v9553, 16
        %v9864 = vrot.slane %v9862, 5
        %v9865 = vsel %vm1055, %v9860, %v9864
        %v9866 = vshrl.u32 %v9553, 16
        %v9868 = vrot.slane %v9866, 4
        %v9869 = vor.u32 %v9868, %v9864
        %v9870 = vrot.slane %v9869, 4
        %v9872 = vshll.u32 %v9554, 16
        %v9874 = vrot.slane %v9872, 5
        %v9875 = vsel %vm1055, %v9870, %v9874
        %v9877 = vshrl.u32 %v9555, 16
        %v9879 = vrot.slane %v9877, 4
        %v9880 = vshll.u32 %v9555, 16
        %v9882 = vrot.slane %v9880, 5
        %v9883 = vor.u32 %v9879, %v9882
        %v9884 = vrot.slane %v9883, 4
        %v9886 = vshll.u32 %v9556, 16
        %v9888 = vrot.slane %v9886, 5
        %v9889 = vsel %vm1055, %v9884, %v9888
        %v9890 = vshrl.u32 %v9556, 16
        %v9892 = vrot.slane %v9890, 4
        %v9893 = vor.u32 %v9892, %v9888
        %v9894 = vrot.slane %v9893, 4
        %v9896 = vshll.u32 %v9557, 16
        %v9898 = vrot.slane %v9896, 5
        %v9899 = vsel %vm1055, %v9894, %v9898
        %v9901 = vshrl.u32 %v9558, 16
        %v9903 = vrot.slane %v9901, 4
        %v9904 = vshll.u32 %v9558, 16
        %v9906 = vrot.slane %v9904, 5
        %v9907 = vor.u32 %v9903, %v9906
        %v9908 = vrot.slane %v9907, 4
        %v9910 = vshll.u32 %v9559, 16
        %v9912 = vrot.slane %v9910, 5
        %v9913 = vsel %vm1055, %v9908, %v9912
        %v9914 = vshrl.u32 %v9559, 16
        %v9916 = vrot.slane %v9914, 4
        %v9917 = vor.u32 %v9916, %v9912
        %v9918 = vrot.slane %v9917, 4
        %v9920 = vshll.u32 %v9560, 16
        %v9922 = vrot.slane %v9920, 5
        %v9923 = vsel %vm1055, %v9918, %v9922
        %v9925 = vshrl.u32 %v9561, 16
        %v9927 = vrot.slane %v9925, 4
        %v9928 = vshll.u32 %v9561, 16
        %v9930 = vrot.slane %v9928, 5
        %v9931 = vor.u32 %v9927, %v9930
        %v9932 = vrot.slane %v9931, 4
        %v9934 = vshll.u32 %v9562, 16
        %v9936 = vrot.slane %v9934, 5
        %v9937 = vsel %vm1055, %v9932, %v9936
        %v9938 = vshrl.u32 %v9562, 16
        %v9940 = vrot.slane %v9938, 4
        %v9941 = vor.u32 %v9940, %v9936
        %v9942 = vrot.slane %v9941, 4
        %v9944 = vshll.u32 %v9563, 16
        %v9946 = vrot.slane %v9944, 5
        %v9947 = vsel %vm1055, %v9942, %v9946
        %s9948 = scalar_lea.vmem [#allocation10], 14
        %v9949 = vld [vmem:[%s9948] sm:$0x3]
        %v9950 = vunpack.c.l.b16 %v9577
        %v9951 = vunpack.c.l.b16 %v9587
        %v9952 = vunpack.c.l.b16 %v9601
        %v9953 = vunpack.c.l.b16 %v9611
        %v9954 = vunpack.c.l.b16 %v9625
        %v9955 = vunpack.c.l.b16 %v9635
        %v9956 = vunpack.c.l.b16 %v9649
        %v9957 = vunpack.c.l.b16 %v9659
        %v9958 = vunpack.c.l.b16 %v9673
        %v9959 = vunpack.c.l.b16 %v9683
        %v9960 = vunpack.c.l.b16 %v9697
        %v9961 = vunpack.c.l.b16 %v9707
        %v9962 = vunpack.c.l.b16 %v9721
        %v9963 = vunpack.c.l.b16 %v9731
        %v9964 = vunpack.c.l.b16 %v9745
        %v9965 = vunpack.c.l.b16 %v9755
        %v9966 = vunpack.c.l.b16 %v9769
        %v9967 = vunpack.c.l.b16 %v9779
        %v9968 = vunpack.c.l.b16 %v9793
        %v9969 = vunpack.c.l.b16 %v9803
        %v9970 = vunpack.c.l.b16 %v9817
        %v9971 = vunpack.c.l.b16 %v9827
        %v9972 = vunpack.c.l.b16 %v9841
        %v9973 = vunpack.c.l.b16 %v9851
        %v9974 = vunpack.c.l.b16 %v9865
        %v9975 = vunpack.c.l.b16 %v9875
        %v9976 = vunpack.c.l.b16 %v9889
        %v9977 = vunpack.c.l.b16 %v9899
        %v9978 = vunpack.c.l.b16 %v9913
        %v9979 = vunpack.c.l.b16 %v9923
        %v9980 = vunpack.c.l.b16 %v9937
        %v9981 = vunpack.c.l.b16 %v9947
        %v9982 = vpack.c.b16 %v9951, %v9950
        %v9983 = vpack.c.b16 %v9953, %v9952
        %v9984 = vpack.c.b16 %v9955, %v9954
        %v9985 = vpack.c.b16 %v9957, %v9956
        %v9986 = vpack.c.b16 %v9959, %v9958
        %v9987 = vpack.c.b16 %v9961, %v9960
        %v9988 = vpack.c.b16 %v9963, %v9962
        %v9989 = vpack.c.b16 %v9965, %v9964
        %v9990 = vpack.c.b16 %v9967, %v9966
        %v9991 = vpack.c.b16 %v9969, %v9968
        %v9992 = vpack.c.b16 %v9971, %v9970
        %v9993 = vpack.c.b16 %v9973, %v9972
        %v9994 = vpack.c.b16 %v9975, %v9974
        %v9995 = vpack.c.b16 %v9977, %v9976
        %v9996 = vpack.c.b16 %v9979, %v9978
        %v9997 = vpack.c.b16 %v9981, %v9980
        %v9999 = vsel %vm1490, %v9982, 0
        %v10002 = vsel %vm1490, %v9983, 0
        %v10005 = vsel %vm1490, %v9984, 0
        %v10008 = vsel %vm1490, %v9985, 0
        %v10011 = vsel %vm1490, %v9986, 0
        %v10014 = vsel %vm1490, %v9987, 0
        %v10017 = vsel %vm1490, %v9988, 0
        %v10020 = vsel %vm1490, %v9989, 0
        %v10023 = vsel %vm1490, %v9990, 0
        %v10026 = vsel %vm1490, %v9991, 0
        %v10029 = vsel %vm1490, %v9992, 0
        %v10032 = vsel %vm1490, %v9993, 0
        %v10035 = vsel %vm1490, %v9994, 0
        %v10038 = vsel %vm1490, %v9995, 0
        %v10041 = vsel %vm1490, %v9996, 0
        %v10044 = vsel %vm1490, %v9997, 0
        %v10047 = vsel %vm1539, %v9949, 0
        %10049 = vmatprep.subr.bf16.mxu0 0
        %10050 = vmatpush1.bf16.msra.mxu0 %v10047
        %10051 = vmatprep.subr.bf16.mxu0 0
        %10052 = vmatpush1.bf16.msra.mxu0 0
        %10053 = vmatprep.subr.bf16.mxu0 0
        %10054 = vmatpush1.bf16.msra.mxu0 0
        %10055 = vmatprep.subr.bf16.mxu0 0
        %10056 = vmatpush1.bf16.msra.mxu0 0
        %10057 = vmatprep.subr.bf16.mxu0 0
        %10058 = vmatpush1.bf16.msra.mxu0 0
        %10059 = vmatprep.subr.bf16.mxu0 0
        %10060 = vmatpush1.bf16.msra.mxu0 0
        %10061 = vmatprep.subr.bf16.mxu0 0
        %10062 = vmatpush1.bf16.msra.mxu0 0
        %10063 = vmatprep.subr.bf16.mxu0 0
        %10064 = vmatpush1.bf16.msra.mxu0 0
        %10065 = vmatprep.subr.bf16.mxu0 0
        %10066 = vmatpush1.bf16.msra.mxu0 0
        %10067 = vmatprep.subr.bf16.mxu0 0
        %10068 = vmatpush1.bf16.msra.mxu0 0
        %10069 = vmatprep.subr.bf16.mxu0 0
        %10070 = vmatpush1.bf16.msra.mxu0 0
        %10071 = vmatprep.subr.bf16.mxu0 0
        %10072 = vmatpush1.bf16.msra.mxu0 0
        %10073 = vmatprep.subr.bf16.mxu0 0
        %10074 = vmatpush1.bf16.msra.mxu0 0
        %10075 = vmatprep.subr.bf16.mxu0 0
        %10076 = vmatpush1.bf16.msra.mxu0 0
        %10077 = vmatprep.subr.bf16.mxu0 0
        %10078 = vmatpush1.bf16.msra.mxu0 0
        %10079 = vmatprep.subr.bf16.mxu0 0
        %10080 = vmatpush1.bf16.msra.mxu0 0
        %10081 = vmatprep.mubr.bf16.mxu0 0
        %10082 = vmatmul.mubr.bf16.gmra.mrb[0].mxu0 %v9999
        %v10083 = vpop.f32.mrb[0].mxu0
        %v10084 = vadd.f32 0.0, %v10083
        %v10085 = vpop.f32.mrb[0].mxu0
        %v10086 = vpop.f32.mrb[0].mxu0
        %v10087 = vadd.f32 0.0, %v10086
        %v10088 = vpop.f32.mrb[0].mxu0
        %10089 = vmatprep.mubr.bf16.mxu0 0
        %10090 = vmatmul.mubr.bf16.gmra.mrb[0].mxu0 %v10002
        %v10091 = vpop.f32.mrb[0].mxu0
        %v10092 = vadd.f32 0.0, %v10091
        %v10093 = vpop.f32.mrb[0].mxu0
        %v10094 = vpop.f32.mrb[0].mxu0
        %v10095 = vadd.f32 0.0, %v10094
        %v10096 = vpop.f32.mrb[0].mxu0
        %10097 = vmatprep.mubr.bf16.mxu0 0
        %10098 = vmatmul.mubr.bf16.gmra.mrb[0].mxu0 %v10005
        %v10099 = vpop.f32.mrb[0].mxu0
        %v10100 = vadd.f32 0.0, %v10099
        %v10101 = vpop.f32.mrb[0].mxu0
        %v10102 = vpop.f32.mrb[0].mxu0
        %v10103 = vadd.f32 0.0, %v10102
        %v10104 = vpop.f32.mrb[0].mxu0
        %10105 = vmatprep.mubr.bf16.mxu0 0
        %10106 = vmatmul.mubr.bf16.gmra.mrb[0].mxu0 %v10008
        %v10107 = vpop.f32.mrb[0].mxu0
        %v10108 = vadd.f32 0.0, %v10107
        %v10109 = vpop.f32.mrb[0].mxu0
        %v10110 = vpop.f32.mrb[0].mxu0
        %v10111 = vadd.f32 0.0, %v10110
        %v10112 = vpop.f32.mrb[0].mxu0
        %10113 = vmatprep.mubr.bf16.mxu0 0
        %10114 = vmatmul.mubr.bf16.gmra.mrb[0].mxu0 %v10011
        %v10115 = vpop.f32.mrb[0].mxu0
        %v10116 = vadd.f32 0.0, %v10115
        %v10117 = vpop.f32.mrb[0].mxu0
        %v10118 = vpop.f32.mrb[0].mxu0
        %v10119 = vadd.f32 0.0, %v10118
        %v10120 = vpop.f32.mrb[0].mxu0
        %10121 = vmatprep.mubr.bf16.mxu0 0
        %10122 = vmatmul.mubr.bf16.gmra.mrb[0].mxu0 %v10014
        %v10123 = vpop.f32.mrb[0].mxu0
        %v10124 = vadd.f32 0.0, %v10123
        %v10125 = vpop.f32.mrb[0].mxu0
        %v10126 = vpop.f32.mrb[0].mxu0
        %v10127 = vadd.f32 0.0, %v10126
        %v10128 = vpop.f32.mrb[0].mxu0
        %10129 = vmatprep.mubr.bf16.mxu0 0
        %10130 = vmatmul.mubr.bf16.gmra.mrb[0].mxu0 %v10017
        %v10131 = vpop.f32.mrb[0].mxu0
        %v10132 = vadd.f32 0.0, %v10131
        %v10133 = vpop.f32.mrb[0].mxu0
        %v10134 = vpop.f32.mrb[0].mxu0
        %v10135 = vadd.f32 0.0, %v10134
        %v10136 = vpop.f32.mrb[0].mxu0
        %10137 = vmatprep.mubr.bf16.mxu0 0
        %10138 = vmatmul.mubr.bf16.gmra.mrb[0].mxu0 %v10020
        %v10139 = vpop.f32.mrb[0].mxu0
        %v10140 = vadd.f32 0.0, %v10139
        %v10141 = vpop.f32.mrb[0].mxu0
        %v10142 = vpop.f32.mrb[0].mxu0
        %v10143 = vadd.f32 0.0, %v10142
        %v10144 = vpop.f32.mrb[0].mxu0
        %10145 = vmatprep.mubr.bf16.mxu0 0
        %10146 = vmatmul.mubr.bf16.gmra.mrb[0].mxu0 %v10023
        %v10147 = vpop.f32.mrb[0].mxu0
        %v10148 = vadd.f32 0.0, %v10147
        %v10149 = vpop.f32.mrb[0].mxu0
        %v10150 = vpop.f32.mrb[0].mxu0
        %v10151 = vadd.f32 0.0, %v10150
        %v10152 = vpop.f32.mrb[0].mxu0
        %10153 = vmatprep.mubr.bf16.mxu0 0
        %10154 = vmatmul.mubr.bf16.gmra.mrb[0].mxu0 %v10026
        %v10155 = vpop.f32.mrb[0].mxu0
        %v10156 = vadd.f32 0.0, %v10155
        %v10157 = vpop.f32.mrb[0].mxu0
        %v10158 = vpop.f32.mrb[0].mxu0
        %v10159 = vadd.f32 0.0, %v10158
        %v10160 = vpop.f32.mrb[0].mxu0
        %10161 = vmatprep.mubr.bf16.mxu0 0
        %10162 = vmatmul.mubr.bf16.gmra.mrb[0].mxu0 %v10029
        %v10163 = vpop.f32.mrb[0].mxu0
        %v10164 = vadd.f32 0.0, %v10163
        %v10165 = vpop.f32.mrb[0].mxu0
        %v10166 = vpop.f32.mrb[0].mxu0
        %v10167 = vadd.f32 0.0, %v10166
        %v10168 = vpop.f32.mrb[0].mxu0
        %10169 = vmatprep.mubr.bf16.mxu0 0
        %10170 = vmatmul.mubr.bf16.gmra.mrb[0].mxu0 %v10032
        %v10171 = vpop.f32.mrb[0].mxu0
        %v10172 = vadd.f32 0.0, %v10171
        %v10173 = vpop.f32.mrb[0].mxu0
        %v10174 = vpop.f32.mrb[0].mxu0
        %v10175 = vadd.f32 0.0, %v10174
        %v10176 = vpop.f32.mrb[0].mxu0
        %10177 = vmatprep.mubr.bf16.mxu0 0
        %10178 = vmatmul.mubr.bf16.gmra.mrb[0].mxu0 %v10035
        %v10179 = vpop.f32.mrb[0].mxu0
        %v10180 = vadd.f32 0.0, %v10179
        %v10181 = vpop.f32.mrb[0].mxu0
        %v10182 = vpop.f32.mrb[0].mxu0
        %v10183 = vadd.f32 0.0, %v10182
        %v10184 = vpop.f32.mrb[0].mxu0
        %10185 = vmatprep.mubr.bf16.mxu0 0
        %10186 = vmatmul.mubr.bf16.gmra.mrb[0].mxu0 %v10038
        %v10187 = vpop.f32.mrb[0].mxu0
        %v10188 = vadd.f32 0.0, %v10187
        %v10189 = vpop.f32.mrb[0].mxu0
        %v10190 = vpop.f32.mrb[0].mxu0
        %v10191 = vadd.f32 0.0, %v10190
        %v10192 = vpop.f32.mrb[0].mxu0
        %10193 = vmatprep.mubr.bf16.mxu0 0
        %10194 = vmatmul.mubr.bf16.gmra.mrb[0].mxu0 %v10041
        %v10195 = vpop.f32.mrb[0].mxu0
        %v10196 = vadd.f32 0.0, %v10195
        %v10197 = vpop.f32.mrb[0].mxu0
        %v10198 = vpop.f32.mrb[0].mxu0
        %v10199 = vadd.f32 0.0, %v10198
        %v10200 = vpop.f32.mrb[0].mxu0
        %10201 = vmatprep.mubr.bf16.mxu0 0
        %10202 = vmatmul.mubr.bf16.gmra.mrb[0].mxu0 %v10044
        %v10203 = vpop.f32.mrb[0].mxu0
        %v10204 = vadd.f32 0.0, %v10203
        %v10205 = vpop.f32.mrb[0].mxu0
        %v10206 = vpop.f32.mrb[0].mxu0
        %v10207 = vadd.f32 0.0, %v10206
        %v10208 = vpop.f32.mrb[0].mxu0
        %10209 = vdwg.mxu0
        %v10210 = vadd.f32 %v9484, %v10084
        %v10211 = vadd.f32 %v9485, %v10087
        %v10212 = vadd.f32 %v9486, %v10092
        %v10213 = vadd.f32 %v9487, %v10095
        %v10214 = vadd.f32 %v9488, %v10100
        %v10215 = vadd.f32 %v9489, %v10103
        %v10216 = vadd.f32 %v9490, %v10108
        %v10217 = vadd.f32 %v9491, %v10111
        %v10218 = vadd.f32 %v9492, %v10116
        %v10219 = vadd.f32 %v9493, %v10119
        %v10220 = vadd.f32 %v9494, %v10124
        %v10221 = vadd.f32 %v9495, %v10127
        %v10222 = vadd.f32 %v9496, %v10132
        %v10223 = vadd.f32 %v9497, %v10135
        %v10224 = vadd.f32 %v9498, %v10140
        %v10225 = vadd.f32 %v9499, %v10143
        %v10226 = vadd.f32 %v9500, %v10148
        %v10227 = vadd.f32 %v9501, %v10151
        %v10228 = vadd.f32 %v9502, %v10156
        %v10229 = vadd.f32 %v9503, %v10159
        %v10230 = vadd.f32 %v9504, %v10164
        %v10231 = vadd.f32 %v9505, %v10167
        %v10232 = vadd.f32 %v9506, %v10172
        %v10233 = vadd.f32 %v9507, %v10175
        %v10234 = vadd.f32 %v9508, %v10180
        %v10235 = vadd.f32 %v9509, %v10183
        %v10236 = vadd.f32 %v9510, %v10188
        %v10237 = vadd.f32 %v9511, %v10191
        %v10238 = vadd.f32 %v9512, %v10196
        %v10239 = vadd.f32 %v9513, %v10199
        %v10240 = vadd.f32 %v9514, %v10204
        %v10241 = vadd.f32 %v9515, %v10207
        %v10242 = vld [vmem:[%s9157] sm:$0xe]
        %v10243 = vld [vmem:[%s9157 + $0xc] sm:$0xe]
        %v10244 = vld [vmem:[%s9157 + $0x18] sm:$0xe]
        %v10245 = vld [vmem:[%s9157 + $0x24] sm:$0xe]
        %v10246 = vld [vmem:[%s9157 + $0x30] sm:$0xe]
        %v10247 = vld [vmem:[%s9157 + $0x3c] sm:$0xe]
        %v10248 = vld [vmem:[%s9157 + $0x48] sm:$0xe]
        %v10249 = vld [vmem:[%s9157 + $0x54] sm:$0xe]
        %v10250 = vld [vmem:[%s9157 + $0x60] sm:$0xe]
        %v10251 = vld [vmem:[%s9157 + $0x6c] sm:$0xe]
        %v10252 = vld [vmem:[%s9157 + $0x78] sm:$0xe]
        %v10253 = vld [vmem:[%s9157 + $0x84] sm:$0xe]
        %v10254 = vld [vmem:[%s9157 + $0x90] sm:$0xe]
        %v10255 = vld [vmem:[%s9157 + $0x9c] sm:$0xe]
        %v10256 = vld [vmem:[%s9157 + $0xa8] sm:$0xe]
        %v10257 = vld [vmem:[%s9157 + $0xb4] sm:$0xe]
        %v10306 = vrot.slane %v10242, 5
        %v10307 = vrot.slane %v10306, 4
        %v10308 = vrot.slane %v9517, 5
        %v10309 = vsel %vm2046, %v10307, %v10308
        %v10310 = vrot.slane %v10308, 4
        %v10311 = vrot.slane %v9518, 5
        %v10312 = vsel %vm2046, %v10310, %v10311
        %v10313 = vrot.slane %v10243, 5
        %v10314 = vrot.slane %v10313, 4
        %v10315 = vrot.slane %v9520, 5
        %v10316 = vsel %vm2046, %v10314, %v10315
        %v10317 = vrot.slane %v10315, 4
        %v10318 = vrot.slane %v9521, 5
        %v10319 = vsel %vm2046, %v10317, %v10318
        %v10320 = vrot.slane %v10244, 5
        %v10321 = vrot.slane %v10320, 4
        %v10322 = vrot.slane %v9523, 5
        %v10323 = vsel %vm2046, %v10321, %v10322
        %v10324 = vrot.slane %v10322, 4
        %v10325 = vrot.slane %v9524, 5
        %v10326 = vsel %vm2046, %v10324, %v10325
        %v10327 = vrot.slane %v10245, 5
        %v10328 = vrot.slane %v10327, 4
        %v10329 = vrot.slane %v9526, 5
        %v10330 = vsel %vm2046, %v10328, %v10329
        %v10331 = vrot.slane %v10329, 4
        %v10332 = vrot.slane %v9527, 5
        %v10333 = vsel %vm2046, %v10331, %v10332
        %v10334 = vrot.slane %v10246, 5
        %v10335 = vrot.slane %v10334, 4
        %v10336 = vrot.slane %v9529, 5
        %v10337 = vsel %vm2046, %v10335, %v10336
        %v10338 = vrot.slane %v10336, 4
        %v10339 = vrot.slane %v9530, 5
        %v10340 = vsel %vm2046, %v10338, %v10339
        %v10341 = vrot.slane %v10247, 5
        %v10342 = vrot.slane %v10341, 4
        %v10343 = vrot.slane %v9532, 5
        %v10344 = vsel %vm2046, %v10342, %v10343
        %v10345 = vrot.slane %v10343, 4
        %v10346 = vrot.slane %v9533, 5
        %v10347 = vsel %vm2046, %v10345, %v10346
        %v10348 = vrot.slane %v10248, 5
        %v10349 = vrot.slane %v10348, 4
        %v10350 = vrot.slane %v9535, 5
        %v10351 = vsel %vm2046, %v10349, %v10350
        %v10352 = vrot.slane %v10350, 4
        %v10353 = vrot.slane %v9536, 5
        %v10354 = vsel %vm2046, %v10352, %v10353
        %v10355 = vrot.slane %v10249, 5
        %v10356 = vrot.slane %v10355, 4
        %v10357 = vrot.slane %v9538, 5
        %v10358 = vsel %vm2046, %v10356, %v10357
        %v10359 = vrot.slane %v10357, 4
        %v10360 = vrot.slane %v9539, 5
        %v10361 = vsel %vm2046, %v10359, %v10360
        %v10362 = vrot.slane %v10250, 5
        %v10363 = vrot.slane %v10362, 4
        %v10364 = vrot.slane %v9541, 5
        %v10365 = vsel %vm2046, %v10363, %v10364
        %v10366 = vrot.slane %v10364, 4
        %v10367 = vrot.slane %v9542, 5
        %v10368 = vsel %vm2046, %v10366, %v10367
        %v10369 = vrot.slane %v10251, 5
        %v10370 = vrot.slane %v10369, 4
        %v10371 = vrot.slane %v9544, 5
        %v10372 = vsel %vm2046, %v10370, %v10371
        %v10373 = vrot.slane %v10371, 4
        %v10374 = vrot.slane %v9545, 5
        %v10375 = vsel %vm2046, %v10373, %v10374
        %v10376 = vrot.slane %v10252, 5
        %v10377 = vrot.slane %v10376, 4
        %v10378 = vrot.slane %v9547, 5
        %v10379 = vsel %vm2046, %v10377, %v10378
        %v10380 = vrot.slane %v10378, 4
        %v10381 = vrot.slane %v9548, 5
        %v10382 = vsel %vm2046, %v10380, %v10381
        %v10383 = vrot.slane %v10253, 5
        %v10384 = vrot.slane %v10383, 4
        %v10385 = vrot.slane %v9550, 5
        %v10386 = vsel %vm2046, %v10384, %v10385
        %v10387 = vrot.slane %v10385, 4
        %v10388 = vrot.slane %v9551, 5
        %v10389 = vsel %vm2046, %v10387, %v10388
        %v10390 = vrot.slane %v10254, 5
        %v10391 = vrot.slane %v10390, 4
        %v10392 = vrot.slane %v9553, 5
        %v10393 = vsel %vm2046, %v10391, %v10392
        %v10394 = vrot.slane %v10392, 4
        %v10395 = vrot.slane %v9554, 5
        %v10396 = vsel %vm2046, %v10394, %v10395
        %v10397 = vrot.slane %v10255, 5
        %v10398 = vrot.slane %v10397, 4
        %v10399 = vrot.slane %v9556, 5
        %v10400 = vsel %vm2046, %v10398, %v10399
        %v10401 = vrot.slane %v10399, 4
        %v10402 = vrot.slane %v9557, 5
        %v10403 = vsel %vm2046, %v10401, %v10402
        %v10404 = vrot.slane %v10256, 5
        %v10405 = vrot.slane %v10404, 4
        %v10406 = vrot.slane %v9559, 5
        %v10407 = vsel %vm2046, %v10405, %v10406
        %v10408 = vrot.slane %v10406, 4
        %v10409 = vrot.slane %v9560, 5
        %v10410 = vsel %vm2046, %v10408, %v10409
        %v10411 = vrot.slane %v10257, 5
        %v10412 = vrot.slane %v10411, 4
        %v10413 = vrot.slane %v9562, 5
        %v10414 = vsel %vm2046, %v10412, %v10413
        %v10415 = vrot.slane %v10413, 4
        %v10416 = vrot.slane %v9563, 5
        %v10417 = vsel %vm2046, %v10415, %v10416
        %s10418 = scalar_lea.vmem [#allocation10], 16
        %v10419 = vld [vmem:[%s10418] sm:$0x3]
        %v10420 = vunpack.c.l.b16 %v10309
        %v10421 = vunpack.c.l.b16 %v10312
        %v10422 = vunpack.c.l.b16 %v10316
        %v10423 = vunpack.c.l.b16 %v10319
        %v10424 = vunpack.c.l.b16 %v10323
        %v10425 = vunpack.c.l.b16 %v10326
        %v10426 = vunpack.c.l.b16 %v10330
        %v10427 = vunpack.c.l.b16 %v10333
        %v10428 = vunpack.c.l.b16 %v10337
        %v10429 = vunpack.c.l.b16 %v10340
        %v10430 = vunpack.c.l.b16 %v10344
        %v10431 = vunpack.c.l.b16 %v10347
        %v10432 = vunpack.c.l.b16 %v10351
        %v10433 = vunpack.c.l.b16 %v10354
        %v10434 = vunpack.c.l.b16 %v10358
        %v10435 = vunpack.c.l.b16 %v10361
        %v10436 = vunpack.c.l.b16 %v10365
        %v10437 = vunpack.c.l.b16 %v10368
        %v10438 = vunpack.c.l.b16 %v10372
        %v10439 = vunpack.c.l.b16 %v10375
        %v10440 = vunpack.c.l.b16 %v10379
        %v10441 = vunpack.c.l.b16 %v10382
        %v10442 = vunpack.c.l.b16 %v10386
        %v10443 = vunpack.c.l.b16 %v10389
        %v10444 = vunpack.c.l.b16 %v10393
        %v10445 = vunpack.c.l.b16 %v10396
        %v10446 = vunpack.c.l.b16 %v10400
        %v10447 = vunpack.c.l.b16 %v10403
        %v10448 = vunpack.c.l.b16 %v10407
        %v10449 = vunpack.c.l.b16 %v10410
        %v10450 = vunpack.c.l.b16 %v10414
        %v10451 = vunpack.c.l.b16 %v10417
        %v10452 = vpack.c.b16 %v10421, %v10420
        %v10453 = vpack.c.b16 %v10423, %v10422
        %v10454 = vpack.c.b16 %v10425, %v10424
        %v10455 = vpack.c.b16 %v10427, %v10426
        %v10456 = vpack.c.b16 %v10429, %v10428
        %v10457 = vpack.c.b16 %v10431, %v10430
        %v10458 = vpack.c.b16 %v10433, %v10432
        %v10459 = vpack.c.b16 %v10435, %v10434
        %v10460 = vpack.c.b16 %v10437, %v10436
        %v10461 = vpack.c.b16 %v10439, %v10438
        %v10462 = vpack.c.b16 %v10441, %v10440
        %v10463 = vpack.c.b16 %v10443, %v10442
        %v10464 = vpack.c.b16 %v10445, %v10444
        %v10465 = vpack.c.b16 %v10447, %v10446
        %v10466 = vpack.c.b16 %v10449, %v10448
        %v10467 = vpack.c.b16 %v10451, %v10450
        %v10469 = vsel %vm1490, %v10452, 0
        %v10472 = vsel %vm1490, %v10453, 0
        %v10475 = vsel %vm1490, %v10454, 0
        %v10478 = vsel %vm1490, %v10455, 0
        %v10481 = vsel %vm1490, %v10456, 0
        %v10484 = vsel %vm1490, %v10457, 0
        %v10487 = vsel %vm1490, %v10458, 0
        %v10490 = vsel %vm1490, %v10459, 0
        %v10493 = vsel %vm1490, %v10460, 0
        %v10496 = vsel %vm1490, %v10461, 0
        %v10499 = vsel %vm1490, %v10462, 0
        %v10502 = vsel %vm1490, %v10463, 0
        %v10505 = vsel %vm1490, %v10464, 0
        %v10508 = vsel %vm1490, %v10465, 0
        %v10511 = vsel %vm1490, %v10466, 0
        %v10514 = vsel %vm1490, %v10467, 0
        %v10517 = vsel %vm1539, %v10419, 0
        %10519 = vmatprep.subr.bf16.mxu0 0
        %10520 = vmatpush1.bf16.msra.mxu0 %v10517
        %10521 = vmatprep.subr.bf16.mxu0 0
        %10522 = vmatpush1.bf16.msra.mxu0 0
        %10523 = vmatprep.subr.bf16.mxu0 0
        %10524 = vmatpush1.bf16.msra.mxu0 0
        %10525 = vmatprep.subr.bf16.mxu0 0
        %10526 = vmatpush1.bf16.msra.mxu0 0
        %10527 = vmatprep.subr.bf16.mxu0 0
        %10528 = vmatpush1.bf16.msra.mxu0 0
        %10529 = vmatprep.subr.bf16.mxu0 0
        %10530 = vmatpush1.bf16.msra.mxu0 0
        %10531 = vmatprep.subr.bf16.mxu0 0
        %10532 = vmatpush1.bf16.msra.mxu0 0
        %10533 = vmatprep.subr.bf16.mxu0 0
        %10534 = vmatpush1.bf16.msra.mxu0 0
        %10535 = vmatprep.subr.bf16.mxu0 0
        %10536 = vmatpush1.bf16.msra.mxu0 0
        %10537 = vmatprep.subr.bf16.mxu0 0
        %10538 = vmatpush1.bf16.msra.mxu0 0
        %10539 = vmatprep.subr.bf16.mxu0 0
        %10540 = vmatpush1.bf16.msra.mxu0 0
        %10541 = vmatprep.subr.bf16.mxu0 0
        %10542 = vmatpush1.bf16.msra.mxu0 0
        %10543 = vmatprep.subr.bf16.mxu0 0
        %10544 = vmatpush1.bf16.msra.mxu0 0
        %10545 = vmatprep.subr.bf16.mxu0 0
        %10546 = vmatpush1.bf16.msra.mxu0 0
        %10547 = vmatprep.subr.bf16.mxu0 0
        %10548 = vmatpush1.bf16.msra.mxu0 0
        %10549 = vmatprep.subr.bf16.mxu0 0
        %10550 = vmatpush1.bf16.msra.mxu0 0
        %10551 = vmatprep.mubr.bf16.mxu0 0
        %10552 = vmatmul.mubr.bf16.gmra.mrb[0].mxu0 %v10469
        %v10553 = vpop.f32.mrb[0].mxu0
        %v10554 = vadd.f32 0.0, %v10553
        %v10555 = vpop.f32.mrb[0].mxu0
        %v10556 = vpop.f32.mrb[0].mxu0
        %v10557 = vadd.f32 0.0, %v10556
        %v10558 = vpop.f32.mrb[0].mxu0
        %10559 = vmatprep.mubr.bf16.mxu0 0
        %10560 = vmatmul.mubr.bf16.gmra.mrb[0].mxu0 %v10472
        %v10561 = vpop.f32.mrb[0].mxu0
        %v10562 = vadd.f32 0.0, %v10561
        %v10563 = vpop.f32.mrb[0].mxu0
        %v10564 = vpop.f32.mrb[0].mxu0
        %v10565 = vadd.f32 0.0, %v10564
        %v10566 = vpop.f32.mrb[0].mxu0
        %10567 = vmatprep.mubr.bf16.mxu0 0
        %10568 = vmatmul.mubr.bf16.gmra.mrb[0].mxu0 %v10475
        %v10569 = vpop.f32.mrb[0].mxu0
        %v10570 = vadd.f32 0.0, %v10569
        %v10571 = vpop.f32.mrb[0].mxu0
        %v10572 = vpop.f32.mrb[0].mxu0
        %v10573 = vadd.f32 0.0, %v10572
        %v10574 = vpop.f32.mrb[0].mxu0
        %10575 = vmatprep.mubr.bf16.mxu0 0
        %10576 = vmatmul.mubr.bf16.gmra.mrb[0].mxu0 %v10478
        %v10577 = vpop.f32.mrb[0].mxu0
        %v10578 = vadd.f32 0.0, %v10577
        %v10579 = vpop.f32.mrb[0].mxu0
        %v10580 = vpop.f32.mrb[0].mxu0
        %v10581 = vadd.f32 0.0, %v10580
        %v10582 = vpop.f32.mrb[0].mxu0
        %10583 = vmatprep.mubr.bf16.mxu0 0
        %10584 = vmatmul.mubr.bf16.gmra.mrb[0].mxu0 %v10481
        %v10585 = vpop.f32.mrb[0].mxu0
        %v10586 = vadd.f32 0.0, %v10585
        %v10587 = vpop.f32.mrb[0].mxu0
        %v10588 = vpop.f32.mrb[0].mxu0
        %v10589 = vadd.f32 0.0, %v10588
        %v10590 = vpop.f32.mrb[0].mxu0
        %10591 = vmatprep.mubr.bf16.mxu0 0
        %10592 = vmatmul.mubr.bf16.gmra.mrb[0].mxu0 %v10484
        %v10593 = vpop.f32.mrb[0].mxu0
        %v10594 = vadd.f32 0.0, %v10593
        %v10595 = vpop.f32.mrb[0].mxu0
        %v10596 = vpop.f32.mrb[0].mxu0
        %v10597 = vadd.f32 0.0, %v10596
        %v10598 = vpop.f32.mrb[0].mxu0
        %10599 = vmatprep.mubr.bf16.mxu0 0
        %10600 = vmatmul.mubr.bf16.gmra.mrb[0].mxu0 %v10487
        %v10601 = vpop.f32.mrb[0].mxu0
        %v10602 = vadd.f32 0.0, %v10601
        %v10603 = vpop.f32.mrb[0].mxu0
        %v10604 = vpop.f32.mrb[0].mxu0
        %v10605 = vadd.f32 0.0, %v10604
        %v10606 = vpop.f32.mrb[0].mxu0
        %10607 = vmatprep.mubr.bf16.mxu0 0
        %10608 = vmatmul.mubr.bf16.gmra.mrb[0].mxu0 %v10490
        %v10609 = vpop.f32.mrb[0].mxu0
        %v10610 = vadd.f32 0.0, %v10609
        %v10611 = vpop.f32.mrb[0].mxu0
        %v10612 = vpop.f32.mrb[0].mxu0
        %v10613 = vadd.f32 0.0, %v10612
        %v10614 = vpop.f32.mrb[0].mxu0
        %10615 = vmatprep.mubr.bf16.mxu0 0
        %10616 = vmatmul.mubr.bf16.gmra.mrb[0].mxu0 %v10493
        %v10617 = vpop.f32.mrb[0].mxu0
        %v10618 = vadd.f32 0.0, %v10617
        %v10619 = vpop.f32.mrb[0].mxu0
        %v10620 = vpop.f32.mrb[0].mxu0
        %v10621 = vadd.f32 0.0, %v10620
        %v10622 = vpop.f32.mrb[0].mxu0
        %10623 = vmatprep.mubr.bf16.mxu0 0
        %10624 = vmatmul.mubr.bf16.gmra.mrb[0].mxu0 %v10496
        %v10625 = vpop.f32.mrb[0].mxu0
        %v10626 = vadd.f32 0.0, %v10625
        %v10627 = vpop.f32.mrb[0].mxu0
        %v10628 = vpop.f32.mrb[0].mxu0
        %v10629 = vadd.f32 0.0, %v10628
        %v10630 = vpop.f32.mrb[0].mxu0
        %10631 = vmatprep.mubr.bf16.mxu0 0
        %10632 = vmatmul.mubr.bf16.gmra.mrb[0].mxu0 %v10499
        %v10633 = vpop.f32.mrb[0].mxu0
        %v10634 = vadd.f32 0.0, %v10633
        %v10635 = vpop.f32.mrb[0].mxu0
        %v10636 = vpop.f32.mrb[0].mxu0
        %v10637 = vadd.f32 0.0, %v10636
        %v10638 = vpop.f32.mrb[0].mxu0
        %10639 = vmatprep.mubr.bf16.mxu0 0
        %10640 = vmatmul.mubr.bf16.gmra.mrb[0].mxu0 %v10502
        %v10641 = vpop.f32.mrb[0].mxu0
        %v10642 = vadd.f32 0.0, %v10641
        %v10643 = vpop.f32.mrb[0].mxu0
        %v10644 = vpop.f32.mrb[0].mxu0
        %v10645 = vadd.f32 0.0, %v10644
        %v10646 = vpop.f32.mrb[0].mxu0
        %10647 = vmatprep.mubr.bf16.mxu0 0
        %10648 = vmatmul.mubr.bf16.gmra.mrb[0].mxu0 %v10505
        %v10649 = vpop.f32.mrb[0].mxu0
        %v10650 = vadd.f32 0.0, %v10649
        %v10651 = vpop.f32.mrb[0].mxu0
        %v10652 = vpop.f32.mrb[0].mxu0
        %v10653 = vadd.f32 0.0, %v10652
        %v10654 = vpop.f32.mrb[0].mxu0
        %10655 = vmatprep.mubr.bf16.mxu0 0
        %10656 = vmatmul.mubr.bf16.gmra.mrb[0].mxu0 %v10508
        %v10657 = vpop.f32.mrb[0].mxu0
        %v10658 = vadd.f32 0.0, %v10657
        %v10659 = vpop.f32.mrb[0].mxu0
        %v10660 = vpop.f32.mrb[0].mxu0
        %v10661 = vadd.f32 0.0, %v10660
        %v10662 = vpop.f32.mrb[0].mxu0
        %10663 = vmatprep.mubr.bf16.mxu0 0
        %10664 = vmatmul.mubr.bf16.gmra.mrb[0].mxu0 %v10511
        %v10665 = vpop.f32.mrb[0].mxu0
        %v10666 = vadd.f32 0.0, %v10665
        %v10667 = vpop.f32.mrb[0].mxu0
        %v10668 = vpop.f32.mrb[0].mxu0
        %v10669 = vadd.f32 0.0, %v10668
        %v10670 = vpop.f32.mrb[0].mxu0
        %10671 = vmatprep.mubr.bf16.mxu0 0
        %10672 = vmatmul.mubr.bf16.gmra.mrb[0].mxu0 %v10514
        %v10673 = vpop.f32.mrb[0].mxu0
        %v10674 = vadd.f32 0.0, %v10673
        %v10675 = vpop.f32.mrb[0].mxu0
        %v10676 = vpop.f32.mrb[0].mxu0
        %v10677 = vadd.f32 0.0, %v10676
        %v10678 = vpop.f32.mrb[0].mxu0
        %10679 = vdwg.mxu0
        %v10680 = vadd.f32 %v10210, %v10554
        %v10681 = vadd.f32 %v10211, %v10557
        %v10682 = vadd.f32 %v10212, %v10562
        %v10683 = vadd.f32 %v10213, %v10565
        %v10684 = vadd.f32 %v10214, %v10570
        %v10685 = vadd.f32 %v10215, %v10573
        %v10686 = vadd.f32 %v10216, %v10578
        %v10687 = vadd.f32 %v10217, %v10581
        %v10688 = vadd.f32 %v10218, %v10586
        %v10689 = vadd.f32 %v10219, %v10589
        %v10690 = vadd.f32 %v10220, %v10594
        %v10691 = vadd.f32 %v10221, %v10597
        %v10692 = vadd.f32 %v10222, %v10602
        %v10693 = vadd.f32 %v10223, %v10605
        %v10694 = vadd.f32 %v10224, %v10610
        %v10695 = vadd.f32 %v10225, %v10613
        %v10696 = vadd.f32 %v10226, %v10618
        %v10697 = vadd.f32 %v10227, %v10621
        %v10698 = vadd.f32 %v10228, %v10626
        %v10699 = vadd.f32 %v10229, %v10629
        %v10700 = vadd.f32 %v10230, %v10634
        %v10701 = vadd.f32 %v10231, %v10637
        %v10702 = vadd.f32 %v10232, %v10642
        %v10703 = vadd.f32 %v10233, %v10645
        %v10704 = vadd.f32 %v10234, %v10650
        %v10705 = vadd.f32 %v10235, %v10653
        %v10706 = vadd.f32 %v10236, %v10658
        %v10707 = vadd.f32 %v10237, %v10661
        %v10708 = vadd.f32 %v10238, %v10666
        %v10709 = vadd.f32 %v10239, %v10669
        %v10710 = vadd.f32 %v10240, %v10674
        %v10711 = vadd.f32 %v10241, %v10677
        %v10712 = vld [vmem:[#allocation12] sm:$0x1]
        %v10714 = vlaneseq
        %v10715 = vshrl.u32 %v10714, 7
        %v10716 = vsub.s32 0, %v10715
        %v10717 = vrot.slane %v10712, %v10716
        %v10719 = vadd.f32 %v10680, %v10717
        %v10720 = vadd.f32 %v10681, %v10717
        %v10721 = vadd.f32 %v10682, %v10717
        %v10722 = vadd.f32 %v10683, %v10717
        %v10723 = vadd.f32 %v10684, %v10717
        %v10724 = vadd.f32 %v10685, %v10717
        %v10725 = vadd.f32 %v10686, %v10717
        %v10726 = vadd.f32 %v10687, %v10717
        %v10727 = vadd.f32 %v10688, %v10717
        %v10728 = vadd.f32 %v10689, %v10717
        %v10729 = vadd.f32 %v10690, %v10717
        %v10730 = vadd.f32 %v10691, %v10717
        %v10731 = vadd.f32 %v10692, %v10717
        %v10732 = vadd.f32 %v10693, %v10717
        %v10733 = vadd.f32 %v10694, %v10717
        %v10734 = vadd.f32 %v10695, %v10717
        %v10735 = vadd.f32 %v10696, %v10717
        %v10736 = vadd.f32 %v10697, %v10717
        %v10737 = vadd.f32 %v10698, %v10717
        %v10738 = vadd.f32 %v10699, %v10717
        %v10739 = vadd.f32 %v10700, %v10717
        %v10740 = vadd.f32 %v10701, %v10717
        %v10741 = vadd.f32 %v10702, %v10717
        %v10742 = vadd.f32 %v10703, %v10717
        %v10743 = vadd.f32 %v10704, %v10717
        %v10744 = vadd.f32 %v10705, %v10717
        %v10745 = vadd.f32 %v10706, %v10717
        %v10746 = vadd.f32 %v10707, %v10717
        %v10747 = vadd.f32 %v10708, %v10717
        %v10748 = vadd.f32 %v10709, %v10717
        %v10749 = vadd.f32 %v10710, %v10717
        %v10750 = vadd.f32 %v10711, %v10717
        %v10751 = vld [vmem:[%s254] sm:$0xf]
        %v10752 = vld [vmem:[%s254 + $0x4] sm:$0xf]
        %v10753 = vld [vmem:[%s254 + $0x8] sm:$0xf]
        %v10754 = vld [vmem:[%s254 + $0xc] sm:$0xf]
        %v10755 = vld [vmem:[%s254 + $0x10] sm:$0xf]
        %v10756 = vld [vmem:[%s254 + $0x14] sm:$0xf]
        %v10757 = vld [vmem:[%s254 + $0x18] sm:$0xf]
        %v10758 = vld [vmem:[%s254 + $0x1c] sm:$0xf]
        %v10759 = vld [vmem:[%s254 + $0x20] sm:$0xf]
        %v10760 = vld [vmem:[%s254 + $0x24] sm:$0xf]
        %v10761 = vld [vmem:[%s254 + $0x28] sm:$0xf]
        %v10762 = vld [vmem:[%s254 + $0x2c] sm:$0xf]
        %v10763 = vld [vmem:[%s254 + $0x30] sm:$0xf]
        %v10764 = vld [vmem:[%s254 + $0x34] sm:$0xf]
        %v10765 = vld [vmem:[%s254 + $0x38] sm:$0xf]
        %v10766 = vld [vmem:[%s254 + $0x3c] sm:$0xf]
        %v10767 = vld [vmem:[%s254 + $0x40] sm:$0xf]
        %v10768 = vld [vmem:[%s254 + $0x44] sm:$0xf]
        %v10769 = vld [vmem:[%s254 + $0x48] sm:$0xf]
        %v10770 = vld [vmem:[%s254 + $0x4c] sm:$0xf]
        %v10771 = vld [vmem:[%s254 + $0x50] sm:$0xf]
        %v10772 = vld [vmem:[%s254 + $0x54] sm:$0xf]
        %v10773 = vld [vmem:[%s254 + $0x58] sm:$0xf]
        %v10774 = vld [vmem:[%s254 + $0x5c] sm:$0xf]
        %v10775 = vld [vmem:[%s254 + $0x60] sm:$0xf]
        %v10776 = vld [vmem:[%s254 + $0x64] sm:$0xf]
        %v10777 = vld [vmem:[%s254 + $0x68] sm:$0xf]
        %v10778 = vld [vmem:[%s254 + $0x6c] sm:$0xf]
        %v10779 = vld [vmem:[%s254 + $0x70] sm:$0xf]
        %v10780 = vld [vmem:[%s254 + $0x74] sm:$0xf]
        %v10781 = vld [vmem:[%s254 + $0x78] sm:$0xf]
        %v10782 = vld [vmem:[%s254 + $0x7c] sm:$0xf]
        %v10783 = vunpack.c.l.bf16 %v10751
        %v10784 = vunpack.c.l.bf16 %v10752
        %v10785 = vunpack.c.l.bf16 %v10753
        %v10786 = vunpack.c.l.bf16 %v10754
        %v10787 = vunpack.c.l.bf16 %v10755
        %v10788 = vunpack.c.l.bf16 %v10756
        %v10789 = vunpack.c.l.bf16 %v10757
        %v10790 = vunpack.c.l.bf16 %v10758
        %v10791 = vunpack.c.l.bf16 %v10759
        %v10792 = vunpack.c.l.bf16 %v10760
        %v10793 = vunpack.c.l.bf16 %v10761
        %v10794 = vunpack.c.l.bf16 %v10762
        %v10795 = vunpack.c.l.bf16 %v10763
        %v10796 = vunpack.c.l.bf16 %v10764
        %v10797 = vunpack.c.l.bf16 %v10765
        %v10798 = vunpack.c.l.bf16 %v10766
        %v10799 = vunpack.c.l.bf16 %v10767
        %v10800 = vunpack.c.l.bf16 %v10768
        %v10801 = vunpack.c.l.bf16 %v10769
        %v10802 = vunpack.c.l.bf16 %v10770
        %v10803 = vunpack.c.l.bf16 %v10771
        %v10804 = vunpack.c.l.bf16 %v10772
        %v10805 = vunpack.c.l.bf16 %v10773
        %v10806 = vunpack.c.l.bf16 %v10774
        %v10807 = vunpack.c.l.bf16 %v10775
        %v10808 = vunpack.c.l.bf16 %v10776
        %v10809 = vunpack.c.l.bf16 %v10777
        %v10810 = vunpack.c.l.bf16 %v10778
        %v10811 = vunpack.c.l.bf16 %v10779
        %v10812 = vunpack.c.l.bf16 %v10780
        %v10813 = vunpack.c.l.bf16 %v10781
        %v10814 = vunpack.c.l.bf16 %v10782
        %v10815 = vadd.f32 %v10719, %v10783
        %v10816 = vadd.f32 %v10720, %v10784
        %v10817 = vadd.f32 %v10721, %v10785
        %v10818 = vadd.f32 %v10722, %v10786
        %v10819 = vadd.f32 %v10723, %v10787
        %v10820 = vadd.f32 %v10724, %v10788
        %v10821 = vadd.f32 %v10725, %v10789
        %v10822 = vadd.f32 %v10726, %v10790
        %v10823 = vadd.f32 %v10727, %v10791
        %v10824 = vadd.f32 %v10728, %v10792
        %v10825 = vadd.f32 %v10729, %v10793
        %v10826 = vadd.f32 %v10730, %v10794
        %v10827 = vadd.f32 %v10731, %v10795
        %v10828 = vadd.f32 %v10732, %v10796
        %v10829 = vadd.f32 %v10733, %v10797
        %v10830 = vadd.f32 %v10734, %v10798
        %v10831 = vadd.f32 %v10735, %v10799
        %v10832 = vadd.f32 %v10736, %v10800
        %v10833 = vadd.f32 %v10737, %v10801
        %v10834 = vadd.f32 %v10738, %v10802
        %v10835 = vadd.f32 %v10739, %v10803
        %v10836 = vadd.f32 %v10740, %v10804
        %v10837 = vadd.f32 %v10741, %v10805
        %v10838 = vadd.f32 %v10742, %v10806
        %v10839 = vadd.f32 %v10743, %v10807
        %v10840 = vadd.f32 %v10744, %v10808
        %v10841 = vadd.f32 %v10745, %v10809
        %v10842 = vadd.f32 %v10746, %v10810
        %v10843 = vadd.f32 %v10747, %v10811
        %v10844 = vadd.f32 %v10748, %v10812
        %v10845 = vadd.f32 %v10749, %v10813
        %v10846 = vadd.f32 %v10750, %v10814
        %v10847 = vmax.f32 %v10815, 0.0
        %v10848 = vmax.f32 %v10816, 0.0
        %v10849 = vmax.f32 %v10817, 0.0
        %v10850 = vmax.f32 %v10818, 0.0
        %v10851 = vmax.f32 %v10819, 0.0
        %v10852 = vmax.f32 %v10820, 0.0
        %v10853 = vmax.f32 %v10821, 0.0
        %v10854 = vmax.f32 %v10822, 0.0
        %v10855 = vmax.f32 %v10823, 0.0
        %v10856 = vmax.f32 %v10824, 0.0
        %v10857 = vmax.f32 %v10825, 0.0
        %v10858 = vmax.f32 %v10826, 0.0
        %v10859 = vmax.f32 %v10827, 0.0
        %v10860 = vmax.f32 %v10828, 0.0
        %v10861 = vmax.f32 %v10829, 0.0
        %v10862 = vmax.f32 %v10830, 0.0
        %v10863 = vmax.f32 %v10831, 0.0
        %v10864 = vmax.f32 %v10832, 0.0
        %v10865 = vmax.f32 %v10833, 0.0
        %v10866 = vmax.f32 %v10834, 0.0
        %v10867 = vmax.f32 %v10835, 0.0
        %v10868 = vmax.f32 %v10836, 0.0
        %v10869 = vmax.f32 %v10837, 0.0
        %v10870 = vmax.f32 %v10838, 0.0
        %v10871 = vmax.f32 %v10839, 0.0
        %v10872 = vmax.f32 %v10840, 0.0
        %v10873 = vmax.f32 %v10841, 0.0
        %v10874 = vmax.f32 %v10842, 0.0
        %v10875 = vmax.f32 %v10843, 0.0
        %v10876 = vmax.f32 %v10844, 0.0
        %v10877 = vmax.f32 %v10845, 0.0
        %v10878 = vmax.f32 %v10846, 0.0
        %v10879 = vpack.c.bf16 %v10848, %v10847
        %v10880 = vpack.c.bf16 %v10850, %v10849
        %v10881 = vpack.c.bf16 %v10852, %v10851
        %v10882 = vpack.c.bf16 %v10854, %v10853
        %v10883 = vpack.c.bf16 %v10856, %v10855
        %v10884 = vpack.c.bf16 %v10858, %v10857
        %v10885 = vpack.c.bf16 %v10860, %v10859
        %v10886 = vpack.c.bf16 %v10862, %v10861
        %v10887 = vpack.c.bf16 %v10864, %v10863
        %v10888 = vpack.c.bf16 %v10866, %v10865
        %v10889 = vpack.c.bf16 %v10868, %v10867
        %v10890 = vpack.c.bf16 %v10870, %v10869
        %v10891 = vpack.c.bf16 %v10872, %v10871
        %v10892 = vpack.c.bf16 %v10874, %v10873
        %v10893 = vpack.c.bf16 %v10876, %v10875
        %v10894 = vpack.c.bf16 %v10878, %v10877
        %v10911 = vunpack.c.l.b16 %v10879
        %v10912 = vunpack.c.h.b16 %v10879
        %v10913 = vunpack.c.l.b16 %v10880
        %v10914 = vunpack.c.h.b16 %v10880
        %v10915 = vunpack.c.l.b16 %v10881
        %v10916 = vunpack.c.h.b16 %v10881
        %v10917 = vunpack.c.l.b16 %v10882
        %v10918 = vunpack.c.h.b16 %v10882
        %v10919 = vunpack.c.l.b16 %v10883
        %v10920 = vunpack.c.h.b16 %v10883
        %v10921 = vunpack.c.l.b16 %v10884
        %v10922 = vunpack.c.h.b16 %v10884
        %v10923 = vunpack.c.l.b16 %v10885
        %v10924 = vunpack.c.h.b16 %v10885
        %v10925 = vunpack.c.l.b16 %v10886
        %v10926 = vunpack.c.h.b16 %v10886
        %v10927 = vunpack.c.l.b16 %v10887
        %v10928 = vunpack.c.h.b16 %v10887
        %v10929 = vunpack.c.l.b16 %v10888
        %v10930 = vunpack.c.h.b16 %v10888
        %v10931 = vunpack.c.l.b16 %v10889
        %v10932 = vunpack.c.h.b16 %v10889
        %v10933 = vunpack.c.l.b16 %v10890
        %v10934 = vunpack.c.h.b16 %v10890
        %v10935 = vunpack.c.l.b16 %v10891
        %v10936 = vunpack.c.h.b16 %v10891
        %v10937 = vunpack.c.l.b16 %v10892
        %v10938 = vunpack.c.h.b16 %v10892
        %v10939 = vunpack.c.l.b16 %v10893
        %v10940 = vunpack.c.h.b16 %v10893
        %v10941 = vunpack.c.l.b16 %v10894
        %v10942 = vunpack.c.h.b16 %v10894
        %v10943 = vpack.c.b16 %v10911, %v10911
        %v10944 = vpack.c.b16 %v10912, %v10912
        %v10945 = vpack.c.b16 %v10913, %v10913
        %v10946 = vpack.c.b16 %v10914, %v10914
        %v10947 = vpack.c.b16 %v10915, %v10915
        %v10948 = vpack.c.b16 %v10916, %v10916
        %v10949 = vpack.c.b16 %v10917, %v10917
        %v10950 = vpack.c.b16 %v10918, %v10918
        %v10951 = vpack.c.b16 %v10919, %v10919
        %v10952 = vpack.c.b16 %v10920, %v10920
        %v10953 = vpack.c.b16 %v10921, %v10921
        %v10954 = vpack.c.b16 %v10922, %v10922
        %v10955 = vpack.c.b16 %v10923, %v10923
        %v10956 = vpack.c.b16 %v10924, %v10924
        %v10957 = vpack.c.b16 %v10925, %v10925
        %v10958 = vpack.c.b16 %v10926, %v10926
        %v10959 = vpack.c.b16 %v10927, %v10927
        %v10960 = vpack.c.b16 %v10928, %v10928
        %v10961 = vpack.c.b16 %v10929, %v10929
        %v10962 = vpack.c.b16 %v10930, %v10930
        %v10963 = vpack.c.b16 %v10931, %v10931
        %v10964 = vpack.c.b16 %v10932, %v10932
        %v10965 = vpack.c.b16 %v10933, %v10933
        %v10966 = vpack.c.b16 %v10934, %v10934
        %v10967 = vpack.c.b16 %v10935, %v10935
        %v10968 = vpack.c.b16 %v10936, %v10936
        %v10969 = vpack.c.b16 %v10937, %v10937
        %v10970 = vpack.c.b16 %v10938, %v10938
        %v10971 = vpack.c.b16 %v10939, %v10939
        %v10972 = vpack.c.b16 %v10940, %v10940
        %v10973 = vpack.c.b16 %v10941, %v10941
        %v10974 = vpack.c.b16 %v10942, %v10942
        %11007 = vst.msk [vmem:[%s296] sm:$0xf] %vm298, %v10943
        %11008 = vst.msk [vmem:[%s296 + $0x4] sm:$0xf] %vm298, %v10944
        %11009 = vst.msk [vmem:[%s296 + $0x8] sm:$0xf] %vm298, %v10945
        %11010 = vst.msk [vmem:[%s296 + $0xc] sm:$0xf] %vm298, %v10946
        %11011 = vst.msk [vmem:[%s296 + $0x10] sm:$0xf] %vm298, %v10947
        %11012 = vst.msk [vmem:[%s296 + $0x14] sm:$0xf] %vm298, %v10948
        %11013 = vst.msk [vmem:[%s296 + $0x18] sm:$0xf] %vm298, %v10949
        %11014 = vst.msk [vmem:[%s296 + $0x1c] sm:$0xf] %vm298, %v10950
        %11015 = vst.msk [vmem:[%s296 + $0x20] sm:$0xf] %vm298, %v10951
        %11016 = vst.msk [vmem:[%s296 + $0x24] sm:$0xf] %vm298, %v10952
        %11017 = vst.msk [vmem:[%s296 + $0x28] sm:$0xf] %vm298, %v10953
        %11018 = vst.msk [vmem:[%s296 + $0x2c] sm:$0xf] %vm298, %v10954
        %11019 = vst.msk [vmem:[%s296 + $0x30] sm:$0xf] %vm298, %v10955
        %11020 = vst.msk [vmem:[%s296 + $0x34] sm:$0xf] %vm298, %v10956
        %11021 = vst.msk [vmem:[%s296 + $0x38] sm:$0xf] %vm298, %v10957
        %11022 = vst.msk [vmem:[%s296 + $0x3c] sm:$0xf] %vm298, %v10958
        %11023 = vst.msk [vmem:[%s296 + $0x40] sm:$0xf] %vm298, %v10959
        %11024 = vst.msk [vmem:[%s296 + $0x44] sm:$0xf] %vm298, %v10960
        %11025 = vst.msk [vmem:[%s296 + $0x48] sm:$0xf] %vm298, %v10961
        %11026 = vst.msk [vmem:[%s296 + $0x4c] sm:$0xf] %vm298, %v10962
        %11027 = vst.msk [vmem:[%s296 + $0x50] sm:$0xf] %vm298, %v10963
        %11028 = vst.msk [vmem:[%s296 + $0x54] sm:$0xf] %vm298, %v10964
        %11029 = vst.msk [vmem:[%s296 + $0x58] sm:$0xf] %vm298, %v10965
        %11030 = vst.msk [vmem:[%s296 + $0x5c] sm:$0xf] %vm298, %v10966
        %11031 = vst.msk [vmem:[%s296 + $0x60] sm:$0xf] %vm298, %v10967
        %11032 = vst.msk [vmem:[%s296 + $0x64] sm:$0xf] %vm298, %v10968
        %11033 = vst.msk [vmem:[%s296 + $0x68] sm:$0xf] %vm298, %v10969
        %11034 = vst.msk [vmem:[%s296 + $0x6c] sm:$0xf] %vm298, %v10970
        %11035 = vst.msk [vmem:[%s296 + $0x70] sm:$0xf] %vm298, %v10971
        %11036 = vst.msk [vmem:[%s296 + $0x74] sm:$0xf] %vm298, %v10972
        %11037 = vst.msk [vmem:[%s296 + $0x78] sm:$0xf] %vm298, %v10973
        %11038 = vst.msk [vmem:[%s296 + $0x7c] sm:$0xf] %vm298, %v10974
        %s11039 = sand.u32 %s142, 1
        %s11040 = scalar_lea.sflag [#allocation6], %s11039
        %s11041 = sand.u32 %s142, 1
        %s11042 = smul.addr %s11041, 128
        %s11043 = scalar_lea.vmem [#allocation13], %s11042
        // Predicated region
        $region61: #{basic_block_forward.1} parent=39 // pred_check
          %p11044 = pneg %p152
        $region62: #{basic_block_forward.1} parent=39 // pred_check_branch
          %11046 = sbr.rel (%p11044) target = $region64
        $region63: #{basic_block_forward.1} parent=39 // pred_region
          %s11048 = ssub.s32 2048, 2048
          %11049 = vsyncadd %s11040, %s11048
          %s11050 = smul.addr %s24, 32
          %s11051 = smul.addr %s11050, 64
          %s11052 = scalar_lea.hbm %s5, %s11051
          %s11053 = sshll.u32 %s11043, 4
          %s11054 = int_to_ptr.vmem [resolvable:$true] %s11053
          %11059 = dma.vmem_to_hbm [thread:$0]  %s11054, 2048, %s11052, %s11040, 64, 64, 4
        $region64: #{basic_block_forward.1} parent=39 // pred_fallthru
          _
      $region40: #{basic_block_forward.1} parent=5 // pred_fallthru
        _
      %p11060 = scmp.le.s32.totalorder 2, %s19
      // Predicated region
      $region65: #{basic_block_forward.1} parent=5 // pred_check
        %p11061 = pneg %p11060
      $region66: #{basic_block_forward.1} parent=5 // pred_check_branch
        %11063 = sbr.rel (%p11061) target = $region68
      $region67: #{basic_block_forward.1} parent=5 // pred_region
        %s11064 = ssub.s32 %s19, 2
        // Predicated region
        $region69: #{basic_block_forward.1} parent=67 // pred_check
          %p11065 = pneg %p158
        $region70: #{basic_block_forward.1} parent=67 // pred_check_branch
          %11067 = sbr.rel (%p11065) target = $region72
        $region71: #{basic_block_forward.1} parent=67 // pred_region
          %s11068 = sand.u32 %s143, 1
          %s11069 = scalar_lea.sflag [#allocation6], %s11068
          %s11070 = sand.u32 %s143, 1
          %s11071 = smul.addr %s11070, 128
          %s11072 = scalar_lea.vmem [#allocation13], %s11071
          %11073 = dma.done %s11069, 2048
        $region72: #{basic_block_forward.1} parent=67 // pred_fallthru
          _
      $region68: #{basic_block_forward.1} parent=5 // pred_fallthru
        _
    $region6: #{basic_block_forward.1} parent=1 // loop_footer
      %s23 = sadd.s32 1, %s19
    $region7: #{basic_block_forward.1} parent=1 // loop_footer_branch
      %18 = sbr.rel target = $region3
    $region8: #{basic_block_forward.1} parent=1 // loop_exit
      _
    %11074 = vsyncpa [#allocation5], 1
    %s11075 = scalar_lea.sflag [#allocation5], 1
    %11076 = vsyncpa %s11075, 1
    %11077 = vsyncpa [#allocation8], 1
    %11078 = vsyncpa [#allocation11], 1
    %11079 = vsyncpa [#allocation6], 1
    %s11080 = scalar_lea.sflag [#allocation6], 1
    %11081 = vsyncpa %s11080, 1

</llo_original>
